<compile_context>
chip_gen: v7x
topology: tpu7x:2x2x1
jax: 0.10.0
libtpu: 0.0.40
codegen_flags: <defaults>
</compile_context>

<pallas_src>
import math

import jax
import jax.numpy as jnp
from jax.experimental import pallas as pl
from jax.experimental.pallas import tpu as pltpu

COL0 = 8  # canvas column offset of the activation interior (f32 sublane tile)


def _wpad(w):
    """Canvas width: col COL0-1 = left halo, [COL0, COL0+w) data, col COL0+w = right halo."""
    return ((w + 9 + 7) // 8) * 8


# ---------------------------------------------------------------------------
# Fused kernel builder (static batch block + spatial sizes in the closure).
# ---------------------------------------------------------------------------
def _build_kernel(TB, H1, W1):
    H2, W2 = H1 // 2, W1 // 2          # after pool(2,2)
    H3, W3 = H2 // 2, W2 // 2          # after pool(2,2)
    H4, W4 = H3, W3 // 2               # after pool(1,2)

    def conv_taps(cv_ref, w_ref, b_ref, h, w):
        """3x3 conv (pad=1) + bias + ReLU as nine accumulated per-tap MXU matmuls."""
        cin = cv_ref.shape[-1]
        m = TB * h * w
        xp = cv_ref[...]                                        # (TB, h+2, wpad, cin) f32
        acc = None
        for dy in range(3):
            for dx in range(3):
                lhs = xp[:, dy:dy + h, COL0 - 1 + dx:COL0 - 1 + dx + w, :]
                lhs = lhs.reshape(m, cin).astype(jnp.bfloat16)
                part = jnp.dot(lhs, w_ref[dy * 3 + dx],
                               preferred_element_type=jnp.float32)
                acc = part if acc is None else acc + part
        return jnp.maximum(acc + b_ref[...], 0.0)               # (m, cout) f32

    def pool_w2(y, rows, w):
        """Max-pool width by 2; y is (rows, w, c)."""
        c = y.shape[-1]
        y = y.reshape(rows, w // 2, 2, c)
        return jnp.maximum(y[:, :, 0, :], y[:, :, 1, :])        # (rows, w//2, c)

    def pool_h2(y, rows, w2):
        """Max-pool height by 2; y is (rows, w2, c) with rows = TB*h (h even)."""
        c = y.shape[-1]
        y = y.reshape(rows // 2, 2, w2, c)
        return jnp.maximum(y[:, 0], y[:, 1])                    # (rows//2, w2, c)

    def stash(cv_ref, val, h, w):
        """Park the activation at (row 1, col COL0); zero only the halo strips
        the taps actually read (rows 0 and h+1, cols COL0-1 and COL0+w)."""
        wp = cv_ref.shape[2]
        c = cv_ref.shape[3]
        zrow = jnp.zeros((TB, 1, wp, c), cv_ref.dtype)
        zcol = jnp.zeros((TB, h, 1, c), cv_ref.dtype)
        cv_ref[:, pl.ds(0, 1), :, :] = zrow                     # top halo row
        cv_ref[:, pl.ds(h + 1, 1), :, :] = zrow                 # bottom halo row
        cv_ref[:, pl.ds(1, h), pl.ds(COL0 - 1, 1), :] = zcol    # left halo col
        cv_ref[:, pl.ds(1, h), pl.ds(COL0 + w, 1), :] = zcol    # right halo col
        cv_ref[:, pl.ds(1, h), pl.ds(COL0, w), :] = val         # interior (written once)

    def kernel(xp_ref, w1_ref, b1_ref, w2_ref, b2_ref, w3_ref, b3_ref,
               w4_ref, b4_ref, mt_ref, o_ref, cv2, cv3, cv4):
        # ---- layer 1: compressed-K conv (K = 9 taps * 3 ch -> 32) + relu + pool(2,2)
        m1 = TB * H1 * W1
        y = jnp.dot(xp_ref[...].reshape(m1, xp_ref.shape[-1]), w1_ref[...],
                    preferred_element_type=jnp.float32)
        y = jnp.maximum(y + b1_ref[...], 0.0)                       # (m1, 64)
        y = pool_w2(y.reshape(TB * H1, W1, 64), TB * H1, W1)
        y = pool_h2(y, TB * H1, W2)                                 # (TB*H2, W2, 64)
        stash(cv2, y.reshape(TB, H2, W2, 64), H2, W2)

        # ---- layer 2: conv(64->128) + relu + pool(2,2)
        y = conv_taps(cv2, w2_ref, b2_ref, H2, W2)                  # (TB*H2*W2, 128)
        y = pool_w2(y.reshape(TB * H2, W2, 128), TB * H2, W2)
        y = pool_h2(y, TB * H2, W3)                                 # (TB*H3, W3, 128)
        stash(cv3, y.reshape(TB, H3, W3, 128), H3, W3)

        # ---- layer 3: conv(128->256) + relu + pool(1,2)
        y = conv_taps(cv3, w3_ref, b3_ref, H3, W3)                  # (TB*H3*W3, 256)
        y = pool_w2(y.reshape(TB * H3, W3, 256), TB * H3, W3)       # (TB*H3, W4, 256)
        stash(cv4, y.reshape(TB, H4, W4, 256), H4, W4)

        # ---- layer 4: conv(256->256) + relu (no pool)
        y = conv_taps(cv4, w4_ref, b4_ref, H4, W4)                  # (TB*H4*W4, 256)
        a4 = y.reshape(TB, H4, W4, 256)

        # ---- linear interp W4 -> 40; emit a lane-dense (40, H4*256) slab per
        #      image (columns h*256 + c; the wrapper restores c*H4 + h order).
        for t in range(TB):
            acat = jnp.concatenate([a4[t, hh] for hh in range(H4)], axis=-1)
            o_ref[t] = jnp.dot(mt_ref[...], acat,
                               preferred_element_type=jnp.float32
                               ).astype(o_ref.dtype)

    return kernel, (H2, W2, H3, W3, H4, W4)


# ---------------------------------------------------------------------------
# Host-side (XLA) packing helpers — cheap layout ops, run once per call.
# ---------------------------------------------------------------------------
def _im2col_conv1(x_nchw):
    """NCHW (B,3,H,W) -> (B, H*W, 32) bf16 im2col patches, lane order (dy,dx,cin)."""
    B, C, H, W = x_nchw.shape
    x = jnp.transpose(x_nchw, (0, 2, 3, 1)).astype(jnp.float32)     # NHWC
    xp = jnp.pad(x, ((0, 0), (1, 1), (1, 1), (0, 0)))
    taps = [xp[:, dy:dy + H, dx:dx + W, :] for dy in range(3) for dx in range(3)]
    p = jnp.concatenate(taps, axis=-1)                              # (B,H,W,27)
    p = jnp.pad(p, ((0, 0), (0, 0), (0, 0), (0, 32 - 9 * C)))
    return p.reshape(B, H * W, 32).astype(jnp.bfloat16)


def _pack_conv1(w_hwio, bias):
    """(3,3,3,64) -> (32,64) bf16 compressed-K weight + (1,64) f32 bias."""
    cout = w_hwio.shape[-1]
    w = w_hwio.astype(jnp.float32).reshape(27, cout)
    w = jnp.pad(w, ((0, 5), (0, 0)))
    return w.astype(jnp.bfloat16), bias.astype(jnp.float32).reshape(1, cout)


def _pack_conv(w_hwio, bias):
    """(3,3,Cin,Cout) -> (9,Cin,Cout) bf16 per-tap weights + (1,Cout) f32 bias."""
    kh, kw, cin, cout = w_hwio.shape
    w = w_hwio.astype(jnp.float32).reshape(kh * kw, cin, cout)
    return w.astype(jnp.bfloat16), bias.astype(jnp.float32).reshape(1, cout)


def _interp_matrix_t(w_in, w_out):
    """F.interpolate(mode='linear', align_corners=False) as a (w_out, w_in) matrix."""
    scale = w_in / w_out
    j = jnp.arange(w_out, dtype=jnp.float32)
    src = jnp.maximum(scale * (j + 0.5) - 0.5, 0.0)
    i0 = jnp.clip(jnp.floor(src).astype(jnp.int32), 0, w_in - 1)
    i1 = jnp.minimum(i0 + 1, w_in - 1)
    lam = src - i0.astype(jnp.float32)
    jj = jnp.arange(w_out)
    m = jnp.zeros((w_out, w_in), jnp.float32)
    m = m.at[jj, i0].add(1.0 - lam)
    m = m.at[jj, i1].add(lam)
    return m


def _pick_tb(b, m_deep, per_img_bytes, budget=24 << 20):
    """Batch block: aim for >=256 matmul rows in the deepest conv, cap by VMEM."""
    want = max(1, -(-256 // max(m_deep, 1)))
    cap = max(1, budget // max(per_img_bytes, 1))
    tb = max(1, min(b, want, cap))
    while b % tb:
        tb -= 1
    return tb


# ---------------------------------------------------------------------------
# Parameters (deterministic uniform init, HWIO layout).
# ---------------------------------------------------------------------------
def init_params(key):
    dims = [(3, 64), (64, 128), (128, 256), (256, 256)]
    params = []
    for cin, cout in dims:
        kw_, kb_, key = jax.random.split(key, 3)
        bound = 1.0 / jnp.sqrt(jnp.float32(cin * 9))
        w = jax.random.uniform(kw_, (3, 3, cin, cout), jnp.float32, -bound, bound)
        b = jax.random.uniform(kb_, (cout,), jnp.float32, -bound, bound)
        params.append((w, b))
    return params


# ---------------------------------------------------------------------------
# Full forward pass (matches FixedCNN.forward): NCHW in -> (B, 40, 256*H//4) out.
# ---------------------------------------------------------------------------
def fixed_cnn_forward(x_nchw, params, tb=None):
    (w1, b1), (w2, b2), (w3, b3), (w4, b4) = params
    B, Cin, H1, W1 = x_nchw.shape
    assert Cin == 3 and H1 % 4 == 0 and W1 % 8 == 0, "shape must pool exactly"

    H2, W2 = H1 // 2, W1 // 2
    H3, W3 = H2 // 2, W2 // 2
    H4, W4 = H3, W3 // 2
    CH = 256 * H4

    cv_shapes = [(H2 + 2, _wpad(W2), 64),
                 (H3 + 2, _wpad(W3), 128),
                 (H4 + 2, _wpad(W4), 256)]
    per_img = (2 * H1 * W1 * 32                                    # bf16 conv1 pattern
               + 4 * 40 * CH                                       # f32 output slab
               + 4 * sum(math.prod(s) for s in cv_shapes)          # f32 canvases
               + 8 * (H2 * W2 * 128 + H3 * W3 * 256 + H4 * W4 * 256))
    if tb is None:
        tb = _pick_tb(B, H4 * W4, per_img)
    assert B % tb == 0, "batch block must divide the batch"
    grid = (B // tb,)    # on v7x prefer an even number of steps (2 TensorCores)

    kernel, _ = _build_kernel(tb, H1, W1)

    xpat = _im2col_conv1(x_nchw)                    # (B, H1*W1, 32) bf16
    w1m, b1m = _pack_conv1(w1, b1)                  # (32,64) bf16 / (1,64) f32
    w2m, b2m = _pack_conv(w2, b2)                   # (9,64,128) bf16
    w3m, b3m = _pack_conv(w3, b3)                   # (9,128,256) bf16
    w4m, b4m = _pack_conv(w4, b4)                   # (9,256,256) bf16
    mt = _interp_matrix_t(W4, 40)                   # (40, W4) f32

    const2 = lambda b: (0, 0)
    const3 = lambda b: (0, 0, 0)
    grid_spec = pltpu.PrefetchScalarGridSpec(
        num_scalar_prefetch=0,
        grid=grid,
        in_specs=[
            pl.BlockSpec((tb, H1 * W1, 32), lambda b: (b, 0, 0)),
            pl.BlockSpec(w1m.shape, const2), pl.BlockSpec(b1m.shape, const2),
            pl.BlockSpec(w2m.shape, const3), pl.BlockSpec(b2m.shape, const2),
            pl.BlockSpec(w3m.shape, const3), pl.BlockSpec(b3m.shape, const2),
            pl.BlockSpec(w4m.shape, const3), pl.BlockSpec(b4m.shape, const2),
            pl.BlockSpec(mt.shape, const2),
        ],
        out_specs=pl.BlockSpec((tb, 40, CH), lambda b: (b, 0, 0)),
        scratch_shapes=[pltpu.VMEM((tb,) + s, jnp.float32) for s in cv_shapes],
    )

    # VMEM budget from actual buffer sizes (+ headroom for pipeline buffers and
    # matmul temporaries) instead of a fixed 32 MiB.
    weight_bytes = 2 * (math.prod(w1m.shape) + math.prod(w2m.shape)
                        + math.prod(w3m.shape) + math.prod(w4m.shape))
    misc_bytes = 4 * (math.prod(b1m.shape) + math.prod(b2m.shape)
                      + math.prod(b3m.shape) + math.prod(b4m.shape)
                      + math.prod(mt.shape))
    resident = 2 * (weight_bytes + misc_bytes) + tb * per_img
    vmem_limit = int(min(64 * 2 ** 20, 2 * resident + 8 * 2 ** 20))

    out_hm = pl.pallas_call(
        kernel,
        out_shape=jax.ShapeDtypeStruct((B, 40, CH), jnp.float32),
        grid_spec=grid_spec,
        compiler_params=pltpu.CompilerParams(
            dimension_semantics=("parallel",),
            vmem_limit_bytes=vmem_limit,
        ),
    )(xpat, w1m, b1m, w2m, b2m, w3m, b3m, w4m, b4m, mt)

    # Kernel emits columns in h-major order (h*256 + c); the module's
    # x.view(b, c*h, w) order is c-major (c*H4 + h).  Tiny layout fixup in XLA.
    return out_hm.reshape(B, 40, H4, 256).transpose(0, 1, 3, 2).reshape(B, 40, CH)


if __name__ == "__main__":
    key = jax.random.PRNGKey(0)
    kx, kp = jax.random.split(key)
    # Small NCHW input consistent with the module (3 input channels).
    x = jax.random.normal(kx, (4, 3, 8, 16), jnp.float32)
    params = init_params(kp)

    fwd = jax.jit(fixed_cnn_forward, static_argnums=(2,))
    out = fwd(x, params, 2)          # TB=2 -> grid=(2,): batched M + even grid
    jax.block_until_ready(out)

    # Features: (4, 256, 2, 2) -> view (4, 512, 2) -> interp 40 -> (4, 40, 512)
    assert out.shape == (4, 40, 256 * 2), out.shape
    assert out.dtype == jnp.float32
    assert bool(jnp.all(jnp.isfinite(out)))
    print("KERNEL_OK")
</pallas_src>

<mosaic_0001>
module attributes {stable_mosaic.version = 11 : i64} {
  func.func @kernel(%arg0: i32, %arg1: memref<2x128x32xbf16, #tpu.memory_space<vmem>>, %arg2: memref<32x64xbf16, #tpu.memory_space<vmem>>, %arg3: memref<1x64xf32, #tpu.memory_space<vmem>>, %arg4: memref<9x64x128xbf16, #tpu.memory_space<vmem>>, %arg5: memref<1x128xf32, #tpu.memory_space<vmem>>, %arg6: memref<9x128x256xbf16, #tpu.memory_space<vmem>>, %arg7: memref<1x256xf32, #tpu.memory_space<vmem>>, %arg8: memref<9x256x256xbf16, #tpu.memory_space<vmem>>, %arg9: memref<1x256xf32, #tpu.memory_space<vmem>>, %arg10: memref<40x2xf32, #tpu.memory_space<vmem>>, %arg11: memref<2x40x512xf32, #tpu.memory_space<vmem>>, %arg12: memref<2x6x24x64xf32, #tpu.memory_space<vmem>>, %arg13: memref<2x4x16x128xf32, #tpu.memory_space<vmem>>, %arg14: memref<2x4x16x256xf32, #tpu.memory_space<vmem>>) attributes {dimension_semantics = [#tpu.dimension_semantics<parallel>], iteration_bounds = array<i64: 2>, scalar_prefetch = 0 : i64, scratch_operands = 3 : i64, tpu.core_type = #tpu.core_type<tc>, window_params = [{transform_indices = @transform_0, window_bounds = array<i64: 2, 128, 32>}, {pipeline_mode = #tpu.pipeline_mode<synchronous>, transform_indices = @transform_1, window_bounds = array<i64: 32, 64>}, {pipeline_mode = #tpu.pipeline_mode<synchronous>, transform_indices = @transform_2, window_bounds = array<i64: 1, 64>}, {pipeline_mode = #tpu.pipeline_mode<synchronous>, transform_indices = @transform_3, window_bounds = array<i64: 9, 64, 128>}, {pipeline_mode = #tpu.pipeline_mode<synchronous>, transform_indices = @transform_4, window_bounds = array<i64: 1, 128>}, {pipeline_mode = #tpu.pipeline_mode<synchronous>, transform_indices = @transform_5, window_bounds = array<i64: 9, 128, 256>}, {pipeline_mode = #tpu.pipeline_mode<synchronous>, transform_indices = @transform_6, window_bounds = array<i64: 1, 256>}, {pipeline_mode = #tpu.pipeline_mode<synchronous>, transform_indices = @transform_7, window_bounds = array<i64: 9, 256, 256>}, {pipeline_mode = #tpu.pipeline_mode<synchronous>, transform_indices = @transform_8, window_bounds = array<i64: 1, 256>}, {pipeline_mode = #tpu.pipeline_mode<synchronous>, transform_indices = @transform_9, window_bounds = array<i64: 40, 2>}, {transform_indices = @transform_10, window_bounds = array<i64: 2, 40, 512>}]} {
    %c0 = arith.constant 0 : index
    %c0_0 = arith.constant 0 : index
    %c0_1 = arith.constant 0 : index
    %0 = vector.load %arg1[%c0, %c0_0, %c0_1] : memref<2x128x32xbf16, #tpu.memory_space<vmem>>, vector<2x128x32xbf16>
    %1 = vector.shape_cast %0 : vector<2x128x32xbf16> to vector<256x32xbf16>
    %c0_2 = arith.constant 0 : index
    %c0_3 = arith.constant 0 : index
    %2 = vector.load %arg2[%c0_2, %c0_3] : memref<32x64xbf16, #tpu.memory_space<vmem>>, vector<32x64xbf16>
    %cst = arith.constant dense<0.000000e+00> : vector<256x64xf32>
    %3 = tpu.matmul %1, %2, %cst {dimension_numbers = #tpu.dot_dimension_numbers<[1], [0], [0], [1], [0, 0, 1, 1], [], []>} : vector<256x32xbf16>, vector<32x64xbf16>, vector<256x64xf32> -> vector<256x64xf32>
    %c0_4 = arith.constant 0 : index
    %c0_5 = arith.constant 0 : index
    %4 = vector.load %arg3[%c0_4, %c0_5] : memref<1x64xf32, #tpu.memory_space<vmem>>, vector<1x64xf32>
    %5 = vector.broadcast %4 : vector<1x64xf32> to vector<256x64xf32>
    %6 = arith.addf %3, %5 : vector<256x64xf32>
    %cst_6 = arith.constant 0.000000e+00 : f32
    %7 = vector.broadcast %cst_6 : f32 to vector<256x64xf32>
    %8 = arith.maximumf %6, %7 : vector<256x64xf32>
    %9 = vector.shape_cast %8 : vector<256x64xf32> to vector<16x16x64xf32>
    %10 = vector.shape_cast %9 : vector<16x16x64xf32> to vector<16x8x2x64xf32>
    %11 = vector.extract_strided_slice %10 {offsets = [0, 0, 0, 0], sizes = [16, 8, 1, 64], strides = [1, 1, 1, 1]} : vector<16x8x2x64xf32> to vector<16x8x1x64xf32>
    %12 = vector.shape_cast %11 : vector<16x8x1x64xf32> to vector<16x8x64xf32>
    %13 = vector.extract_strided_slice %10 {offsets = [0, 0, 1, 0], sizes = [16, 8, 1, 64], strides = [1, 1, 1, 1]} : vector<16x8x2x64xf32> to vector<16x8x1x64xf32>
    %14 = vector.shape_cast %13 : vector<16x8x1x64xf32> to vector<16x8x64xf32>
    %15 = arith.maximumf %12, %14 : vector<16x8x64xf32>
    %16 = vector.shape_cast %15 : vector<16x8x64xf32> to vector<8x2x8x64xf32>
    %17 = vector.extract_strided_slice %16 {offsets = [0, 0, 0, 0], sizes = [8, 1, 8, 64], strides = [1, 1, 1, 1]} : vector<8x2x8x64xf32> to vector<8x1x8x64xf32>
    %18 = vector.shape_cast %17 : vector<8x1x8x64xf32> to vector<8x8x64xf32>
    %19 = vector.extract_strided_slice %16 {offsets = [0, 1, 0, 0], sizes = [8, 1, 8, 64], strides = [1, 1, 1, 1]} : vector<8x2x8x64xf32> to vector<8x1x8x64xf32>
    %20 = vector.shape_cast %19 : vector<8x1x8x64xf32> to vector<8x8x64xf32>
    %21 = arith.maximumf %18, %20 : vector<8x8x64xf32>
    %22 = vector.shape_cast %21 : vector<8x8x64xf32> to vector<2x4x8x64xf32>
    %cst_7 = arith.constant 0.000000e+00 : f32
    %23 = vector.broadcast %cst_7 : f32 to vector<2x1x24x64xf32>
    %cst_8 = arith.constant 0.000000e+00 : f32
    %24 = vector.broadcast %cst_8 : f32 to vector<2x4x1x64xf32>
    %c0_9 = arith.constant 0 : index
    %c0_10 = arith.constant 0 : index
    %c0_11 = arith.constant 0 : index
    %c0_12 = arith.constant 0 : index
    %25 = vector.load %arg12[%c0_9, %c0_10, %c0_11, %c0_12] : memref<2x6x24x64xf32, #tpu.memory_space<vmem>>, vector<2x1x24x64xf32>
    tpu.vector_store %arg12[%c0_9, %c0_10, %c0_11, %c0_12], %23 {strides = array<i32>} : memref<2x6x24x64xf32, #tpu.memory_space<vmem>>, vector<2x1x24x64xf32>,
    %c0_13 = arith.constant 0 : index
    %c5 = arith.constant 5 : index
    %c0_14 = arith.constant 0 : index
    %c0_15 = arith.constant 0 : index
    %26 = vector.load %arg12[%c0_13, %c5, %c0_14, %c0_15] : memref<2x6x24x64xf32, #tpu.memory_space<vmem>>, vector<2x1x24x64xf32>
    tpu.vector_store %arg12[%c0_13, %c5, %c0_14, %c0_15], %23 {strides = array<i32>} : memref<2x6x24x64xf32, #tpu.memory_space<vmem>>, vector<2x1x24x64xf32>,
    %c0_16 = arith.constant 0 : index
    %c1 = arith.constant 1 : index
    %c7 = arith.constant 7 : index
    %c0_17 = arith.constant 0 : index
    %27 = vector.load %arg12[%c0_16, %c1, %c7, %c0_17] : memref<2x6x24x64xf32, #tpu.memory_space<vmem>>, vector<2x4x1x64xf32>
    tpu.vector_store %arg12[%c0_16, %c1, %c7, %c0_17], %24 {strides = array<i32>} : memref<2x6x24x64xf32, #tpu.memory_space<vmem>>, vector<2x4x1x64xf32>,
    %c0_18 = arith.constant 0 : index
    %c1_19 = arith.constant 1 : index
    %c16 = arith.constant 16 : index
    %c0_20 = arith.constant 0 : index
    %28 = vector.load %arg12[%c0_18, %c1_19, %c16, %c0_20] : memref<2x6x24x64xf32, #tpu.memory_space<vmem>>, vector<2x4x1x64xf32>
    tpu.vector_store %arg12[%c0_18, %c1_19, %c16, %c0_20], %24 {strides = array<i32>} : memref<2x6x24x64xf32, #tpu.memory_space<vmem>>, vector<2x4x1x64xf32>,
    %c0_21 = arith.constant 0 : index
    %c1_22 = arith.constant 1 : index
    %c8 = arith.constant 8 : index
    %c0_23 = arith.constant 0 : index
    %29 = vector.load %arg12[%c0_21, %c1_22, %c8, %c0_23] : memref<2x6x24x64xf32, #tpu.memory_space<vmem>>, vector<2x4x8x64xf32>
    tpu.vector_store %arg12[%c0_21, %c1_22, %c8, %c0_23], %22 {strides = array<i32>} : memref<2x6x24x64xf32, #tpu.memory_space<vmem>>, vector<2x4x8x64xf32>,
    %c0_24 = arith.constant 0 : index
    %c0_25 = arith.constant 0 : index
    %c0_26 = arith.constant 0 : index
    %c0_27 = arith.constant 0 : index
    %30 = vector.load %arg12[%c0_24, %c0_25, %c0_26, %c0_27] : memref<2x6x24x64xf32, #tpu.memory_space<vmem>>, vector<2x6x24x64xf32>
    %31 = vector.extract_strided_slice %30 {offsets = [0, 0, 7, 0], sizes = [2, 4, 8, 64], strides = [1, 1, 1, 1]} : vector<2x6x24x64xf32> to vector<2x4x8x64xf32>
    %32 = vector.shape_cast %31 : vector<2x4x8x64xf32> to vector<64x64xf32>
    %33 = arith.truncf %32 : vector<64x64xf32> to vector<64x64xbf16>
    %c0_28 = arith.constant 0 : index
    %c0_29 = arith.constant 0 : index
    %c0_30 = arith.constant 0 : index
    %34 = vector.load %arg4[%c0_28, %c0_29, %c0_30] : memref<9x64x128xbf16, #tpu.memory_space<vmem>>, vector<1x64x128xbf16>
    %35 = vector.shape_cast %34 : vector<1x64x128xbf16> to vector<64x128xbf16>
    %cst_31 = arith.constant dense<0.000000e+00> : vector<64x128xf32>
    %36 = tpu.matmul %33, %35, %cst_31 {dimension_numbers = #tpu.dot_dimension_numbers<[1], [0], [0], [1], [0, 0, 1, 1], [], []>} : vector<64x64xbf16>, vector<64x128xbf16>, vector<64x128xf32> -> vector<64x128xf32>
    %37 = vector.extract_strided_slice %30 {offsets = [0, 0, 8, 0], sizes = [2, 4, 8, 64], strides = [1, 1, 1, 1]} : vector<2x6x24x64xf32> to vector<2x4x8x64xf32>
    %38 = vector.shape_cast %37 : vector<2x4x8x64xf32> to vector<64x64xf32>
    %39 = arith.truncf %38 : vector<64x64xf32> to vector<64x64xbf16>
    %c1_32 = arith.constant 1 : index
    %c0_33 = arith.constant 0 : index
    %c0_34 = arith.constant 0 : index
    %40 = vector.load %arg4[%c1_32, %c0_33, %c0_34] : memref<9x64x128xbf16, #tpu.memory_space<vmem>>, vector<1x64x128xbf16>
    %41 = vector.shape_cast %40 : vector<1x64x128xbf16> to vector<64x128xbf16>
    %cst_35 = arith.constant dense<0.000000e+00> : vector<64x128xf32>
    %42 = tpu.matmul %39, %41, %cst_35 {dimension_numbers = #tpu.dot_dimension_numbers<[1], [0], [0], [1], [0, 0, 1, 1], [], []>} : vector<64x64xbf16>, vector<64x128xbf16>, vector<64x128xf32> -> vector<64x128xf32>
    %43 = arith.addf %36, %42 : vector<64x128xf32>
    %44 = vector.extract_strided_slice %30 {offsets = [0, 0, 9, 0], sizes = [2, 4, 8, 64], strides = [1, 1, 1, 1]} : vector<2x6x24x64xf32> to vector<2x4x8x64xf32>
    %45 = vector.shape_cast %44 : vector<2x4x8x64xf32> to vector<64x64xf32>
    %46 = arith.truncf %45 : vector<64x64xf32> to vector<64x64xbf16>
    %c2 = arith.constant 2 : index
    %c0_36 = arith.constant 0 : index
    %c0_37 = arith.constant 0 : index
    %47 = vector.load %arg4[%c2, %c0_36, %c0_37] : memref<9x64x128xbf16, #tpu.memory_space<vmem>>, vector<1x64x128xbf16>
    %48 = vector.shape_cast %47 : vector<1x64x128xbf16> to vector<64x128xbf16>
    %cst_38 = arith.constant dense<0.000000e+00> : vector<64x128xf32>
    %49 = tpu.matmul %46, %48, %cst_38 {dimension_numbers = #tpu.dot_dimension_numbers<[1], [0], [0], [1], [0, 0, 1, 1], [], []>} : vector<64x64xbf16>, vector<64x128xbf16>, vector<64x128xf32> -> vector<64x128xf32>
    %50 = arith.addf %43, %49 : vector<64x128xf32>
    %51 = vector.extract_strided_slice %30 {offsets = [0, 1, 7, 0], sizes = [2, 4, 8, 64], strides = [1, 1, 1, 1]} : vector<2x6x24x64xf32> to vector<2x4x8x64xf32>
    %52 = vector.shape_cast %51 : vector<2x4x8x64xf32> to vector<64x64xf32>
    %53 = arith.truncf %52 : vector<64x64xf32> to vector<64x64xbf16>
    %c3 = arith.constant 3 : index
    %c0_39 = arith.constant 0 : index
    %c0_40 = arith.constant 0 : index
    %54 = vector.load %arg4[%c3, %c0_39, %c0_40] : memref<9x64x128xbf16, #tpu.memory_space<vmem>>, vector<1x64x128xbf16>
    %55 = vector.shape_cast %54 : vector<1x64x128xbf16> to vector<64x128xbf16>
    %cst_41 = arith.constant dense<0.000000e+00> : vector<64x128xf32>
    %56 = tpu.matmul %53, %55, %cst_41 {dimension_numbers = #tpu.dot_dimension_numbers<[1], [0], [0], [1], [0, 0, 1, 1], [], []>} : vector<64x64xbf16>, vector<64x128xbf16>, vector<64x128xf32> -> vector<64x128xf32>
    %57 = arith.addf %50, %56 : vector<64x128xf32>
    %58 = vector.extract_strided_slice %30 {offsets = [0, 1, 8, 0], sizes = [2, 4, 8, 64], strides = [1, 1, 1, 1]} : vector<2x6x24x64xf32> to vector<2x4x8x64xf32>
    %59 = vector.shape_cast %58 : vector<2x4x8x64xf32> to vector<64x64xf32>
    %60 = arith.truncf %59 : vector<64x64xf32> to vector<64x64xbf16>
    %c4 = arith.constant 4 : index
    %c0_42 = arith.constant 0 : index
    %c0_43 = arith.constant 0 : index
    %61 = vector.load %arg4[%c4, %c0_42, %c0_43] : memref<9x64x128xbf16, #tpu.memory_space<vmem>>, vector<1x64x128xbf16>
    %62 = vector.shape_cast %61 : vector<1x64x128xbf16> to vector<64x128xbf16>
    %cst_44 = arith.constant dense<0.000000e+00> : vector<64x128xf32>
    %63 = tpu.matmul %60, %62, %cst_44 {dimension_numbers = #tpu.dot_dimension_numbers<[1], [0], [0], [1], [0, 0, 1, 1], [], []>} : vector<64x64xbf16>, vector<64x128xbf16>, vector<64x128xf32> -> vector<64x128xf32>
    %64 = arith.addf %57, %63 : vector<64x128xf32>
    %65 = vector.extract_strided_slice %30 {offsets = [0, 1, 9, 0], sizes = [2, 4, 8, 64], strides = [1, 1, 1, 1]} : vector<2x6x24x64xf32> to vector<2x4x8x64xf32>
    %66 = vector.shape_cast %65 : vector<2x4x8x64xf32> to vector<64x64xf32>
    %67 = arith.truncf %66 : vector<64x64xf32> to vector<64x64xbf16>
    %c5_45 = arith.constant 5 : index
    %c0_46 = arith.constant 0 : index
    %c0_47 = arith.constant 0 : index
    %68 = vector.load %arg4[%c5_45, %c0_46, %c0_47] : memref<9x64x128xbf16, #tpu.memory_space<vmem>>, vector<1x64x128xbf16>
    %69 = vector.shape_cast %68 : vector<1x64x128xbf16> to vector<64x128xbf16>
    %cst_48 = arith.constant dense<0.000000e+00> : vector<64x128xf32>
    %70 = tpu.matmul %67, %69, %cst_48 {dimension_numbers = #tpu.dot_dimension_numbers<[1], [0], [0], [1], [0, 0, 1, 1], [], []>} : vector<64x64xbf16>, vector<64x128xbf16>, vector<64x128xf32> -> vector<64x128xf32>
    %71 = arith.addf %64, %70 : vector<64x128xf32>
    %72 = vector.extract_strided_slice %30 {offsets = [0, 2, 7, 0], sizes = [2, 4, 8, 64], strides = [1, 1, 1, 1]} : vector<2x6x24x64xf32> to vector<2x4x8x64xf32>
    %73 = vector.shape_cast %72 : vector<2x4x8x64xf32> to vector<64x64xf32>
    %74 = arith.truncf %73 : vector<64x64xf32> to vector<64x64xbf16>
    %c6 = arith.constant 6 : index
    %c0_49 = arith.constant 0 : index
    %c0_50 = arith.constant 0 : index
    %75 = vector.load %arg4[%c6, %c0_49, %c0_50] : memref<9x64x128xbf16, #tpu.memory_space<vmem>>, vector<1x64x128xbf16>
    %76 = vector.shape_cast %75 : vector<1x64x128xbf16> to vector<64x128xbf16>
    %cst_51 = arith.constant dense<0.000000e+00> : vector<64x128xf32>
    %77 = tpu.matmul %74, %76, %cst_51 {dimension_numbers = #tpu.dot_dimension_numbers<[1], [0], [0], [1], [0, 0, 1, 1], [], []>} : vector<64x64xbf16>, vector<64x128xbf16>, vector<64x128xf32> -> vector<64x128xf32>
    %78 = arith.addf %71, %77 : vector<64x128xf32>
    %79 = vector.extract_strided_slice %30 {offsets = [0, 2, 8, 0], sizes = [2, 4, 8, 64], strides = [1, 1, 1, 1]} : vector<2x6x24x64xf32> to vector<2x4x8x64xf32>
    %80 = vector.shape_cast %79 : vector<2x4x8x64xf32> to vector<64x64xf32>
    %81 = arith.truncf %80 : vector<64x64xf32> to vector<64x64xbf16>
    %c7_52 = arith.constant 7 : index
    %c0_53 = arith.constant 0 : index
    %c0_54 = arith.constant 0 : index
    %82 = vector.load %arg4[%c7_52, %c0_53, %c0_54] : memref<9x64x128xbf16, #tpu.memory_space<vmem>>, vector<1x64x128xbf16>
    %83 = vector.shape_cast %82 : vector<1x64x128xbf16> to vector<64x128xbf16>
    %cst_55 = arith.constant dense<0.000000e+00> : vector<64x128xf32>
    %84 = tpu.matmul %81, %83, %cst_55 {dimension_numbers = #tpu.dot_dimension_numbers<[1], [0], [0], [1], [0, 0, 1, 1], [], []>} : vector<64x64xbf16>, vector<64x128xbf16>, vector<64x128xf32> -> vector<64x128xf32>
    %85 = arith.addf %78, %84 : vector<64x128xf32>
    %86 = vector.extract_strided_slice %30 {offsets = [0, 2, 9, 0], sizes = [2, 4, 8, 64], strides = [1, 1, 1, 1]} : vector<2x6x24x64xf32> to vector<2x4x8x64xf32>
    %87 = vector.shape_cast %86 : vector<2x4x8x64xf32> to vector<64x64xf32>
    %88 = arith.truncf %87 : vector<64x64xf32> to vector<64x64xbf16>
    %c8_56 = arith.constant 8 : index
    %c0_57 = arith.constant 0 : index
    %c0_58 = arith.constant 0 : index
    %89 = vector.load %arg4[%c8_56, %c0_57, %c0_58] : memref<9x64x128xbf16, #tpu.memory_space<vmem>>, vector<1x64x128xbf16>
    %90 = vector.shape_cast %89 : vector<1x64x128xbf16> to vector<64x128xbf16>
    %cst_59 = arith.constant dense<0.000000e+00> : vector<64x128xf32>
    %91 = tpu.matmul %88, %90, %cst_59 {dimension_numbers = #tpu.dot_dimension_numbers<[1], [0], [0], [1], [0, 0, 1, 1], [], []>} : vector<64x64xbf16>, vector<64x128xbf16>, vector<64x128xf32> -> vector<64x128xf32>
    %92 = arith.addf %85, %91 : vector<64x128xf32>
    %c0_60 = arith.constant 0 : index
    %c0_61 = arith.constant 0 : index
    %93 = vector.load %arg5[%c0_60, %c0_61] : memref<1x128xf32, #tpu.memory_space<vmem>>, vector<1x128xf32>
    %94 = vector.broadcast %93 : vector<1x128xf32> to vector<64x128xf32>
    %95 = arith.addf %92, %94 : vector<64x128xf32>
    %cst_62 = arith.constant 0.000000e+00 : f32
    %96 = vector.broadcast %cst_62 : f32 to vector<64x128xf32>
    %97 = arith.maximumf %95, %96 : vector<64x128xf32>
    %98 = vector.shape_cast %97 : vector<64x128xf32> to vector<8x8x128xf32>
    %99 = vector.shape_cast %98 : vector<8x8x128xf32> to vector<8x4x2x128xf32>
    %100 = vector.extract_strided_slice %99 {offsets = [0, 0, 0, 0], sizes = [8, 4, 1, 128], strides = [1, 1, 1, 1]} : vector<8x4x2x128xf32> to vector<8x4x1x128xf32>
    %101 = vector.shape_cast %100 : vector<8x4x1x128xf32> to vector<8x4x128xf32>
    %102 = vector.extract_strided_slice %99 {offsets = [0, 0, 1, 0], sizes = [8, 4, 1, 128], strides = [1, 1, 1, 1]} : vector<8x4x2x128xf32> to vector<8x4x1x128xf32>
    %103 = vector.shape_cast %102 : vector<8x4x1x128xf32> to vector<8x4x128xf32>
    %104 = arith.maximumf %101, %103 : vector<8x4x128xf32>
    %105 = vector.shape_cast %104 : vector<8x4x128xf32> to vector<4x2x4x128xf32>
    %106 = vector.extract_strided_slice %105 {offsets = [0, 0, 0, 0], sizes = [4, 1, 4, 128], strides = [1, 1, 1, 1]} : vector<4x2x4x128xf32> to vector<4x1x4x128xf32>
    %107 = vector.shape_cast %106 : vector<4x1x4x128xf32> to vector<4x4x128xf32>
    %108 = vector.extract_strided_slice %105 {offsets = [0, 1, 0, 0], sizes = [4, 1, 4, 128], strides = [1, 1, 1, 1]} : vector<4x2x4x128xf32> to vector<4x1x4x128xf32>
    %109 = vector.shape_cast %108 : vector<4x1x4x128xf32> to vector<4x4x128xf32>
    %110 = arith.maximumf %107, %109 : vector<4x4x128xf32>
    %111 = vector.shape_cast %110 : vector<4x4x128xf32> to vector<2x2x4x128xf32>
    %cst_63 = arith.constant 0.000000e+00 : f32
    %112 = vector.broadcast %cst_63 : f32 to vector<2x1x16x128xf32>
    %cst_64 = arith.constant 0.000000e+00 : f32
    %113 = vector.broadcast %cst_64 : f32 to vector<2x2x1x128xf32>
    %c0_65 = arith.constant 0 : index
    %c0_66 = arith.constant 0 : index
    %c0_67 = arith.constant 0 : index
    %c0_68 = arith.constant 0 : index
    %114 = vector.load %arg13[%c0_65, %c0_66, %c0_67, %c0_68] : memref<2x4x16x128xf32, #tpu.memory_space<vmem>>, vector<2x1x16x128xf32>
    tpu.vector_store %arg13[%c0_65, %c0_66, %c0_67, %c0_68], %112 {strides = array<i32>} : memref<2x4x16x128xf32, #tpu.memory_space<vmem>>, vector<2x1x16x128xf32>,
    %c0_69 = arith.constant 0 : index
    %c3_70 = arith.constant 3 : index
    %c0_71 = arith.constant 0 : index
    %c0_72 = arith.constant 0 : index
    %115 = vector.load %arg13[%c0_69, %c3_70, %c0_71, %c0_72] : memref<2x4x16x128xf32, #tpu.memory_space<vmem>>, vector<2x1x16x128xf32>
    tpu.vector_store %arg13[%c0_69, %c3_70, %c0_71, %c0_72], %112 {strides = array<i32>} : memref<2x4x16x128xf32, #tpu.memory_space<vmem>>, vector<2x1x16x128xf32>,
    %c0_73 = arith.constant 0 : index
    %c1_74 = arith.constant 1 : index
    %c7_75 = arith.constant 7 : index
    %c0_76 = arith.constant 0 : index
    %116 = vector.load %arg13[%c0_73, %c1_74, %c7_75, %c0_76] : memref<2x4x16x128xf32, #tpu.memory_space<vmem>>, vector<2x2x1x128xf32>
    tpu.vector_store %arg13[%c0_73, %c1_74, %c7_75, %c0_76], %113 {strides = array<i32>} : memref<2x4x16x128xf32, #tpu.memory_space<vmem>>, vector<2x2x1x128xf32>,
    %c0_77 = arith.constant 0 : index
    %c1_78 = arith.constant 1 : index
    %c12 = arith.constant 12 : index
    %c0_79 = arith.constant 0 : index
    %117 = vector.load %arg13[%c0_77, %c1_78, %c12, %c0_79] : memref<2x4x16x128xf32, #tpu.memory_space<vmem>>, vector<2x2x1x128xf32>
    tpu.vector_store %arg13[%c0_77, %c1_78, %c12, %c0_79], %113 {strides = array<i32>} : memref<2x4x16x128xf32, #tpu.memory_space<vmem>>, vector<2x2x1x128xf32>,
    %c0_80 = arith.constant 0 : index
    %c1_81 = arith.constant 1 : index
    %c8_82 = arith.constant 8 : index
    %c0_83 = arith.constant 0 : index
    %118 = vector.load %arg13[%c0_80, %c1_81, %c8_82, %c0_83] : memref<2x4x16x128xf32, #tpu.memory_space<vmem>>, vector<2x2x4x128xf32>
    tpu.vector_store %arg13[%c0_80, %c1_81, %c8_82, %c0_83], %111 {strides = array<i32>} : memref<2x4x16x128xf32, #tpu.memory_space<vmem>>, vector<2x2x4x128xf32>,
    %c0_84 = arith.constant 0 : index
    %c0_85 = arith.constant 0 : index
    %c0_86 = arith.constant 0 : index
    %c0_87 = arith.constant 0 : index
    %119 = vector.load %arg13[%c0_84, %c0_85, %c0_86, %c0_87] : memref<2x4x16x128xf32, #tpu.memory_space<vmem>>, vector<2x4x16x128xf32>
    %120 = vector.extract_strided_slice %119 {offsets = [0, 0, 7, 0], sizes = [2, 2, 4, 128], strides = [1, 1, 1, 1]} : vector<2x4x16x128xf32> to vector<2x2x4x128xf32>
    %121 = vector.shape_cast %120 : vector<2x2x4x128xf32> to vector<16x128xf32>
    %122 = arith.truncf %121 : vector<16x128xf32> to vector<16x128xbf16>
    %c0_88 = arith.constant 0 : index
    %c0_89 = arith.constant 0 : index
    %c0_90 = arith.constant 0 : index
    %123 = vector.load %arg6[%c0_88, %c0_89, %c0_90] : memref<9x128x256xbf16, #tpu.memory_space<vmem>>, vector<1x128x256xbf16>
    %124 = vector.shape_cast %123 : vector<1x128x256xbf16> to vector<128x256xbf16>
    %cst_91 = arith.constant dense<0.000000e+00> : vector<16x256xf32>
    %125 = tpu.matmul %122, %124, %cst_91 {dimension_numbers = #tpu.dot_dimension_numbers<[1], [0], [0], [1], [0, 0, 1, 1], [], []>} : vector<16x128xbf16>, vector<128x256xbf16>, vector<16x256xf32> -> vector<16x256xf32>
    %126 = vector.extract_strided_slice %119 {offsets = [0, 0, 8, 0], sizes = [2, 2, 4, 128], strides = [1, 1, 1, 1]} : vector<2x4x16x128xf32> to vector<2x2x4x128xf32>
    %127 = vector.shape_cast %126 : vector<2x2x4x128xf32> to vector<16x128xf32>
    %128 = arith.truncf %127 : vector<16x128xf32> to vector<16x128xbf16>
    %c1_92 = arith.constant 1 : index
    %c0_93 = arith.constant 0 : index
    %c0_94 = arith.constant 0 : index
    %129 = vector.load %arg6[%c1_92, %c0_93, %c0_94] : memref<9x128x256xbf16, #tpu.memory_space<vmem>>, vector<1x128x256xbf16>
    %130 = vector.shape_cast %129 : vector<1x128x256xbf16> to vector<128x256xbf16>
    %cst_95 = arith.constant dense<0.000000e+00> : vector<16x256xf32>
    %131 = tpu.matmul %128, %130, %cst_95 {dimension_numbers = #tpu.dot_dimension_numbers<[1], [0], [0], [1], [0, 0, 1, 1], [], []>} : vector<16x128xbf16>, vector<128x256xbf16>, vector<16x256xf32> -> vector<16x256xf32>
    %132 = arith.addf %125, %131 : vector<16x256xf32>
    %133 = vector.extract_strided_slice %119 {offsets = [0, 0, 9, 0], sizes = [2, 2, 4, 128], strides = [1, 1, 1, 1]} : vector<2x4x16x128xf32> to vector<2x2x4x128xf32>
    %134 = vector.shape_cast %133 : vector<2x2x4x128xf32> to vector<16x128xf32>
    %135 = arith.truncf %134 : vector<16x128xf32> to vector<16x128xbf16>
    %c2_96 = arith.constant 2 : index
    %c0_97 = arith.constant 0 : index
    %c0_98 = arith.constant 0 : index
    %136 = vector.load %arg6[%c2_96, %c0_97, %c0_98] : memref<9x128x256xbf16, #tpu.memory_space<vmem>>, vector<1x128x256xbf16>
    %137 = vector.shape_cast %136 : vector<1x128x256xbf16> to vector<128x256xbf16>
    %cst_99 = arith.constant dense<0.000000e+00> : vector<16x256xf32>
    %138 = tpu.matmul %135, %137, %cst_99 {dimension_numbers = #tpu.dot_dimension_numbers<[1], [0], [0], [1], [0, 0, 1, 1], [], []>} : vector<16x128xbf16>, vector<128x256xbf16>, vector<16x256xf32> -> vector<16x256xf32>
    %139 = arith.addf %132, %138 : vector<16x256xf32>
    %140 = vector.extract_strided_slice %119 {offsets = [0, 1, 7, 0], sizes = [2, 2, 4, 128], strides = [1, 1, 1, 1]} : vector<2x4x16x128xf32> to vector<2x2x4x128xf32>
    %141 = vector.shape_cast %140 : vector<2x2x4x128xf32> to vector<16x128xf32>
    %142 = arith.truncf %141 : vector<16x128xf32> to vector<16x128xbf16>
    %c3_100 = arith.constant 3 : index
    %c0_101 = arith.constant 0 : index
    %c0_102 = arith.constant 0 : index
    %143 = vector.load %arg6[%c3_100, %c0_101, %c0_102] : memref<9x128x256xbf16, #tpu.memory_space<vmem>>, vector<1x128x256xbf16>
    %144 = vector.shape_cast %143 : vector<1x128x256xbf16> to vector<128x256xbf16>
    %cst_103 = arith.constant dense<0.000000e+00> : vector<16x256xf32>
    %145 = tpu.matmul %142, %144, %cst_103 {dimension_numbers = #tpu.dot_dimension_numbers<[1], [0], [0], [1], [0, 0, 1, 1], [], []>} : vector<16x128xbf16>, vector<128x256xbf16>, vector<16x256xf32> -> vector<16x256xf32>
    %146 = arith.addf %139, %145 : vector<16x256xf32>
    %147 = vector.extract_strided_slice %119 {offsets = [0, 1, 8, 0], sizes = [2, 2, 4, 128], strides = [1, 1, 1, 1]} : vector<2x4x16x128xf32> to vector<2x2x4x128xf32>
    %148 = vector.shape_cast %147 : vector<2x2x4x128xf32> to vector<16x128xf32>
    %149 = arith.truncf %148 : vector<16x128xf32> to vector<16x128xbf16>
    %c4_104 = arith.constant 4 : index
    %c0_105 = arith.constant 0 : index
    %c0_106 = arith.constant 0 : index
    %150 = vector.load %arg6[%c4_104, %c0_105, %c0_106] : memref<9x128x256xbf16, #tpu.memory_space<vmem>>, vector<1x128x256xbf16>
    %151 = vector.shape_cast %150 : vector<1x128x256xbf16> to vector<128x256xbf16>
    %cst_107 = arith.constant dense<0.000000e+00> : vector<16x256xf32>
    %152 = tpu.matmul %149, %151, %cst_107 {dimension_numbers = #tpu.dot_dimension_numbers<[1], [0], [0], [1], [0, 0, 1, 1], [], []>} : vector<16x128xbf16>, vector<128x256xbf16>, vector<16x256xf32> -> vector<16x256xf32>
    %153 = arith.addf %146, %152 : vector<16x256xf32>
    %154 = vector.extract_strided_slice %119 {offsets = [0, 1, 9, 0], sizes = [2, 2, 4, 128], strides = [1, 1, 1, 1]} : vector<2x4x16x128xf32> to vector<2x2x4x128xf32>
    %155 = vector.shape_cast %154 : vector<2x2x4x128xf32> to vector<16x128xf32>
    %156 = arith.truncf %155 : vector<16x128xf32> to vector<16x128xbf16>
    %c5_108 = arith.constant 5 : index
    %c0_109 = arith.constant 0 : index
    %c0_110 = arith.constant 0 : index
    %157 = vector.load %arg6[%c5_108, %c0_109, %c0_110] : memref<9x128x256xbf16, #tpu.memory_space<vmem>>, vector<1x128x256xbf16>
    %158 = vector.shape_cast %157 : vector<1x128x256xbf16> to vector<128x256xbf16>
    %cst_111 = arith.constant dense<0.000000e+00> : vector<16x256xf32>
    %159 = tpu.matmul %156, %158, %cst_111 {dimension_numbers = #tpu.dot_dimension_numbers<[1], [0], [0], [1], [0, 0, 1, 1], [], []>} : vector<16x128xbf16>, vector<128x256xbf16>, vector<16x256xf32> -> vector<16x256xf32>
    %160 = arith.addf %153, %159 : vector<16x256xf32>
    %161 = vector.extract_strided_slice %119 {offsets = [0, 2, 7, 0], sizes = [2, 2, 4, 128], strides = [1, 1, 1, 1]} : vector<2x4x16x128xf32> to vector<2x2x4x128xf32>
    %162 = vector.shape_cast %161 : vector<2x2x4x128xf32> to vector<16x128xf32>
    %163 = arith.truncf %162 : vector<16x128xf32> to vector<16x128xbf16>
    %c6_112 = arith.constant 6 : index
    %c0_113 = arith.constant 0 : index
    %c0_114 = arith.constant 0 : index
    %164 = vector.load %arg6[%c6_112, %c0_113, %c0_114] : memref<9x128x256xbf16, #tpu.memory_space<vmem>>, vector<1x128x256xbf16>
    %165 = vector.shape_cast %164 : vector<1x128x256xbf16> to vector<128x256xbf16>
    %cst_115 = arith.constant dense<0.000000e+00> : vector<16x256xf32>
    %166 = tpu.matmul %163, %165, %cst_115 {dimension_numbers = #tpu.dot_dimension_numbers<[1], [0], [0], [1], [0, 0, 1, 1], [], []>} : vector<16x128xbf16>, vector<128x256xbf16>, vector<16x256xf32> -> vector<16x256xf32>
    %167 = arith.addf %160, %166 : vector<16x256xf32>
    %168 = vector.extract_strided_slice %119 {offsets = [0, 2, 8, 0], sizes = [2, 2, 4, 128], strides = [1, 1, 1, 1]} : vector<2x4x16x128xf32> to vector<2x2x4x128xf32>
    %169 = vector.shape_cast %168 : vector<2x2x4x128xf32> to vector<16x128xf32>
    %170 = arith.truncf %169 : vector<16x128xf32> to vector<16x128xbf16>
    %c7_116 = arith.constant 7 : index
    %c0_117 = arith.constant 0 : index
    %c0_118 = arith.constant 0 : index
    %171 = vector.load %arg6[%c7_116, %c0_117, %c0_118] : memref<9x128x256xbf16, #tpu.memory_space<vmem>>, vector<1x128x256xbf16>
    %172 = vector.shape_cast %171 : vector<1x128x256xbf16> to vector<128x256xbf16>
    %cst_119 = arith.constant dense<0.000000e+00> : vector<16x256xf32>
    %173 = tpu.matmul %170, %172, %cst_119 {dimension_numbers = #tpu.dot_dimension_numbers<[1], [0], [0], [1], [0, 0, 1, 1], [], []>} : vector<16x128xbf16>, vector<128x256xbf16>, vector<16x256xf32> -> vector<16x256xf32>
    %174 = arith.addf %167, %173 : vector<16x256xf32>
    %175 = vector.extract_strided_slice %119 {offsets = [0, 2, 9, 0], sizes = [2, 2, 4, 128], strides = [1, 1, 1, 1]} : vector<2x4x16x128xf32> to vector<2x2x4x128xf32>
    %176 = vector.shape_cast %175 : vector<2x2x4x128xf32> to vector<16x128xf32>
    %177 = arith.truncf %176 : vector<16x128xf32> to vector<16x128xbf16>
    %c8_120 = arith.constant 8 : index
    %c0_121 = arith.constant 0 : index
    %c0_122 = arith.constant 0 : index
    %178 = vector.load %arg6[%c8_120, %c0_121, %c0_122] : memref<9x128x256xbf16, #tpu.memory_space<vmem>>, vector<1x128x256xbf16>
    %179 = vector.shape_cast %178 : vector<1x128x256xbf16> to vector<128x256xbf16>
    %cst_123 = arith.constant dense<0.000000e+00> : vector<16x256xf32>
    %180 = tpu.matmul %177, %179, %cst_123 {dimension_numbers = #tpu.dot_dimension_numbers<[1], [0], [0], [1], [0, 0, 1, 1], [], []>} : vector<16x128xbf16>, vector<128x256xbf16>, vector<16x256xf32> -> vector<16x256xf32>
    %181 = arith.addf %174, %180 : vector<16x256xf32>
    %c0_124 = arith.constant 0 : index
    %c0_125 = arith.constant 0 : index
    %182 = vector.load %arg7[%c0_124, %c0_125] : memref<1x256xf32, #tpu.memory_space<vmem>>, vector<1x256xf32>
    %183 = vector.broadcast %182 : vector<1x256xf32> to vector<16x256xf32>
    %184 = arith.addf %181, %183 : vector<16x256xf32>
    %cst_126 = arith.constant 0.000000e+00 : f32
    %185 = vector.broadcast %cst_126 : f32 to vector<16x256xf32>
    %186 = arith.maximumf %184, %185 : vector<16x256xf32>
    %187 = vector.shape_cast %186 : vector<16x256xf32> to vector<4x4x256xf32>
    %188 = vector.shape_cast %187 : vector<4x4x256xf32> to vector<4x2x2x256xf32>
    %189 = vector.extract_strided_slice %188 {offsets = [0, 0, 0, 0], sizes = [4, 2, 1, 256], strides = [1, 1, 1, 1]} : vector<4x2x2x256xf32> to vector<4x2x1x256xf32>
    %190 = vector.shape_cast %189 : vector<4x2x1x256xf32> to vector<4x2x256xf32>
    %191 = vector.extract_strided_slice %188 {offsets = [0, 0, 1, 0], sizes = [4, 2, 1, 256], strides = [1, 1, 1, 1]} : vector<4x2x2x256xf32> to vector<4x2x1x256xf32>
    %192 = vector.shape_cast %191 : vector<4x2x1x256xf32> to vector<4x2x256xf32>
    %193 = arith.maximumf %190, %192 : vector<4x2x256xf32>
    %194 = vector.shape_cast %193 : vector<4x2x256xf32> to vector<2x2x2x256xf32>
    %cst_127 = arith.constant 0.000000e+00 : f32
    %195 = vector.broadcast %cst_127 : f32 to vector<2x1x16x256xf32>
    %cst_128 = arith.constant 0.000000e+00 : f32
    %196 = vector.broadcast %cst_128 : f32 to vector<2x2x1x256xf32>
    %c0_129 = arith.constant 0 : index
    %c0_130 = arith.constant 0 : index
    %c0_131 = arith.constant 0 : index
    %c0_132 = arith.constant 0 : index
    %197 = vector.load %arg14[%c0_129, %c0_130, %c0_131, %c0_132] : memref<2x4x16x256xf32, #tpu.memory_space<vmem>>, vector<2x1x16x256xf32>
    tpu.vector_store %arg14[%c0_129, %c0_130, %c0_131, %c0_132], %195 {strides = array<i32>} : memref<2x4x16x256xf32, #tpu.memory_space<vmem>>, vector<2x1x16x256xf32>,
    %c0_133 = arith.constant 0 : index
    %c3_134 = arith.constant 3 : index
    %c0_135 = arith.constant 0 : index
    %c0_136 = arith.constant 0 : index
    %198 = vector.load %arg14[%c0_133, %c3_134, %c0_135, %c0_136] : memref<2x4x16x256xf32, #tpu.memory_space<vmem>>, vector<2x1x16x256xf32>
    tpu.vector_store %arg14[%c0_133, %c3_134, %c0_135, %c0_136], %195 {strides = array<i32>} : memref<2x4x16x256xf32, #tpu.memory_space<vmem>>, vector<2x1x16x256xf32>,
    %c0_137 = arith.constant 0 : index
    %c1_138 = arith.constant 1 : index
    %c7_139 = arith.constant 7 : index
    %c0_140 = arith.constant 0 : index
    %199 = vector.load %arg14[%c0_137, %c1_138, %c7_139, %c0_140] : memref<2x4x16x256xf32, #tpu.memory_space<vmem>>, vector<2x2x1x256xf32>
    tpu.vector_store %arg14[%c0_137, %c1_138, %c7_139, %c0_140], %196 {strides = array<i32>} : memref<2x4x16x256xf32, #tpu.memory_space<vmem>>, vector<2x2x1x256xf32>,
    %c0_141 = arith.constant 0 : index
    %c1_142 = arith.constant 1 : index
    %c10 = arith.constant 10 : index
    %c0_143 = arith.constant 0 : index
    %200 = vector.load %arg14[%c0_141, %c1_142, %c10, %c0_143] : memref<2x4x16x256xf32, #tpu.memory_space<vmem>>, vector<2x2x1x256xf32>
    tpu.vector_store %arg14[%c0_141, %c1_142, %c10, %c0_143], %196 {strides = array<i32>} : memref<2x4x16x256xf32, #tpu.memory_space<vmem>>, vector<2x2x1x256xf32>,
    %c0_144 = arith.constant 0 : index
    %c1_145 = arith.constant 1 : index
    %c8_146 = arith.constant 8 : index
    %c0_147 = arith.constant 0 : index
    %201 = vector.load %arg14[%c0_144, %c1_145, %c8_146, %c0_147] : memref<2x4x16x256xf32, #tpu.memory_space<vmem>>, vector<2x2x2x256xf32>
    tpu.vector_store %arg14[%c0_144, %c1_145, %c8_146, %c0_147], %194 {strides = array<i32>} : memref<2x4x16x256xf32, #tpu.memory_space<vmem>>, vector<2x2x2x256xf32>,
    %c0_148 = arith.constant 0 : index
    %c0_149 = arith.constant 0 : index
    %c0_150 = arith.constant 0 : index
    %c0_151 = arith.constant 0 : index
    %202 = vector.load %arg14[%c0_148, %c0_149, %c0_150, %c0_151] : memref<2x4x16x256xf32, #tpu.memory_space<vmem>>, vector<2x4x16x256xf32>
    %203 = vector.extract_strided_slice %202 {offsets = [0, 0, 7, 0], sizes = [2, 2, 2, 256], strides = [1, 1, 1, 1]} : vector<2x4x16x256xf32> to vector<2x2x2x256xf32>
    %204 = vector.shape_cast %203 : vector<2x2x2x256xf32> to vector<8x256xf32>
    %205 = arith.truncf %204 : vector<8x256xf32> to vector<8x256xbf16>
    %c0_152 = arith.constant 0 : index
    %c0_153 = arith.constant 0 : index
    %c0_154 = arith.constant 0 : index
    %206 = vector.load %arg8[%c0_152, %c0_153, %c0_154] : memref<9x256x256xbf16, #tpu.memory_space<vmem>>, vector<1x256x256xbf16>
    %207 = vector.shape_cast %206 : vector<1x256x256xbf16> to vector<256x256xbf16>
    %cst_155 = arith.constant dense<0.000000e+00> : vector<8x256xf32>
    %208 = tpu.matmul %205, %207, %cst_155 {dimension_numbers = #tpu.dot_dimension_numbers<[1], [0], [0], [1], [0, 0, 1, 1], [], []>} : vector<8x256xbf16>, vector<256x256xbf16>, vector<8x256xf32> -> vector<8x256xf32>
    %209 = vector.extract_strided_slice %202 {offsets = [0, 0, 8, 0], sizes = [2, 2, 2, 256], strides = [1, 1, 1, 1]} : vector<2x4x16x256xf32> to vector<2x2x2x256xf32>
    %210 = vector.shape_cast %209 : vector<2x2x2x256xf32> to vector<8x256xf32>
    %211 = arith.truncf %210 : vector<8x256xf32> to vector<8x256xbf16>
    %c1_156 = arith.constant 1 : index
    %c0_157 = arith.constant 0 : index
    %c0_158 = arith.constant 0 : index
    %212 = vector.load %arg8[%c1_156, %c0_157, %c0_158] : memref<9x256x256xbf16, #tpu.memory_space<vmem>>, vector<1x256x256xbf16>
    %213 = vector.shape_cast %212 : vector<1x256x256xbf16> to vector<256x256xbf16>
    %cst_159 = arith.constant dense<0.000000e+00> : vector<8x256xf32>
    %214 = tpu.matmul %211, %213, %cst_159 {dimension_numbers = #tpu.dot_dimension_numbers<[1], [0], [0], [1], [0, 0, 1, 1], [], []>} : vector<8x256xbf16>, vector<256x256xbf16>, vector<8x256xf32> -> vector<8x256xf32>
    %215 = arith.addf %208, %214 : vector<8x256xf32>
    %216 = vector.extract_strided_slice %202 {offsets = [0, 0, 9, 0], sizes = [2, 2, 2, 256], strides = [1, 1, 1, 1]} : vector<2x4x16x256xf32> to vector<2x2x2x256xf32>
    %217 = vector.shape_cast %216 : vector<2x2x2x256xf32> to vector<8x256xf32>
    %218 = arith.truncf %217 : vector<8x256xf32> to vector<8x256xbf16>
    %c2_160 = arith.constant 2 : index
    %c0_161 = arith.constant 0 : index
    %c0_162 = arith.constant 0 : index
    %219 = vector.load %arg8[%c2_160, %c0_161, %c0_162] : memref<9x256x256xbf16, #tpu.memory_space<vmem>>, vector<1x256x256xbf16>
    %220 = vector.shape_cast %219 : vector<1x256x256xbf16> to vector<256x256xbf16>
    %cst_163 = arith.constant dense<0.000000e+00> : vector<8x256xf32>
    %221 = tpu.matmul %218, %220, %cst_163 {dimension_numbers = #tpu.dot_dimension_numbers<[1], [0], [0], [1], [0, 0, 1, 1], [], []>} : vector<8x256xbf16>, vector<256x256xbf16>, vector<8x256xf32> -> vector<8x256xf32>
    %222 = arith.addf %215, %221 : vector<8x256xf32>
    %223 = vector.extract_strided_slice %202 {offsets = [0, 1, 7, 0], sizes = [2, 2, 2, 256], strides = [1, 1, 1, 1]} : vector<2x4x16x256xf32> to vector<2x2x2x256xf32>
    %224 = vector.shape_cast %223 : vector<2x2x2x256xf32> to vector<8x256xf32>
    %225 = arith.truncf %224 : vector<8x256xf32> to vector<8x256xbf16>
    %c3_164 = arith.constant 3 : index
    %c0_165 = arith.constant 0 : index
    %c0_166 = arith.constant 0 : index
    %226 = vector.load %arg8[%c3_164, %c0_165, %c0_166] : memref<9x256x256xbf16, #tpu.memory_space<vmem>>, vector<1x256x256xbf16>
    %227 = vector.shape_cast %226 : vector<1x256x256xbf16> to vector<256x256xbf16>
    %cst_167 = arith.constant dense<0.000000e+00> : vector<8x256xf32>
    %228 = tpu.matmul %225, %227, %cst_167 {dimension_numbers = #tpu.dot_dimension_numbers<[1], [0], [0], [1], [0, 0, 1, 1], [], []>} : vector<8x256xbf16>, vector<256x256xbf16>, vector<8x256xf32> -> vector<8x256xf32>
    %229 = arith.addf %222, %228 : vector<8x256xf32>
    %230 = vector.extract_strided_slice %202 {offsets = [0, 1, 8, 0], sizes = [2, 2, 2, 256], strides = [1, 1, 1, 1]} : vector<2x4x16x256xf32> to vector<2x2x2x256xf32>
    %231 = vector.shape_cast %230 : vector<2x2x2x256xf32> to vector<8x256xf32>
    %232 = arith.truncf %231 : vector<8x256xf32> to vector<8x256xbf16>
    %c4_168 = arith.constant 4 : index
    %c0_169 = arith.constant 0 : index
    %c0_170 = arith.constant 0 : index
    %233 = vector.load %arg8[%c4_168, %c0_169, %c0_170] : memref<9x256x256xbf16, #tpu.memory_space<vmem>>, vector<1x256x256xbf16>
    %234 = vector.shape_cast %233 : vector<1x256x256xbf16> to vector<256x256xbf16>
    %cst_171 = arith.constant dense<0.000000e+00> : vector<8x256xf32>
    %235 = tpu.matmul %232, %234, %cst_171 {dimension_numbers = #tpu.dot_dimension_numbers<[1], [0], [0], [1], [0, 0, 1, 1], [], []>} : vector<8x256xbf16>, vector<256x256xbf16>, vector<8x256xf32> -> vector<8x256xf32>
    %236 = arith.addf %229, %235 : vector<8x256xf32>
    %237 = vector.extract_strided_slice %202 {offsets = [0, 1, 9, 0], sizes = [2, 2, 2, 256], strides = [1, 1, 1, 1]} : vector<2x4x16x256xf32> to vector<2x2x2x256xf32>
    %238 = vector.shape_cast %237 : vector<2x2x2x256xf32> to vector<8x256xf32>
    %239 = arith.truncf %238 : vector<8x256xf32> to vector<8x256xbf16>
    %c5_172 = arith.constant 5 : index
    %c0_173 = arith.constant 0 : index
    %c0_174 = arith.constant 0 : index
    %240 = vector.load %arg8[%c5_172, %c0_173, %c0_174] : memref<9x256x256xbf16, #tpu.memory_space<vmem>>, vector<1x256x256xbf16>
    %241 = vector.shape_cast %240 : vector<1x256x256xbf16> to vector<256x256xbf16>
    %cst_175 = arith.constant dense<0.000000e+00> : vector<8x256xf32>
    %242 = tpu.matmul %239, %241, %cst_175 {dimension_numbers = #tpu.dot_dimension_numbers<[1], [0], [0], [1], [0, 0, 1, 1], [], []>} : vector<8x256xbf16>, vector<256x256xbf16>, vector<8x256xf32> -> vector<8x256xf32>
    %243 = arith.addf %236, %242 : vector<8x256xf32>
    %244 = vector.extract_strided_slice %202 {offsets = [0, 2, 7, 0], sizes = [2, 2, 2, 256], strides = [1, 1, 1, 1]} : vector<2x4x16x256xf32> to vector<2x2x2x256xf32>
    %245 = vector.shape_cast %244 : vector<2x2x2x256xf32> to vector<8x256xf32>
    %246 = arith.truncf %245 : vector<8x256xf32> to vector<8x256xbf16>
    %c6_176 = arith.constant 6 : index
    %c0_177 = arith.constant 0 : index
    %c0_178 = arith.constant 0 : index
    %247 = vector.load %arg8[%c6_176, %c0_177, %c0_178] : memref<9x256x256xbf16, #tpu.memory_space<vmem>>, vector<1x256x256xbf16>
    %248 = vector.shape_cast %247 : vector<1x256x256xbf16> to vector<256x256xbf16>
    %cst_179 = arith.constant dense<0.000000e+00> : vector<8x256xf32>
    %249 = tpu.matmul %246, %248, %cst_179 {dimension_numbers = #tpu.dot_dimension_numbers<[1], [0], [0], [1], [0, 0, 1, 1], [], []>} : vector<8x256xbf16>, vector<256x256xbf16>, vector<8x256xf32> -> vector<8x256xf32>
    %250 = arith.addf %243, %249 : vector<8x256xf32>
    %251 = vector.extract_strided_slice %202 {offsets = [0, 2, 8, 0], sizes = [2, 2, 2, 256], strides = [1, 1, 1, 1]} : vector<2x4x16x256xf32> to vector<2x2x2x256xf32>
    %252 = vector.shape_cast %251 : vector<2x2x2x256xf32> to vector<8x256xf32>
    %253 = arith.truncf %252 : vector<8x256xf32> to vector<8x256xbf16>
    %c7_180 = arith.constant 7 : index
    %c0_181 = arith.constant 0 : index
    %c0_182 = arith.constant 0 : index
    %254 = vector.load %arg8[%c7_180, %c0_181, %c0_182] : memref<9x256x256xbf16, #tpu.memory_space<vmem>>, vector<1x256x256xbf16>
    %255 = vector.shape_cast %254 : vector<1x256x256xbf16> to vector<256x256xbf16>
    %cst_183 = arith.constant dense<0.000000e+00> : vector<8x256xf32>
    %256 = tpu.matmul %253, %255, %cst_183 {dimension_numbers = #tpu.dot_dimension_numbers<[1], [0], [0], [1], [0, 0, 1, 1], [], []>} : vector<8x256xbf16>, vector<256x256xbf16>, vector<8x256xf32> -> vector<8x256xf32>
    %257 = arith.addf %250, %256 : vector<8x256xf32>
    %258 = vector.extract_strided_slice %202 {offsets = [0, 2, 9, 0], sizes = [2, 2, 2, 256], strides = [1, 1, 1, 1]} : vector<2x4x16x256xf32> to vector<2x2x2x256xf32>
    %259 = vector.shape_cast %258 : vector<2x2x2x256xf32> to vector<8x256xf32>
    %260 = arith.truncf %259 : vector<8x256xf32> to vector<8x256xbf16>
    %c8_184 = arith.constant 8 : index
    %c0_185 = arith.constant 0 : index
    %c0_186 = arith.constant 0 : index
    %261 = vector.load %arg8[%c8_184, %c0_185, %c0_186] : memref<9x256x256xbf16, #tpu.memory_space<vmem>>, vector<1x256x256xbf16>
    %262 = vector.shape_cast %261 : vector<1x256x256xbf16> to vector<256x256xbf16>
    %cst_187 = arith.constant dense<0.000000e+00> : vector<8x256xf32>
    %263 = tpu.matmul %260, %262, %cst_187 {dimension_numbers = #tpu.dot_dimension_numbers<[1], [0], [0], [1], [0, 0, 1, 1], [], []>} : vector<8x256xbf16>, vector<256x256xbf16>, vector<8x256xf32> -> vector<8x256xf32>
    %264 = arith.addf %257, %263 : vector<8x256xf32>
    %c0_188 = arith.constant 0 : index
    %c0_189 = arith.constant 0 : index
    %265 = vector.load %arg9[%c0_188, %c0_189] : memref<1x256xf32, #tpu.memory_space<vmem>>, vector<1x256xf32>
    %266 = vector.broadcast %265 : vector<1x256xf32> to vector<8x256xf32>
    %267 = arith.addf %264, %266 : vector<8x256xf32>
    %cst_190 = arith.constant 0.000000e+00 : f32
    %268 = vector.broadcast %cst_190 : f32 to vector<8x256xf32>
    %269 = arith.maximumf %267, %268 : vector<8x256xf32>
    %270 = vector.shape_cast %269 : vector<8x256xf32> to vector<2x2x2x256xf32>
    %271 = vector.extract_strided_slice %270 {offsets = [0, 0, 0, 0], sizes = [1, 1, 2, 256], strides = [1, 1, 1, 1]} : vector<2x2x2x256xf32> to vector<1x1x2x256xf32>
    %272 = vector.shape_cast %271 : vector<1x1x2x256xf32> to vector<2x256xf32>
    %273 = vector.extract_strided_slice %270 {offsets = [0, 1, 0, 0], sizes = [1, 1, 2, 256], strides = [1, 1, 1, 1]} : vector<2x2x2x256xf32> to vector<1x1x2x256xf32>
    %274 = vector.shape_cast %273 : vector<1x1x2x256xf32> to vector<2x256xf32>
    %275 = tpu.concatenate %272, %274 in 1 : vector<2x256xf32>, vector<2x256xf32> -> vector<2x512xf32>
    %c0_191 = arith.constant 0 : index
    %c0_192 = arith.constant 0 : index
    %276 = vector.load %arg10[%c0_191, %c0_192] : memref<40x2xf32, #tpu.memory_space<vmem>>, vector<40x2xf32>
    %cst_193 = arith.constant dense<0.000000e+00> : vector<40x512xf32>
    %277 = tpu.matmul %276, %275, %cst_193 {dimension_numbers = #tpu.dot_dimension_numbers<[1], [0], [0], [1], [0, 0, 1, 1], [], []>} : vector<40x2xf32>, vector<2x512xf32>, vector<40x512xf32> -> vector<40x512xf32>
    %c0_194 = arith.constant 0 : index
    %c0_195 = arith.constant 0 : index
    %c0_196 = arith.constant 0 : index
    %278 = vector.load %arg11[%c0_194, %c0_195, %c0_196] : memref<2x40x512xf32, #tpu.memory_space<vmem>>, vector<1x40x512xf32>
    %279 = vector.shape_cast %278 : vector<1x40x512xf32> to vector<40x512xf32>
    %280 = vector.shape_cast %277 : vector<40x512xf32> to vector<1x40x512xf32>
    tpu.vector_store %arg11[%c0_194, %c0_195, %c0_196], %280 {strides = array<i32>} : memref<2x40x512xf32, #tpu.memory_space<vmem>>, vector<1x40x512xf32>,
    %281 = vector.extract_strided_slice %270 {offsets = [1, 0, 0, 0], sizes = [1, 1, 2, 256], strides = [1, 1, 1, 1]} : vector<2x2x2x256xf32> to vector<1x1x2x256xf32>
    %282 = vector.shape_cast %281 : vector<1x1x2x256xf32> to vector<2x256xf32>
    %283 = vector.extract_strided_slice %270 {offsets = [1, 1, 0, 0], sizes = [1, 1, 2, 256], strides = [1, 1, 1, 1]} : vector<2x2x2x256xf32> to vector<1x1x2x256xf32>
    %284 = vector.shape_cast %283 : vector<1x1x2x256xf32> to vector<2x256xf32>
    %285 = tpu.concatenate %282, %284 in 1 : vector<2x256xf32>, vector<2x256xf32> -> vector<2x512xf32>
    %c0_197 = arith.constant 0 : index
    %c0_198 = arith.constant 0 : index
    %286 = vector.load %arg10[%c0_197, %c0_198] : memref<40x2xf32, #tpu.memory_space<vmem>>, vector<40x2xf32>
    %cst_199 = arith.constant dense<0.000000e+00> : vector<40x512xf32>
    %287 = tpu.matmul %286, %285, %cst_199 {dimension_numbers = #tpu.dot_dimension_numbers<[1], [0], [0], [1], [0, 0, 1, 1], [], []>} : vector<40x2xf32>, vector<2x512xf32>, vector<40x512xf32> -> vector<40x512xf32>
    %c1_200 = arith.constant 1 : index
    %c0_201 = arith.constant 0 : index
    %c0_202 = arith.constant 0 : index
    %288 = vector.load %arg11[%c1_200, %c0_201, %c0_202] : memref<2x40x512xf32, #tpu.memory_space<vmem>>, vector<1x40x512xf32>
    %289 = vector.shape_cast %288 : vector<1x40x512xf32> to vector<40x512xf32>
    %290 = vector.shape_cast %287 : vector<40x512xf32> to vector<1x40x512xf32>
    tpu.vector_store %arg11[%c1_200, %c0_201, %c0_202], %290 {strides = array<i32>} : memref<2x40x512xf32, #tpu.memory_space<vmem>>, vector<1x40x512xf32>,
    return
  }
  func.func @transform_0(%arg0: i32) -> (i32, i32, i32) {
    %c0_i32 = arith.constant 0 : i32
    %c0_i32_0 = arith.constant 0 : i32
    %c0_i32_1 = arith.constant 0 : i32
    return %arg0, %c0_i32, %c0_i32_0 : i32, i32, i32
  }
  func.func @transform_1(%arg0: i32) -> (i32, i32) {
    %c0_i32 = arith.constant 0 : i32
    %c0_i32_0 = arith.constant 0 : i32
    %c0_i32_1 = arith.constant 0 : i32
    return %c0_i32, %c0_i32_0 : i32, i32
  }
  func.func @transform_2(%arg0: i32) -> (i32, i32) {
    %c0_i32 = arith.constant 0 : i32
    %c0_i32_0 = arith.constant 0 : i32
    %c0_i32_1 = arith.constant 0 : i32
    return %c0_i32, %c0_i32_0 : i32, i32
  }
  func.func @transform_3(%arg0: i32) -> (i32, i32, i32) {
    %c0_i32 = arith.constant 0 : i32
    %c0_i32_0 = arith.constant 0 : i32
    %c0_i32_1 = arith.constant 0 : i32
    %c0_i32_2 = arith.constant 0 : i32
    return %c0_i32, %c0_i32_0, %c0_i32_1 : i32, i32, i32
  }
  func.func @transform_4(%arg0: i32) -> (i32, i32) {
    %c0_i32 = arith.constant 0 : i32
    %c0_i32_0 = arith.constant 0 : i32
    %c0_i32_1 = arith.constant 0 : i32
    return %c0_i32, %c0_i32_0 : i32, i32
  }
  func.func @transform_5(%arg0: i32) -> (i32, i32, i32) {
    %c0_i32 = arith.constant 0 : i32
    %c0_i32_0 = arith.constant 0 : i32
    %c0_i32_1 = arith.constant 0 : i32
    %c0_i32_2 = arith.constant 0 : i32
    return %c0_i32, %c0_i32_0, %c0_i32_1 : i32, i32, i32
  }
  func.func @transform_6(%arg0: i32) -> (i32, i32) {
    %c0_i32 = arith.constant 0 : i32
    %c0_i32_0 = arith.constant 0 : i32
    %c0_i32_1 = arith.constant 0 : i32
    return %c0_i32, %c0_i32_0 : i32, i32
  }
  func.func @transform_7(%arg0: i32) -> (i32, i32, i32) {
    %c0_i32 = arith.constant 0 : i32
    %c0_i32_0 = arith.constant 0 : i32
    %c0_i32_1 = arith.constant 0 : i32
    %c0_i32_2 = arith.constant 0 : i32
    return %c0_i32, %c0_i32_0, %c0_i32_1 : i32, i32, i32
  }
  func.func @transform_8(%arg0: i32) -> (i32, i32) {
    %c0_i32 = arith.constant 0 : i32
    %c0_i32_0 = arith.constant 0 : i32
    %c0_i32_1 = arith.constant 0 : i32
    return %c0_i32, %c0_i32_0 : i32, i32
  }
  func.func @transform_9(%arg0: i32) -> (i32, i32) {
    %c0_i32 = arith.constant 0 : i32
    %c0_i32_0 = arith.constant 0 : i32
    %c0_i32_1 = arith.constant 0 : i32
    return %c0_i32, %c0_i32_0 : i32, i32
  }
  func.func @transform_10(%arg0: i32) -> (i32, i32, i32) {
    %c0_i32 = arith.constant 0 : i32
    %c0_i32_0 = arith.constant 0 : i32
    %c0_i32_1 = arith.constant 0 : i32
    return %arg0, %c0_i32, %c0_i32_0 : i32, i32, i32
  }
}

</mosaic_0001>

<llo_original>
// kernel: fixed_cnn_forward.1
$region0: #{fixed_cnn_forward.1}
  #allocation0 [shape = 'u32[]', space=smem, size = 0x4, offset = 0x4, fixed_abs, tag = 'smem constant byte address 0x4 - core index']
  #allocation1 [shape = 'u32[144,128]{1,0:T(1,128)}', space=vmem, size = 0x12000, scoped, tag = 'internal scratch']
  #allocation2 [shape = 'f32[2,6,24,64]{3,2,1,0:T(8,128)}', space=vmem, size = 0x24000, scoped, tag = 'scratch operand']
  #allocation3 [shape = 'f32[2,4,16,128]{3,2,1,0:T(8,128)}', space=vmem, size = 0x10000, scoped, tag = 'scratch operand']
  #allocation4 [shape = 'f32[2,4,16,256]{3,2,1,0:T(8,128)}', space=vmem, size = 0x20000, scoped, tag = 'scratch operand']
  %s0 = inlined_call_operand.vmem [shape: bf16[4,128,32], index: 0, kind: input, shape index: {}]
  %s1 = inlined_call_operand.vmem [shape: bf16[32,64], index: 1, kind: input, shape index: {}]
  %s2 = inlined_call_operand.vmem [shape: f32[1,64], index: 2, kind: input, shape index: {}]
  %s3 = inlined_call_operand.vmem [shape: bf16[9,64,128], index: 3, kind: input, shape index: {}]
  %s4 = inlined_call_operand.vmem [shape: f32[1,128], index: 4, kind: input, shape index: {}]
  %s5 = inlined_call_operand.vmem [shape: bf16[9,128,256], index: 5, kind: input, shape index: {}]
  %s6 = inlined_call_operand.vmem [shape: f32[1,256], index: 6, kind: input, shape index: {}]
  %s7 = inlined_call_operand.vmem [shape: bf16[9,256,256], index: 7, kind: input, shape index: {}]
  %s8 = inlined_call_operand.vmem [shape: f32[1,256], index: 8, kind: input, shape index: {}]
  %s9 = inlined_call_operand.vmem [shape: f32[40,2], index: 9, kind: input, shape index: {}]
  %s10 = inlined_call_operand.vmem [shape: f32[4,40,512], index: 10, kind: output, shape index: {}]
  %s11 = sld [smem:[#allocation0]]
  $region73: #{fixed_cnn_forward.1} parent=0
    _
  %s13 = ssub.s32 1, %s11
  %s14 = scalar_select 0, %s13, %s11
  loop: start=0, step=1, limit=4
  $region2: #{fixed_cnn_forward.1} parent=0 // loop_pre_header
    _
  $region3: #{fixed_cnn_forward.1} parent=0 // loop_header
    %s16 = sphi 0, %s20
    %p17 = scmp.ge.s32.totalorder %s16, 4
    %s26 = sphi 0, %s28
    %s29 = sphi 0, %s26
    %s30 = sphi 0, %s29
    %s46 = sphi 0, %s30
    %s50 = sphi 0, %s50
    %s52 = sphi 0, %s50
    %s53 = sphi 0, %s52
    %s67 = sphi 0, %s53
    %s71 = sphi 0, %s71
    %s73 = sphi 0, %s71
    %s74 = sphi 0, %s73
    %s88 = sphi 0, %s74
    %s92 = sphi 0, %s92
    %s94 = sphi 0, %s92
    %s95 = sphi 0, %s94
    %s109 = sphi 0, %s95
    %s113 = sphi 0, %s113
    %s115 = sphi 0, %s113
    %s116 = sphi 0, %s115
    %s130 = sphi 0, %s116
    %s134 = sphi 0, %s134
    %s136 = sphi 0, %s134
    %s137 = sphi 0, %s136
    %s151 = sphi 0, %s137
    %s155 = sphi 0, %s155
    %s157 = sphi 0, %s155
    %s158 = sphi 0, %s157
    %s172 = sphi 0, %s158
    %s176 = sphi 0, %s176
    %s178 = sphi 0, %s176
    %s179 = sphi 0, %s178
    %s193 = sphi 0, %s179
    %s197 = sphi 0, %s197
    %s199 = sphi 0, %s197
    %s200 = sphi 0, %s199
    %s214 = sphi 0, %s200
    %s218 = sphi 0, %s218
    %s220 = sphi 0, %s218
    %s221 = sphi 0, %s220
    %s235 = sphi 0, %s221
    %s241 = sphi 0, %s243
    %s244 = sphi 0, %s241
    %s245 = sphi 0, %s244
    %s261 = sphi 0, %s245
  $region4: #{fixed_cnn_forward.1} parent=0 // loop_header_branch
    %19 = sbr.rel (%p17) target = $region8
  $region5: #{fixed_cnn_forward.1} parent=0 // loop_body
    %s21 = ssub.s32 %s16, 1
    %s22 = ssub.s32 %s16, 2
    %s23 = sadd.s32 %s16, 1
    %s24 = ssub.s32 %s16, %s23
    %p25 = scmp.eq.s32.totalorder %s24, 0
    %s27 = sadd.s32 %s26, 1
    %s28 = scalar_select %p25, %s26, %s27
    %p31 = pneg %p25
    %p32 = scmp.eq.s32.totalorder %s16, 1
    %p33 = por %p31, %p32
    %p34 = scmp.ne.s32.totalorder %s26, %s29
    %p35 = scmp.eq.s32.totalorder %s16, 0
    %p36 = por %p34, %p35
    %p37 = scmp.ne.s32.totalorder %s26, %s29
    %p38 = scmp.eq.s32.totalorder %s21, 1
    %p39 = por %p37, %p38
    %p40 = scmp.ne.s32.totalorder %s29, %s30
    %p41 = scmp.eq.s32.totalorder %s21, 0
    %p42 = por %p40, %p41
    %p43 = scmp.ne.s32.totalorder %s29, %s30
    %p44 = scmp.eq.s32.totalorder %s22, 1
    %p45 = por %p43, %p44
    %p47 = scmp.ne.s32.totalorder %s30, %s46
    %p48 = scmp.eq.s32.totalorder %s22, 0
    %p49 = por %p47, %p48
    %s51 = sadd.s32 %s50, 1
    %p54 = scmp.eq.s32.totalorder %s16, 1
    %p55 = scmp.ne.s32.totalorder %s50, %s52
    %p56 = scmp.eq.s32.totalorder %s16, 0
    %p57 = por %p55, %p56
    %p58 = scmp.ne.s32.totalorder %s50, %s52
    %p59 = scmp.eq.s32.totalorder %s21, 1
    %p60 = por %p58, %p59
    %p61 = scmp.ne.s32.totalorder %s52, %s53
    %p62 = scmp.eq.s32.totalorder %s21, 0
    %p63 = por %p61, %p62
    %p64 = scmp.ne.s32.totalorder %s52, %s53
    %p65 = scmp.eq.s32.totalorder %s22, 1
    %p66 = por %p64, %p65
    %p68 = scmp.ne.s32.totalorder %s53, %s67
    %p69 = scmp.eq.s32.totalorder %s22, 0
    %p70 = por %p68, %p69
    %s72 = sadd.s32 %s71, 1
    %p75 = scmp.eq.s32.totalorder %s16, 1
    %p76 = scmp.ne.s32.totalorder %s71, %s73
    %p77 = scmp.eq.s32.totalorder %s16, 0
    %p78 = por %p76, %p77
    %p79 = scmp.ne.s32.totalorder %s71, %s73
    %p80 = scmp.eq.s32.totalorder %s21, 1
    %p81 = por %p79, %p80
    %p82 = scmp.ne.s32.totalorder %s73, %s74
    %p83 = scmp.eq.s32.totalorder %s21, 0
    %p84 = por %p82, %p83
    %p85 = scmp.ne.s32.totalorder %s73, %s74
    %p86 = scmp.eq.s32.totalorder %s22, 1
    %p87 = por %p85, %p86
    %p89 = scmp.ne.s32.totalorder %s74, %s88
    %p90 = scmp.eq.s32.totalorder %s22, 0
    %p91 = por %p89, %p90
    %s93 = sadd.s32 %s92, 1
    %p96 = scmp.eq.s32.totalorder %s16, 1
    %p97 = scmp.ne.s32.totalorder %s92, %s94
    %p98 = scmp.eq.s32.totalorder %s16, 0
    %p99 = por %p97, %p98
    %p100 = scmp.ne.s32.totalorder %s92, %s94
    %p101 = scmp.eq.s32.totalorder %s21, 1
    %p102 = por %p100, %p101
    %p103 = scmp.ne.s32.totalorder %s94, %s95
    %p104 = scmp.eq.s32.totalorder %s21, 0
    %p105 = por %p103, %p104
    %p106 = scmp.ne.s32.totalorder %s94, %s95
    %p107 = scmp.eq.s32.totalorder %s22, 1
    %p108 = por %p106, %p107
    %p110 = scmp.ne.s32.totalorder %s95, %s109
    %p111 = scmp.eq.s32.totalorder %s22, 0
    %p112 = por %p110, %p111
    %s114 = sadd.s32 %s113, 1
    %p117 = scmp.eq.s32.totalorder %s16, 1
    %p118 = scmp.ne.s32.totalorder %s113, %s115
    %p119 = scmp.eq.s32.totalorder %s16, 0
    %p120 = por %p118, %p119
    %p121 = scmp.ne.s32.totalorder %s113, %s115
    %p122 = scmp.eq.s32.totalorder %s21, 1
    %p123 = por %p121, %p122
    %p124 = scmp.ne.s32.totalorder %s115, %s116
    %p125 = scmp.eq.s32.totalorder %s21, 0
    %p126 = por %p124, %p125
    %p127 = scmp.ne.s32.totalorder %s115, %s116
    %p128 = scmp.eq.s32.totalorder %s22, 1
    %p129 = por %p127, %p128
    %p131 = scmp.ne.s32.totalorder %s116, %s130
    %p132 = scmp.eq.s32.totalorder %s22, 0
    %p133 = por %p131, %p132
    %s135 = sadd.s32 %s134, 1
    %p138 = scmp.eq.s32.totalorder %s16, 1
    %p139 = scmp.ne.s32.totalorder %s134, %s136
    %p140 = scmp.eq.s32.totalorder %s16, 0
    %p141 = por %p139, %p140
    %p142 = scmp.ne.s32.totalorder %s134, %s136
    %p143 = scmp.eq.s32.totalorder %s21, 1
    %p144 = por %p142, %p143
    %p145 = scmp.ne.s32.totalorder %s136, %s137
    %p146 = scmp.eq.s32.totalorder %s21, 0
    %p147 = por %p145, %p146
    %p148 = scmp.ne.s32.totalorder %s136, %s137
    %p149 = scmp.eq.s32.totalorder %s22, 1
    %p150 = por %p148, %p149
    %p152 = scmp.ne.s32.totalorder %s137, %s151
    %p153 = scmp.eq.s32.totalorder %s22, 0
    %p154 = por %p152, %p153
    %s156 = sadd.s32 %s155, 1
    %p159 = scmp.eq.s32.totalorder %s16, 1
    %p160 = scmp.ne.s32.totalorder %s155, %s157
    %p161 = scmp.eq.s32.totalorder %s16, 0
    %p162 = por %p160, %p161
    %p163 = scmp.ne.s32.totalorder %s155, %s157
    %p164 = scmp.eq.s32.totalorder %s21, 1
    %p165 = por %p163, %p164
    %p166 = scmp.ne.s32.totalorder %s157, %s158
    %p167 = scmp.eq.s32.totalorder %s21, 0
    %p168 = por %p166, %p167
    %p169 = scmp.ne.s32.totalorder %s157, %s158
    %p170 = scmp.eq.s32.totalorder %s22, 1
    %p171 = por %p169, %p170
    %p173 = scmp.ne.s32.totalorder %s158, %s172
    %p174 = scmp.eq.s32.totalorder %s22, 0
    %p175 = por %p173, %p174
    %s177 = sadd.s32 %s176, 1
    %p180 = scmp.eq.s32.totalorder %s16, 1
    %p181 = scmp.ne.s32.totalorder %s176, %s178
    %p182 = scmp.eq.s32.totalorder %s16, 0
    %p183 = por %p181, %p182
    %p184 = scmp.ne.s32.totalorder %s176, %s178
    %p185 = scmp.eq.s32.totalorder %s21, 1
    %p186 = por %p184, %p185
    %p187 = scmp.ne.s32.totalorder %s178, %s179
    %p188 = scmp.eq.s32.totalorder %s21, 0
    %p189 = por %p187, %p188
    %p190 = scmp.ne.s32.totalorder %s178, %s179
    %p191 = scmp.eq.s32.totalorder %s22, 1
    %p192 = por %p190, %p191
    %p194 = scmp.ne.s32.totalorder %s179, %s193
    %p195 = scmp.eq.s32.totalorder %s22, 0
    %p196 = por %p194, %p195
    %s198 = sadd.s32 %s197, 1
    %p201 = scmp.eq.s32.totalorder %s16, 1
    %p202 = scmp.ne.s32.totalorder %s197, %s199
    %p203 = scmp.eq.s32.totalorder %s16, 0
    %p204 = por %p202, %p203
    %p205 = scmp.ne.s32.totalorder %s197, %s199
    %p206 = scmp.eq.s32.totalorder %s21, 1
    %p207 = por %p205, %p206
    %p208 = scmp.ne.s32.totalorder %s199, %s200
    %p209 = scmp.eq.s32.totalorder %s21, 0
    %p210 = por %p208, %p209
    %p211 = scmp.ne.s32.totalorder %s199, %s200
    %p212 = scmp.eq.s32.totalorder %s22, 1
    %p213 = por %p211, %p212
    %p215 = scmp.ne.s32.totalorder %s200, %s214
    %p216 = scmp.eq.s32.totalorder %s22, 0
    %p217 = por %p215, %p216
    %s219 = sadd.s32 %s218, 1
    %p222 = scmp.eq.s32.totalorder %s16, 1
    %p223 = scmp.ne.s32.totalorder %s218, %s220
    %p224 = scmp.eq.s32.totalorder %s16, 0
    %p225 = por %p223, %p224
    %p226 = scmp.ne.s32.totalorder %s218, %s220
    %p227 = scmp.eq.s32.totalorder %s21, 1
    %p228 = por %p226, %p227
    %p229 = scmp.ne.s32.totalorder %s220, %s221
    %p230 = scmp.eq.s32.totalorder %s21, 0
    %p231 = por %p229, %p230
    %p232 = scmp.ne.s32.totalorder %s220, %s221
    %p233 = scmp.eq.s32.totalorder %s22, 1
    %p234 = por %p232, %p233
    %p236 = scmp.ne.s32.totalorder %s221, %s235
    %p237 = scmp.eq.s32.totalorder %s22, 0
    %p238 = por %p236, %p237
    %s239 = ssub.s32 %s16, %s23
    %p240 = scmp.eq.s32.totalorder %s239, 0
    %s242 = sadd.s32 %s241, 1
    %s243 = scalar_select %p240, %s241, %s242
    %p246 = pneg %p240
    %p247 = scmp.eq.s32.totalorder %s16, 1
    %p248 = por %p246, %p247
    %p249 = scmp.ne.s32.totalorder %s241, %s244
    %p250 = scmp.eq.s32.totalorder %s16, 0
    %p251 = por %p249, %p250
    %p252 = scmp.ne.s32.totalorder %s241, %s244
    %p253 = scmp.eq.s32.totalorder %s21, 1
    %p254 = por %p252, %p253
    %p255 = scmp.ne.s32.totalorder %s244, %s245
    %p256 = scmp.eq.s32.totalorder %s21, 0
    %p257 = por %p255, %p256
    %p258 = scmp.ne.s32.totalorder %s244, %s245
    %p259 = scmp.eq.s32.totalorder %s22, 1
    %p260 = por %p258, %p259
    %p262 = scmp.ne.s32.totalorder %s245, %s261
    %p263 = scmp.eq.s32.totalorder %s22, 0
    %p264 = por %p262, %p263
    %p265 = scmp.le.s32.totalorder 1, %s16
    %p266 = scmp.lt.s32.totalorder %s16, 3
    %p267 = pnand %p265, %p266
    %p268 = pneg %p267
    // Predicated region
    $region9: #{fixed_cnn_forward.1} parent=5 // pred_check
      _
    $region10: #{fixed_cnn_forward.1} parent=5 // pred_check_branch
      %270 = sbr.rel (%p267) target = $region12
    $region11: #{fixed_cnn_forward.1} parent=5 // pred_region
      %s271 = ssub.s32 %s16, 1
      // Predicated region
      $region13: #{fixed_cnn_forward.1} parent=11 // pred_check
        %p272 = pneg %p63
      $region14: #{fixed_cnn_forward.1} parent=11 // pred_check_branch
        %274 = sbr.rel (%p272) target = $region16
      $region15: #{fixed_cnn_forward.1} parent=11 // pred_region
        _
      $region16: #{fixed_cnn_forward.1} parent=11 // pred_fallthru
        _
      // Predicated region
      $region17: #{fixed_cnn_forward.1} parent=11 // pred_check
        %p275 = pneg %p84
      $region18: #{fixed_cnn_forward.1} parent=11 // pred_check_branch
        %277 = sbr.rel (%p275) target = $region20
      $region19: #{fixed_cnn_forward.1} parent=11 // pred_region
        _
      $region20: #{fixed_cnn_forward.1} parent=11 // pred_fallthru
        _
      // Predicated region
      $region21: #{fixed_cnn_forward.1} parent=11 // pred_check
        %p278 = pneg %p105
      $region22: #{fixed_cnn_forward.1} parent=11 // pred_check_branch
        %280 = sbr.rel (%p278) target = $region24
      $region23: #{fixed_cnn_forward.1} parent=11 // pred_region
        _
      $region24: #{fixed_cnn_forward.1} parent=11 // pred_fallthru
        _
      // Predicated region
      $region25: #{fixed_cnn_forward.1} parent=11 // pred_check
        %p281 = pneg %p126
      $region26: #{fixed_cnn_forward.1} parent=11 // pred_check_branch
        %283 = sbr.rel (%p281) target = $region28
      $region27: #{fixed_cnn_forward.1} parent=11 // pred_region
        _
      $region28: #{fixed_cnn_forward.1} parent=11 // pred_fallthru
        _
      // Predicated region
      $region29: #{fixed_cnn_forward.1} parent=11 // pred_check
        %p284 = pneg %p147
      $region30: #{fixed_cnn_forward.1} parent=11 // pred_check_branch
        %286 = sbr.rel (%p284) target = $region32
      $region31: #{fixed_cnn_forward.1} parent=11 // pred_region
        _
      $region32: #{fixed_cnn_forward.1} parent=11 // pred_fallthru
        _
      // Predicated region
      $region33: #{fixed_cnn_forward.1} parent=11 // pred_check
        %p287 = pneg %p168
      $region34: #{fixed_cnn_forward.1} parent=11 // pred_check_branch
        %289 = sbr.rel (%p287) target = $region36
      $region35: #{fixed_cnn_forward.1} parent=11 // pred_region
        _
      $region36: #{fixed_cnn_forward.1} parent=11 // pred_fallthru
        _
      // Predicated region
      $region37: #{fixed_cnn_forward.1} parent=11 // pred_check
        %p290 = pneg %p189
      $region38: #{fixed_cnn_forward.1} parent=11 // pred_check_branch
        %292 = sbr.rel (%p290) target = $region40
      $region39: #{fixed_cnn_forward.1} parent=11 // pred_region
        _
      $region40: #{fixed_cnn_forward.1} parent=11 // pred_fallthru
        _
      // Predicated region
      $region41: #{fixed_cnn_forward.1} parent=11 // pred_check
        %p293 = pneg %p210
      $region42: #{fixed_cnn_forward.1} parent=11 // pred_check_branch
        %295 = sbr.rel (%p293) target = $region44
      $region43: #{fixed_cnn_forward.1} parent=11 // pred_region
        _
      $region44: #{fixed_cnn_forward.1} parent=11 // pred_fallthru
        _
      // Predicated region
      $region45: #{fixed_cnn_forward.1} parent=11 // pred_check
        %p296 = pneg %p231
      $region46: #{fixed_cnn_forward.1} parent=11 // pred_check_branch
        %298 = sbr.rel (%p296) target = $region48
      $region47: #{fixed_cnn_forward.1} parent=11 // pred_region
        _
      $region48: #{fixed_cnn_forward.1} parent=11 // pred_fallthru
        _
    $region12: #{fixed_cnn_forward.1} parent=5 // pred_fallthru
      _
    %p299 = scmp.lt.s32.totalorder %s16, 2
    // Predicated region
    $region49: #{fixed_cnn_forward.1} parent=5 // pred_check
      %p300 = pneg %p299
    $region50: #{fixed_cnn_forward.1} parent=5 // pred_check_branch
      %302 = sbr.rel (%p300) target = $region52
    $region51: #{fixed_cnn_forward.1} parent=5 // pred_region
      // Predicated region
      $region53: #{fixed_cnn_forward.1} parent=51 // pred_check
        %p303 = pneg %p36
      $region54: #{fixed_cnn_forward.1} parent=51 // pred_check_branch
        %305 = sbr.rel (%p303) target = $region56
      $region55: #{fixed_cnn_forward.1} parent=51 // pred_region
        %s306 = smul.u32 2, %s16
        %p307 = scmp.lt.s32.totalorder %s306, 3
        %s308 = scalar_select %p307, %s306, 3
        %s309 = smul.addr %s308, 16
        %s310 = smul.addr %s309, 4
        %s311 = scalar_lea.vmem %s0, %s310
        %s312 = smul.u32 2, %s16
      $region56: #{fixed_cnn_forward.1} parent=51 // pred_fallthru
        _
    $region52: #{fixed_cnn_forward.1} parent=5 // pred_fallthru
      _
    %p313 = scmp.le.s32.totalorder 1, %s16
    %p314 = scmp.lt.s32.totalorder %s16, 3
    %p315 = pnand %p313, %p314
    %p316 = pneg %p315
    // Predicated region
    $region57: #{fixed_cnn_forward.1} parent=5 // pred_check
      _
    $region58: #{fixed_cnn_forward.1} parent=5 // pred_check_branch
      %318 = sbr.rel (%p315) target = $region60
    $region59: #{fixed_cnn_forward.1} parent=5 // pred_region
      %s319 = ssub.s32 %s16, 1
      %s320 = smul.u32 2, %s21
      %p321 = scmp.lt.s32.totalorder %s320, 3
      %s322 = scalar_select %p321, %s320, 3
      %s323 = smul.addr %s322, 16
      %s324 = smul.addr %s323, 4
      %s325 = scalar_lea.vmem %s0, %s324
      %p326 = pneg %p42
      %p327 = pneg %p39
      %p328 = pneg %p63
      %p329 = pneg %p60
      %p330 = pneg %p84
      %p331 = pneg %p81
      %p332 = pneg %p105
      %p333 = pneg %p102
      %p334 = pneg %p126
      %p335 = pneg %p123
      %p336 = pneg %p147
      %p337 = pneg %p144
      %p338 = pneg %p168
      %p339 = pneg %p165
      %p340 = pneg %p189
      %p341 = pneg %p186
      %p342 = pneg %p210
      %p343 = pneg %p207
      %p344 = pneg %p231
      %p345 = pneg %p228
      %p346 = pneg %p257
      %p347 = pneg %p254
      %s348 = smul.u32 2, %s21
      %p349 = scmp.lt.s32.totalorder %s348, 3
      %s350 = scalar_select %p349, %s348, 3
      %s351 = smul.addr %s350, 20
      %s352 = smul.addr %s351, 8
      %s353 = scalar_lea.vmem %s10, %s352
      %s354 = smul.u32 2, %s21
      %p355 = scmp.lt.s32.totalorder %s354, 3
      %s356 = scalar_select %p355, %s354, 3
      %s357 = smul.addr %s356, 16
      %s358 = smul.addr %s357, 4
      %s359 = scalar_lea.vmem %s0, %s358
      %s360 = smul.u32 2, %s21
      %s361 = smul.u32 2, %s21
      %p362 = scmp.lt.s32.totalorder %s361, 3
      %s363 = scalar_select %p362, %s361, 3
      %s364 = smul.addr %s363, 20
      %s365 = smul.addr %s364, 8
      %s366 = scalar_lea.vmem %s10, %s365
      %s367 = smul.u32 2, %s21
      %v369 = vld [vmem:[%s359] sm:$0xf]
      %v370 = vld [vmem:[%s359 + $0x4] sm:$0xf]
      %v371 = vld [vmem:[%s359 + $0x8] sm:$0xf]
      %v372 = vld [vmem:[%s359 + $0xc] sm:$0xf]
      %v373 = vld [vmem:[%s359 + $0x10] sm:$0xf]
      %v374 = vld [vmem:[%s359 + $0x14] sm:$0xf]
      %v375 = vld [vmem:[%s359 + $0x18] sm:$0xf]
      %v376 = vld [vmem:[%s359 + $0x1c] sm:$0xf]
      %v377 = vld [vmem:[%s359 + $0x20] sm:$0xf]
      %v378 = vld [vmem:[%s359 + $0x24] sm:$0xf]
      %v379 = vld [vmem:[%s359 + $0x28] sm:$0xf]
      %v380 = vld [vmem:[%s359 + $0x2c] sm:$0xf]
      %v381 = vld [vmem:[%s359 + $0x30] sm:$0xf]
      %v382 = vld [vmem:[%s359 + $0x34] sm:$0xf]
      %v383 = vld [vmem:[%s359 + $0x38] sm:$0xf]
      %v384 = vld [vmem:[%s359 + $0x3c] sm:$0xf]
      %v385 = vld [vmem:[%s359 + $0x40] sm:$0xf]
      %v386 = vld [vmem:[%s359 + $0x44] sm:$0xf]
      %v387 = vld [vmem:[%s359 + $0x48] sm:$0xf]
      %v388 = vld [vmem:[%s359 + $0x4c] sm:$0xf]
      %v389 = vld [vmem:[%s359 + $0x50] sm:$0xf]
      %v390 = vld [vmem:[%s359 + $0x54] sm:$0xf]
      %v391 = vld [vmem:[%s359 + $0x58] sm:$0xf]
      %v392 = vld [vmem:[%s359 + $0x5c] sm:$0xf]
      %v393 = vld [vmem:[%s359 + $0x60] sm:$0xf]
      %v394 = vld [vmem:[%s359 + $0x64] sm:$0xf]
      %v395 = vld [vmem:[%s359 + $0x68] sm:$0xf]
      %v396 = vld [vmem:[%s359 + $0x6c] sm:$0xf]
      %v397 = vld [vmem:[%s359 + $0x70] sm:$0xf]
      %v398 = vld [vmem:[%s359 + $0x74] sm:$0xf]
      %v399 = vld [vmem:[%s359 + $0x78] sm:$0xf]
      %v400 = vld [vmem:[%s359 + $0x7c] sm:$0xf]
      %v401 = vld [vmem:[%s1] sm:$0xf]
      %v402 = vld [vmem:[%s1 + $0x4] sm:$0xf]
      %v403 = vld [vmem:[%s1 + $0x8] sm:$0xf]
      %v404 = vld [vmem:[%s1 + $0xc] sm:$0xf]
      %v405 = vld [vmem:[%s2] sm:$0x1]
      %v407 = vlaneseq
      %v408 = vshrl.u32 %v407, 7
      %v409 = vsub.s32 0, %v408
      %v410 = vrot.slane %v405, %v409
      %v444 = vunpack.c.l.b16 %v369
      %v445 = vunpack.c.l.b16 %v370
      %v446 = vunpack.c.l.b16 %v371
      %v447 = vunpack.c.l.b16 %v372
      %v448 = vunpack.c.l.b16 %v373
      %v449 = vunpack.c.l.b16 %v374
      %v450 = vunpack.c.l.b16 %v375
      %v451 = vunpack.c.l.b16 %v376
      %v452 = vunpack.c.l.b16 %v377
      %v453 = vunpack.c.l.b16 %v378
      %v454 = vunpack.c.l.b16 %v379
      %v455 = vunpack.c.l.b16 %v380
      %v456 = vunpack.c.l.b16 %v381
      %v457 = vunpack.c.l.b16 %v382
      %v458 = vunpack.c.l.b16 %v383
      %v459 = vunpack.c.l.b16 %v384
      %v460 = vunpack.c.l.b16 %v385
      %v461 = vunpack.c.l.b16 %v386
      %v462 = vunpack.c.l.b16 %v387
      %v463 = vunpack.c.l.b16 %v388
      %v464 = vunpack.c.l.b16 %v389
      %v465 = vunpack.c.l.b16 %v390
      %v466 = vunpack.c.l.b16 %v391
      %v467 = vunpack.c.l.b16 %v392
      %v468 = vunpack.c.l.b16 %v393
      %v469 = vunpack.c.l.b16 %v394
      %v470 = vunpack.c.l.b16 %v395
      %v471 = vunpack.c.l.b16 %v396
      %v472 = vunpack.c.l.b16 %v397
      %v473 = vunpack.c.l.b16 %v398
      %v474 = vunpack.c.l.b16 %v399
      %v475 = vunpack.c.l.b16 %v400
      %v476 = vpack.c.b16 %v445, %v444
      %v477 = vpack.c.b16 %v447, %v446
      %v478 = vpack.c.b16 %v449, %v448
      %v479 = vpack.c.b16 %v451, %v450
      %v480 = vpack.c.b16 %v453, %v452
      %v481 = vpack.c.b16 %v455, %v454
      %v482 = vpack.c.b16 %v457, %v456
      %v483 = vpack.c.b16 %v459, %v458
      %v484 = vpack.c.b16 %v461, %v460
      %v485 = vpack.c.b16 %v463, %v462
      %v486 = vpack.c.b16 %v465, %v464
      %v487 = vpack.c.b16 %v467, %v466
      %v488 = vpack.c.b16 %v469, %v468
      %v489 = vpack.c.b16 %v471, %v470
      %v490 = vpack.c.b16 %v473, %v472
      %v491 = vpack.c.b16 %v475, %v474
      %v496 = vunpack.c.l.b16 %v401
      %v497 = vunpack.c.l.b16 %v402
      %v498 = vunpack.c.l.b16 %v403
      %v499 = vunpack.c.l.b16 %v404
      %v500 = vpack.c.b16 %v497, %v496
      %v501 = vpack.c.b16 %v499, %v498
      %vm504 = vcmask 261120
      %v506 = vsel %vm504, %v476, 0
      %v509 = vsel %vm504, %v477, 0
      %v512 = vsel %vm504, %v478, 0
      %v515 = vsel %vm504, %v479, 0
      %v518 = vsel %vm504, %v480, 0
      %v521 = vsel %vm504, %v481, 0
      %v524 = vsel %vm504, %v482, 0
      %v527 = vsel %vm504, %v483, 0
      %v530 = vsel %vm504, %v484, 0
      %v533 = vsel %vm504, %v485, 0
      %v536 = vsel %vm504, %v486, 0
      %v539 = vsel %vm504, %v487, 0
      %v542 = vsel %vm504, %v488, 0
      %v545 = vsel %vm504, %v489, 0
      %v548 = vsel %vm504, %v490, 0
      %v551 = vsel %vm504, %v491, 0
      %553 = vmatprep.subr.bf16.mxu0 0
      %554 = vmatpush1.bf16.msra.mxu0 %v500
      %555 = vmatprep.subr.bf16.mxu0 0
      %556 = vmatpush1.bf16.msra.mxu0 %v501
      %557 = vmatprep.subr.bf16.mxu0 0
      %558 = vmatpush1.bf16.msra.mxu0 0
      %559 = vmatprep.subr.bf16.mxu0 0
      %560 = vmatpush1.bf16.msra.mxu0 0
      %561 = vmatprep.subr.bf16.mxu0 0
      %562 = vmatpush1.bf16.msra.mxu0 0
      %563 = vmatprep.subr.bf16.mxu0 0
      %564 = vmatpush1.bf16.msra.mxu0 0
      %565 = vmatprep.subr.bf16.mxu0 0
      %566 = vmatpush1.bf16.msra.mxu0 0
      %567 = vmatprep.subr.bf16.mxu0 0
      %568 = vmatpush1.bf16.msra.mxu0 0
      %569 = vmatprep.subr.bf16.mxu0 0
      %570 = vmatpush1.bf16.msra.mxu0 0
      %571 = vmatprep.subr.bf16.mxu0 0
      %572 = vmatpush1.bf16.msra.mxu0 0
      %573 = vmatprep.subr.bf16.mxu0 0
      %574 = vmatpush1.bf16.msra.mxu0 0
      %575 = vmatprep.subr.bf16.mxu0 0
      %576 = vmatpush1.bf16.msra.mxu0 0
      %577 = vmatprep.subr.bf16.mxu0 0
      %578 = vmatpush1.bf16.msra.mxu0 0
      %579 = vmatprep.subr.bf16.mxu0 0
      %580 = vmatpush1.bf16.msra.mxu0 0
      %581 = vmatprep.subr.bf16.mxu0 0
      %582 = vmatpush1.bf16.msra.mxu0 0
      %583 = vmatprep.subr.bf16.mxu0 0
      %584 = vmatpush1.bf16.msra.mxu0 0
      %585 = vmatprep.mubr.bf16.mxu0 0
      %586 = vmatmul.mubr.bf16.gmra.mrb[0].mxu0 %v506
      %v587 = vpop.f32.mrb[0].mxu0
      %v588 = vadd.f32 %v410, %v587
      %v589 = vpop.f32.mrb[0].mxu0
      %v590 = vpop.f32.mrb[0].mxu0
      %v591 = vadd.f32 %v410, %v590
      %v592 = vpop.f32.mrb[0].mxu0
      %593 = vmatprep.mubr.bf16.mxu0 0
      %594 = vmatmul.mubr.bf16.gmra.mrb[0].mxu0 %v509
      %v595 = vpop.f32.mrb[0].mxu0
      %v596 = vadd.f32 %v410, %v595
      %v597 = vpop.f32.mrb[0].mxu0
      %v598 = vpop.f32.mrb[0].mxu0
      %v599 = vadd.f32 %v410, %v598
      %v600 = vpop.f32.mrb[0].mxu0
      %601 = vmatprep.mubr.bf16.mxu0 0
      %602 = vmatmul.mubr.bf16.gmra.mrb[0].mxu0 %v512
      %v603 = vpop.f32.mrb[0].mxu0
      %v604 = vadd.f32 %v410, %v603
      %v605 = vpop.f32.mrb[0].mxu0
      %v606 = vpop.f32.mrb[0].mxu0
      %v607 = vadd.f32 %v410, %v606
      %v608 = vpop.f32.mrb[0].mxu0
      %609 = vmatprep.mubr.bf16.mxu0 0
      %610 = vmatmul.mubr.bf16.gmra.mrb[0].mxu0 %v515
      %v611 = vpop.f32.mrb[0].mxu0
      %v612 = vadd.f32 %v410, %v611
      %v613 = vpop.f32.mrb[0].mxu0
      %v614 = vpop.f32.mrb[0].mxu0
      %v615 = vadd.f32 %v410, %v614
      %v616 = vpop.f32.mrb[0].mxu0
      %617 = vmatprep.mubr.bf16.mxu0 0
      %618 = vmatmul.mubr.bf16.gmra.mrb[0].mxu0 %v518
      %v619 = vpop.f32.mrb[0].mxu0
      %v620 = vadd.f32 %v410, %v619
      %v621 = vpop.f32.mrb[0].mxu0
      %v622 = vpop.f32.mrb[0].mxu0
      %v623 = vadd.f32 %v410, %v622
      %v624 = vpop.f32.mrb[0].mxu0
      %625 = vmatprep.mubr.bf16.mxu0 0
      %626 = vmatmul.mubr.bf16.gmra.mrb[0].mxu0 %v521
      %v627 = vpop.f32.mrb[0].mxu0
      %v628 = vadd.f32 %v410, %v627
      %v629 = vpop.f32.mrb[0].mxu0
      %v630 = vpop.f32.mrb[0].mxu0
      %v631 = vadd.f32 %v410, %v630
      %v632 = vpop.f32.mrb[0].mxu0
      %633 = vmatprep.mubr.bf16.mxu0 0
      %634 = vmatmul.mubr.bf16.gmra.mrb[0].mxu0 %v524
      %v635 = vpop.f32.mrb[0].mxu0
      %v636 = vadd.f32 %v410, %v635
      %v637 = vpop.f32.mrb[0].mxu0
      %v638 = vpop.f32.mrb[0].mxu0
      %v639 = vadd.f32 %v410, %v638
      %v640 = vpop.f32.mrb[0].mxu0
      %641 = vmatprep.mubr.bf16.mxu0 0
      %642 = vmatmul.mubr.bf16.gmra.mrb[0].mxu0 %v527
      %v643 = vpop.f32.mrb[0].mxu0
      %v644 = vadd.f32 %v410, %v643
      %v645 = vpop.f32.mrb[0].mxu0
      %v646 = vpop.f32.mrb[0].mxu0
      %v647 = vadd.f32 %v410, %v646
      %v648 = vpop.f32.mrb[0].mxu0
      %649 = vmatprep.mubr.bf16.mxu0 0
      %650 = vmatmul.mubr.bf16.gmra.mrb[0].mxu0 %v530
      %v651 = vpop.f32.mrb[0].mxu0
      %v652 = vadd.f32 %v410, %v651
      %v653 = vpop.f32.mrb[0].mxu0
      %v654 = vpop.f32.mrb[0].mxu0
      %v655 = vadd.f32 %v410, %v654
      %v656 = vpop.f32.mrb[0].mxu0
      %657 = vmatprep.mubr.bf16.mxu0 0
      %658 = vmatmul.mubr.bf16.gmra.mrb[0].mxu0 %v533
      %v659 = vpop.f32.mrb[0].mxu0
      %v660 = vadd.f32 %v410, %v659
      %v661 = vpop.f32.mrb[0].mxu0
      %v662 = vpop.f32.mrb[0].mxu0
      %v663 = vadd.f32 %v410, %v662
      %v664 = vpop.f32.mrb[0].mxu0
      %665 = vmatprep.mubr.bf16.mxu0 0
      %666 = vmatmul.mubr.bf16.gmra.mrb[0].mxu0 %v536
      %v667 = vpop.f32.mrb[0].mxu0
      %v668 = vadd.f32 %v410, %v667
      %v669 = vpop.f32.mrb[0].mxu0
      %v670 = vpop.f32.mrb[0].mxu0
      %v671 = vadd.f32 %v410, %v670
      %v672 = vpop.f32.mrb[0].mxu0
      %673 = vmatprep.mubr.bf16.mxu0 0
      %674 = vmatmul.mubr.bf16.gmra.mrb[0].mxu0 %v539
      %v675 = vpop.f32.mrb[0].mxu0
      %v676 = vadd.f32 %v410, %v675
      %v677 = vpop.f32.mrb[0].mxu0
      %v678 = vpop.f32.mrb[0].mxu0
      %v679 = vadd.f32 %v410, %v678
      %v680 = vpop.f32.mrb[0].mxu0
      %681 = vmatprep.mubr.bf16.mxu0 0
      %682 = vmatmul.mubr.bf16.gmra.mrb[0].mxu0 %v542
      %v683 = vpop.f32.mrb[0].mxu0
      %v684 = vadd.f32 %v410, %v683
      %v685 = vpop.f32.mrb[0].mxu0
      %v686 = vpop.f32.mrb[0].mxu0
      %v687 = vadd.f32 %v410, %v686
      %v688 = vpop.f32.mrb[0].mxu0
      %689 = vmatprep.mubr.bf16.mxu0 0
      %690 = vmatmul.mubr.bf16.gmra.mrb[0].mxu0 %v545
      %v691 = vpop.f32.mrb[0].mxu0
      %v692 = vadd.f32 %v410, %v691
      %v693 = vpop.f32.mrb[0].mxu0
      %v694 = vpop.f32.mrb[0].mxu0
      %v695 = vadd.f32 %v410, %v694
      %v696 = vpop.f32.mrb[0].mxu0
      %697 = vmatprep.mubr.bf16.mxu0 0
      %698 = vmatmul.mubr.bf16.gmra.mrb[0].mxu0 %v548
      %v699 = vpop.f32.mrb[0].mxu0
      %v700 = vadd.f32 %v410, %v699
      %v701 = vpop.f32.mrb[0].mxu0
      %v702 = vpop.f32.mrb[0].mxu0
      %v703 = vadd.f32 %v410, %v702
      %v704 = vpop.f32.mrb[0].mxu0
      %705 = vmatprep.mubr.bf16.mxu0 0
      %706 = vmatmul.mubr.bf16.gmra.mrb[0].mxu0 %v551
      %v707 = vpop.f32.mrb[0].mxu0
      %v708 = vadd.f32 %v410, %v707
      %v709 = vpop.f32.mrb[0].mxu0
      %v710 = vpop.f32.mrb[0].mxu0
      %v711 = vadd.f32 %v410, %v710
      %v712 = vpop.f32.mrb[0].mxu0
      %713 = vdwg.mxu0
      %v714 = vmax.f32 %v588, 0.0
      %v715 = vmax.f32 %v591, 0.0
      %v716 = vmax.f32 %v596, 0.0
      %v717 = vmax.f32 %v599, 0.0
      %v718 = vmax.f32 %v604, 0.0
      %v719 = vmax.f32 %v607, 0.0
      %v720 = vmax.f32 %v612, 0.0
      %v721 = vmax.f32 %v615, 0.0
      %v722 = vmax.f32 %v620, 0.0
      %v723 = vmax.f32 %v623, 0.0
      %v724 = vmax.f32 %v628, 0.0
      %v725 = vmax.f32 %v631, 0.0
      %v726 = vmax.f32 %v636, 0.0
      %v727 = vmax.f32 %v639, 0.0
      %v728 = vmax.f32 %v644, 0.0
      %v729 = vmax.f32 %v647, 0.0
      %v730 = vmax.f32 %v652, 0.0
      %v731 = vmax.f32 %v655, 0.0
      %v732 = vmax.f32 %v660, 0.0
      %v733 = vmax.f32 %v663, 0.0
      %v734 = vmax.f32 %v668, 0.0
      %v735 = vmax.f32 %v671, 0.0
      %v736 = vmax.f32 %v676, 0.0
      %v737 = vmax.f32 %v679, 0.0
      %v738 = vmax.f32 %v684, 0.0
      %v739 = vmax.f32 %v687, 0.0
      %v740 = vmax.f32 %v692, 0.0
      %v741 = vmax.f32 %v695, 0.0
      %v742 = vmax.f32 %v700, 0.0
      %v743 = vmax.f32 %v703, 0.0
      %v744 = vmax.f32 %v708, 0.0
      %v745 = vmax.f32 %v711, 0.0
      %v778 = vcombine.high %v714, %v714
      %v780 = vunpack.c.l.s4 1983009808
      %v781 = vunpack.c.0.s8 %v780
      %v782 = vlaneseq
      %v783 = vshrl.u32 %v782, 7
      %v784 = vsub.s32 %v781, %v783
      %v785 = vrot.slane %v714, %v784
      %v787 = vunpack.c.l.s4 1983009808
      %v788 = vunpack.c.0.s8 %v787
      %v789 = vlaneseq
      %v790 = vshrl.u32 %v789, 7
      %v791 = vsub.s32 %v788, %v790
      %v792 = vrot.slane %v778, %v791
      %v793 = vcombine.high %v785, %v785
      %v794 = vcombine.high %v792, %v792
      %v795 = vcombine.high %v715, %v715
      %v797 = vunpack.c.l.s4 1983009808
      %v798 = vunpack.c.0.s8 %v797
      %v799 = vlaneseq
      %v800 = vshrl.u32 %v799, 7
      %v801 = vsub.s32 %v798, %v800
      %v802 = vrot.slane %v715, %v801
      %v804 = vunpack.c.l.s4 1983009808
      %v805 = vunpack.c.0.s8 %v804
      %v806 = vlaneseq
      %v807 = vshrl.u32 %v806, 7
      %v808 = vsub.s32 %v805, %v807
      %v809 = vrot.slane %v795, %v808
      %v810 = vcombine.high %v802, %v802
      %v811 = vcombine.high %v809, %v809
      %v812 = vcombine.high %v716, %v716
      %v814 = vunpack.c.l.s4 1983009808
      %v815 = vunpack.c.0.s8 %v814
      %v816 = vlaneseq
      %v817 = vshrl.u32 %v816, 7
      %v818 = vsub.s32 %v815, %v817
      %v819 = vrot.slane %v716, %v818
      %v821 = vunpack.c.l.s4 1983009808
      %v822 = vunpack.c.0.s8 %v821
      %v823 = vlaneseq
      %v824 = vshrl.u32 %v823, 7
      %v825 = vsub.s32 %v822, %v824
      %v826 = vrot.slane %v812, %v825
      %v827 = vcombine.high %v819, %v819
      %v828 = vcombine.high %v826, %v826
      %v829 = vcombine.high %v717, %v717
      %v831 = vunpack.c.l.s4 1983009808
      %v832 = vunpack.c.0.s8 %v831
      %v833 = vlaneseq
      %v834 = vshrl.u32 %v833, 7
      %v835 = vsub.s32 %v832, %v834
      %v836 = vrot.slane %v717, %v835
      %v838 = vunpack.c.l.s4 1983009808
      %v839 = vunpack.c.0.s8 %v838
      %v840 = vlaneseq
      %v841 = vshrl.u32 %v840, 7
      %v842 = vsub.s32 %v839, %v841
      %v843 = vrot.slane %v829, %v842
      %v844 = vcombine.high %v836, %v836
      %v845 = vcombine.high %v843, %v843
      %v846 = vcombine.high %v718, %v718
      %v848 = vunpack.c.l.s4 1983009808
      %v849 = vunpack.c.0.s8 %v848
      %v850 = vlaneseq
      %v851 = vshrl.u32 %v850, 7
      %v852 = vsub.s32 %v849, %v851
      %v853 = vrot.slane %v718, %v852
      %v855 = vunpack.c.l.s4 1983009808
      %v856 = vunpack.c.0.s8 %v855
      %v857 = vlaneseq
      %v858 = vshrl.u32 %v857, 7
      %v859 = vsub.s32 %v856, %v858
      %v860 = vrot.slane %v846, %v859
      %v861 = vcombine.high %v853, %v853
      %v862 = vcombine.high %v860, %v860
      %v863 = vcombine.high %v719, %v719
      %v865 = vunpack.c.l.s4 1983009808
      %v866 = vunpack.c.0.s8 %v865
      %v867 = vlaneseq
      %v868 = vshrl.u32 %v867, 7
      %v869 = vsub.s32 %v866, %v868
      %v870 = vrot.slane %v719, %v869
      %v872 = vunpack.c.l.s4 1983009808
      %v873 = vunpack.c.0.s8 %v872
      %v874 = vlaneseq
      %v875 = vshrl.u32 %v874, 7
      %v876 = vsub.s32 %v873, %v875
      %v877 = vrot.slane %v863, %v876
      %v878 = vcombine.high %v870, %v870
      %v879 = vcombine.high %v877, %v877
      %v880 = vcombine.high %v720, %v720
      %v882 = vunpack.c.l.s4 1983009808
      %v883 = vunpack.c.0.s8 %v882
      %v884 = vlaneseq
      %v885 = vshrl.u32 %v884, 7
      %v886 = vsub.s32 %v883, %v885
      %v887 = vrot.slane %v720, %v886
      %v889 = vunpack.c.l.s4 1983009808
      %v890 = vunpack.c.0.s8 %v889
      %v891 = vlaneseq
      %v892 = vshrl.u32 %v891, 7
      %v893 = vsub.s32 %v890, %v892
      %v894 = vrot.slane %v880, %v893
      %v895 = vcombine.high %v887, %v887
      %v896 = vcombine.high %v894, %v894
      %v897 = vcombine.high %v721, %v721
      %v899 = vunpack.c.l.s4 1983009808
      %v900 = vunpack.c.0.s8 %v899
      %v901 = vlaneseq
      %v902 = vshrl.u32 %v901, 7
      %v903 = vsub.s32 %v900, %v902
      %v904 = vrot.slane %v721, %v903
      %v906 = vunpack.c.l.s4 1983009808
      %v907 = vunpack.c.0.s8 %v906
      %v908 = vlaneseq
      %v909 = vshrl.u32 %v908, 7
      %v910 = vsub.s32 %v907, %v909
      %v911 = vrot.slane %v897, %v910
      %v912 = vcombine.high %v904, %v904
      %v913 = vcombine.high %v911, %v911
      %v914 = vcombine.high %v722, %v722
      %v916 = vunpack.c.l.s4 1983009808
      %v917 = vunpack.c.0.s8 %v916
      %v918 = vlaneseq
      %v919 = vshrl.u32 %v918, 7
      %v920 = vsub.s32 %v917, %v919
      %v921 = vrot.slane %v722, %v920
      %v923 = vunpack.c.l.s4 1983009808
      %v924 = vunpack.c.0.s8 %v923
      %v925 = vlaneseq
      %v926 = vshrl.u32 %v925, 7
      %v927 = vsub.s32 %v924, %v926
      %v928 = vrot.slane %v914, %v927
      %v929 = vcombine.high %v921, %v921
      %v930 = vcombine.high %v928, %v928
      %v931 = vcombine.high %v723, %v723
      %v933 = vunpack.c.l.s4 1983009808
      %v934 = vunpack.c.0.s8 %v933
      %v935 = vlaneseq
      %v936 = vshrl.u32 %v935, 7
      %v937 = vsub.s32 %v934, %v936
      %v938 = vrot.slane %v723, %v937
      %v940 = vunpack.c.l.s4 1983009808
      %v941 = vunpack.c.0.s8 %v940
      %v942 = vlaneseq
      %v943 = vshrl.u32 %v942, 7
      %v944 = vsub.s32 %v941, %v943
      %v945 = vrot.slane %v931, %v944
      %v946 = vcombine.high %v938, %v938
      %v947 = vcombine.high %v945, %v945
      %v948 = vcombine.high %v724, %v724
      %v950 = vunpack.c.l.s4 1983009808
      %v951 = vunpack.c.0.s8 %v950
      %v952 = vlaneseq
      %v953 = vshrl.u32 %v952, 7
      %v954 = vsub.s32 %v951, %v953
      %v955 = vrot.slane %v724, %v954
      %v957 = vunpack.c.l.s4 1983009808
      %v958 = vunpack.c.0.s8 %v957
      %v959 = vlaneseq
      %v960 = vshrl.u32 %v959, 7
      %v961 = vsub.s32 %v958, %v960
      %v962 = vrot.slane %v948, %v961
      %v963 = vcombine.high %v955, %v955
      %v964 = vcombine.high %v962, %v962
      %v965 = vcombine.high %v725, %v725
      %v967 = vunpack.c.l.s4 1983009808
      %v968 = vunpack.c.0.s8 %v967
      %v969 = vlaneseq
      %v970 = vshrl.u32 %v969, 7
      %v971 = vsub.s32 %v968, %v970
      %v972 = vrot.slane %v725, %v971
      %v974 = vunpack.c.l.s4 1983009808
      %v975 = vunpack.c.0.s8 %v974
      %v976 = vlaneseq
      %v977 = vshrl.u32 %v976, 7
      %v978 = vsub.s32 %v975, %v977
      %v979 = vrot.slane %v965, %v978
      %v980 = vcombine.high %v972, %v972
      %v981 = vcombine.high %v979, %v979
      %v982 = vcombine.high %v726, %v726
      %v984 = vunpack.c.l.s4 1983009808
      %v985 = vunpack.c.0.s8 %v984
      %v986 = vlaneseq
      %v987 = vshrl.u32 %v986, 7
      %v988 = vsub.s32 %v985, %v987
      %v989 = vrot.slane %v726, %v988
      %v991 = vunpack.c.l.s4 1983009808
      %v992 = vunpack.c.0.s8 %v991
      %v993 = vlaneseq
      %v994 = vshrl.u32 %v993, 7
      %v995 = vsub.s32 %v992, %v994
      %v996 = vrot.slane %v982, %v995
      %v997 = vcombine.high %v989, %v989
      %v998 = vcombine.high %v996, %v996
      %v999 = vcombine.high %v727, %v727
      %v1001 = vunpack.c.l.s4 1983009808
      %v1002 = vunpack.c.0.s8 %v1001
      %v1003 = vlaneseq
      %v1004 = vshrl.u32 %v1003, 7
      %v1005 = vsub.s32 %v1002, %v1004
      %v1006 = vrot.slane %v727, %v1005
      %v1008 = vunpack.c.l.s4 1983009808
      %v1009 = vunpack.c.0.s8 %v1008
      %v1010 = vlaneseq
      %v1011 = vshrl.u32 %v1010, 7
      %v1012 = vsub.s32 %v1009, %v1011
      %v1013 = vrot.slane %v999, %v1012
      %v1014 = vcombine.high %v1006, %v1006
      %v1015 = vcombine.high %v1013, %v1013
      %v1016 = vcombine.high %v728, %v728
      %v1018 = vunpack.c.l.s4 1983009808
      %v1019 = vunpack.c.0.s8 %v1018
      %v1020 = vlaneseq
      %v1021 = vshrl.u32 %v1020, 7
      %v1022 = vsub.s32 %v1019, %v1021
      %v1023 = vrot.slane %v728, %v1022
      %v1025 = vunpack.c.l.s4 1983009808
      %v1026 = vunpack.c.0.s8 %v1025
      %v1027 = vlaneseq
      %v1028 = vshrl.u32 %v1027, 7
      %v1029 = vsub.s32 %v1026, %v1028
      %v1030 = vrot.slane %v1016, %v1029
      %v1031 = vcombine.high %v1023, %v1023
      %v1032 = vcombine.high %v1030, %v1030
      %v1033 = vcombine.high %v729, %v729
      %v1035 = vunpack.c.l.s4 1983009808
      %v1036 = vunpack.c.0.s8 %v1035
      %v1037 = vlaneseq
      %v1038 = vshrl.u32 %v1037, 7
      %v1039 = vsub.s32 %v1036, %v1038
      %v1040 = vrot.slane %v729, %v1039
      %v1042 = vunpack.c.l.s4 1983009808
      %v1043 = vunpack.c.0.s8 %v1042
      %v1044 = vlaneseq
      %v1045 = vshrl.u32 %v1044, 7
      %v1046 = vsub.s32 %v1043, %v1045
      %v1047 = vrot.slane %v1033, %v1046
      %v1048 = vcombine.high %v1040, %v1040
      %v1049 = vcombine.high %v1047, %v1047
      %v1050 = vcombine.high %v730, %v730
      %v1052 = vunpack.c.l.s4 1983009808
      %v1053 = vunpack.c.0.s8 %v1052
      %v1054 = vlaneseq
      %v1055 = vshrl.u32 %v1054, 7
      %v1056 = vsub.s32 %v1053, %v1055
      %v1057 = vrot.slane %v730, %v1056
      %v1059 = vunpack.c.l.s4 1983009808
      %v1060 = vunpack.c.0.s8 %v1059
      %v1061 = vlaneseq
      %v1062 = vshrl.u32 %v1061, 7
      %v1063 = vsub.s32 %v1060, %v1062
      %v1064 = vrot.slane %v1050, %v1063
      %v1065 = vcombine.high %v1057, %v1057
      %v1066 = vcombine.high %v1064, %v1064
      %v1067 = vcombine.high %v731, %v731
      %v1069 = vunpack.c.l.s4 1983009808
      %v1070 = vunpack.c.0.s8 %v1069
      %v1071 = vlaneseq
      %v1072 = vshrl.u32 %v1071, 7
      %v1073 = vsub.s32 %v1070, %v1072
      %v1074 = vrot.slane %v731, %v1073
      %v1076 = vunpack.c.l.s4 1983009808
      %v1077 = vunpack.c.0.s8 %v1076
      %v1078 = vlaneseq
      %v1079 = vshrl.u32 %v1078, 7
      %v1080 = vsub.s32 %v1077, %v1079
      %v1081 = vrot.slane %v1067, %v1080
      %v1082 = vcombine.high %v1074, %v1074
      %v1083 = vcombine.high %v1081, %v1081
      %v1084 = vcombine.high %v732, %v732
      %v1086 = vunpack.c.l.s4 1983009808
      %v1087 = vunpack.c.0.s8 %v1086
      %v1088 = vlaneseq
      %v1089 = vshrl.u32 %v1088, 7
      %v1090 = vsub.s32 %v1087, %v1089
      %v1091 = vrot.slane %v732, %v1090
      %v1093 = vunpack.c.l.s4 1983009808
      %v1094 = vunpack.c.0.s8 %v1093
      %v1095 = vlaneseq
      %v1096 = vshrl.u32 %v1095, 7
      %v1097 = vsub.s32 %v1094, %v1096
      %v1098 = vrot.slane %v1084, %v1097
      %v1099 = vcombine.high %v1091, %v1091
      %v1100 = vcombine.high %v1098, %v1098
      %v1101 = vcombine.high %v733, %v733
      %v1103 = vunpack.c.l.s4 1983009808
      %v1104 = vunpack.c.0.s8 %v1103
      %v1105 = vlaneseq
      %v1106 = vshrl.u32 %v1105, 7
      %v1107 = vsub.s32 %v1104, %v1106
      %v1108 = vrot.slane %v733, %v1107
      %v1110 = vunpack.c.l.s4 1983009808
      %v1111 = vunpack.c.0.s8 %v1110
      %v1112 = vlaneseq
      %v1113 = vshrl.u32 %v1112, 7
      %v1114 = vsub.s32 %v1111, %v1113
      %v1115 = vrot.slane %v1101, %v1114
      %v1116 = vcombine.high %v1108, %v1108
      %v1117 = vcombine.high %v1115, %v1115
      %v1118 = vcombine.high %v734, %v734
      %v1120 = vunpack.c.l.s4 1983009808
      %v1121 = vunpack.c.0.s8 %v1120
      %v1122 = vlaneseq
      %v1123 = vshrl.u32 %v1122, 7
      %v1124 = vsub.s32 %v1121, %v1123
      %v1125 = vrot.slane %v734, %v1124
      %v1127 = vunpack.c.l.s4 1983009808
      %v1128 = vunpack.c.0.s8 %v1127
      %v1129 = vlaneseq
      %v1130 = vshrl.u32 %v1129, 7
      %v1131 = vsub.s32 %v1128, %v1130
      %v1132 = vrot.slane %v1118, %v1131
      %v1133 = vcombine.high %v1125, %v1125
      %v1134 = vcombine.high %v1132, %v1132
      %v1135 = vcombine.high %v735, %v735
      %v1137 = vunpack.c.l.s4 1983009808
      %v1138 = vunpack.c.0.s8 %v1137
      %v1139 = vlaneseq
      %v1140 = vshrl.u32 %v1139, 7
      %v1141 = vsub.s32 %v1138, %v1140
      %v1142 = vrot.slane %v735, %v1141
      %v1144 = vunpack.c.l.s4 1983009808
      %v1145 = vunpack.c.0.s8 %v1144
      %v1146 = vlaneseq
      %v1147 = vshrl.u32 %v1146, 7
      %v1148 = vsub.s32 %v1145, %v1147
      %v1149 = vrot.slane %v1135, %v1148
      %v1150 = vcombine.high %v1142, %v1142
      %v1151 = vcombine.high %v1149, %v1149
      %v1152 = vcombine.high %v736, %v736
      %v1154 = vunpack.c.l.s4 1983009808
      %v1155 = vunpack.c.0.s8 %v1154
      %v1156 = vlaneseq
      %v1157 = vshrl.u32 %v1156, 7
      %v1158 = vsub.s32 %v1155, %v1157
      %v1159 = vrot.slane %v736, %v1158
      %v1161 = vunpack.c.l.s4 1983009808
      %v1162 = vunpack.c.0.s8 %v1161
      %v1163 = vlaneseq
      %v1164 = vshrl.u32 %v1163, 7
      %v1165 = vsub.s32 %v1162, %v1164
      %v1166 = vrot.slane %v1152, %v1165
      %v1167 = vcombine.high %v1159, %v1159
      %v1168 = vcombine.high %v1166, %v1166
      %v1169 = vcombine.high %v737, %v737
      %v1171 = vunpack.c.l.s4 1983009808
      %v1172 = vunpack.c.0.s8 %v1171
      %v1173 = vlaneseq
      %v1174 = vshrl.u32 %v1173, 7
      %v1175 = vsub.s32 %v1172, %v1174
      %v1176 = vrot.slane %v737, %v1175
      %v1178 = vunpack.c.l.s4 1983009808
      %v1179 = vunpack.c.0.s8 %v1178
      %v1180 = vlaneseq
      %v1181 = vshrl.u32 %v1180, 7
      %v1182 = vsub.s32 %v1179, %v1181
      %v1183 = vrot.slane %v1169, %v1182
      %v1184 = vcombine.high %v1176, %v1176
      %v1185 = vcombine.high %v1183, %v1183
      %v1186 = vcombine.high %v738, %v738
      %v1188 = vunpack.c.l.s4 1983009808
      %v1189 = vunpack.c.0.s8 %v1188
      %v1190 = vlaneseq
      %v1191 = vshrl.u32 %v1190, 7
      %v1192 = vsub.s32 %v1189, %v1191
      %v1193 = vrot.slane %v738, %v1192
      %v1195 = vunpack.c.l.s4 1983009808
      %v1196 = vunpack.c.0.s8 %v1195
      %v1197 = vlaneseq
      %v1198 = vshrl.u32 %v1197, 7
      %v1199 = vsub.s32 %v1196, %v1198
      %v1200 = vrot.slane %v1186, %v1199
      %v1201 = vcombine.high %v1193, %v1193
      %v1202 = vcombine.high %v1200, %v1200
      %v1203 = vcombine.high %v739, %v739
      %v1205 = vunpack.c.l.s4 1983009808
      %v1206 = vunpack.c.0.s8 %v1205
      %v1207 = vlaneseq
      %v1208 = vshrl.u32 %v1207, 7
      %v1209 = vsub.s32 %v1206, %v1208
      %v1210 = vrot.slane %v739, %v1209
      %v1212 = vunpack.c.l.s4 1983009808
      %v1213 = vunpack.c.0.s8 %v1212
      %v1214 = vlaneseq
      %v1215 = vshrl.u32 %v1214, 7
      %v1216 = vsub.s32 %v1213, %v1215
      %v1217 = vrot.slane %v1203, %v1216
      %v1218 = vcombine.high %v1210, %v1210
      %v1219 = vcombine.high %v1217, %v1217
      %v1220 = vcombine.high %v740, %v740
      %v1222 = vunpack.c.l.s4 1983009808
      %v1223 = vunpack.c.0.s8 %v1222
      %v1224 = vlaneseq
      %v1225 = vshrl.u32 %v1224, 7
      %v1226 = vsub.s32 %v1223, %v1225
      %v1227 = vrot.slane %v740, %v1226
      %v1229 = vunpack.c.l.s4 1983009808
      %v1230 = vunpack.c.0.s8 %v1229
      %v1231 = vlaneseq
      %v1232 = vshrl.u32 %v1231, 7
      %v1233 = vsub.s32 %v1230, %v1232
      %v1234 = vrot.slane %v1220, %v1233
      %v1235 = vcombine.high %v1227, %v1227
      %v1236 = vcombine.high %v1234, %v1234
      %v1237 = vcombine.high %v741, %v741
      %v1239 = vunpack.c.l.s4 1983009808
      %v1240 = vunpack.c.0.s8 %v1239
      %v1241 = vlaneseq
      %v1242 = vshrl.u32 %v1241, 7
      %v1243 = vsub.s32 %v1240, %v1242
      %v1244 = vrot.slane %v741, %v1243
      %v1246 = vunpack.c.l.s4 1983009808
      %v1247 = vunpack.c.0.s8 %v1246
      %v1248 = vlaneseq
      %v1249 = vshrl.u32 %v1248, 7
      %v1250 = vsub.s32 %v1247, %v1249
      %v1251 = vrot.slane %v1237, %v1250
      %v1252 = vcombine.high %v1244, %v1244
      %v1253 = vcombine.high %v1251, %v1251
      %v1254 = vcombine.high %v742, %v742
      %v1256 = vunpack.c.l.s4 1983009808
      %v1257 = vunpack.c.0.s8 %v1256
      %v1258 = vlaneseq
      %v1259 = vshrl.u32 %v1258, 7
      %v1260 = vsub.s32 %v1257, %v1259
      %v1261 = vrot.slane %v742, %v1260
      %v1263 = vunpack.c.l.s4 1983009808
      %v1264 = vunpack.c.0.s8 %v1263
      %v1265 = vlaneseq
      %v1266 = vshrl.u32 %v1265, 7
      %v1267 = vsub.s32 %v1264, %v1266
      %v1268 = vrot.slane %v1254, %v1267
      %v1269 = vcombine.high %v1261, %v1261
      %v1270 = vcombine.high %v1268, %v1268
      %v1271 = vcombine.high %v743, %v743
      %v1273 = vunpack.c.l.s4 1983009808
      %v1274 = vunpack.c.0.s8 %v1273
      %v1275 = vlaneseq
      %v1276 = vshrl.u32 %v1275, 7
      %v1277 = vsub.s32 %v1274, %v1276
      %v1278 = vrot.slane %v743, %v1277
      %v1280 = vunpack.c.l.s4 1983009808
      %v1281 = vunpack.c.0.s8 %v1280
      %v1282 = vlaneseq
      %v1283 = vshrl.u32 %v1282, 7
      %v1284 = vsub.s32 %v1281, %v1283
      %v1285 = vrot.slane %v1271, %v1284
      %v1286 = vcombine.high %v1278, %v1278
      %v1287 = vcombine.high %v1285, %v1285
      %v1288 = vcombine.high %v744, %v744
      %v1290 = vunpack.c.l.s4 1983009808
      %v1291 = vunpack.c.0.s8 %v1290
      %v1292 = vlaneseq
      %v1293 = vshrl.u32 %v1292, 7
      %v1294 = vsub.s32 %v1291, %v1293
      %v1295 = vrot.slane %v744, %v1294
      %v1297 = vunpack.c.l.s4 1983009808
      %v1298 = vunpack.c.0.s8 %v1297
      %v1299 = vlaneseq
      %v1300 = vshrl.u32 %v1299, 7
      %v1301 = vsub.s32 %v1298, %v1300
      %v1302 = vrot.slane %v1288, %v1301
      %v1303 = vcombine.high %v1295, %v1295
      %v1304 = vcombine.high %v1302, %v1302
      %v1305 = vcombine.high %v745, %v745
      %v1307 = vunpack.c.l.s4 1983009808
      %v1308 = vunpack.c.0.s8 %v1307
      %v1309 = vlaneseq
      %v1310 = vshrl.u32 %v1309, 7
      %v1311 = vsub.s32 %v1308, %v1310
      %v1312 = vrot.slane %v745, %v1311
      %v1314 = vunpack.c.l.s4 1983009808
      %v1315 = vunpack.c.0.s8 %v1314
      %v1316 = vlaneseq
      %v1317 = vshrl.u32 %v1316, 7
      %v1318 = vsub.s32 %v1315, %v1317
      %v1319 = vrot.slane %v1305, %v1318
      %v1320 = vcombine.high %v1312, %v1312
      %v1321 = vcombine.high %v1319, %v1319
      %v1450 = vrot.slane %v785, 7
      %v1451 = vrot.slane %v1450, 2
      %v1452 = vrot.slane %v793, 7
      %v1453 = vrot.slane %v1452, 2
      %v1454 = vrot.slane %v792, 7
      %v1455 = vrot.slane %v1454, 2
      %v1456 = vrot.slane %v794, 7
      %v1457 = vrot.slane %v1456, 2
      %v1458 = vrot.slane %v802, 7
      %v1459 = vrot.slane %v1458, 2
      %v1460 = vrot.slane %v810, 7
      %v1461 = vrot.slane %v1460, 2
      %v1462 = vrot.slane %v809, 7
      %v1463 = vrot.slane %v1462, 2
      %v1464 = vrot.slane %v811, 7
      %v1465 = vrot.slane %v1464, 2
      %v1466 = vrot.slane %v819, 7
      %v1467 = vrot.slane %v1466, 2
      %v1468 = vrot.slane %v827, 7
      %v1469 = vrot.slane %v1468, 2
      %v1470 = vrot.slane %v826, 7
      %v1471 = vrot.slane %v1470, 2
      %v1472 = vrot.slane %v828, 7
      %v1473 = vrot.slane %v1472, 2
      %v1474 = vrot.slane %v836, 7
      %v1475 = vrot.slane %v1474, 2
      %v1476 = vrot.slane %v844, 7
      %v1477 = vrot.slane %v1476, 2
      %v1478 = vrot.slane %v843, 7
      %v1479 = vrot.slane %v1478, 2
      %v1480 = vrot.slane %v845, 7
      %v1481 = vrot.slane %v1480, 2
      %v1482 = vrot.slane %v853, 7
      %v1483 = vrot.slane %v1482, 2
      %v1484 = vrot.slane %v861, 7
      %v1485 = vrot.slane %v1484, 2
      %v1486 = vrot.slane %v860, 7
      %v1487 = vrot.slane %v1486, 2
      %v1488 = vrot.slane %v862, 7
      %v1489 = vrot.slane %v1488, 2
      %v1490 = vrot.slane %v870, 7
      %v1491 = vrot.slane %v1490, 2
      %v1492 = vrot.slane %v878, 7
      %v1493 = vrot.slane %v1492, 2
      %v1494 = vrot.slane %v877, 7
      %v1495 = vrot.slane %v1494, 2
      %v1496 = vrot.slane %v879, 7
      %v1497 = vrot.slane %v1496, 2
      %v1498 = vrot.slane %v887, 7
      %v1499 = vrot.slane %v1498, 2
      %v1500 = vrot.slane %v895, 7
      %v1501 = vrot.slane %v1500, 2
      %v1502 = vrot.slane %v894, 7
      %v1503 = vrot.slane %v1502, 2
      %v1504 = vrot.slane %v896, 7
      %v1505 = vrot.slane %v1504, 2
      %v1506 = vrot.slane %v904, 7
      %v1507 = vrot.slane %v1506, 2
      %v1508 = vrot.slane %v912, 7
      %v1509 = vrot.slane %v1508, 2
      %v1510 = vrot.slane %v911, 7
      %v1511 = vrot.slane %v1510, 2
      %v1512 = vrot.slane %v913, 7
      %v1513 = vrot.slane %v1512, 2
      %v1514 = vrot.slane %v921, 7
      %v1515 = vrot.slane %v1514, 2
      %v1516 = vrot.slane %v929, 7
      %v1517 = vrot.slane %v1516, 2
      %v1518 = vrot.slane %v928, 7
      %v1519 = vrot.slane %v1518, 2
      %v1520 = vrot.slane %v930, 7
      %v1521 = vrot.slane %v1520, 2
      %v1522 = vrot.slane %v938, 7
      %v1523 = vrot.slane %v1522, 2
      %v1524 = vrot.slane %v946, 7
      %v1525 = vrot.slane %v1524, 2
      %v1526 = vrot.slane %v945, 7
      %v1527 = vrot.slane %v1526, 2
      %v1528 = vrot.slane %v947, 7
      %v1529 = vrot.slane %v1528, 2
      %v1530 = vrot.slane %v955, 7
      %v1531 = vrot.slane %v1530, 2
      %v1532 = vrot.slane %v963, 7
      %v1533 = vrot.slane %v1532, 2
      %v1534 = vrot.slane %v962, 7
      %v1535 = vrot.slane %v1534, 2
      %v1536 = vrot.slane %v964, 7
      %v1537 = vrot.slane %v1536, 2
      %v1538 = vrot.slane %v972, 7
      %v1539 = vrot.slane %v1538, 2
      %v1540 = vrot.slane %v980, 7
      %v1541 = vrot.slane %v1540, 2
      %v1542 = vrot.slane %v979, 7
      %v1543 = vrot.slane %v1542, 2
      %v1544 = vrot.slane %v981, 7
      %v1545 = vrot.slane %v1544, 2
      %v1546 = vrot.slane %v989, 7
      %v1547 = vrot.slane %v1546, 2
      %v1548 = vrot.slane %v997, 7
      %v1549 = vrot.slane %v1548, 2
      %v1550 = vrot.slane %v996, 7
      %v1551 = vrot.slane %v1550, 2
      %v1552 = vrot.slane %v998, 7
      %v1553 = vrot.slane %v1552, 2
      %v1554 = vrot.slane %v1006, 7
      %v1555 = vrot.slane %v1554, 2
      %v1556 = vrot.slane %v1014, 7
      %v1557 = vrot.slane %v1556, 2
      %v1558 = vrot.slane %v1013, 7
      %v1559 = vrot.slane %v1558, 2
      %v1560 = vrot.slane %v1015, 7
      %v1561 = vrot.slane %v1560, 2
      %v1562 = vrot.slane %v1023, 7
      %v1563 = vrot.slane %v1562, 2
      %v1564 = vrot.slane %v1031, 7
      %v1565 = vrot.slane %v1564, 2
      %v1566 = vrot.slane %v1030, 7
      %v1567 = vrot.slane %v1566, 2
      %v1568 = vrot.slane %v1032, 7
      %v1569 = vrot.slane %v1568, 2
      %v1570 = vrot.slane %v1040, 7
      %v1571 = vrot.slane %v1570, 2
      %v1572 = vrot.slane %v1048, 7
      %v1573 = vrot.slane %v1572, 2
      %v1574 = vrot.slane %v1047, 7
      %v1575 = vrot.slane %v1574, 2
      %v1576 = vrot.slane %v1049, 7
      %v1577 = vrot.slane %v1576, 2
      %v1578 = vrot.slane %v1057, 7
      %v1579 = vrot.slane %v1578, 2
      %v1580 = vrot.slane %v1065, 7
      %v1581 = vrot.slane %v1580, 2
      %v1582 = vrot.slane %v1064, 7
      %v1583 = vrot.slane %v1582, 2
      %v1584 = vrot.slane %v1066, 7
      %v1585 = vrot.slane %v1584, 2
      %v1586 = vrot.slane %v1074, 7
      %v1587 = vrot.slane %v1586, 2
      %v1588 = vrot.slane %v1082, 7
      %v1589 = vrot.slane %v1588, 2
      %v1590 = vrot.slane %v1081, 7
      %v1591 = vrot.slane %v1590, 2
      %v1592 = vrot.slane %v1083, 7
      %v1593 = vrot.slane %v1592, 2
      %v1594 = vrot.slane %v1091, 7
      %v1595 = vrot.slane %v1594, 2
      %v1596 = vrot.slane %v1099, 7
      %v1597 = vrot.slane %v1596, 2
      %v1598 = vrot.slane %v1098, 7
      %v1599 = vrot.slane %v1598, 2
      %v1600 = vrot.slane %v1100, 7
      %v1601 = vrot.slane %v1600, 2
      %v1602 = vrot.slane %v1108, 7
      %v1603 = vrot.slane %v1602, 2
      %v1604 = vrot.slane %v1116, 7
      %v1605 = vrot.slane %v1604, 2
      %v1606 = vrot.slane %v1115, 7
      %v1607 = vrot.slane %v1606, 2
      %v1608 = vrot.slane %v1117, 7
      %v1609 = vrot.slane %v1608, 2
      %v1610 = vrot.slane %v1125, 7
      %v1611 = vrot.slane %v1610, 2
      %v1612 = vrot.slane %v1133, 7
      %v1613 = vrot.slane %v1612, 2
      %v1614 = vrot.slane %v1132, 7
      %v1615 = vrot.slane %v1614, 2
      %v1616 = vrot.slane %v1134, 7
      %v1617 = vrot.slane %v1616, 2
      %v1618 = vrot.slane %v1142, 7
      %v1619 = vrot.slane %v1618, 2
      %v1620 = vrot.slane %v1150, 7
      %v1621 = vrot.slane %v1620, 2
      %v1622 = vrot.slane %v1149, 7
      %v1623 = vrot.slane %v1622, 2
      %v1624 = vrot.slane %v1151, 7
      %v1625 = vrot.slane %v1624, 2
      %v1626 = vrot.slane %v1159, 7
      %v1627 = vrot.slane %v1626, 2
      %v1628 = vrot.slane %v1167, 7
      %v1629 = vrot.slane %v1628, 2
      %v1630 = vrot.slane %v1166, 7
      %v1631 = vrot.slane %v1630, 2
      %v1632 = vrot.slane %v1168, 7
      %v1633 = vrot.slane %v1632, 2
      %v1634 = vrot.slane %v1176, 7
      %v1635 = vrot.slane %v1634, 2
      %v1636 = vrot.slane %v1184, 7
      %v1637 = vrot.slane %v1636, 2
      %v1638 = vrot.slane %v1183, 7
      %v1639 = vrot.slane %v1638, 2
      %v1640 = vrot.slane %v1185, 7
      %v1641 = vrot.slane %v1640, 2
      %v1642 = vrot.slane %v1193, 7
      %v1643 = vrot.slane %v1642, 2
      %v1644 = vrot.slane %v1201, 7
      %v1645 = vrot.slane %v1644, 2
      %v1646 = vrot.slane %v1200, 7
      %v1647 = vrot.slane %v1646, 2
      %v1648 = vrot.slane %v1202, 7
      %v1649 = vrot.slane %v1648, 2
      %v1650 = vrot.slane %v1210, 7
      %v1651 = vrot.slane %v1650, 2
      %v1652 = vrot.slane %v1218, 7
      %v1653 = vrot.slane %v1652, 2
      %v1654 = vrot.slane %v1217, 7
      %v1655 = vrot.slane %v1654, 2
      %v1656 = vrot.slane %v1219, 7
      %v1657 = vrot.slane %v1656, 2
      %v1658 = vrot.slane %v1227, 7
      %v1659 = vrot.slane %v1658, 2
      %v1660 = vrot.slane %v1235, 7
      %v1661 = vrot.slane %v1660, 2
      %v1662 = vrot.slane %v1234, 7
      %v1663 = vrot.slane %v1662, 2
      %v1664 = vrot.slane %v1236, 7
      %v1665 = vrot.slane %v1664, 2
      %v1666 = vrot.slane %v1244, 7
      %v1667 = vrot.slane %v1666, 2
      %v1668 = vrot.slane %v1252, 7
      %v1669 = vrot.slane %v1668, 2
      %v1670 = vrot.slane %v1251, 7
      %v1671 = vrot.slane %v1670, 2
      %v1672 = vrot.slane %v1253, 7
      %v1673 = vrot.slane %v1672, 2
      %v1674 = vrot.slane %v1261, 7
      %v1675 = vrot.slane %v1674, 2
      %v1676 = vrot.slane %v1269, 7
      %v1677 = vrot.slane %v1676, 2
      %v1678 = vrot.slane %v1268, 7
      %v1679 = vrot.slane %v1678, 2
      %v1680 = vrot.slane %v1270, 7
      %v1681 = vrot.slane %v1680, 2
      %v1682 = vrot.slane %v1278, 7
      %v1683 = vrot.slane %v1682, 2
      %v1684 = vrot.slane %v1286, 7
      %v1685 = vrot.slane %v1684, 2
      %v1686 = vrot.slane %v1285, 7
      %v1687 = vrot.slane %v1686, 2
      %v1688 = vrot.slane %v1287, 7
      %v1689 = vrot.slane %v1688, 2
      %v1690 = vrot.slane %v1295, 7
      %v1691 = vrot.slane %v1690, 2
      %v1692 = vrot.slane %v1303, 7
      %v1693 = vrot.slane %v1692, 2
      %v1694 = vrot.slane %v1302, 7
      %v1695 = vrot.slane %v1694, 2
      %v1696 = vrot.slane %v1304, 7
      %v1697 = vrot.slane %v1696, 2
      %v1698 = vrot.slane %v1312, 7
      %v1699 = vrot.slane %v1698, 2
      %v1700 = vrot.slane %v1320, 7
      %v1701 = vrot.slane %v1700, 2
      %v1702 = vrot.slane %v1319, 7
      %v1703 = vrot.slane %v1702, 2
      %v1704 = vrot.slane %v1321, 7
      %v1705 = vrot.slane %v1704, 2
      %v1834 = vmax.f32 %v785, %v1451
      %v1835 = vmax.f32 %v793, %v1453
      %v1836 = vmax.f32 %v792, %v1455
      %v1837 = vmax.f32 %v794, %v1457
      %v1838 = vmax.f32 %v802, %v1459
      %v1839 = vmax.f32 %v810, %v1461
      %v1840 = vmax.f32 %v809, %v1463
      %v1841 = vmax.f32 %v811, %v1465
      %v1842 = vmax.f32 %v819, %v1467
      %v1843 = vmax.f32 %v827, %v1469
      %v1844 = vmax.f32 %v826, %v1471
      %v1845 = vmax.f32 %v828, %v1473
      %v1846 = vmax.f32 %v836, %v1475
      %v1847 = vmax.f32 %v844, %v1477
      %v1848 = vmax.f32 %v843, %v1479
      %v1849 = vmax.f32 %v845, %v1481
      %v1850 = vmax.f32 %v853, %v1483
      %v1851 = vmax.f32 %v861, %v1485
      %v1852 = vmax.f32 %v860, %v1487
      %v1853 = vmax.f32 %v862, %v1489
      %v1854 = vmax.f32 %v870, %v1491
      %v1855 = vmax.f32 %v878, %v1493
      %v1856 = vmax.f32 %v877, %v1495
      %v1857 = vmax.f32 %v879, %v1497
      %v1858 = vmax.f32 %v887, %v1499
      %v1859 = vmax.f32 %v895, %v1501
      %v1860 = vmax.f32 %v894, %v1503
      %v1861 = vmax.f32 %v896, %v1505
      %v1862 = vmax.f32 %v904, %v1507
      %v1863 = vmax.f32 %v912, %v1509
      %v1864 = vmax.f32 %v911, %v1511
      %v1865 = vmax.f32 %v913, %v1513
      %v1866 = vmax.f32 %v921, %v1515
      %v1867 = vmax.f32 %v929, %v1517
      %v1868 = vmax.f32 %v928, %v1519
      %v1869 = vmax.f32 %v930, %v1521
      %v1870 = vmax.f32 %v938, %v1523
      %v1871 = vmax.f32 %v946, %v1525
      %v1872 = vmax.f32 %v945, %v1527
      %v1873 = vmax.f32 %v947, %v1529
      %v1874 = vmax.f32 %v955, %v1531
      %v1875 = vmax.f32 %v963, %v1533
      %v1876 = vmax.f32 %v962, %v1535
      %v1877 = vmax.f32 %v964, %v1537
      %v1878 = vmax.f32 %v972, %v1539
      %v1879 = vmax.f32 %v980, %v1541
      %v1880 = vmax.f32 %v979, %v1543
      %v1881 = vmax.f32 %v981, %v1545
      %v1882 = vmax.f32 %v989, %v1547
      %v1883 = vmax.f32 %v997, %v1549
      %v1884 = vmax.f32 %v996, %v1551
      %v1885 = vmax.f32 %v998, %v1553
      %v1886 = vmax.f32 %v1006, %v1555
      %v1887 = vmax.f32 %v1014, %v1557
      %v1888 = vmax.f32 %v1013, %v1559
      %v1889 = vmax.f32 %v1015, %v1561
      %v1890 = vmax.f32 %v1023, %v1563
      %v1891 = vmax.f32 %v1031, %v1565
      %v1892 = vmax.f32 %v1030, %v1567
      %v1893 = vmax.f32 %v1032, %v1569
      %v1894 = vmax.f32 %v1040, %v1571
      %v1895 = vmax.f32 %v1048, %v1573
      %v1896 = vmax.f32 %v1047, %v1575
      %v1897 = vmax.f32 %v1049, %v1577
      %v1898 = vmax.f32 %v1057, %v1579
      %v1899 = vmax.f32 %v1065, %v1581
      %v1900 = vmax.f32 %v1064, %v1583
      %v1901 = vmax.f32 %v1066, %v1585
      %v1902 = vmax.f32 %v1074, %v1587
      %v1903 = vmax.f32 %v1082, %v1589
      %v1904 = vmax.f32 %v1081, %v1591
      %v1905 = vmax.f32 %v1083, %v1593
      %v1906 = vmax.f32 %v1091, %v1595
      %v1907 = vmax.f32 %v1099, %v1597
      %v1908 = vmax.f32 %v1098, %v1599
      %v1909 = vmax.f32 %v1100, %v1601
      %v1910 = vmax.f32 %v1108, %v1603
      %v1911 = vmax.f32 %v1116, %v1605
      %v1912 = vmax.f32 %v1115, %v1607
      %v1913 = vmax.f32 %v1117, %v1609
      %v1914 = vmax.f32 %v1125, %v1611
      %v1915 = vmax.f32 %v1133, %v1613
      %v1916 = vmax.f32 %v1132, %v1615
      %v1917 = vmax.f32 %v1134, %v1617
      %v1918 = vmax.f32 %v1142, %v1619
      %v1919 = vmax.f32 %v1150, %v1621
      %v1920 = vmax.f32 %v1149, %v1623
      %v1921 = vmax.f32 %v1151, %v1625
      %v1922 = vmax.f32 %v1159, %v1627
      %v1923 = vmax.f32 %v1167, %v1629
      %v1924 = vmax.f32 %v1166, %v1631
      %v1925 = vmax.f32 %v1168, %v1633
      %v1926 = vmax.f32 %v1176, %v1635
      %v1927 = vmax.f32 %v1184, %v1637
      %v1928 = vmax.f32 %v1183, %v1639
      %v1929 = vmax.f32 %v1185, %v1641
      %v1930 = vmax.f32 %v1193, %v1643
      %v1931 = vmax.f32 %v1201, %v1645
      %v1932 = vmax.f32 %v1200, %v1647
      %v1933 = vmax.f32 %v1202, %v1649
      %v1934 = vmax.f32 %v1210, %v1651
      %v1935 = vmax.f32 %v1218, %v1653
      %v1936 = vmax.f32 %v1217, %v1655
      %v1937 = vmax.f32 %v1219, %v1657
      %v1938 = vmax.f32 %v1227, %v1659
      %v1939 = vmax.f32 %v1235, %v1661
      %v1940 = vmax.f32 %v1234, %v1663
      %v1941 = vmax.f32 %v1236, %v1665
      %v1942 = vmax.f32 %v1244, %v1667
      %v1943 = vmax.f32 %v1252, %v1669
      %v1944 = vmax.f32 %v1251, %v1671
      %v1945 = vmax.f32 %v1253, %v1673
      %v1946 = vmax.f32 %v1261, %v1675
      %v1947 = vmax.f32 %v1269, %v1677
      %v1948 = vmax.f32 %v1268, %v1679
      %v1949 = vmax.f32 %v1270, %v1681
      %v1950 = vmax.f32 %v1278, %v1683
      %v1951 = vmax.f32 %v1286, %v1685
      %v1952 = vmax.f32 %v1285, %v1687
      %v1953 = vmax.f32 %v1287, %v1689
      %v1954 = vmax.f32 %v1295, %v1691
      %v1955 = vmax.f32 %v1303, %v1693
      %v1956 = vmax.f32 %v1302, %v1695
      %v1957 = vmax.f32 %v1304, %v1697
      %v1958 = vmax.f32 %v1312, %v1699
      %v1959 = vmax.f32 %v1320, %v1701
      %v1960 = vmax.f32 %v1319, %v1703
      %v1961 = vmax.f32 %v1321, %v1705
      %v1962 = vmax.f32 %v1834, %v1842
      %v1963 = vmax.f32 %v1835, %v1843
      %v1964 = vmax.f32 %v1836, %v1844
      %v1965 = vmax.f32 %v1837, %v1845
      %v1966 = vmax.f32 %v1838, %v1846
      %v1967 = vmax.f32 %v1839, %v1847
      %v1968 = vmax.f32 %v1840, %v1848
      %v1969 = vmax.f32 %v1841, %v1849
      %v1970 = vmax.f32 %v1850, %v1858
      %v1971 = vmax.f32 %v1851, %v1859
      %v1972 = vmax.f32 %v1852, %v1860
      %v1973 = vmax.f32 %v1853, %v1861
      %v1974 = vmax.f32 %v1854, %v1862
      %v1975 = vmax.f32 %v1855, %v1863
      %v1976 = vmax.f32 %v1856, %v1864
      %v1977 = vmax.f32 %v1857, %v1865
      %v1978 = vmax.f32 %v1866, %v1874
      %v1979 = vmax.f32 %v1867, %v1875
      %v1980 = vmax.f32 %v1868, %v1876
      %v1981 = vmax.f32 %v1869, %v1877
      %v1982 = vmax.f32 %v1870, %v1878
      %v1983 = vmax.f32 %v1871, %v1879
      %v1984 = vmax.f32 %v1872, %v1880
      %v1985 = vmax.f32 %v1873, %v1881
      %v1986 = vmax.f32 %v1882, %v1890
      %v1987 = vmax.f32 %v1883, %v1891
      %v1988 = vmax.f32 %v1884, %v1892
      %v1989 = vmax.f32 %v1885, %v1893
      %v1990 = vmax.f32 %v1886, %v1894
      %v1991 = vmax.f32 %v1887, %v1895
      %v1992 = vmax.f32 %v1888, %v1896
      %v1993 = vmax.f32 %v1889, %v1897
      %v1994 = vmax.f32 %v1898, %v1906
      %v1995 = vmax.f32 %v1899, %v1907
      %v1996 = vmax.f32 %v1900, %v1908
      %v1997 = vmax.f32 %v1901, %v1909
      %v1998 = vmax.f32 %v1902, %v1910
      %v1999 = vmax.f32 %v1903, %v1911
      %v2000 = vmax.f32 %v1904, %v1912
      %v2001 = vmax.f32 %v1905, %v1913
      %v2002 = vmax.f32 %v1914, %v1922
      %v2003 = vmax.f32 %v1915, %v1923
      %v2004 = vmax.f32 %v1916, %v1924
      %v2005 = vmax.f32 %v1917, %v1925
      %v2006 = vmax.f32 %v1918, %v1926
      %v2007 = vmax.f32 %v1919, %v1927
      %v2008 = vmax.f32 %v1920, %v1928
      %v2009 = vmax.f32 %v1921, %v1929
      %v2010 = vmax.f32 %v1930, %v1938
      %v2011 = vmax.f32 %v1931, %v1939
      %v2012 = vmax.f32 %v1932, %v1940
      %v2013 = vmax.f32 %v1933, %v1941
      %v2014 = vmax.f32 %v1934, %v1942
      %v2015 = vmax.f32 %v1935, %v1943
      %v2016 = vmax.f32 %v1936, %v1944
      %v2017 = vmax.f32 %v1937, %v1945
      %v2018 = vmax.f32 %v1946, %v1954
      %v2019 = vmax.f32 %v1947, %v1955
      %v2020 = vmax.f32 %v1948, %v1956
      %v2021 = vmax.f32 %v1949, %v1957
      %v2022 = vmax.f32 %v1950, %v1958
      %v2023 = vmax.f32 %v1951, %v1959
      %v2024 = vmax.f32 %v1952, %v1960
      %v2025 = vmax.f32 %v1953, %v1961
      %vm2026 = vcmask 523264
      %2027 = vst.msk [vmem:[#allocation2] sm:$0xff] %vm2026, 0.0
      %2028 = vst.msk [vmem:[#allocation2 + $0x8] sm:$0xff] %vm2026, 0.0
      %2029 = vst.msk [vmem:[#allocation2 + $0x10] sm:$0xff] %vm2026, 0.0
      %2030 = vst.msk [vmem:[#allocation2 + $0x90] sm:$0xff] %vm2026, 0.0
      %2031 = vst.msk [vmem:[#allocation2 + $0x98] sm:$0xff] %vm2026, 0.0
      %2032 = vst.msk [vmem:[#allocation2 + $0xa0] sm:$0xff] %vm2026, 0.0
      %s2033 = scalar_lea.vmem [#allocation2], 120
      %2034 = vst.msk [vmem:[%s2033] sm:$0xff] %vm2026, 0.0
      %2035 = vst.msk [vmem:[%s2033 + $0x8] sm:$0xff] %vm2026, 0.0
      %2036 = vst.msk [vmem:[%s2033 + $0x10] sm:$0xff] %vm2026, 0.0
      %2037 = vst.msk [vmem:[%s2033 + $0x90] sm:$0xff] %vm2026, 0.0
      %2038 = vst.msk [vmem:[%s2033 + $0x98] sm:$0xff] %vm2026, 0.0
      %2039 = vst.msk [vmem:[%s2033 + $0xa0] sm:$0xff] %vm2026, 0.0
      %s2040 = scalar_lea.vmem [#allocation2], 24
      %vm2041 = vcmask 516096
      %2042 = vst.msk [vmem:[%s2040 + $0x7] sm:$0x1] %vm2041, 0.0
      %2043 = vst.msk [vmem:[%s2040 + $0x1f] sm:$0x1] %vm2041, 0.0
      %2044 = vst.msk [vmem:[%s2040 + $0x37] sm:$0x1] %vm2041, 0.0
      %2045 = vst.msk [vmem:[%s2040 + $0x4f] sm:$0x1] %vm2041, 0.0
      %2046 = vst.msk [vmem:[%s2040 + $0x97] sm:$0x1] %vm2041, 0.0
      %2047 = vst.msk [vmem:[%s2040 + $0xaf] sm:$0x1] %vm2041, 0.0
      %2048 = vst.msk [vmem:[%s2040 + $0xc7] sm:$0x1] %vm2041, 0.0
      %2049 = vst.msk [vmem:[%s2040 + $0xdf] sm:$0x1] %vm2041, 0.0
      %2050 = vst.msk [vmem:[%s2040 + $0x10] sm:$0x1] %vm2041, 0.0
      %2051 = vst.msk [vmem:[%s2040 + $0x28] sm:$0x1] %vm2041, 0.0
      %2052 = vst.msk [vmem:[%s2040 + $0x40] sm:$0x1] %vm2041, 0.0
      %2053 = vst.msk [vmem:[%s2040 + $0x58] sm:$0x1] %vm2041, 0.0
      %2054 = vst.msk [vmem:[%s2040 + $0xa0] sm:$0x1] %vm2041, 0.0
      %2055 = vst.msk [vmem:[%s2040 + $0xb8] sm:$0x1] %vm2041, 0.0
      %2056 = vst.msk [vmem:[%s2040 + $0xd0] sm:$0x1] %vm2041, 0.0
      %2057 = vst.msk [vmem:[%s2040 + $0xe8] sm:$0x1] %vm2041, 0.0
      %v2122 = vlaneseq
      %v2123 = vshrl.u32 %v2122, 7
      %v2124 = vsub.s32 0, %v2123
      %v2125 = vrot.slane %v1962, %v2124
      %v2126 = vlaneseq
      %v2127 = vshrl.u32 %v2126, 7
      %v2128 = vsub.s32 0, %v2127
      %v2129 = vrot.slane %v1963, %v2128
      %v2130 = vlaneseq
      %v2131 = vshrl.u32 %v2130, 7
      %v2132 = vsub.s32 0, %v2131
      %v2133 = vrot.slane %v1964, %v2132
      %v2134 = vlaneseq
      %v2135 = vshrl.u32 %v2134, 7
      %v2136 = vsub.s32 0, %v2135
      %v2137 = vrot.slane %v1965, %v2136
      %v2138 = vlaneseq
      %v2139 = vshrl.u32 %v2138, 7
      %v2140 = vsub.s32 0, %v2139
      %v2141 = vrot.slane %v1966, %v2140
      %v2142 = vlaneseq
      %v2143 = vshrl.u32 %v2142, 7
      %v2144 = vsub.s32 0, %v2143
      %v2145 = vrot.slane %v1967, %v2144
      %v2146 = vlaneseq
      %v2147 = vshrl.u32 %v2146, 7
      %v2148 = vsub.s32 0, %v2147
      %v2149 = vrot.slane %v1968, %v2148
      %v2150 = vlaneseq
      %v2151 = vshrl.u32 %v2150, 7
      %v2152 = vsub.s32 0, %v2151
      %v2153 = vrot.slane %v1969, %v2152
      %v2154 = vlaneseq
      %v2155 = vshrl.u32 %v2154, 7
      %v2156 = vsub.s32 0, %v2155
      %v2157 = vrot.slane %v1970, %v2156
      %v2158 = vlaneseq
      %v2159 = vshrl.u32 %v2158, 7
      %v2160 = vsub.s32 0, %v2159
      %v2161 = vrot.slane %v1971, %v2160
      %v2162 = vlaneseq
      %v2163 = vshrl.u32 %v2162, 7
      %v2164 = vsub.s32 0, %v2163
      %v2165 = vrot.slane %v1972, %v2164
      %v2166 = vlaneseq
      %v2167 = vshrl.u32 %v2166, 7
      %v2168 = vsub.s32 0, %v2167
      %v2169 = vrot.slane %v1973, %v2168
      %v2170 = vlaneseq
      %v2171 = vshrl.u32 %v2170, 7
      %v2172 = vsub.s32 0, %v2171
      %v2173 = vrot.slane %v1974, %v2172
      %v2174 = vlaneseq
      %v2175 = vshrl.u32 %v2174, 7
      %v2176 = vsub.s32 0, %v2175
      %v2177 = vrot.slane %v1975, %v2176
      %v2178 = vlaneseq
      %v2179 = vshrl.u32 %v2178, 7
      %v2180 = vsub.s32 0, %v2179
      %v2181 = vrot.slane %v1976, %v2180
      %v2182 = vlaneseq
      %v2183 = vshrl.u32 %v2182, 7
      %v2184 = vsub.s32 0, %v2183
      %v2185 = vrot.slane %v1977, %v2184
      %v2186 = vlaneseq
      %v2187 = vshrl.u32 %v2186, 7
      %v2188 = vsub.s32 0, %v2187
      %v2189 = vrot.slane %v1978, %v2188
      %v2190 = vlaneseq
      %v2191 = vshrl.u32 %v2190, 7
      %v2192 = vsub.s32 0, %v2191
      %v2193 = vrot.slane %v1979, %v2192
      %v2194 = vlaneseq
      %v2195 = vshrl.u32 %v2194, 7
      %v2196 = vsub.s32 0, %v2195
      %v2197 = vrot.slane %v1980, %v2196
      %v2198 = vlaneseq
      %v2199 = vshrl.u32 %v2198, 7
      %v2200 = vsub.s32 0, %v2199
      %v2201 = vrot.slane %v1981, %v2200
      %v2202 = vlaneseq
      %v2203 = vshrl.u32 %v2202, 7
      %v2204 = vsub.s32 0, %v2203
      %v2205 = vrot.slane %v1982, %v2204
      %v2206 = vlaneseq
      %v2207 = vshrl.u32 %v2206, 7
      %v2208 = vsub.s32 0, %v2207
      %v2209 = vrot.slane %v1983, %v2208
      %v2210 = vlaneseq
      %v2211 = vshrl.u32 %v2210, 7
      %v2212 = vsub.s32 0, %v2211
      %v2213 = vrot.slane %v1984, %v2212
      %v2214 = vlaneseq
      %v2215 = vshrl.u32 %v2214, 7
      %v2216 = vsub.s32 0, %v2215
      %v2217 = vrot.slane %v1985, %v2216
      %v2218 = vlaneseq
      %v2219 = vshrl.u32 %v2218, 7
      %v2220 = vsub.s32 0, %v2219
      %v2221 = vrot.slane %v1986, %v2220
      %v2222 = vlaneseq
      %v2223 = vshrl.u32 %v2222, 7
      %v2224 = vsub.s32 0, %v2223
      %v2225 = vrot.slane %v1987, %v2224
      %v2226 = vlaneseq
      %v2227 = vshrl.u32 %v2226, 7
      %v2228 = vsub.s32 0, %v2227
      %v2229 = vrot.slane %v1988, %v2228
      %v2230 = vlaneseq
      %v2231 = vshrl.u32 %v2230, 7
      %v2232 = vsub.s32 0, %v2231
      %v2233 = vrot.slane %v1989, %v2232
      %v2234 = vlaneseq
      %v2235 = vshrl.u32 %v2234, 7
      %v2236 = vsub.s32 0, %v2235
      %v2237 = vrot.slane %v1990, %v2236
      %v2238 = vlaneseq
      %v2239 = vshrl.u32 %v2238, 7
      %v2240 = vsub.s32 0, %v2239
      %v2241 = vrot.slane %v1991, %v2240
      %v2242 = vlaneseq
      %v2243 = vshrl.u32 %v2242, 7
      %v2244 = vsub.s32 0, %v2243
      %v2245 = vrot.slane %v1992, %v2244
      %v2246 = vlaneseq
      %v2247 = vshrl.u32 %v2246, 7
      %v2248 = vsub.s32 0, %v2247
      %v2249 = vrot.slane %v1993, %v2248
      %v2250 = vlaneseq
      %v2251 = vshrl.u32 %v2250, 7
      %v2252 = vsub.s32 0, %v2251
      %v2253 = vrot.slane %v1994, %v2252
      %v2254 = vlaneseq
      %v2255 = vshrl.u32 %v2254, 7
      %v2256 = vsub.s32 0, %v2255
      %v2257 = vrot.slane %v1995, %v2256
      %v2258 = vlaneseq
      %v2259 = vshrl.u32 %v2258, 7
      %v2260 = vsub.s32 0, %v2259
      %v2261 = vrot.slane %v1996, %v2260
      %v2262 = vlaneseq
      %v2263 = vshrl.u32 %v2262, 7
      %v2264 = vsub.s32 0, %v2263
      %v2265 = vrot.slane %v1997, %v2264
      %v2266 = vlaneseq
      %v2267 = vshrl.u32 %v2266, 7
      %v2268 = vsub.s32 0, %v2267
      %v2269 = vrot.slane %v1998, %v2268
      %v2270 = vlaneseq
      %v2271 = vshrl.u32 %v2270, 7
      %v2272 = vsub.s32 0, %v2271
      %v2273 = vrot.slane %v1999, %v2272
      %v2274 = vlaneseq
      %v2275 = vshrl.u32 %v2274, 7
      %v2276 = vsub.s32 0, %v2275
      %v2277 = vrot.slane %v2000, %v2276
      %v2278 = vlaneseq
      %v2279 = vshrl.u32 %v2278, 7
      %v2280 = vsub.s32 0, %v2279
      %v2281 = vrot.slane %v2001, %v2280
      %v2282 = vlaneseq
      %v2283 = vshrl.u32 %v2282, 7
      %v2284 = vsub.s32 0, %v2283
      %v2285 = vrot.slane %v2002, %v2284
      %v2286 = vlaneseq
      %v2287 = vshrl.u32 %v2286, 7
      %v2288 = vsub.s32 0, %v2287
      %v2289 = vrot.slane %v2003, %v2288
      %v2290 = vlaneseq
      %v2291 = vshrl.u32 %v2290, 7
      %v2292 = vsub.s32 0, %v2291
      %v2293 = vrot.slane %v2004, %v2292
      %v2294 = vlaneseq
      %v2295 = vshrl.u32 %v2294, 7
      %v2296 = vsub.s32 0, %v2295
      %v2297 = vrot.slane %v2005, %v2296
      %v2298 = vlaneseq
      %v2299 = vshrl.u32 %v2298, 7
      %v2300 = vsub.s32 0, %v2299
      %v2301 = vrot.slane %v2006, %v2300
      %v2302 = vlaneseq
      %v2303 = vshrl.u32 %v2302, 7
      %v2304 = vsub.s32 0, %v2303
      %v2305 = vrot.slane %v2007, %v2304
      %v2306 = vlaneseq
      %v2307 = vshrl.u32 %v2306, 7
      %v2308 = vsub.s32 0, %v2307
      %v2309 = vrot.slane %v2008, %v2308
      %v2310 = vlaneseq
      %v2311 = vshrl.u32 %v2310, 7
      %v2312 = vsub.s32 0, %v2311
      %v2313 = vrot.slane %v2009, %v2312
      %v2314 = vlaneseq
      %v2315 = vshrl.u32 %v2314, 7
      %v2316 = vsub.s32 0, %v2315
      %v2317 = vrot.slane %v2010, %v2316
      %v2318 = vlaneseq
      %v2319 = vshrl.u32 %v2318, 7
      %v2320 = vsub.s32 0, %v2319
      %v2321 = vrot.slane %v2011, %v2320
      %v2322 = vlaneseq
      %v2323 = vshrl.u32 %v2322, 7
      %v2324 = vsub.s32 0, %v2323
      %v2325 = vrot.slane %v2012, %v2324
      %v2326 = vlaneseq
      %v2327 = vshrl.u32 %v2326, 7
      %v2328 = vsub.s32 0, %v2327
      %v2329 = vrot.slane %v2013, %v2328
      %v2330 = vlaneseq
      %v2331 = vshrl.u32 %v2330, 7
      %v2332 = vsub.s32 0, %v2331
      %v2333 = vrot.slane %v2014, %v2332
      %v2334 = vlaneseq
      %v2335 = vshrl.u32 %v2334, 7
      %v2336 = vsub.s32 0, %v2335
      %v2337 = vrot.slane %v2015, %v2336
      %v2338 = vlaneseq
      %v2339 = vshrl.u32 %v2338, 7
      %v2340 = vsub.s32 0, %v2339
      %v2341 = vrot.slane %v2016, %v2340
      %v2342 = vlaneseq
      %v2343 = vshrl.u32 %v2342, 7
      %v2344 = vsub.s32 0, %v2343
      %v2345 = vrot.slane %v2017, %v2344
      %v2346 = vlaneseq
      %v2347 = vshrl.u32 %v2346, 7
      %v2348 = vsub.s32 0, %v2347
      %v2349 = vrot.slane %v2018, %v2348
      %v2350 = vlaneseq
      %v2351 = vshrl.u32 %v2350, 7
      %v2352 = vsub.s32 0, %v2351
      %v2353 = vrot.slane %v2019, %v2352
      %v2354 = vlaneseq
      %v2355 = vshrl.u32 %v2354, 7
      %v2356 = vsub.s32 0, %v2355
      %v2357 = vrot.slane %v2020, %v2356
      %v2358 = vlaneseq
      %v2359 = vshrl.u32 %v2358, 7
      %v2360 = vsub.s32 0, %v2359
      %v2361 = vrot.slane %v2021, %v2360
      %v2362 = vlaneseq
      %v2363 = vshrl.u32 %v2362, 7
      %v2364 = vsub.s32 0, %v2363
      %v2365 = vrot.slane %v2022, %v2364
      %v2366 = vlaneseq
      %v2367 = vshrl.u32 %v2366, 7
      %v2368 = vsub.s32 0, %v2367
      %v2369 = vrot.slane %v2023, %v2368
      %v2370 = vlaneseq
      %v2371 = vshrl.u32 %v2370, 7
      %v2372 = vsub.s32 0, %v2371
      %v2373 = vrot.slane %v2024, %v2372
      %v2374 = vlaneseq
      %v2375 = vshrl.u32 %v2374, 7
      %v2376 = vsub.s32 0, %v2375
      %v2377 = vrot.slane %v2025, %v2376
      %vm2378 = vcmask 1041409
      %v2379 = vsel %vm2378, %v2129, %v2125
      %vm2380 = vcmask 1042434
      %v2381 = vsel %vm2380, %v2133, %v2379
      %vm2382 = vcmask 1043459
      %v2383 = vsel %vm2382, %v2137, %v2381
      %vm2384 = vcmask 1044484
      %v2385 = vsel %vm2384, %v2141, %v2383
      %vm2386 = vcmask 1045509
      %v2387 = vsel %vm2386, %v2145, %v2385
      %vm2388 = vcmask 1046534
      %v2389 = vsel %vm2388, %v2149, %v2387
      %vm2390 = vcmask 1047559
      %v2391 = vsel %vm2390, %v2153, %v2389
      %v2392 = vsel %vm2378, %v2161, %v2157
      %v2393 = vsel %vm2380, %v2165, %v2392
      %v2394 = vsel %vm2382, %v2169, %v2393
      %v2395 = vsel %vm2384, %v2173, %v2394
      %v2396 = vsel %vm2386, %v2177, %v2395
      %v2397 = vsel %vm2388, %v2181, %v2396
      %v2398 = vsel %vm2390, %v2185, %v2397
      %v2399 = vsel %vm2378, %v2193, %v2189
      %v2400 = vsel %vm2380, %v2197, %v2399
      %v2401 = vsel %vm2382, %v2201, %v2400
      %v2402 = vsel %vm2384, %v2205, %v2401
      %v2403 = vsel %vm2386, %v2209, %v2402
      %v2404 = vsel %vm2388, %v2213, %v2403
      %v2405 = vsel %vm2390, %v2217, %v2404
      %v2406 = vsel %vm2378, %v2225, %v2221
      %v2407 = vsel %vm2380, %v2229, %v2406
      %v2408 = vsel %vm2382, %v2233, %v2407
      %v2409 = vsel %vm2384, %v2237, %v2408
      %v2410 = vsel %vm2386, %v2241, %v2409
      %v2411 = vsel %vm2388, %v2245, %v2410
      %v2412 = vsel %vm2390, %v2249, %v2411
      %v2413 = vsel %vm2378, %v2257, %v2253
      %v2414 = vsel %vm2380, %v2261, %v2413
      %v2415 = vsel %vm2382, %v2265, %v2414
      %v2416 = vsel %vm2384, %v2269, %v2415
      %v2417 = vsel %vm2386, %v2273, %v2416
      %v2418 = vsel %vm2388, %v2277, %v2417
      %v2419 = vsel %vm2390, %v2281, %v2418
      %v2420 = vsel %vm2378, %v2289, %v2285
      %v2421 = vsel %vm2380, %v2293, %v2420
      %v2422 = vsel %vm2382, %v2297, %v2421
      %v2423 = vsel %vm2384, %v2301, %v2422
      %v2424 = vsel %vm2386, %v2305, %v2423
      %v2425 = vsel %vm2388, %v2309, %v2424
      %v2426 = vsel %vm2390, %v2313, %v2425
      %v2427 = vsel %vm2378, %v2321, %v2317
      %v2428 = vsel %vm2380, %v2325, %v2427
      %v2429 = vsel %vm2382, %v2329, %v2428
      %v2430 = vsel %vm2384, %v2333, %v2429
      %v2431 = vsel %vm2386, %v2337, %v2430
      %v2432 = vsel %vm2388, %v2341, %v2431
      %v2433 = vsel %vm2390, %v2345, %v2432
      %v2434 = vsel %vm2378, %v2353, %v2349
      %v2435 = vsel %vm2380, %v2357, %v2434
      %v2436 = vsel %vm2382, %v2361, %v2435
      %v2437 = vsel %vm2384, %v2365, %v2436
      %v2438 = vsel %vm2386, %v2369, %v2437
      %v2439 = vsel %vm2388, %v2373, %v2438
      %v2440 = vsel %vm2390, %v2377, %v2439
      %2449 = vst.msk [vmem:[%s2040 + $0x8] sm:$0xff] %vm2026, %v2391
      %2450 = vst.msk [vmem:[%s2040 + $0x20] sm:$0xff] %vm2026, %v2398
      %2451 = vst.msk [vmem:[%s2040 + $0x38] sm:$0xff] %vm2026, %v2405
      %2452 = vst.msk [vmem:[%s2040 + $0x50] sm:$0xff] %vm2026, %v2412
      %2453 = vst.msk [vmem:[%s2040 + $0x98] sm:$0xff] %vm2026, %v2419
      %2454 = vst.msk [vmem:[%s2040 + $0xb0] sm:$0xff] %vm2026, %v2426
      %2455 = vst.msk [vmem:[%s2040 + $0xc8] sm:$0xff] %vm2026, %v2433
      %2456 = vst.msk [vmem:[%s2040 + $0xe0] sm:$0xff] %vm2026, %v2440
      %v2457 = vld [vmem:[#allocation2] sm:$0xff]
      %v2458 = vld [vmem:[#allocation2 + $0x8] sm:$0xff]
      %v2459 = vld [vmem:[#allocation2 + $0x10] sm:$0xff]
      %v2460 = vld [vmem:[#allocation2 + $0x18] sm:$0xff]
      %v2461 = vld [vmem:[#allocation2 + $0x20] sm:$0xff]
      %v2462 = vld [vmem:[#allocation2 + $0x28] sm:$0xff]
      %v2463 = vld [vmem:[#allocation2 + $0x30] sm:$0xff]
      %v2464 = vld [vmem:[#allocation2 + $0x38] sm:$0xff]
      %v2465 = vld [vmem:[#allocation2 + $0x40] sm:$0xff]
      %v2466 = vld [vmem:[#allocation2 + $0x48] sm:$0xff]
      %v2467 = vld [vmem:[#allocation2 + $0x50] sm:$0xff]
      %v2468 = vld [vmem:[#allocation2 + $0x58] sm:$0xff]
      %v2469 = vld [vmem:[#allocation2 + $0x60] sm:$0xff]
      %v2470 = vld [vmem:[#allocation2 + $0x68] sm:$0xff]
      %v2471 = vld [vmem:[#allocation2 + $0x70] sm:$0xff]
      %v2472 = vld [vmem:[#allocation2 + $0x78] sm:$0xff]
      %v2473 = vld [vmem:[#allocation2 + $0x80] sm:$0xff]
      %v2474 = vld [vmem:[#allocation2 + $0x88] sm:$0xff]
      %v2475 = vld [vmem:[#allocation2 + $0x90] sm:$0xff]
      %v2476 = vld [vmem:[#allocation2 + $0x98] sm:$0xff]
      %v2477 = vld [vmem:[#allocation2 + $0xa0] sm:$0xff]
      %v2478 = vld [vmem:[#allocation2 + $0xa8] sm:$0xff]
      %v2479 = vld [vmem:[#allocation2 + $0xb0] sm:$0xff]
      %v2480 = vld [vmem:[#allocation2 + $0xb8] sm:$0xff]
      %v2481 = vld [vmem:[#allocation2 + $0xc0] sm:$0xff]
      %v2482 = vld [vmem:[#allocation2 + $0xc8] sm:$0xff]
      %v2483 = vld [vmem:[#allocation2 + $0xd0] sm:$0xff]
      %v2484 = vld [vmem:[#allocation2 + $0xd8] sm:$0xff]
      %v2485 = vld [vmem:[#allocation2 + $0xe0] sm:$0xff]
      %v2486 = vld [vmem:[#allocation2 + $0xe8] sm:$0xff]
      %v2487 = vld [vmem:[#allocation2 + $0xf0] sm:$0xff]
      %v2488 = vld [vmem:[#allocation2 + $0xf8] sm:$0xff]
      %v2489 = vld [vmem:[#allocation2 + $0x100] sm:$0xff]
      %v2490 = vld [vmem:[#allocation2 + $0x108] sm:$0xff]
      %v2491 = vld [vmem:[#allocation2 + $0x110] sm:$0xff]
      %v2492 = vld [vmem:[#allocation2 + $0x118] sm:$0xff]
      %vm2509 = vcmask 1040384
      %v2510 = vrot.slane %v2457, 7
      %v2511 = vrot.slane %v2458, 7
      %v2512 = vsel %vm2509, %v2510, %v2511
      %v2513 = vrot.slane %v2460, 7
      %v2514 = vrot.slane %v2461, 7
      %v2515 = vsel %vm2509, %v2513, %v2514
      %v2516 = vrot.slane %v2463, 7
      %v2517 = vrot.slane %v2464, 7
      %v2518 = vsel %vm2509, %v2516, %v2517
      %v2519 = vrot.slane %v2466, 7
      %v2520 = vrot.slane %v2467, 7
      %v2521 = vsel %vm2509, %v2519, %v2520
      %v2522 = vrot.slane %v2475, 7
      %v2523 = vrot.slane %v2476, 7
      %v2524 = vsel %vm2509, %v2522, %v2523
      %v2525 = vrot.slane %v2478, 7
      %v2526 = vrot.slane %v2479, 7
      %v2527 = vsel %vm2509, %v2525, %v2526
      %v2528 = vrot.slane %v2481, 7
      %v2529 = vrot.slane %v2482, 7
      %v2530 = vsel %vm2509, %v2528, %v2529
      %v2531 = vrot.slane %v2484, 7
      %v2532 = vrot.slane %v2485, 7
      %v2533 = vsel %vm2509, %v2531, %v2532
      %v2542 = vpack.c.bf16 %v2515, %v2512
      %v2543 = vpack.c.bf16 %v2521, %v2518
      %v2544 = vpack.c.bf16 %v2527, %v2524
      %v2545 = vpack.c.bf16 %v2533, %v2530
      %v2546 = vld [vmem:[%s3] sm:$0xf]
      %v2547 = vld [vmem:[%s3 + $0x4] sm:$0xf]
      %v2548 = vld [vmem:[%s3 + $0x8] sm:$0xf]
      %v2549 = vld [vmem:[%s3 + $0xc] sm:$0xf]
      %v2550 = vld [vmem:[%s3 + $0x10] sm:$0xf]
      %v2551 = vld [vmem:[%s3 + $0x14] sm:$0xf]
      %v2552 = vld [vmem:[%s3 + $0x18] sm:$0xf]
      %v2553 = vld [vmem:[%s3 + $0x1c] sm:$0xf]
      %v2554 = vpack.c.bf16 %v2461, %v2458
      %v2555 = vpack.c.bf16 %v2467, %v2464
      %v2556 = vpack.c.bf16 %v2479, %v2476
      %v2557 = vpack.c.bf16 %v2485, %v2482
      %s2558 = scalar_lea.vmem %s3, 32
      %v2559 = vld [vmem:[%s2558] sm:$0xf]
      %v2560 = vld [vmem:[%s2558 + $0x4] sm:$0xf]
      %v2561 = vld [vmem:[%s2558 + $0x8] sm:$0xf]
      %v2562 = vld [vmem:[%s2558 + $0xc] sm:$0xf]
      %v2563 = vld [vmem:[%s2558 + $0x10] sm:$0xf]
      %v2564 = vld [vmem:[%s2558 + $0x14] sm:$0xf]
      %v2565 = vld [vmem:[%s2558 + $0x18] sm:$0xf]
      %v2566 = vld [vmem:[%s2558 + $0x1c] sm:$0xf]
      %v2575 = vunpack.c.l.b16 %v2559
      %v2576 = vunpack.c.l.b16 %v2560
      %v2577 = vunpack.c.l.b16 %v2561
      %v2578 = vunpack.c.l.b16 %v2562
      %v2579 = vunpack.c.l.b16 %v2563
      %v2580 = vunpack.c.l.b16 %v2564
      %v2581 = vunpack.c.l.b16 %v2565
      %v2582 = vunpack.c.l.b16 %v2566
      %v2583 = vpack.c.b16 %v2576, %v2575
      %v2584 = vpack.c.b16 %v2578, %v2577
      %v2585 = vpack.c.b16 %v2580, %v2579
      %v2586 = vpack.c.b16 %v2582, %v2581
      %v2592 = vsel %vm2026, %v2554, 0
      %v2595 = vsel %vm2026, %v2555, 0
      %v2598 = vsel %vm2026, %v2556, 0
      %v2601 = vsel %vm2026, %v2557, 0
      %2603 = vmatprep.subr.bf16.mxu0 0
      %2604 = vmatpush1.bf16.msra.mxu0 %v2583
      %2605 = vmatprep.subr.bf16.mxu0 0
      %2606 = vmatpush1.bf16.msra.mxu0 %v2584
      %2607 = vmatprep.subr.bf16.mxu0 0
      %2608 = vmatpush1.bf16.msra.mxu0 %v2585
      %2609 = vmatprep.subr.bf16.mxu0 0
      %2610 = vmatpush1.bf16.msra.mxu0 %v2586
      %2611 = vmatprep.subr.bf16.mxu0 0
      %2612 = vmatpush1.bf16.msra.mxu0 0
      %2613 = vmatprep.subr.bf16.mxu0 0
      %2614 = vmatpush1.bf16.msra.mxu0 0
      %2615 = vmatprep.subr.bf16.mxu0 0
      %2616 = vmatpush1.bf16.msra.mxu0 0
      %2617 = vmatprep.subr.bf16.mxu0 0
      %2618 = vmatpush1.bf16.msra.mxu0 0
      %2619 = vmatprep.subr.bf16.mxu0 0
      %2620 = vmatpush1.bf16.msra.mxu0 0
      %2621 = vmatprep.subr.bf16.mxu0 0
      %2622 = vmatpush1.bf16.msra.mxu0 0
      %2623 = vmatprep.subr.bf16.mxu0 0
      %2624 = vmatpush1.bf16.msra.mxu0 0
      %2625 = vmatprep.subr.bf16.mxu0 0
      %2626 = vmatpush1.bf16.msra.mxu0 0
      %2627 = vmatprep.subr.bf16.mxu0 0
      %2628 = vmatpush1.bf16.msra.mxu0 0
      %2629 = vmatprep.subr.bf16.mxu0 0
      %2630 = vmatpush1.bf16.msra.mxu0 0
      %2631 = vmatprep.subr.bf16.mxu0 0
      %2632 = vmatpush1.bf16.msra.mxu0 0
      %2633 = vmatprep.subr.bf16.mxu0 0
      %2634 = vmatpush1.bf16.msra.mxu0 0
      %2635 = vmatprep.mubr.bf16.mxu0 0
      %2636 = vmatmul.mubr.bf16.gmra.mrb[0].mxu0 %v2592
      %v2637 = vpop.f32.mrb[0].mxu0
      %v2638 = vadd.f32 0.0, %v2637
      %v2639 = vpop.f32.mrb[0].mxu0
      %v2640 = vpop.f32.mrb[0].mxu0
      %v2641 = vadd.f32 0.0, %v2640
      %v2642 = vpop.f32.mrb[0].mxu0
      %2643 = vmatprep.mubr.bf16.mxu0 0
      %2644 = vmatmul.mubr.bf16.gmra.mrb[0].mxu0 %v2595
      %v2645 = vpop.f32.mrb[0].mxu0
      %v2646 = vadd.f32 0.0, %v2645
      %v2647 = vpop.f32.mrb[0].mxu0
      %v2648 = vpop.f32.mrb[0].mxu0
      %v2649 = vadd.f32 0.0, %v2648
      %v2650 = vpop.f32.mrb[0].mxu0
      %2651 = vmatprep.mubr.bf16.mxu0 0
      %2652 = vmatmul.mubr.bf16.gmra.mrb[0].mxu0 %v2598
      %v2653 = vpop.f32.mrb[0].mxu0
      %v2654 = vadd.f32 0.0, %v2653
      %v2655 = vpop.f32.mrb[0].mxu0
      %v2656 = vpop.f32.mrb[0].mxu0
      %v2657 = vadd.f32 0.0, %v2656
      %v2658 = vpop.f32.mrb[0].mxu0
      %2659 = vmatprep.mubr.bf16.mxu0 0
      %2660 = vmatmul.mubr.bf16.gmra.mrb[0].mxu0 %v2601
      %v2661 = vpop.f32.mrb[0].mxu0
      %v2662 = vadd.f32 0.0, %v2661
      %v2663 = vpop.f32.mrb[0].mxu0
      %v2664 = vpop.f32.mrb[0].mxu0
      %v2665 = vadd.f32 0.0, %v2664
      %v2666 = vpop.f32.mrb[0].mxu0
      %2667 = vdwg.mxu0
      %v2676 = vunpack.c.l.b16 %v2546
      %v2677 = vunpack.c.l.b16 %v2547
      %v2678 = vunpack.c.l.b16 %v2548
      %v2679 = vunpack.c.l.b16 %v2549
      %v2680 = vunpack.c.l.b16 %v2550
      %v2681 = vunpack.c.l.b16 %v2551
      %v2682 = vunpack.c.l.b16 %v2552
      %v2683 = vunpack.c.l.b16 %v2553
      %v2684 = vpack.c.b16 %v2677, %v2676
      %v2685 = vpack.c.b16 %v2679, %v2678
      %v2686 = vpack.c.b16 %v2681, %v2680
      %v2687 = vpack.c.b16 %v2683, %v2682
      %v2693 = vsel %vm2026, %v2542, 0
      %v2696 = vsel %vm2026, %v2543, 0
      %v2699 = vsel %vm2026, %v2544, 0
      %v2702 = vsel %vm2026, %v2545, 0
      %2704 = vmatprep.subr.bf16.mxu0 0
      %2705 = vmatpush1.bf16.msra.mxu0 %v2684
      %2706 = vmatprep.subr.bf16.mxu0 0
      %2707 = vmatpush1.bf16.msra.mxu0 %v2685
      %2708 = vmatprep.subr.bf16.mxu0 0
      %2709 = vmatpush1.bf16.msra.mxu0 %v2686
      %2710 = vmatprep.subr.bf16.mxu0 0
      %2711 = vmatpush1.bf16.msra.mxu0 %v2687
      %2712 = vmatprep.subr.bf16.mxu0 0
      %2713 = vmatpush1.bf16.msra.mxu0 0
      %2714 = vmatprep.subr.bf16.mxu0 0
      %2715 = vmatpush1.bf16.msra.mxu0 0
      %2716 = vmatprep.subr.bf16.mxu0 0
      %2717 = vmatpush1.bf16.msra.mxu0 0
      %2718 = vmatprep.subr.bf16.mxu0 0
      %2719 = vmatpush1.bf16.msra.mxu0 0
      %2720 = vmatprep.subr.bf16.mxu0 0
      %2721 = vmatpush1.bf16.msra.mxu0 0
      %2722 = vmatprep.subr.bf16.mxu0 0
      %2723 = vmatpush1.bf16.msra.mxu0 0
      %2724 = vmatprep.subr.bf16.mxu0 0
      %2725 = vmatpush1.bf16.msra.mxu0 0
      %2726 = vmatprep.subr.bf16.mxu0 0
      %2727 = vmatpush1.bf16.msra.mxu0 0
      %2728 = vmatprep.subr.bf16.mxu0 0
      %2729 = vmatpush1.bf16.msra.mxu0 0
      %2730 = vmatprep.subr.bf16.mxu0 0
      %2731 = vmatpush1.bf16.msra.mxu0 0
      %2732 = vmatprep.subr.bf16.mxu0 0
      %2733 = vmatpush1.bf16.msra.mxu0 0
      %2734 = vmatprep.subr.bf16.mxu0 0
      %2735 = vmatpush1.bf16.msra.mxu0 0
      %2736 = vmatprep.mubr.bf16.mxu0 0
      %2737 = vmatmul.mubr.bf16.gmra.mrb[0].mxu0 %v2693
      %v2738 = vpop.f32.mrb[0].mxu0
      %v2739 = vadd.f32 %v2638, %v2738
      %v2740 = vpop.f32.mrb[0].mxu0
      %v2741 = vpop.f32.mrb[0].mxu0
      %v2742 = vadd.f32 %v2641, %v2741
      %v2743 = vpop.f32.mrb[0].mxu0
      %2744 = vmatprep.mubr.bf16.mxu0 0
      %2745 = vmatmul.mubr.bf16.gmra.mrb[0].mxu0 %v2696
      %v2746 = vpop.f32.mrb[0].mxu0
      %v2747 = vadd.f32 %v2646, %v2746
      %v2748 = vpop.f32.mrb[0].mxu0
      %v2749 = vpop.f32.mrb[0].mxu0
      %v2750 = vadd.f32 %v2649, %v2749
      %v2751 = vpop.f32.mrb[0].mxu0
      %2752 = vmatprep.mubr.bf16.mxu0 0
      %2753 = vmatmul.mubr.bf16.gmra.mrb[0].mxu0 %v2699
      %v2754 = vpop.f32.mrb[0].mxu0
      %v2755 = vadd.f32 %v2654, %v2754
      %v2756 = vpop.f32.mrb[0].mxu0
      %v2757 = vpop.f32.mrb[0].mxu0
      %v2758 = vadd.f32 %v2657, %v2757
      %v2759 = vpop.f32.mrb[0].mxu0
      %2760 = vmatprep.mubr.bf16.mxu0 0
      %2761 = vmatmul.mubr.bf16.gmra.mrb[0].mxu0 %v2702
      %v2762 = vpop.f32.mrb[0].mxu0
      %v2763 = vadd.f32 %v2662, %v2762
      %v2764 = vpop.f32.mrb[0].mxu0
      %v2765 = vpop.f32.mrb[0].mxu0
      %v2766 = vadd.f32 %v2665, %v2765
      %v2767 = vpop.f32.mrb[0].mxu0
      %2768 = vdwg.mxu0
      %vm2777 = vcmask 1046528
      %v2778 = vrot.slane %v2458, 1
      %v2779 = vrot.slane %v2459, 1
      %v2780 = vsel %vm2777, %v2778, %v2779
      %v2781 = vrot.slane %v2461, 1
      %v2782 = vrot.slane %v2462, 1
      %v2783 = vsel %vm2777, %v2781, %v2782
      %v2784 = vrot.slane %v2464, 1
      %v2785 = vrot.slane %v2465, 1
      %v2786 = vsel %vm2777, %v2784, %v2785
      %v2787 = vrot.slane %v2467, 1
      %v2788 = vrot.slane %v2468, 1
      %v2789 = vsel %vm2777, %v2787, %v2788
      %v2790 = vrot.slane %v2476, 1
      %v2791 = vrot.slane %v2477, 1
      %v2792 = vsel %vm2777, %v2790, %v2791
      %v2793 = vrot.slane %v2479, 1
      %v2794 = vrot.slane %v2480, 1
      %v2795 = vsel %vm2777, %v2793, %v2794
      %v2796 = vrot.slane %v2482, 1
      %v2797 = vrot.slane %v2483, 1
      %v2798 = vsel %vm2777, %v2796, %v2797
      %v2799 = vrot.slane %v2485, 1
      %v2800 = vrot.slane %v2486, 1
      %v2801 = vsel %vm2777, %v2799, %v2800
      %v2810 = vpack.c.bf16 %v2783, %v2780
      %v2811 = vpack.c.bf16 %v2789, %v2786
      %v2812 = vpack.c.bf16 %v2795, %v2792
      %v2813 = vpack.c.bf16 %v2801, %v2798
      %s2814 = scalar_lea.vmem %s3, 64
      %v2815 = vld [vmem:[%s2814] sm:$0xf]
      %v2816 = vld [vmem:[%s2814 + $0x4] sm:$0xf]
      %v2817 = vld [vmem:[%s2814 + $0x8] sm:$0xf]
      %v2818 = vld [vmem:[%s2814 + $0xc] sm:$0xf]
      %v2819 = vld [vmem:[%s2814 + $0x10] sm:$0xf]
      %v2820 = vld [vmem:[%s2814 + $0x14] sm:$0xf]
      %v2821 = vld [vmem:[%s2814 + $0x18] sm:$0xf]
      %v2822 = vld [vmem:[%s2814 + $0x1c] sm:$0xf]
      %v2831 = vunpack.c.l.b16 %v2815
      %v2832 = vunpack.c.l.b16 %v2816
      %v2833 = vunpack.c.l.b16 %v2817
      %v2834 = vunpack.c.l.b16 %v2818
      %v2835 = vunpack.c.l.b16 %v2819
      %v2836 = vunpack.c.l.b16 %v2820
      %v2837 = vunpack.c.l.b16 %v2821
      %v2838 = vunpack.c.l.b16 %v2822
      %v2839 = vpack.c.b16 %v2832, %v2831
      %v2840 = vpack.c.b16 %v2834, %v2833
      %v2841 = vpack.c.b16 %v2836, %v2835
      %v2842 = vpack.c.b16 %v2838, %v2837
      %v2848 = vsel %vm2026, %v2810, 0
      %v2851 = vsel %vm2026, %v2811, 0
      %v2854 = vsel %vm2026, %v2812, 0
      %v2857 = vsel %vm2026, %v2813, 0
      %2859 = vmatprep.subr.bf16.mxu0 0
      %2860 = vmatpush1.bf16.msra.mxu0 %v2839
      %2861 = vmatprep.subr.bf16.mxu0 0
      %2862 = vmatpush1.bf16.msra.mxu0 %v2840
      %2863 = vmatprep.subr.bf16.mxu0 0
      %2864 = vmatpush1.bf16.msra.mxu0 %v2841
      %2865 = vmatprep.subr.bf16.mxu0 0
      %2866 = vmatpush1.bf16.msra.mxu0 %v2842
      %2867 = vmatprep.subr.bf16.mxu0 0
      %2868 = vmatpush1.bf16.msra.mxu0 0
      %2869 = vmatprep.subr.bf16.mxu0 0
      %2870 = vmatpush1.bf16.msra.mxu0 0
      %2871 = vmatprep.subr.bf16.mxu0 0
      %2872 = vmatpush1.bf16.msra.mxu0 0
      %2873 = vmatprep.subr.bf16.mxu0 0
      %2874 = vmatpush1.bf16.msra.mxu0 0
      %2875 = vmatprep.subr.bf16.mxu0 0
      %2876 = vmatpush1.bf16.msra.mxu0 0
      %2877 = vmatprep.subr.bf16.mxu0 0
      %2878 = vmatpush1.bf16.msra.mxu0 0
      %2879 = vmatprep.subr.bf16.mxu0 0
      %2880 = vmatpush1.bf16.msra.mxu0 0
      %2881 = vmatprep.subr.bf16.mxu0 0
      %2882 = vmatpush1.bf16.msra.mxu0 0
      %2883 = vmatprep.subr.bf16.mxu0 0
      %2884 = vmatpush1.bf16.msra.mxu0 0
      %2885 = vmatprep.subr.bf16.mxu0 0
      %2886 = vmatpush1.bf16.msra.mxu0 0
      %2887 = vmatprep.subr.bf16.mxu0 0
      %2888 = vmatpush1.bf16.msra.mxu0 0
      %2889 = vmatprep.subr.bf16.mxu0 0
      %2890 = vmatpush1.bf16.msra.mxu0 0
      %2891 = vmatprep.mubr.bf16.mxu0 0
      %2892 = vmatmul.mubr.bf16.gmra.mrb[0].mxu0 %v2848
      %v2893 = vpop.f32.mrb[0].mxu0
      %v2894 = vadd.f32 0.0, %v2893
      %v2895 = vpop.f32.mrb[0].mxu0
      %v2896 = vpop.f32.mrb[0].mxu0
      %v2897 = vadd.f32 0.0, %v2896
      %v2898 = vpop.f32.mrb[0].mxu0
      %2899 = vmatprep.mubr.bf16.mxu0 0
      %2900 = vmatmul.mubr.bf16.gmra.mrb[0].mxu0 %v2851
      %v2901 = vpop.f32.mrb[0].mxu0
      %v2902 = vadd.f32 0.0, %v2901
      %v2903 = vpop.f32.mrb[0].mxu0
      %v2904 = vpop.f32.mrb[0].mxu0
      %v2905 = vadd.f32 0.0, %v2904
      %v2906 = vpop.f32.mrb[0].mxu0
      %2907 = vmatprep.mubr.bf16.mxu0 0
      %2908 = vmatmul.mubr.bf16.gmra.mrb[0].mxu0 %v2854
      %v2909 = vpop.f32.mrb[0].mxu0
      %v2910 = vadd.f32 0.0, %v2909
      %v2911 = vpop.f32.mrb[0].mxu0
      %v2912 = vpop.f32.mrb[0].mxu0
      %v2913 = vadd.f32 0.0, %v2912
      %v2914 = vpop.f32.mrb[0].mxu0
      %2915 = vmatprep.mubr.bf16.mxu0 0
      %2916 = vmatmul.mubr.bf16.gmra.mrb[0].mxu0 %v2857
      %v2917 = vpop.f32.mrb[0].mxu0
      %v2918 = vadd.f32 0.0, %v2917
      %v2919 = vpop.f32.mrb[0].mxu0
      %v2920 = vpop.f32.mrb[0].mxu0
      %v2921 = vadd.f32 0.0, %v2920
      %v2922 = vpop.f32.mrb[0].mxu0
      %2923 = vdwg.mxu0
      %v2924 = vadd.f32 %v2739, %v2894
      %v2925 = vadd.f32 %v2742, %v2897
      %v2926 = vadd.f32 %v2747, %v2902
      %v2927 = vadd.f32 %v2750, %v2905
      %v2928 = vadd.f32 %v2755, %v2910
      %v2929 = vadd.f32 %v2758, %v2913
      %v2930 = vadd.f32 %v2763, %v2918
      %v2931 = vadd.f32 %v2766, %v2921
      %v2936 = vrot.slane %v2469, 7
      %v2937 = vrot.slane %v2470, 7
      %v2938 = vsel %vm2509, %v2936, %v2937
      %v2939 = vrot.slane %v2487, 7
      %v2940 = vrot.slane %v2488, 7
      %v2941 = vsel %vm2509, %v2939, %v2940
      %v2944 = vpack.c.bf16 %v2518, %v2515
      %v2945 = vpack.c.bf16 %v2938, %v2521
      %v2946 = vpack.c.bf16 %v2530, %v2527
      %v2947 = vpack.c.bf16 %v2941, %v2533
      %s2948 = scalar_lea.vmem %s3, 96
      %v2949 = vld [vmem:[%s2948] sm:$0xf]
      %v2950 = vld [vmem:[%s2948 + $0x4] sm:$0xf]
      %v2951 = vld [vmem:[%s2948 + $0x8] sm:$0xf]
      %v2952 = vld [vmem:[%s2948 + $0xc] sm:$0xf]
      %v2953 = vld [vmem:[%s2948 + $0x10] sm:$0xf]
      %v2954 = vld [vmem:[%s2948 + $0x14] sm:$0xf]
      %v2955 = vld [vmem:[%s2948 + $0x18] sm:$0xf]
      %v2956 = vld [vmem:[%s2948 + $0x1c] sm:$0xf]
      %v2965 = vunpack.c.l.b16 %v2949
      %v2966 = vunpack.c.l.b16 %v2950
      %v2967 = vunpack.c.l.b16 %v2951
      %v2968 = vunpack.c.l.b16 %v2952
      %v2969 = vunpack.c.l.b16 %v2953
      %v2970 = vunpack.c.l.b16 %v2954
      %v2971 = vunpack.c.l.b16 %v2955
      %v2972 = vunpack.c.l.b16 %v2956
      %v2973 = vpack.c.b16 %v2966, %v2965
      %v2974 = vpack.c.b16 %v2968, %v2967
      %v2975 = vpack.c.b16 %v2970, %v2969
      %v2976 = vpack.c.b16 %v2972, %v2971
      %v2982 = vsel %vm2026, %v2944, 0
      %v2985 = vsel %vm2026, %v2945, 0
      %v2988 = vsel %vm2026, %v2946, 0
      %v2991 = vsel %vm2026, %v2947, 0
      %2993 = vmatprep.subr.bf16.mxu0 0
      %2994 = vmatpush1.bf16.msra.mxu0 %v2973
      %2995 = vmatprep.subr.bf16.mxu0 0
      %2996 = vmatpush1.bf16.msra.mxu0 %v2974
      %2997 = vmatprep.subr.bf16.mxu0 0
      %2998 = vmatpush1.bf16.msra.mxu0 %v2975
      %2999 = vmatprep.subr.bf16.mxu0 0
      %3000 = vmatpush1.bf16.msra.mxu0 %v2976
      %3001 = vmatprep.subr.bf16.mxu0 0
      %3002 = vmatpush1.bf16.msra.mxu0 0
      %3003 = vmatprep.subr.bf16.mxu0 0
      %3004 = vmatpush1.bf16.msra.mxu0 0
      %3005 = vmatprep.subr.bf16.mxu0 0
      %3006 = vmatpush1.bf16.msra.mxu0 0
      %3007 = vmatprep.subr.bf16.mxu0 0
      %3008 = vmatpush1.bf16.msra.mxu0 0
      %3009 = vmatprep.subr.bf16.mxu0 0
      %3010 = vmatpush1.bf16.msra.mxu0 0
      %3011 = vmatprep.subr.bf16.mxu0 0
      %3012 = vmatpush1.bf16.msra.mxu0 0
      %3013 = vmatprep.subr.bf16.mxu0 0
      %3014 = vmatpush1.bf16.msra.mxu0 0
      %3015 = vmatprep.subr.bf16.mxu0 0
      %3016 = vmatpush1.bf16.msra.mxu0 0
      %3017 = vmatprep.subr.bf16.mxu0 0
      %3018 = vmatpush1.bf16.msra.mxu0 0
      %3019 = vmatprep.subr.bf16.mxu0 0
      %3020 = vmatpush1.bf16.msra.mxu0 0
      %3021 = vmatprep.subr.bf16.mxu0 0
      %3022 = vmatpush1.bf16.msra.mxu0 0
      %3023 = vmatprep.subr.bf16.mxu0 0
      %3024 = vmatpush1.bf16.msra.mxu0 0
      %3025 = vmatprep.mubr.bf16.mxu0 0
      %3026 = vmatmul.mubr.bf16.gmra.mrb[0].mxu0 %v2982
      %v3027 = vpop.f32.mrb[0].mxu0
      %v3028 = vadd.f32 0.0, %v3027
      %v3029 = vpop.f32.mrb[0].mxu0
      %v3030 = vpop.f32.mrb[0].mxu0
      %v3031 = vadd.f32 0.0, %v3030
      %v3032 = vpop.f32.mrb[0].mxu0
      %3033 = vmatprep.mubr.bf16.mxu0 0
      %3034 = vmatmul.mubr.bf16.gmra.mrb[0].mxu0 %v2985
      %v3035 = vpop.f32.mrb[0].mxu0
      %v3036 = vadd.f32 0.0, %v3035
      %v3037 = vpop.f32.mrb[0].mxu0
      %v3038 = vpop.f32.mrb[0].mxu0
      %v3039 = vadd.f32 0.0, %v3038
      %v3040 = vpop.f32.mrb[0].mxu0
      %3041 = vmatprep.mubr.bf16.mxu0 0
      %3042 = vmatmul.mubr.bf16.gmra.mrb[0].mxu0 %v2988
      %v3043 = vpop.f32.mrb[0].mxu0
      %v3044 = vadd.f32 0.0, %v3043
      %v3045 = vpop.f32.mrb[0].mxu0
      %v3046 = vpop.f32.mrb[0].mxu0
      %v3047 = vadd.f32 0.0, %v3046
      %v3048 = vpop.f32.mrb[0].mxu0
      %3049 = vmatprep.mubr.bf16.mxu0 0
      %3050 = vmatmul.mubr.bf16.gmra.mrb[0].mxu0 %v2991
      %v3051 = vpop.f32.mrb[0].mxu0
      %v3052 = vadd.f32 0.0, %v3051
      %v3053 = vpop.f32.mrb[0].mxu0
      %v3054 = vpop.f32.mrb[0].mxu0
      %v3055 = vadd.f32 0.0, %v3054
      %v3056 = vpop.f32.mrb[0].mxu0
      %3057 = vdwg.mxu0
      %v3058 = vadd.f32 %v2924, %v3028
      %v3059 = vadd.f32 %v2925, %v3031
      %v3060 = vadd.f32 %v2926, %v3036
      %v3061 = vadd.f32 %v2927, %v3039
      %v3062 = vadd.f32 %v2928, %v3044
      %v3063 = vadd.f32 %v2929, %v3047
      %v3064 = vadd.f32 %v2930, %v3052
      %v3065 = vadd.f32 %v2931, %v3055
      %v3066 = vpack.c.bf16 %v2464, %v2461
      %v3067 = vpack.c.bf16 %v2470, %v2467
      %v3068 = vpack.c.bf16 %v2482, %v2479
      %v3069 = vpack.c.bf16 %v2488, %v2485
      %s3070 = scalar_lea.vmem %s3, 128
      %v3071 = vld [vmem:[%s3070] sm:$0xf]
      %v3072 = vld [vmem:[%s3070 + $0x4] sm:$0xf]
      %v3073 = vld [vmem:[%s3070 + $0x8] sm:$0xf]
      %v3074 = vld [vmem:[%s3070 + $0xc] sm:$0xf]
      %v3075 = vld [vmem:[%s3070 + $0x10] sm:$0xf]
      %v3076 = vld [vmem:[%s3070 + $0x14] sm:$0xf]
      %v3077 = vld [vmem:[%s3070 + $0x18] sm:$0xf]
      %v3078 = vld [vmem:[%s3070 + $0x1c] sm:$0xf]
      %v3087 = vunpack.c.l.b16 %v3071
      %v3088 = vunpack.c.l.b16 %v3072
      %v3089 = vunpack.c.l.b16 %v3073
      %v3090 = vunpack.c.l.b16 %v3074
      %v3091 = vunpack.c.l.b16 %v3075
      %v3092 = vunpack.c.l.b16 %v3076
      %v3093 = vunpack.c.l.b16 %v3077
      %v3094 = vunpack.c.l.b16 %v3078
      %v3095 = vpack.c.b16 %v3088, %v3087
      %v3096 = vpack.c.b16 %v3090, %v3089
      %v3097 = vpack.c.b16 %v3092, %v3091
      %v3098 = vpack.c.b16 %v3094, %v3093
      %v3104 = vsel %vm2026, %v3066, 0
      %v3107 = vsel %vm2026, %v3067, 0
      %v3110 = vsel %vm2026, %v3068, 0
      %v3113 = vsel %vm2026, %v3069, 0
      %3115 = vmatprep.subr.bf16.mxu0 0
      %3116 = vmatpush1.bf16.msra.mxu0 %v3095
      %3117 = vmatprep.subr.bf16.mxu0 0
      %3118 = vmatpush1.bf16.msra.mxu0 %v3096
      %3119 = vmatprep.subr.bf16.mxu0 0
      %3120 = vmatpush1.bf16.msra.mxu0 %v3097
      %3121 = vmatprep.subr.bf16.mxu0 0
      %3122 = vmatpush1.bf16.msra.mxu0 %v3098
      %3123 = vmatprep.subr.bf16.mxu0 0
      %3124 = vmatpush1.bf16.msra.mxu0 0
      %3125 = vmatprep.subr.bf16.mxu0 0
      %3126 = vmatpush1.bf16.msra.mxu0 0
      %3127 = vmatprep.subr.bf16.mxu0 0
      %3128 = vmatpush1.bf16.msra.mxu0 0
      %3129 = vmatprep.subr.bf16.mxu0 0
      %3130 = vmatpush1.bf16.msra.mxu0 0
      %3131 = vmatprep.subr.bf16.mxu0 0
      %3132 = vmatpush1.bf16.msra.mxu0 0
      %3133 = vmatprep.subr.bf16.mxu0 0
      %3134 = vmatpush1.bf16.msra.mxu0 0
      %3135 = vmatprep.subr.bf16.mxu0 0
      %3136 = vmatpush1.bf16.msra.mxu0 0
      %3137 = vmatprep.subr.bf16.mxu0 0
      %3138 = vmatpush1.bf16.msra.mxu0 0
      %3139 = vmatprep.subr.bf16.mxu0 0
      %3140 = vmatpush1.bf16.msra.mxu0 0
      %3141 = vmatprep.subr.bf16.mxu0 0
      %3142 = vmatpush1.bf16.msra.mxu0 0
      %3143 = vmatprep.subr.bf16.mxu0 0
      %3144 = vmatpush1.bf16.msra.mxu0 0
      %3145 = vmatprep.subr.bf16.mxu0 0
      %3146 = vmatpush1.bf16.msra.mxu0 0
      %3147 = vmatprep.mubr.bf16.mxu0 0
      %3148 = vmatmul.mubr.bf16.gmra.mrb[0].mxu0 %v3104
      %v3149 = vpop.f32.mrb[0].mxu0
      %v3150 = vadd.f32 0.0, %v3149
      %v3151 = vpop.f32.mrb[0].mxu0
      %v3152 = vpop.f32.mrb[0].mxu0
      %v3153 = vadd.f32 0.0, %v3152
      %v3154 = vpop.f32.mrb[0].mxu0
      %3155 = vmatprep.mubr.bf16.mxu0 0
      %3156 = vmatmul.mubr.bf16.gmra.mrb[0].mxu0 %v3107
      %v3157 = vpop.f32.mrb[0].mxu0
      %v3158 = vadd.f32 0.0, %v3157
      %v3159 = vpop.f32.mrb[0].mxu0
      %v3160 = vpop.f32.mrb[0].mxu0
      %v3161 = vadd.f32 0.0, %v3160
      %v3162 = vpop.f32.mrb[0].mxu0
      %3163 = vmatprep.mubr.bf16.mxu0 0
      %3164 = vmatmul.mubr.bf16.gmra.mrb[0].mxu0 %v3110
      %v3165 = vpop.f32.mrb[0].mxu0
      %v3166 = vadd.f32 0.0, %v3165
      %v3167 = vpop.f32.mrb[0].mxu0
      %v3168 = vpop.f32.mrb[0].mxu0
      %v3169 = vadd.f32 0.0, %v3168
      %v3170 = vpop.f32.mrb[0].mxu0
      %3171 = vmatprep.mubr.bf16.mxu0 0
      %3172 = vmatmul.mubr.bf16.gmra.mrb[0].mxu0 %v3113
      %v3173 = vpop.f32.mrb[0].mxu0
      %v3174 = vadd.f32 0.0, %v3173
      %v3175 = vpop.f32.mrb[0].mxu0
      %v3176 = vpop.f32.mrb[0].mxu0
      %v3177 = vadd.f32 0.0, %v3176
      %v3178 = vpop.f32.mrb[0].mxu0
      %3179 = vdwg.mxu0
      %v3180 = vadd.f32 %v3058, %v3150
      %v3181 = vadd.f32 %v3059, %v3153
      %v3182 = vadd.f32 %v3060, %v3158
      %v3183 = vadd.f32 %v3061, %v3161
      %v3184 = vadd.f32 %v3062, %v3166
      %v3185 = vadd.f32 %v3063, %v3169
      %v3186 = vadd.f32 %v3064, %v3174
      %v3187 = vadd.f32 %v3065, %v3177
      %v3190 = vrot.slane %v2470, 1
      %v3191 = vrot.slane %v2471, 1
      %v3192 = vsel %vm2777, %v3190, %v3191
      %v3193 = vrot.slane %v2488, 1
      %v3194 = vrot.slane %v2489, 1
      %v3195 = vsel %vm2777, %v3193, %v3194
      %v3198 = vpack.c.bf16 %v2786, %v2783
      %v3199 = vpack.c.bf16 %v3192, %v2789
      %v3200 = vpack.c.bf16 %v2798, %v2795
      %v3201 = vpack.c.bf16 %v3195, %v2801
      %s3202 = scalar_lea.vmem %s3, 160
      %v3203 = vld [vmem:[%s3202] sm:$0xf]
      %v3204 = vld [vmem:[%s3202 + $0x4] sm:$0xf]
      %v3205 = vld [vmem:[%s3202 + $0x8] sm:$0xf]
      %v3206 = vld [vmem:[%s3202 + $0xc] sm:$0xf]
      %v3207 = vld [vmem:[%s3202 + $0x10] sm:$0xf]
      %v3208 = vld [vmem:[%s3202 + $0x14] sm:$0xf]
      %v3209 = vld [vmem:[%s3202 + $0x18] sm:$0xf]
      %v3210 = vld [vmem:[%s3202 + $0x1c] sm:$0xf]
      %v3219 = vunpack.c.l.b16 %v3203
      %v3220 = vunpack.c.l.b16 %v3204
      %v3221 = vunpack.c.l.b16 %v3205
      %v3222 = vunpack.c.l.b16 %v3206
      %v3223 = vunpack.c.l.b16 %v3207
      %v3224 = vunpack.c.l.b16 %v3208
      %v3225 = vunpack.c.l.b16 %v3209
      %v3226 = vunpack.c.l.b16 %v3210
      %v3227 = vpack.c.b16 %v3220, %v3219
      %v3228 = vpack.c.b16 %v3222, %v3221
      %v3229 = vpack.c.b16 %v3224, %v3223
      %v3230 = vpack.c.b16 %v3226, %v3225
      %v3236 = vsel %vm2026, %v3198, 0
      %v3239 = vsel %vm2026, %v3199, 0
      %v3242 = vsel %vm2026, %v3200, 0
      %v3245 = vsel %vm2026, %v3201, 0
      %3247 = vmatprep.subr.bf16.mxu0 0
      %3248 = vmatpush1.bf16.msra.mxu0 %v3227
      %3249 = vmatprep.subr.bf16.mxu0 0
      %3250 = vmatpush1.bf16.msra.mxu0 %v3228
      %3251 = vmatprep.subr.bf16.mxu0 0
      %3252 = vmatpush1.bf16.msra.mxu0 %v3229
      %3253 = vmatprep.subr.bf16.mxu0 0
      %3254 = vmatpush1.bf16.msra.mxu0 %v3230
      %3255 = vmatprep.subr.bf16.mxu0 0
      %3256 = vmatpush1.bf16.msra.mxu0 0
      %3257 = vmatprep.subr.bf16.mxu0 0
      %3258 = vmatpush1.bf16.msra.mxu0 0
      %3259 = vmatprep.subr.bf16.mxu0 0
      %3260 = vmatpush1.bf16.msra.mxu0 0
      %3261 = vmatprep.subr.bf16.mxu0 0
      %3262 = vmatpush1.bf16.msra.mxu0 0
      %3263 = vmatprep.subr.bf16.mxu0 0
      %3264 = vmatpush1.bf16.msra.mxu0 0
      %3265 = vmatprep.subr.bf16.mxu0 0
      %3266 = vmatpush1.bf16.msra.mxu0 0
      %3267 = vmatprep.subr.bf16.mxu0 0
      %3268 = vmatpush1.bf16.msra.mxu0 0
      %3269 = vmatprep.subr.bf16.mxu0 0
      %3270 = vmatpush1.bf16.msra.mxu0 0
      %3271 = vmatprep.subr.bf16.mxu0 0
      %3272 = vmatpush1.bf16.msra.mxu0 0
      %3273 = vmatprep.subr.bf16.mxu0 0
      %3274 = vmatpush1.bf16.msra.mxu0 0
      %3275 = vmatprep.subr.bf16.mxu0 0
      %3276 = vmatpush1.bf16.msra.mxu0 0
      %3277 = vmatprep.subr.bf16.mxu0 0
      %3278 = vmatpush1.bf16.msra.mxu0 0
      %3279 = vmatprep.mubr.bf16.mxu0 0
      %3280 = vmatmul.mubr.bf16.gmra.mrb[0].mxu0 %v3236
      %v3281 = vpop.f32.mrb[0].mxu0
      %v3282 = vadd.f32 0.0, %v3281
      %v3283 = vpop.f32.mrb[0].mxu0
      %v3284 = vpop.f32.mrb[0].mxu0
      %v3285 = vadd.f32 0.0, %v3284
      %v3286 = vpop.f32.mrb[0].mxu0
      %3287 = vmatprep.mubr.bf16.mxu0 0
      %3288 = vmatmul.mubr.bf16.gmra.mrb[0].mxu0 %v3239
      %v3289 = vpop.f32.mrb[0].mxu0
      %v3290 = vadd.f32 0.0, %v3289
      %v3291 = vpop.f32.mrb[0].mxu0
      %v3292 = vpop.f32.mrb[0].mxu0
      %v3293 = vadd.f32 0.0, %v3292
      %v3294 = vpop.f32.mrb[0].mxu0
      %3295 = vmatprep.mubr.bf16.mxu0 0
      %3296 = vmatmul.mubr.bf16.gmra.mrb[0].mxu0 %v3242
      %v3297 = vpop.f32.mrb[0].mxu0
      %v3298 = vadd.f32 0.0, %v3297
      %v3299 = vpop.f32.mrb[0].mxu0
      %v3300 = vpop.f32.mrb[0].mxu0
      %v3301 = vadd.f32 0.0, %v3300
      %v3302 = vpop.f32.mrb[0].mxu0
      %3303 = vmatprep.mubr.bf16.mxu0 0
      %3304 = vmatmul.mubr.bf16.gmra.mrb[0].mxu0 %v3245
      %v3305 = vpop.f32.mrb[0].mxu0
      %v3306 = vadd.f32 0.0, %v3305
      %v3307 = vpop.f32.mrb[0].mxu0
      %v3308 = vpop.f32.mrb[0].mxu0
      %v3309 = vadd.f32 0.0, %v3308
      %v3310 = vpop.f32.mrb[0].mxu0
      %3311 = vdwg.mxu0
      %v3312 = vadd.f32 %v3180, %v3282
      %v3313 = vadd.f32 %v3181, %v3285
      %v3314 = vadd.f32 %v3182, %v3290
      %v3315 = vadd.f32 %v3183, %v3293
      %v3316 = vadd.f32 %v3184, %v3298
      %v3317 = vadd.f32 %v3185, %v3301
      %v3318 = vadd.f32 %v3186, %v3306
      %v3319 = vadd.f32 %v3187, %v3309
      %v3324 = vrot.slane %v2472, 7
      %v3325 = vrot.slane %v2473, 7
      %v3326 = vsel %vm2509, %v3324, %v3325
      %v3327 = vrot.slane %v2490, 7
      %v3328 = vrot.slane %v2491, 7
      %v3329 = vsel %vm2509, %v3327, %v3328
      %v3332 = vpack.c.bf16 %v3326, %v2938
      %v3333 = vpack.c.bf16 %v3329, %v2941
      %s3334 = scalar_lea.vmem %s3, 192
      %v3335 = vld [vmem:[%s3334] sm:$0xf]
      %v3336 = vld [vmem:[%s3334 + $0x4] sm:$0xf]
      %v3337 = vld [vmem:[%s3334 + $0x8] sm:$0xf]
      %v3338 = vld [vmem:[%s3334 + $0xc] sm:$0xf]
      %v3339 = vld [vmem:[%s3334 + $0x10] sm:$0xf]
      %v3340 = vld [vmem:[%s3334 + $0x14] sm:$0xf]
      %v3341 = vld [vmem:[%s3334 + $0x18] sm:$0xf]
      %v3342 = vld [vmem:[%s3334 + $0x1c] sm:$0xf]
      %v3351 = vunpack.c.l.b16 %v3335
      %v3352 = vunpack.c.l.b16 %v3336
      %v3353 = vunpack.c.l.b16 %v3337
      %v3354 = vunpack.c.l.b16 %v3338
      %v3355 = vunpack.c.l.b16 %v3339
      %v3356 = vunpack.c.l.b16 %v3340
      %v3357 = vunpack.c.l.b16 %v3341
      %v3358 = vunpack.c.l.b16 %v3342
      %v3359 = vpack.c.b16 %v3352, %v3351
      %v3360 = vpack.c.b16 %v3354, %v3353
      %v3361 = vpack.c.b16 %v3356, %v3355
      %v3362 = vpack.c.b16 %v3358, %v3357
      %v3368 = vsel %vm2026, %v3332, 0
      %v3371 = vsel %vm2026, %v3333, 0
      %3373 = vmatprep.subr.bf16.mxu0 0
      %3374 = vmatpush1.bf16.msra.mxu0 %v3359
      %3375 = vmatprep.subr.bf16.mxu0 0
      %3376 = vmatpush1.bf16.msra.mxu0 %v3360
      %3377 = vmatprep.subr.bf16.mxu0 0
      %3378 = vmatpush1.bf16.msra.mxu0 %v3361
      %3379 = vmatprep.subr.bf16.mxu0 0
      %3380 = vmatpush1.bf16.msra.mxu0 %v3362
      %3381 = vmatprep.subr.bf16.mxu0 0
      %3382 = vmatpush1.bf16.msra.mxu0 0
      %3383 = vmatprep.subr.bf16.mxu0 0
      %3384 = vmatpush1.bf16.msra.mxu0 0
      %3385 = vmatprep.subr.bf16.mxu0 0
      %3386 = vmatpush1.bf16.msra.mxu0 0
      %3387 = vmatprep.subr.bf16.mxu0 0
      %3388 = vmatpush1.bf16.msra.mxu0 0
      %3389 = vmatprep.subr.bf16.mxu0 0
      %3390 = vmatpush1.bf16.msra.mxu0 0
      %3391 = vmatprep.subr.bf16.mxu0 0
      %3392 = vmatpush1.bf16.msra.mxu0 0
      %3393 = vmatprep.subr.bf16.mxu0 0
      %3394 = vmatpush1.bf16.msra.mxu0 0
      %3395 = vmatprep.subr.bf16.mxu0 0
      %3396 = vmatpush1.bf16.msra.mxu0 0
      %3397 = vmatprep.subr.bf16.mxu0 0
      %3398 = vmatpush1.bf16.msra.mxu0 0
      %3399 = vmatprep.subr.bf16.mxu0 0
      %3400 = vmatpush1.bf16.msra.mxu0 0
      %3401 = vmatprep.subr.bf16.mxu0 0
      %3402 = vmatpush1.bf16.msra.mxu0 0
      %3403 = vmatprep.subr.bf16.mxu0 0
      %3404 = vmatpush1.bf16.msra.mxu0 0
      %3405 = vmatprep.mubr.bf16.mxu0 0
      %3406 = vmatmul.mubr.bf16.gmra.mrb[0].mxu0 %v2696
      %v3407 = vpop.f32.mrb[0].mxu0
      %v3408 = vadd.f32 0.0, %v3407
      %v3409 = vpop.f32.mrb[0].mxu0
      %v3410 = vpop.f32.mrb[0].mxu0
      %v3411 = vadd.f32 0.0, %v3410
      %v3412 = vpop.f32.mrb[0].mxu0
      %3413 = vmatprep.mubr.bf16.mxu0 0
      %3414 = vmatmul.mubr.bf16.gmra.mrb[0].mxu0 %v3368
      %v3415 = vpop.f32.mrb[0].mxu0
      %v3416 = vadd.f32 0.0, %v3415
      %v3417 = vpop.f32.mrb[0].mxu0
      %v3418 = vpop.f32.mrb[0].mxu0
      %v3419 = vadd.f32 0.0, %v3418
      %v3420 = vpop.f32.mrb[0].mxu0
      %3421 = vmatprep.mubr.bf16.mxu0 0
      %3422 = vmatmul.mubr.bf16.gmra.mrb[0].mxu0 %v2702
      %v3423 = vpop.f32.mrb[0].mxu0
      %v3424 = vadd.f32 0.0, %v3423
      %v3425 = vpop.f32.mrb[0].mxu0
      %v3426 = vpop.f32.mrb[0].mxu0
      %v3427 = vadd.f32 0.0, %v3426
      %v3428 = vpop.f32.mrb[0].mxu0
      %3429 = vmatprep.mubr.bf16.mxu0 0
      %3430 = vmatmul.mubr.bf16.gmra.mrb[0].mxu0 %v3371
      %v3431 = vpop.f32.mrb[0].mxu0
      %v3432 = vadd.f32 0.0, %v3431
      %v3433 = vpop.f32.mrb[0].mxu0
      %v3434 = vpop.f32.mrb[0].mxu0
      %v3435 = vadd.f32 0.0, %v3434
      %v3436 = vpop.f32.mrb[0].mxu0
      %3437 = vdwg.mxu0
      %v3438 = vadd.f32 %v3312, %v3408
      %v3439 = vadd.f32 %v3313, %v3411
      %v3440 = vadd.f32 %v3314, %v3416
      %v3441 = vadd.f32 %v3315, %v3419
      %v3442 = vadd.f32 %v3316, %v3424
      %v3443 = vadd.f32 %v3317, %v3427
      %v3444 = vadd.f32 %v3318, %v3432
      %v3445 = vadd.f32 %v3319, %v3435
      %v3446 = vpack.c.bf16 %v2473, %v2470
      %v3447 = vpack.c.bf16 %v2491, %v2488
      %s3448 = scalar_lea.vmem %s3, 224
      %v3449 = vld [vmem:[%s3448] sm:$0xf]
      %v3450 = vld [vmem:[%s3448 + $0x4] sm:$0xf]
      %v3451 = vld [vmem:[%s3448 + $0x8] sm:$0xf]
      %v3452 = vld [vmem:[%s3448 + $0xc] sm:$0xf]
      %v3453 = vld [vmem:[%s3448 + $0x10] sm:$0xf]
      %v3454 = vld [vmem:[%s3448 + $0x14] sm:$0xf]
      %v3455 = vld [vmem:[%s3448 + $0x18] sm:$0xf]
      %v3456 = vld [vmem:[%s3448 + $0x1c] sm:$0xf]
      %v3465 = vunpack.c.l.b16 %v3449
      %v3466 = vunpack.c.l.b16 %v3450
      %v3467 = vunpack.c.l.b16 %v3451
      %v3468 = vunpack.c.l.b16 %v3452
      %v3469 = vunpack.c.l.b16 %v3453
      %v3470 = vunpack.c.l.b16 %v3454
      %v3471 = vunpack.c.l.b16 %v3455
      %v3472 = vunpack.c.l.b16 %v3456
      %v3473 = vpack.c.b16 %v3466, %v3465
      %v3474 = vpack.c.b16 %v3468, %v3467
      %v3475 = vpack.c.b16 %v3470, %v3469
      %v3476 = vpack.c.b16 %v3472, %v3471
      %v3482 = vsel %vm2026, %v3446, 0
      %v3485 = vsel %vm2026, %v3447, 0
      %3487 = vmatprep.subr.bf16.mxu0 0
      %3488 = vmatpush1.bf16.msra.mxu0 %v3473
      %3489 = vmatprep.subr.bf16.mxu0 0
      %3490 = vmatpush1.bf16.msra.mxu0 %v3474
      %3491 = vmatprep.subr.bf16.mxu0 0
      %3492 = vmatpush1.bf16.msra.mxu0 %v3475
      %3493 = vmatprep.subr.bf16.mxu0 0
      %3494 = vmatpush1.bf16.msra.mxu0 %v3476
      %3495 = vmatprep.subr.bf16.mxu0 0
      %3496 = vmatpush1.bf16.msra.mxu0 0
      %3497 = vmatprep.subr.bf16.mxu0 0
      %3498 = vmatpush1.bf16.msra.mxu0 0
      %3499 = vmatprep.subr.bf16.mxu0 0
      %3500 = vmatpush1.bf16.msra.mxu0 0
      %3501 = vmatprep.subr.bf16.mxu0 0
      %3502 = vmatpush1.bf16.msra.mxu0 0
      %3503 = vmatprep.subr.bf16.mxu0 0
      %3504 = vmatpush1.bf16.msra.mxu0 0
      %3505 = vmatprep.subr.bf16.mxu0 0
      %3506 = vmatpush1.bf16.msra.mxu0 0
      %3507 = vmatprep.subr.bf16.mxu0 0
      %3508 = vmatpush1.bf16.msra.mxu0 0
      %3509 = vmatprep.subr.bf16.mxu0 0
      %3510 = vmatpush1.bf16.msra.mxu0 0
      %3511 = vmatprep.subr.bf16.mxu0 0
      %3512 = vmatpush1.bf16.msra.mxu0 0
      %3513 = vmatprep.subr.bf16.mxu0 0
      %3514 = vmatpush1.bf16.msra.mxu0 0
      %3515 = vmatprep.subr.bf16.mxu0 0
      %3516 = vmatpush1.bf16.msra.mxu0 0
      %3517 = vmatprep.subr.bf16.mxu0 0
      %3518 = vmatpush1.bf16.msra.mxu0 0
      %3519 = vmatprep.mubr.bf16.mxu0 0
      %3520 = vmatmul.mubr.bf16.gmra.mrb[0].mxu0 %v2595
      %v3521 = vpop.f32.mrb[0].mxu0
      %v3522 = vadd.f32 0.0, %v3521
      %v3523 = vpop.f32.mrb[0].mxu0
      %v3524 = vpop.f32.mrb[0].mxu0
      %v3525 = vadd.f32 0.0, %v3524
      %v3526 = vpop.f32.mrb[0].mxu0
      %3527 = vmatprep.mubr.bf16.mxu0 0
      %3528 = vmatmul.mubr.bf16.gmra.mrb[0].mxu0 %v3482
      %v3529 = vpop.f32.mrb[0].mxu0
      %v3530 = vadd.f32 0.0, %v3529
      %v3531 = vpop.f32.mrb[0].mxu0
      %v3532 = vpop.f32.mrb[0].mxu0
      %v3533 = vadd.f32 0.0, %v3532
      %v3534 = vpop.f32.mrb[0].mxu0
      %3535 = vmatprep.mubr.bf16.mxu0 0
      %3536 = vmatmul.mubr.bf16.gmra.mrb[0].mxu0 %v2601
      %v3537 = vpop.f32.mrb[0].mxu0
      %v3538 = vadd.f32 0.0, %v3537
      %v3539 = vpop.f32.mrb[0].mxu0
      %v3540 = vpop.f32.mrb[0].mxu0
      %v3541 = vadd.f32 0.0, %v3540
      %v3542 = vpop.f32.mrb[0].mxu0
      %3543 = vmatprep.mubr.bf16.mxu0 0
      %3544 = vmatmul.mubr.bf16.gmra.mrb[0].mxu0 %v3485
      %v3545 = vpop.f32.mrb[0].mxu0
      %v3546 = vadd.f32 0.0, %v3545
      %v3547 = vpop.f32.mrb[0].mxu0
      %v3548 = vpop.f32.mrb[0].mxu0
      %v3549 = vadd.f32 0.0, %v3548
      %v3550 = vpop.f32.mrb[0].mxu0
      %3551 = vdwg.mxu0
      %v3552 = vadd.f32 %v3438, %v3522
      %v3553 = vadd.f32 %v3439, %v3525
      %v3554 = vadd.f32 %v3440, %v3530
      %v3555 = vadd.f32 %v3441, %v3533
      %v3556 = vadd.f32 %v3442, %v3538
      %v3557 = vadd.f32 %v3443, %v3541
      %v3558 = vadd.f32 %v3444, %v3546
      %v3559 = vadd.f32 %v3445, %v3549
      %v3562 = vrot.slane %v2473, 1
      %v3563 = vrot.slane %v2474, 1
      %v3564 = vsel %vm2777, %v3562, %v3563
      %v3565 = vrot.slane %v2491, 1
      %v3566 = vrot.slane %v2492, 1
      %v3567 = vsel %vm2777, %v3565, %v3566
      %v3570 = vpack.c.bf16 %v3564, %v3192
      %v3571 = vpack.c.bf16 %v3567, %v3195
      %s3572 = scalar_lea.vmem %s3, 256
      %v3573 = vld [vmem:[%s3572] sm:$0xf]
      %v3574 = vld [vmem:[%s3572 + $0x4] sm:$0xf]
      %v3575 = vld [vmem:[%s3572 + $0x8] sm:$0xf]
      %v3576 = vld [vmem:[%s3572 + $0xc] sm:$0xf]
      %v3577 = vld [vmem:[%s3572 + $0x10] sm:$0xf]
      %v3578 = vld [vmem:[%s3572 + $0x14] sm:$0xf]
      %v3579 = vld [vmem:[%s3572 + $0x18] sm:$0xf]
      %v3580 = vld [vmem:[%s3572 + $0x1c] sm:$0xf]
      %v3589 = vunpack.c.l.b16 %v3573
      %v3590 = vunpack.c.l.b16 %v3574
      %v3591 = vunpack.c.l.b16 %v3575
      %v3592 = vunpack.c.l.b16 %v3576
      %v3593 = vunpack.c.l.b16 %v3577
      %v3594 = vunpack.c.l.b16 %v3578
      %v3595 = vunpack.c.l.b16 %v3579
      %v3596 = vunpack.c.l.b16 %v3580
      %v3597 = vpack.c.b16 %v3590, %v3589
      %v3598 = vpack.c.b16 %v3592, %v3591
      %v3599 = vpack.c.b16 %v3594, %v3593
      %v3600 = vpack.c.b16 %v3596, %v3595
      %v3606 = vsel %vm2026, %v3570, 0
      %v3609 = vsel %vm2026, %v3571, 0
      %3611 = vmatprep.subr.bf16.mxu0 0
      %3612 = vmatpush1.bf16.msra.mxu0 %v3597
      %3613 = vmatprep.subr.bf16.mxu0 0
      %3614 = vmatpush1.bf16.msra.mxu0 %v3598
      %3615 = vmatprep.subr.bf16.mxu0 0
      %3616 = vmatpush1.bf16.msra.mxu0 %v3599
      %3617 = vmatprep.subr.bf16.mxu0 0
      %3618 = vmatpush1.bf16.msra.mxu0 %v3600
      %3619 = vmatprep.subr.bf16.mxu0 0
      %3620 = vmatpush1.bf16.msra.mxu0 0
      %3621 = vmatprep.subr.bf16.mxu0 0
      %3622 = vmatpush1.bf16.msra.mxu0 0
      %3623 = vmatprep.subr.bf16.mxu0 0
      %3624 = vmatpush1.bf16.msra.mxu0 0
      %3625 = vmatprep.subr.bf16.mxu0 0
      %3626 = vmatpush1.bf16.msra.mxu0 0
      %3627 = vmatprep.subr.bf16.mxu0 0
      %3628 = vmatpush1.bf16.msra.mxu0 0
      %3629 = vmatprep.subr.bf16.mxu0 0
      %3630 = vmatpush1.bf16.msra.mxu0 0
      %3631 = vmatprep.subr.bf16.mxu0 0
      %3632 = vmatpush1.bf16.msra.mxu0 0
      %3633 = vmatprep.subr.bf16.mxu0 0
      %3634 = vmatpush1.bf16.msra.mxu0 0
      %3635 = vmatprep.subr.bf16.mxu0 0
      %3636 = vmatpush1.bf16.msra.mxu0 0
      %3637 = vmatprep.subr.bf16.mxu0 0
      %3638 = vmatpush1.bf16.msra.mxu0 0
      %3639 = vmatprep.subr.bf16.mxu0 0
      %3640 = vmatpush1.bf16.msra.mxu0 0
      %3641 = vmatprep.subr.bf16.mxu0 0
      %3642 = vmatpush1.bf16.msra.mxu0 0
      %3643 = vmatprep.mubr.bf16.mxu0 0
      %3644 = vmatmul.mubr.bf16.gmra.mrb[0].mxu0 %v2851
      %v3645 = vpop.f32.mrb[0].mxu0
      %v3646 = vadd.f32 0.0, %v3645
      %v3647 = vpop.f32.mrb[0].mxu0
      %v3648 = vpop.f32.mrb[0].mxu0
      %v3649 = vadd.f32 0.0, %v3648
      %v3650 = vpop.f32.mrb[0].mxu0
      %3651 = vmatprep.mubr.bf16.mxu0 0
      %3652 = vmatmul.mubr.bf16.gmra.mrb[0].mxu0 %v3606
      %v3653 = vpop.f32.mrb[0].mxu0
      %v3654 = vadd.f32 0.0, %v3653
      %v3655 = vpop.f32.mrb[0].mxu0
      %v3656 = vpop.f32.mrb[0].mxu0
      %v3657 = vadd.f32 0.0, %v3656
      %v3658 = vpop.f32.mrb[0].mxu0
      %3659 = vmatprep.mubr.bf16.mxu0 0
      %3660 = vmatmul.mubr.bf16.gmra.mrb[0].mxu0 %v2857
      %v3661 = vpop.f32.mrb[0].mxu0
      %v3662 = vadd.f32 0.0, %v3661
      %v3663 = vpop.f32.mrb[0].mxu0
      %v3664 = vpop.f32.mrb[0].mxu0
      %v3665 = vadd.f32 0.0, %v3664
      %v3666 = vpop.f32.mrb[0].mxu0
      %3667 = vmatprep.mubr.bf16.mxu0 0
      %3668 = vmatmul.mubr.bf16.gmra.mrb[0].mxu0 %v3609
      %v3669 = vpop.f32.mrb[0].mxu0
      %v3670 = vadd.f32 0.0, %v3669
      %v3671 = vpop.f32.mrb[0].mxu0
      %v3672 = vpop.f32.mrb[0].mxu0
      %v3673 = vadd.f32 0.0, %v3672
      %v3674 = vpop.f32.mrb[0].mxu0
      %3675 = vdwg.mxu0
      %v3676 = vadd.f32 %v3552, %v3646
      %v3677 = vadd.f32 %v3553, %v3649
      %v3678 = vadd.f32 %v3554, %v3654
      %v3679 = vadd.f32 %v3555, %v3657
      %v3680 = vadd.f32 %v3556, %v3662
      %v3681 = vadd.f32 %v3557, %v3665
      %v3682 = vadd.f32 %v3558, %v3670
      %v3683 = vadd.f32 %v3559, %v3673
      %v3684 = vld [vmem:[%s4] sm:$0x1]
      %v3686 = vlaneseq
      %v3687 = vshrl.u32 %v3686, 7
      %v3688 = vsub.s32 0, %v3687
      %v3689 = vrot.slane %v3684, %v3688
      %v3691 = vadd.f32 %v3676, %v3689
      %v3692 = vadd.f32 %v3677, %v3689
      %v3693 = vadd.f32 %v3678, %v3689
      %v3694 = vadd.f32 %v3679, %v3689
      %v3695 = vadd.f32 %v3680, %v3689
      %v3696 = vadd.f32 %v3681, %v3689
      %v3697 = vadd.f32 %v3682, %v3689
      %v3698 = vadd.f32 %v3683, %v3689
      %v3699 = vmax.f32 %v3691, 0.0
      %v3700 = vmax.f32 %v3692, 0.0
      %v3701 = vmax.f32 %v3693, 0.0
      %v3702 = vmax.f32 %v3694, 0.0
      %v3703 = vmax.f32 %v3695, 0.0
      %v3704 = vmax.f32 %v3696, 0.0
      %v3705 = vmax.f32 %v3697, 0.0
      %v3706 = vmax.f32 %v3698, 0.0
      %v3715 = vcombine.high %v3699, %v3699
      %v3717 = vunpack.c.l.s4 1983009808
      %v3718 = vunpack.c.0.s8 %v3717
      %v3719 = vlaneseq
      %v3720 = vshrl.u32 %v3719, 7
      %v3721 = vsub.s32 %v3718, %v3720
      %v3722 = vrot.slane %v3699, %v3721
      %v3724 = vunpack.c.l.s4 1983009808
      %v3725 = vunpack.c.0.s8 %v3724
      %v3726 = vlaneseq
      %v3727 = vshrl.u32 %v3726, 7
      %v3728 = vsub.s32 %v3725, %v3727
      %v3729 = vrot.slane %v3715, %v3728
      %v3730 = vcombine.high %v3722, %v3722
      %v3731 = vcombine.high %v3729, %v3729
      %v3732 = vcombine.high %v3700, %v3700
      %v3734 = vunpack.c.l.s4 1983009808
      %v3735 = vunpack.c.0.s8 %v3734
      %v3736 = vlaneseq
      %v3737 = vshrl.u32 %v3736, 7
      %v3738 = vsub.s32 %v3735, %v3737
      %v3739 = vrot.slane %v3700, %v3738
      %v3741 = vunpack.c.l.s4 1983009808
      %v3742 = vunpack.c.0.s8 %v3741
      %v3743 = vlaneseq
      %v3744 = vshrl.u32 %v3743, 7
      %v3745 = vsub.s32 %v3742, %v3744
      %v3746 = vrot.slane %v3732, %v3745
      %v3747 = vcombine.high %v3739, %v3739
      %v3748 = vcombine.high %v3746, %v3746
      %v3749 = vcombine.high %v3701, %v3701
      %v3751 = vunpack.c.l.s4 1983009808
      %v3752 = vunpack.c.0.s8 %v3751
      %v3753 = vlaneseq
      %v3754 = vshrl.u32 %v3753, 7
      %v3755 = vsub.s32 %v3752, %v3754
      %v3756 = vrot.slane %v3701, %v3755
      %v3758 = vunpack.c.l.s4 1983009808
      %v3759 = vunpack.c.0.s8 %v3758
      %v3760 = vlaneseq
      %v3761 = vshrl.u32 %v3760, 7
      %v3762 = vsub.s32 %v3759, %v3761
      %v3763 = vrot.slane %v3749, %v3762
      %v3764 = vcombine.high %v3756, %v3756
      %v3765 = vcombine.high %v3763, %v3763
      %v3766 = vcombine.high %v3702, %v3702
      %v3768 = vunpack.c.l.s4 1983009808
      %v3769 = vunpack.c.0.s8 %v3768
      %v3770 = vlaneseq
      %v3771 = vshrl.u32 %v3770, 7
      %v3772 = vsub.s32 %v3769, %v3771
      %v3773 = vrot.slane %v3702, %v3772
      %v3775 = vunpack.c.l.s4 1983009808
      %v3776 = vunpack.c.0.s8 %v3775
      %v3777 = vlaneseq
      %v3778 = vshrl.u32 %v3777, 7
      %v3779 = vsub.s32 %v3776, %v3778
      %v3780 = vrot.slane %v3766, %v3779
      %v3781 = vcombine.high %v3773, %v3773
      %v3782 = vcombine.high %v3780, %v3780
      %v3783 = vcombine.high %v3703, %v3703
      %v3785 = vunpack.c.l.s4 1983009808
      %v3786 = vunpack.c.0.s8 %v3785
      %v3787 = vlaneseq
      %v3788 = vshrl.u32 %v3787, 7
      %v3789 = vsub.s32 %v3786, %v3788
      %v3790 = vrot.slane %v3703, %v3789
      %v3792 = vunpack.c.l.s4 1983009808
      %v3793 = vunpack.c.0.s8 %v3792
      %v3794 = vlaneseq
      %v3795 = vshrl.u32 %v3794, 7
      %v3796 = vsub.s32 %v3793, %v3795
      %v3797 = vrot.slane %v3783, %v3796
      %v3798 = vcombine.high %v3790, %v3790
      %v3799 = vcombine.high %v3797, %v3797
      %v3800 = vcombine.high %v3704, %v3704
      %v3802 = vunpack.c.l.s4 1983009808
      %v3803 = vunpack.c.0.s8 %v3802
      %v3804 = vlaneseq
      %v3805 = vshrl.u32 %v3804, 7
      %v3806 = vsub.s32 %v3803, %v3805
      %v3807 = vrot.slane %v3704, %v3806
      %v3809 = vunpack.c.l.s4 1983009808
      %v3810 = vunpack.c.0.s8 %v3809
      %v3811 = vlaneseq
      %v3812 = vshrl.u32 %v3811, 7
      %v3813 = vsub.s32 %v3810, %v3812
      %v3814 = vrot.slane %v3800, %v3813
      %v3815 = vcombine.high %v3807, %v3807
      %v3816 = vcombine.high %v3814, %v3814
      %v3817 = vcombine.high %v3705, %v3705
      %v3819 = vunpack.c.l.s4 1983009808
      %v3820 = vunpack.c.0.s8 %v3819
      %v3821 = vlaneseq
      %v3822 = vshrl.u32 %v3821, 7
      %v3823 = vsub.s32 %v3820, %v3822
      %v3824 = vrot.slane %v3705, %v3823
      %v3826 = vunpack.c.l.s4 1983009808
      %v3827 = vunpack.c.0.s8 %v3826
      %v3828 = vlaneseq
      %v3829 = vshrl.u32 %v3828, 7
      %v3830 = vsub.s32 %v3827, %v3829
      %v3831 = vrot.slane %v3817, %v3830
      %v3832 = vcombine.high %v3824, %v3824
      %v3833 = vcombine.high %v3831, %v3831
      %v3834 = vcombine.high %v3706, %v3706
      %v3836 = vunpack.c.l.s4 1983009808
      %v3837 = vunpack.c.0.s8 %v3836
      %v3838 = vlaneseq
      %v3839 = vshrl.u32 %v3838, 7
      %v3840 = vsub.s32 %v3837, %v3839
      %v3841 = vrot.slane %v3706, %v3840
      %v3843 = vunpack.c.l.s4 1983009808
      %v3844 = vunpack.c.0.s8 %v3843
      %v3845 = vlaneseq
      %v3846 = vshrl.u32 %v3845, 7
      %v3847 = vsub.s32 %v3844, %v3846
      %v3848 = vrot.slane %v3834, %v3847
      %v3849 = vcombine.high %v3841, %v3841
      %v3850 = vcombine.high %v3848, %v3848
      %v3883 = vrot.slane %v3722, 7
      %v3884 = vrot.slane %v3883, 2
      %v3885 = vrot.slane %v3730, 7
      %v3886 = vrot.slane %v3885, 2
      %v3887 = vrot.slane %v3729, 7
      %v3888 = vrot.slane %v3887, 2
      %v3889 = vrot.slane %v3731, 7
      %v3890 = vrot.slane %v3889, 2
      %v3891 = vrot.slane %v3739, 7
      %v3892 = vrot.slane %v3891, 2
      %v3893 = vrot.slane %v3747, 7
      %v3894 = vrot.slane %v3893, 2
      %v3895 = vrot.slane %v3746, 7
      %v3896 = vrot.slane %v3895, 2
      %v3897 = vrot.slane %v3748, 7
      %v3898 = vrot.slane %v3897, 2
      %v3899 = vrot.slane %v3756, 7
      %v3900 = vrot.slane %v3899, 2
      %v3901 = vrot.slane %v3764, 7
      %v3902 = vrot.slane %v3901, 2
      %v3903 = vrot.slane %v3763, 7
      %v3904 = vrot.slane %v3903, 2
      %v3905 = vrot.slane %v3765, 7
      %v3906 = vrot.slane %v3905, 2
      %v3907 = vrot.slane %v3773, 7
      %v3908 = vrot.slane %v3907, 2
      %v3909 = vrot.slane %v3781, 7
      %v3910 = vrot.slane %v3909, 2
      %v3911 = vrot.slane %v3780, 7
      %v3912 = vrot.slane %v3911, 2
      %v3913 = vrot.slane %v3782, 7
      %v3914 = vrot.slane %v3913, 2
      %v3915 = vrot.slane %v3790, 7
      %v3916 = vrot.slane %v3915, 2
      %v3917 = vrot.slane %v3798, 7
      %v3918 = vrot.slane %v3917, 2
      %v3919 = vrot.slane %v3797, 7
      %v3920 = vrot.slane %v3919, 2
      %v3921 = vrot.slane %v3799, 7
      %v3922 = vrot.slane %v3921, 2
      %v3923 = vrot.slane %v3807, 7
      %v3924 = vrot.slane %v3923, 2
      %v3925 = vrot.slane %v3815, 7
      %v3926 = vrot.slane %v3925, 2
      %v3927 = vrot.slane %v3814, 7
      %v3928 = vrot.slane %v3927, 2
      %v3929 = vrot.slane %v3816, 7
      %v3930 = vrot.slane %v3929, 2
      %v3931 = vrot.slane %v3824, 7
      %v3932 = vrot.slane %v3931, 2
      %v3933 = vrot.slane %v3832, 7
      %v3934 = vrot.slane %v3933, 2
      %v3935 = vrot.slane %v3831, 7
      %v3936 = vrot.slane %v3935, 2
      %v3937 = vrot.slane %v3833, 7
      %v3938 = vrot.slane %v3937, 2
      %v3939 = vrot.slane %v3841, 7
      %v3940 = vrot.slane %v3939, 2
      %v3941 = vrot.slane %v3849, 7
      %v3942 = vrot.slane %v3941, 2
      %v3943 = vrot.slane %v3848, 7
      %v3944 = vrot.slane %v3943, 2
      %v3945 = vrot.slane %v3850, 7
      %v3946 = vrot.slane %v3945, 2
      %v3979 = vmax.f32 %v3722, %v3884
      %v3980 = vmax.f32 %v3730, %v3886
      %v3981 = vmax.f32 %v3729, %v3888
      %v3982 = vmax.f32 %v3731, %v3890
      %v3983 = vmax.f32 %v3739, %v3892
      %v3984 = vmax.f32 %v3747, %v3894
      %v3985 = vmax.f32 %v3746, %v3896
      %v3986 = vmax.f32 %v3748, %v3898
      %v3987 = vmax.f32 %v3756, %v3900
      %v3988 = vmax.f32 %v3764, %v3902
      %v3989 = vmax.f32 %v3763, %v3904
      %v3990 = vmax.f32 %v3765, %v3906
      %v3991 = vmax.f32 %v3773, %v3908
      %v3992 = vmax.f32 %v3781, %v3910
      %v3993 = vmax.f32 %v3780, %v3912
      %v3994 = vmax.f32 %v3782, %v3914
      %v3995 = vmax.f32 %v3790, %v3916
      %v3996 = vmax.f32 %v3798, %v3918
      %v3997 = vmax.f32 %v3797, %v3920
      %v3998 = vmax.f32 %v3799, %v3922
      %v3999 = vmax.f32 %v3807, %v3924
      %v4000 = vmax.f32 %v3815, %v3926
      %v4001 = vmax.f32 %v3814, %v3928
      %v4002 = vmax.f32 %v3816, %v3930
      %v4003 = vmax.f32 %v3824, %v3932
      %v4004 = vmax.f32 %v3832, %v3934
      %v4005 = vmax.f32 %v3831, %v3936
      %v4006 = vmax.f32 %v3833, %v3938
      %v4007 = vmax.f32 %v3841, %v3940
      %v4008 = vmax.f32 %v3849, %v3942
      %v4009 = vmax.f32 %v3848, %v3944
      %v4010 = vmax.f32 %v3850, %v3946
      %v4011 = vmax.f32 %v3979, %v3983
      %v4012 = vmax.f32 %v3980, %v3984
      %v4013 = vmax.f32 %v3981, %v3985
      %v4014 = vmax.f32 %v3982, %v3986
      %v4015 = vmax.f32 %v3987, %v3991
      %v4016 = vmax.f32 %v3988, %v3992
      %v4017 = vmax.f32 %v3989, %v3993
      %v4018 = vmax.f32 %v3990, %v3994
      %v4019 = vmax.f32 %v3995, %v3999
      %v4020 = vmax.f32 %v3996, %v4000
      %v4021 = vmax.f32 %v3997, %v4001
      %v4022 = vmax.f32 %v3998, %v4002
      %v4023 = vmax.f32 %v4003, %v4007
      %v4024 = vmax.f32 %v4004, %v4008
      %v4025 = vmax.f32 %v4005, %v4009
      %v4026 = vmax.f32 %v4006, %v4010
      %4027 = vst [vmem:[#allocation3] sm:$0xff] 0.0
      %4028 = vst [vmem:[#allocation3 + $0x8] sm:$0xff] 0.0
      %4029 = vst [vmem:[#allocation3 + $0x40] sm:$0xff] 0.0
      %4030 = vst [vmem:[#allocation3 + $0x48] sm:$0xff] 0.0
      %s4031 = scalar_lea.vmem [#allocation3], 48
      %4032 = vst [vmem:[%s4031] sm:$0xff] 0.0
      %4033 = vst [vmem:[%s4031 + $0x8] sm:$0xff] 0.0
      %4034 = vst [vmem:[%s4031 + $0x40] sm:$0xff] 0.0
      %4035 = vst [vmem:[%s4031 + $0x48] sm:$0xff] 0.0
      %s4036 = scalar_lea.vmem [#allocation3], 16
      %4037 = vst [vmem:[%s4036 + $0x7] sm:$0x1] 0.0
      %4038 = vst [vmem:[%s4036 + $0x17] sm:$0x1] 0.0
      %4039 = vst [vmem:[%s4036 + $0x47] sm:$0x1] 0.0
      %4040 = vst [vmem:[%s4036 + $0x57] sm:$0x1] 0.0
      %4041 = vst [vmem:[%s4036 + $0xc] sm:$0x1] 0.0
      %4042 = vst [vmem:[%s4036 + $0x1c] sm:$0x1] 0.0
      %4043 = vst [vmem:[%s4036 + $0x4c] sm:$0x1] 0.0
      %4044 = vst [vmem:[%s4036 + $0x5c] sm:$0x1] 0.0
      %v4061 = vlaneseq
      %v4062 = vshrl.u32 %v4061, 7
      %v4063 = vsub.s32 0, %v4062
      %v4064 = vrot.slane %v4011, %v4063
      %v4065 = vlaneseq
      %v4066 = vshrl.u32 %v4065, 7
      %v4067 = vsub.s32 0, %v4066
      %v4068 = vrot.slane %v4012, %v4067
      %v4069 = vlaneseq
      %v4070 = vshrl.u32 %v4069, 7
      %v4071 = vsub.s32 0, %v4070
      %v4072 = vrot.slane %v4013, %v4071
      %v4073 = vlaneseq
      %v4074 = vshrl.u32 %v4073, 7
      %v4075 = vsub.s32 0, %v4074
      %v4076 = vrot.slane %v4014, %v4075
      %v4077 = vlaneseq
      %v4078 = vshrl.u32 %v4077, 7
      %v4079 = vsub.s32 0, %v4078
      %v4080 = vrot.slane %v4015, %v4079
      %v4081 = vlaneseq
      %v4082 = vshrl.u32 %v4081, 7
      %v4083 = vsub.s32 0, %v4082
      %v4084 = vrot.slane %v4016, %v4083
      %v4085 = vlaneseq
      %v4086 = vshrl.u32 %v4085, 7
      %v4087 = vsub.s32 0, %v4086
      %v4088 = vrot.slane %v4017, %v4087
      %v4089 = vlaneseq
      %v4090 = vshrl.u32 %v4089, 7
      %v4091 = vsub.s32 0, %v4090
      %v4092 = vrot.slane %v4018, %v4091
      %v4093 = vlaneseq
      %v4094 = vshrl.u32 %v4093, 7
      %v4095 = vsub.s32 0, %v4094
      %v4096 = vrot.slane %v4019, %v4095
      %v4097 = vlaneseq
      %v4098 = vshrl.u32 %v4097, 7
      %v4099 = vsub.s32 0, %v4098
      %v4100 = vrot.slane %v4020, %v4099
      %v4101 = vlaneseq
      %v4102 = vshrl.u32 %v4101, 7
      %v4103 = vsub.s32 0, %v4102
      %v4104 = vrot.slane %v4021, %v4103
      %v4105 = vlaneseq
      %v4106 = vshrl.u32 %v4105, 7
      %v4107 = vsub.s32 0, %v4106
      %v4108 = vrot.slane %v4022, %v4107
      %v4109 = vlaneseq
      %v4110 = vshrl.u32 %v4109, 7
      %v4111 = vsub.s32 0, %v4110
      %v4112 = vrot.slane %v4023, %v4111
      %v4113 = vlaneseq
      %v4114 = vshrl.u32 %v4113, 7
      %v4115 = vsub.s32 0, %v4114
      %v4116 = vrot.slane %v4024, %v4115
      %v4117 = vlaneseq
      %v4118 = vshrl.u32 %v4117, 7
      %v4119 = vsub.s32 0, %v4118
      %v4120 = vrot.slane %v4025, %v4119
      %v4121 = vlaneseq
      %v4122 = vshrl.u32 %v4121, 7
      %v4123 = vsub.s32 0, %v4122
      %v4124 = vrot.slane %v4026, %v4123
      %v4125 = vsel %vm2378, %v4068, %v4064
      %v4126 = vsel %vm2380, %v4072, %v4125
      %v4127 = vsel %vm2382, %v4076, %v4126
      %v4128 = vsel %vm2378, %v4084, %v4080
      %v4129 = vsel %vm2380, %v4088, %v4128
      %v4130 = vsel %vm2382, %v4092, %v4129
      %v4131 = vsel %vm2378, %v4100, %v4096
      %v4132 = vsel %vm2380, %v4104, %v4131
      %v4133 = vsel %vm2382, %v4108, %v4132
      %v4134 = vsel %vm2378, %v4116, %v4112
      %v4135 = vsel %vm2380, %v4120, %v4134
      %v4136 = vsel %vm2382, %v4124, %v4135
      %4141 = vst [vmem:[%s4036 + $0x8] sm:$0xf] %v4127
      %4142 = vst [vmem:[%s4036 + $0x18] sm:$0xf] %v4130
      %4143 = vst [vmem:[%s4036 + $0x48] sm:$0xf] %v4133
      %4144 = vst [vmem:[%s4036 + $0x58] sm:$0xf] %v4136
      %v4145 = vld [vmem:[#allocation3] sm:$0xff]
      %v4146 = vld [vmem:[#allocation3 + $0x8] sm:$0xff]
      %v4147 = vld [vmem:[#allocation3 + $0x10] sm:$0xff]
      %v4148 = vld [vmem:[#allocation3 + $0x18] sm:$0xff]
      %v4149 = vld [vmem:[#allocation3 + $0x20] sm:$0xff]
      %v4150 = vld [vmem:[#allocation3 + $0x28] sm:$0xff]
      %v4151 = vld [vmem:[#allocation3 + $0x30] sm:$0xff]
      %v4152 = vld [vmem:[#allocation3 + $0x38] sm:$0xff]
      %v4153 = vld [vmem:[#allocation3 + $0x40] sm:$0xff]
      %v4154 = vld [vmem:[#allocation3 + $0x48] sm:$0xff]
      %v4155 = vld [vmem:[#allocation3 + $0x50] sm:$0xff]
      %v4156 = vld [vmem:[#allocation3 + $0x58] sm:$0xff]
      %v4157 = vld [vmem:[#allocation3 + $0x60] sm:$0xff]
      %v4158 = vld [vmem:[#allocation3 + $0x68] sm:$0xff]
      %v4159 = vld [vmem:[#allocation3 + $0x70] sm:$0xff]
      %v4160 = vld [vmem:[#allocation3 + $0x78] sm:$0xff]
      %v4169 = vcombine.high %v4145, %v4145
      %v4170 = vcombine.high %v4147, %v4147
      %v4171 = vcombine.high %v4153, %v4153
      %v4172 = vcombine.high %v4155, %v4155
      %vm4173 = vmor %vm2509, %vm2384
      %v4174 = vrot.slane %v4169, 7
      %v4175 = vrot.slane %v4174, 4
      %v4176 = vrot.slane %v4146, 7
      %v4177 = vsel %vm4173, %v4175, %v4176
      %v4178 = vrot.slane %v4170, 7
      %v4179 = vrot.slane %v4178, 4
      %v4180 = vrot.slane %v4148, 7
      %v4181 = vsel %vm4173, %v4179, %v4180
      %v4182 = vrot.slane %v4171, 7
      %v4183 = vrot.slane %v4182, 4
      %v4184 = vrot.slane %v4154, 7
      %v4185 = vsel %vm4173, %v4183, %v4184
      %v4186 = vrot.slane %v4172, 7
      %v4187 = vrot.slane %v4186, 4
      %v4188 = vrot.slane %v4156, 7
      %v4189 = vsel %vm4173, %v4187, %v4188
      %v4190 = vcombine.low %v4177, %v4181
      %v4191 = vcombine.low %v4185, %v4189
      %v4194 = vpack.c.bf16 %v4191, %v4190
      %v4195 = vld [vmem:[%s5] sm:$0xff]
      %v4196 = vld [vmem:[%s5 + $0x8] sm:$0xff]
      %v4197 = vld [vmem:[%s5 + $0x10] sm:$0xff]
      %v4198 = vld [vmem:[%s5 + $0x18] sm:$0xff]
      %v4199 = vld [vmem:[%s5 + $0x20] sm:$0xff]
      %v4200 = vld [vmem:[%s5 + $0x28] sm:$0xff]
      %v4201 = vld [vmem:[%s5 + $0x30] sm:$0xff]
      %v4202 = vld [vmem:[%s5 + $0x38] sm:$0xff]
      %v4203 = vld [vmem:[%s5 + $0x40] sm:$0xff]
      %v4204 = vld [vmem:[%s5 + $0x48] sm:$0xff]
      %v4205 = vld [vmem:[%s5 + $0x50] sm:$0xff]
      %v4206 = vld [vmem:[%s5 + $0x58] sm:$0xff]
      %v4207 = vld [vmem:[%s5 + $0x60] sm:$0xff]
      %v4208 = vld [vmem:[%s5 + $0x68] sm:$0xff]
      %v4209 = vld [vmem:[%s5 + $0x70] sm:$0xff]
      %v4210 = vld [vmem:[%s5 + $0x78] sm:$0xff]
      %v4211 = vcombine.low %v4146, %v4148
      %v4212 = vcombine.low %v4154, %v4156
      %v4215 = vpack.c.bf16 %v4212, %v4211
      %s4216 = scalar_lea.vmem %s5, 128
      %v4217 = vld [vmem:[%s4216] sm:$0xff]
      %v4218 = vld [vmem:[%s4216 + $0x8] sm:$0xff]
      %v4219 = vld [vmem:[%s4216 + $0x10] sm:$0xff]
      %v4220 = vld [vmem:[%s4216 + $0x18] sm:$0xff]
      %v4221 = vld [vmem:[%s4216 + $0x20] sm:$0xff]
      %v4222 = vld [vmem:[%s4216 + $0x28] sm:$0xff]
      %v4223 = vld [vmem:[%s4216 + $0x30] sm:$0xff]
      %v4224 = vld [vmem:[%s4216 + $0x38] sm:$0xff]
      %v4225 = vld [vmem:[%s4216 + $0x40] sm:$0xff]
      %v4226 = vld [vmem:[%s4216 + $0x48] sm:$0xff]
      %v4227 = vld [vmem:[%s4216 + $0x50] sm:$0xff]
      %v4228 = vld [vmem:[%s4216 + $0x58] sm:$0xff]
      %v4229 = vld [vmem:[%s4216 + $0x60] sm:$0xff]
      %v4230 = vld [vmem:[%s4216 + $0x68] sm:$0xff]
      %v4231 = vld [vmem:[%s4216 + $0x70] sm:$0xff]
      %v4232 = vld [vmem:[%s4216 + $0x78] sm:$0xff]
      %v4249 = vunpack.c.l.b16 %v4217
      %v4250 = vunpack.c.h.b16 %v4217
      %v4251 = vunpack.c.l.b16 %v4218
      %v4252 = vunpack.c.h.b16 %v4218
      %v4253 = vunpack.c.l.b16 %v4219
      %v4254 = vunpack.c.h.b16 %v4219
      %v4255 = vunpack.c.l.b16 %v4220
      %v4256 = vunpack.c.h.b16 %v4220
      %v4257 = vunpack.c.l.b16 %v4221
      %v4258 = vunpack.c.h.b16 %v4221
      %v4259 = vunpack.c.l.b16 %v4222
      %v4260 = vunpack.c.h.b16 %v4222
      %v4261 = vunpack.c.l.b16 %v4223
      %v4262 = vunpack.c.h.b16 %v4223
      %v4263 = vunpack.c.l.b16 %v4224
      %v4264 = vunpack.c.h.b16 %v4224
      %v4265 = vunpack.c.l.b16 %v4225
      %v4266 = vunpack.c.h.b16 %v4225
      %v4267 = vunpack.c.l.b16 %v4226
      %v4268 = vunpack.c.h.b16 %v4226
      %v4269 = vunpack.c.l.b16 %v4227
      %v4270 = vunpack.c.h.b16 %v4227
      %v4271 = vunpack.c.l.b16 %v4228
      %v4272 = vunpack.c.h.b16 %v4228
      %v4273 = vunpack.c.l.b16 %v4229
      %v4274 = vunpack.c.h.b16 %v4229
      %v4275 = vunpack.c.l.b16 %v4230
      %v4276 = vunpack.c.h.b16 %v4230
      %v4277 = vunpack.c.l.b16 %v4231
      %v4278 = vunpack.c.h.b16 %v4231
      %v4279 = vunpack.c.l.b16 %v4232
      %v4280 = vunpack.c.h.b16 %v4232
      %v4281 = vpack.c.b16 %v4251, %v4249
      %v4282 = vpack.c.b16 %v4252, %v4250
      %v4283 = vpack.c.b16 %v4255, %v4253
      %v4284 = vpack.c.b16 %v4256, %v4254
      %v4285 = vpack.c.b16 %v4259, %v4257
      %v4286 = vpack.c.b16 %v4260, %v4258
      %v4287 = vpack.c.b16 %v4263, %v4261
      %v4288 = vpack.c.b16 %v4264, %v4262
      %v4289 = vpack.c.b16 %v4267, %v4265
      %v4290 = vpack.c.b16 %v4268, %v4266
      %v4291 = vpack.c.b16 %v4271, %v4269
      %v4292 = vpack.c.b16 %v4272, %v4270
      %v4293 = vpack.c.b16 %v4275, %v4273
      %v4294 = vpack.c.b16 %v4276, %v4274
      %v4295 = vpack.c.b16 %v4279, %v4277
      %v4296 = vpack.c.b16 %v4280, %v4278
      %4313 = vmatprep.subr.bf16.mxu0 %v4282
      %4314 = vmatpush1.bf16.msra.mxu0 %v4281
      %4315 = vmatprep.subr.bf16.mxu0 %v4284
      %4316 = vmatpush1.bf16.msra.mxu0 %v4283
      %4317 = vmatprep.subr.bf16.mxu0 %v4286
      %4318 = vmatpush1.bf16.msra.mxu0 %v4285
      %4319 = vmatprep.subr.bf16.mxu0 %v4288
      %4320 = vmatpush1.bf16.msra.mxu0 %v4287
      %4321 = vmatprep.subr.bf16.mxu0 %v4290
      %4322 = vmatpush1.bf16.msra.mxu0 %v4289
      %4323 = vmatprep.subr.bf16.mxu0 %v4292
      %4324 = vmatpush1.bf16.msra.mxu0 %v4291
      %4325 = vmatprep.subr.bf16.mxu0 %v4294
      %4326 = vmatpush1.bf16.msra.mxu0 %v4293
      %4327 = vmatprep.subr.bf16.mxu0 %v4296
      %4328 = vmatpush1.bf16.msra.mxu0 %v4295
      %4329 = vmatprep.subr.bf16.mxu0 0
      %4330 = vmatpush1.bf16.msra.mxu0 0
      %4331 = vmatprep.subr.bf16.mxu0 0
      %4332 = vmatpush1.bf16.msra.mxu0 0
      %4333 = vmatprep.subr.bf16.mxu0 0
      %4334 = vmatpush1.bf16.msra.mxu0 0
      %4335 = vmatprep.subr.bf16.mxu0 0
      %4336 = vmatpush1.bf16.msra.mxu0 0
      %4337 = vmatprep.subr.bf16.mxu0 0
      %4338 = vmatpush1.bf16.msra.mxu0 0
      %4339 = vmatprep.subr.bf16.mxu0 0
      %4340 = vmatpush1.bf16.msra.mxu0 0
      %4341 = vmatprep.subr.bf16.mxu0 0
      %4342 = vmatpush1.bf16.msra.mxu0 0
      %4343 = vmatprep.subr.bf16.mxu0 0
      %4344 = vmatpush1.bf16.msra.mxu0 0
      %4345 = vmatprep.mubr.bf16.mxu0 0
      %4346 = vmatmul.mubr.bf16.gmra.mrb[0].mxu0 %v4215
      %v4347 = vpop.f32.mrb[0].mxu0
      %v4348 = vadd.f32 0.0, %v4347
      %v4349 = vpop.f32.mrb[0].mxu0
      %v4350 = vadd.f32 0.0, %v4349
      %v4351 = vpop.f32.mrb[0].mxu0
      %v4352 = vadd.f32 0.0, %v4351
      %v4353 = vpop.f32.mrb[0].mxu0
      %v4354 = vadd.f32 0.0, %v4353
      %4355 = vdwg.mxu0
      %v4372 = vunpack.c.l.b16 %v4195
      %v4373 = vunpack.c.h.b16 %v4195
      %v4374 = vunpack.c.l.b16 %v4196
      %v4375 = vunpack.c.h.b16 %v4196
      %v4376 = vunpack.c.l.b16 %v4197
      %v4377 = vunpack.c.h.b16 %v4197
      %v4378 = vunpack.c.l.b16 %v4198
      %v4379 = vunpack.c.h.b16 %v4198
      %v4380 = vunpack.c.l.b16 %v4199
      %v4381 = vunpack.c.h.b16 %v4199
      %v4382 = vunpack.c.l.b16 %v4200
      %v4383 = vunpack.c.h.b16 %v4200
      %v4384 = vunpack.c.l.b16 %v4201
      %v4385 = vunpack.c.h.b16 %v4201
      %v4386 = vunpack.c.l.b16 %v4202
      %v4387 = vunpack.c.h.b16 %v4202
      %v4388 = vunpack.c.l.b16 %v4203
      %v4389 = vunpack.c.h.b16 %v4203
      %v4390 = vunpack.c.l.b16 %v4204
      %v4391 = vunpack.c.h.b16 %v4204
      %v4392 = vunpack.c.l.b16 %v4205
      %v4393 = vunpack.c.h.b16 %v4205
      %v4394 = vunpack.c.l.b16 %v4206
      %v4395 = vunpack.c.h.b16 %v4206
      %v4396 = vunpack.c.l.b16 %v4207
      %v4397 = vunpack.c.h.b16 %v4207
      %v4398 = vunpack.c.l.b16 %v4208
      %v4399 = vunpack.c.h.b16 %v4208
      %v4400 = vunpack.c.l.b16 %v4209
      %v4401 = vunpack.c.h.b16 %v4209
      %v4402 = vunpack.c.l.b16 %v4210
      %v4403 = vunpack.c.h.b16 %v4210
      %v4404 = vpack.c.b16 %v4374, %v4372
      %v4405 = vpack.c.b16 %v4375, %v4373
      %v4406 = vpack.c.b16 %v4378, %v4376
      %v4407 = vpack.c.b16 %v4379, %v4377
      %v4408 = vpack.c.b16 %v4382, %v4380
      %v4409 = vpack.c.b16 %v4383, %v4381
      %v4410 = vpack.c.b16 %v4386, %v4384
      %v4411 = vpack.c.b16 %v4387, %v4385
      %v4412 = vpack.c.b16 %v4390, %v4388
      %v4413 = vpack.c.b16 %v4391, %v4389
      %v4414 = vpack.c.b16 %v4394, %v4392
      %v4415 = vpack.c.b16 %v4395, %v4393
      %v4416 = vpack.c.b16 %v4398, %v4396
      %v4417 = vpack.c.b16 %v4399, %v4397
      %v4418 = vpack.c.b16 %v4402, %v4400
      %v4419 = vpack.c.b16 %v4403, %v4401
      %4436 = vmatprep.subr.bf16.mxu0 %v4405
      %4437 = vmatpush1.bf16.msra.mxu0 %v4404
      %4438 = vmatprep.subr.bf16.mxu0 %v4407
      %4439 = vmatpush1.bf16.msra.mxu0 %v4406
      %4440 = vmatprep.subr.bf16.mxu0 %v4409
      %4441 = vmatpush1.bf16.msra.mxu0 %v4408
      %4442 = vmatprep.subr.bf16.mxu0 %v4411
      %4443 = vmatpush1.bf16.msra.mxu0 %v4410
      %4444 = vmatprep.subr.bf16.mxu0 %v4413
      %4445 = vmatpush1.bf16.msra.mxu0 %v4412
      %4446 = vmatprep.subr.bf16.mxu0 %v4415
      %4447 = vmatpush1.bf16.msra.mxu0 %v4414
      %4448 = vmatprep.subr.bf16.mxu0 %v4417
      %4449 = vmatpush1.bf16.msra.mxu0 %v4416
      %4450 = vmatprep.subr.bf16.mxu0 %v4419
      %4451 = vmatpush1.bf16.msra.mxu0 %v4418
      %4452 = vmatprep.subr.bf16.mxu0 0
      %4453 = vmatpush1.bf16.msra.mxu0 0
      %4454 = vmatprep.subr.bf16.mxu0 0
      %4455 = vmatpush1.bf16.msra.mxu0 0
      %4456 = vmatprep.subr.bf16.mxu0 0
      %4457 = vmatpush1.bf16.msra.mxu0 0
      %4458 = vmatprep.subr.bf16.mxu0 0
      %4459 = vmatpush1.bf16.msra.mxu0 0
      %4460 = vmatprep.subr.bf16.mxu0 0
      %4461 = vmatpush1.bf16.msra.mxu0 0
      %4462 = vmatprep.subr.bf16.mxu0 0
      %4463 = vmatpush1.bf16.msra.mxu0 0
      %4464 = vmatprep.subr.bf16.mxu0 0
      %4465 = vmatpush1.bf16.msra.mxu0 0
      %4466 = vmatprep.subr.bf16.mxu0 0
      %4467 = vmatpush1.bf16.msra.mxu0 0
      %4468 = vmatprep.mubr.bf16.mxu0 0
      %4469 = vmatmul.mubr.bf16.gmra.mrb[0].mxu0 %v4194
      %v4470 = vpop.f32.mrb[0].mxu0
      %v4471 = vadd.f32 %v4348, %v4470
      %v4472 = vpop.f32.mrb[0].mxu0
      %v4473 = vadd.f32 %v4350, %v4472
      %v4474 = vpop.f32.mrb[0].mxu0
      %v4475 = vadd.f32 %v4352, %v4474
      %v4476 = vpop.f32.mrb[0].mxu0
      %v4477 = vadd.f32 %v4354, %v4476
      %4478 = vdwg.mxu0
      %v4479 = vcombine.high %v4146, %v4146
      %v4480 = vcombine.high %v4148, %v4148
      %v4481 = vcombine.high %v4154, %v4154
      %v4482 = vcombine.high %v4156, %v4156
      %vm4483 = vcmask 1042432
      %vm4484 = vcmask 1046532
      %vm4485 = vmor %vm4483, %vm4484
      %v4486 = vrot.slane %v4146, 5
      %v4487 = vrot.slane %v4486, 4
      %v4488 = vrot.slane %v4479, 5
      %v4489 = vsel %vm4485, %v4487, %v4488
      %v4490 = vrot.slane %v4148, 5
      %v4491 = vrot.slane %v4490, 4
      %v4492 = vrot.slane %v4480, 5
      %v4493 = vsel %vm4485, %v4491, %v4492
      %v4494 = vrot.slane %v4154, 5
      %v4495 = vrot.slane %v4494, 4
      %v4496 = vrot.slane %v4481, 5
      %v4497 = vsel %vm4485, %v4495, %v4496
      %v4498 = vrot.slane %v4156, 5
      %v4499 = vrot.slane %v4498, 4
      %v4500 = vrot.slane %v4482, 5
      %v4501 = vsel %vm4485, %v4499, %v4500
      %v4502 = vcombine.low %v4489, %v4493
      %v4503 = vcombine.low %v4497, %v4501
      %v4506 = vpack.c.bf16 %v4503, %v4502
      %s4507 = scalar_lea.vmem %s5, 256
      %v4508 = vld [vmem:[%s4507] sm:$0xff]
      %v4509 = vld [vmem:[%s4507 + $0x8] sm:$0xff]
      %v4510 = vld [vmem:[%s4507 + $0x10] sm:$0xff]
      %v4511 = vld [vmem:[%s4507 + $0x18] sm:$0xff]
      %v4512 = vld [vmem:[%s4507 + $0x20] sm:$0xff]
      %v4513 = vld [vmem:[%s4507 + $0x28] sm:$0xff]
      %v4514 = vld [vmem:[%s4507 + $0x30] sm:$0xff]
      %v4515 = vld [vmem:[%s4507 + $0x38] sm:$0xff]
      %v4516 = vld [vmem:[%s4507 + $0x40] sm:$0xff]
      %v4517 = vld [vmem:[%s4507 + $0x48] sm:$0xff]
      %v4518 = vld [vmem:[%s4507 + $0x50] sm:$0xff]
      %v4519 = vld [vmem:[%s4507 + $0x58] sm:$0xff]
      %v4520 = vld [vmem:[%s4507 + $0x60] sm:$0xff]
      %v4521 = vld [vmem:[%s4507 + $0x68] sm:$0xff]
      %v4522 = vld [vmem:[%s4507 + $0x70] sm:$0xff]
      %v4523 = vld [vmem:[%s4507 + $0x78] sm:$0xff]
      %v4540 = vunpack.c.l.b16 %v4508
      %v4541 = vunpack.c.h.b16 %v4508
      %v4542 = vunpack.c.l.b16 %v4509
      %v4543 = vunpack.c.h.b16 %v4509
      %v4544 = vunpack.c.l.b16 %v4510
      %v4545 = vunpack.c.h.b16 %v4510
      %v4546 = vunpack.c.l.b16 %v4511
      %v4547 = vunpack.c.h.b16 %v4511
      %v4548 = vunpack.c.l.b16 %v4512
      %v4549 = vunpack.c.h.b16 %v4512
      %v4550 = vunpack.c.l.b16 %v4513
      %v4551 = vunpack.c.h.b16 %v4513
      %v4552 = vunpack.c.l.b16 %v4514
      %v4553 = vunpack.c.h.b16 %v4514
      %v4554 = vunpack.c.l.b16 %v4515
      %v4555 = vunpack.c.h.b16 %v4515
      %v4556 = vunpack.c.l.b16 %v4516
      %v4557 = vunpack.c.h.b16 %v4516
      %v4558 = vunpack.c.l.b16 %v4517
      %v4559 = vunpack.c.h.b16 %v4517
      %v4560 = vunpack.c.l.b16 %v4518
      %v4561 = vunpack.c.h.b16 %v4518
      %v4562 = vunpack.c.l.b16 %v4519
      %v4563 = vunpack.c.h.b16 %v4519
      %v4564 = vunpack.c.l.b16 %v4520
      %v4565 = vunpack.c.h.b16 %v4520
      %v4566 = vunpack.c.l.b16 %v4521
      %v4567 = vunpack.c.h.b16 %v4521
      %v4568 = vunpack.c.l.b16 %v4522
      %v4569 = vunpack.c.h.b16 %v4522
      %v4570 = vunpack.c.l.b16 %v4523
      %v4571 = vunpack.c.h.b16 %v4523
      %v4572 = vpack.c.b16 %v4542, %v4540
      %v4573 = vpack.c.b16 %v4543, %v4541
      %v4574 = vpack.c.b16 %v4546, %v4544
      %v4575 = vpack.c.b16 %v4547, %v4545
      %v4576 = vpack.c.b16 %v4550, %v4548
      %v4577 = vpack.c.b16 %v4551, %v4549
      %v4578 = vpack.c.b16 %v4554, %v4552
      %v4579 = vpack.c.b16 %v4555, %v4553
      %v4580 = vpack.c.b16 %v4558, %v4556
      %v4581 = vpack.c.b16 %v4559, %v4557
      %v4582 = vpack.c.b16 %v4562, %v4560
      %v4583 = vpack.c.b16 %v4563, %v4561
      %v4584 = vpack.c.b16 %v4566, %v4564
      %v4585 = vpack.c.b16 %v4567, %v4565
      %v4586 = vpack.c.b16 %v4570, %v4568
      %v4587 = vpack.c.b16 %v4571, %v4569
      %4604 = vmatprep.subr.bf16.mxu0 %v4573
      %4605 = vmatpush1.bf16.msra.mxu0 %v4572
      %4606 = vmatprep.subr.bf16.mxu0 %v4575
      %4607 = vmatpush1.bf16.msra.mxu0 %v4574
      %4608 = vmatprep.subr.bf16.mxu0 %v4577
      %4609 = vmatpush1.bf16.msra.mxu0 %v4576
      %4610 = vmatprep.subr.bf16.mxu0 %v4579
      %4611 = vmatpush1.bf16.msra.mxu0 %v4578
      %4612 = vmatprep.subr.bf16.mxu0 %v4581
      %4613 = vmatpush1.bf16.msra.mxu0 %v4580
      %4614 = vmatprep.subr.bf16.mxu0 %v4583
      %4615 = vmatpush1.bf16.msra.mxu0 %v4582
      %4616 = vmatprep.subr.bf16.mxu0 %v4585
      %4617 = vmatpush1.bf16.msra.mxu0 %v4584
      %4618 = vmatprep.subr.bf16.mxu0 %v4587
      %4619 = vmatpush1.bf16.msra.mxu0 %v4586
      %4620 = vmatprep.subr.bf16.mxu0 0
      %4621 = vmatpush1.bf16.msra.mxu0 0
      %4622 = vmatprep.subr.bf16.mxu0 0
      %4623 = vmatpush1.bf16.msra.mxu0 0
      %4624 = vmatprep.subr.bf16.mxu0 0
      %4625 = vmatpush1.bf16.msra.mxu0 0
      %4626 = vmatprep.subr.bf16.mxu0 0
      %4627 = vmatpush1.bf16.msra.mxu0 0
      %4628 = vmatprep.subr.bf16.mxu0 0
      %4629 = vmatpush1.bf16.msra.mxu0 0
      %4630 = vmatprep.subr.bf16.mxu0 0
      %4631 = vmatpush1.bf16.msra.mxu0 0
      %4632 = vmatprep.subr.bf16.mxu0 0
      %4633 = vmatpush1.bf16.msra.mxu0 0
      %4634 = vmatprep.subr.bf16.mxu0 0
      %4635 = vmatpush1.bf16.msra.mxu0 0
      %4636 = vmatprep.mubr.bf16.mxu0 0
      %4637 = vmatmul.mubr.bf16.gmra.mrb[0].mxu0 %v4506
      %v4638 = vpop.f32.mrb[0].mxu0
      %v4639 = vadd.f32 0.0, %v4638
      %v4640 = vpop.f32.mrb[0].mxu0
      %v4641 = vadd.f32 0.0, %v4640
      %v4642 = vpop.f32.mrb[0].mxu0
      %v4643 = vadd.f32 0.0, %v4642
      %v4644 = vpop.f32.mrb[0].mxu0
      %v4645 = vadd.f32 0.0, %v4644
      %4646 = vdwg.mxu0
      %v4647 = vadd.f32 %v4471, %v4639
      %v4648 = vadd.f32 %v4473, %v4641
      %v4649 = vadd.f32 %v4475, %v4643
      %v4650 = vadd.f32 %v4477, %v4645
      %v4655 = vcombine.high %v4149, %v4149
      %v4656 = vcombine.high %v4157, %v4157
      %v4657 = vrot.slane %v4655, 7
      %v4658 = vrot.slane %v4657, 4
      %v4659 = vrot.slane %v4150, 7
      %v4660 = vsel %vm4173, %v4658, %v4659
      %v4661 = vrot.slane %v4656, 7
      %v4662 = vrot.slane %v4661, 4
      %v4663 = vrot.slane %v4158, 7
      %v4664 = vsel %vm4173, %v4662, %v4663
      %v4665 = vcombine.low %v4181, %v4660
      %v4666 = vcombine.low %v4189, %v4664
      %v4669 = vpack.c.bf16 %v4666, %v4665
      %s4670 = scalar_lea.vmem %s5, 384
      %v4671 = vld [vmem:[%s4670] sm:$0xff]
      %v4672 = vld [vmem:[%s4670 + $0x8] sm:$0xff]
      %v4673 = vld [vmem:[%s4670 + $0x10] sm:$0xff]
      %v4674 = vld [vmem:[%s4670 + $0x18] sm:$0xff]
      %v4675 = vld [vmem:[%s4670 + $0x20] sm:$0xff]
      %v4676 = vld [vmem:[%s4670 + $0x28] sm:$0xff]
      %v4677 = vld [vmem:[%s4670 + $0x30] sm:$0xff]
      %v4678 = vld [vmem:[%s4670 + $0x38] sm:$0xff]
      %v4679 = vld [vmem:[%s4670 + $0x40] sm:$0xff]
      %v4680 = vld [vmem:[%s4670 + $0x48] sm:$0xff]
      %v4681 = vld [vmem:[%s4670 + $0x50] sm:$0xff]
      %v4682 = vld [vmem:[%s4670 + $0x58] sm:$0xff]
      %v4683 = vld [vmem:[%s4670 + $0x60] sm:$0xff]
      %v4684 = vld [vmem:[%s4670 + $0x68] sm:$0xff]
      %v4685 = vld [vmem:[%s4670 + $0x70] sm:$0xff]
      %v4686 = vld [vmem:[%s4670 + $0x78] sm:$0xff]
      %v4703 = vunpack.c.l.b16 %v4671
      %v4704 = vunpack.c.h.b16 %v4671
      %v4705 = vunpack.c.l.b16 %v4672
      %v4706 = vunpack.c.h.b16 %v4672
      %v4707 = vunpack.c.l.b16 %v4673
      %v4708 = vunpack.c.h.b16 %v4673
      %v4709 = vunpack.c.l.b16 %v4674
      %v4710 = vunpack.c.h.b16 %v4674
      %v4711 = vunpack.c.l.b16 %v4675
      %v4712 = vunpack.c.h.b16 %v4675
      %v4713 = vunpack.c.l.b16 %v4676
      %v4714 = vunpack.c.h.b16 %v4676
      %v4715 = vunpack.c.l.b16 %v4677
      %v4716 = vunpack.c.h.b16 %v4677
      %v4717 = vunpack.c.l.b16 %v4678
      %v4718 = vunpack.c.h.b16 %v4678
      %v4719 = vunpack.c.l.b16 %v4679
      %v4720 = vunpack.c.h.b16 %v4679
      %v4721 = vunpack.c.l.b16 %v4680
      %v4722 = vunpack.c.h.b16 %v4680
      %v4723 = vunpack.c.l.b16 %v4681
      %v4724 = vunpack.c.h.b16 %v4681
      %v4725 = vunpack.c.l.b16 %v4682
      %v4726 = vunpack.c.h.b16 %v4682
      %v4727 = vunpack.c.l.b16 %v4683
      %v4728 = vunpack.c.h.b16 %v4683
      %v4729 = vunpack.c.l.b16 %v4684
      %v4730 = vunpack.c.h.b16 %v4684
      %v4731 = vunpack.c.l.b16 %v4685
      %v4732 = vunpack.c.h.b16 %v4685
      %v4733 = vunpack.c.l.b16 %v4686
      %v4734 = vunpack.c.h.b16 %v4686
      %v4735 = vpack.c.b16 %v4705, %v4703
      %v4736 = vpack.c.b16 %v4706, %v4704
      %v4737 = vpack.c.b16 %v4709, %v4707
      %v4738 = vpack.c.b16 %v4710, %v4708
      %v4739 = vpack.c.b16 %v4713, %v4711
      %v4740 = vpack.c.b16 %v4714, %v4712
      %v4741 = vpack.c.b16 %v4717, %v4715
      %v4742 = vpack.c.b16 %v4718, %v4716
      %v4743 = vpack.c.b16 %v4721, %v4719
      %v4744 = vpack.c.b16 %v4722, %v4720
      %v4745 = vpack.c.b16 %v4725, %v4723
      %v4746 = vpack.c.b16 %v4726, %v4724
      %v4747 = vpack.c.b16 %v4729, %v4727
      %v4748 = vpack.c.b16 %v4730, %v4728
      %v4749 = vpack.c.b16 %v4733, %v4731
      %v4750 = vpack.c.b16 %v4734, %v4732
      %4767 = vmatprep.subr.bf16.mxu0 %v4736
      %4768 = vmatpush1.bf16.msra.mxu0 %v4735
      %4769 = vmatprep.subr.bf16.mxu0 %v4738
      %4770 = vmatpush1.bf16.msra.mxu0 %v4737
      %4771 = vmatprep.subr.bf16.mxu0 %v4740
      %4772 = vmatpush1.bf16.msra.mxu0 %v4739
      %4773 = vmatprep.subr.bf16.mxu0 %v4742
      %4774 = vmatpush1.bf16.msra.mxu0 %v4741
      %4775 = vmatprep.subr.bf16.mxu0 %v4744
      %4776 = vmatpush1.bf16.msra.mxu0 %v4743
      %4777 = vmatprep.subr.bf16.mxu0 %v4746
      %4778 = vmatpush1.bf16.msra.mxu0 %v4745
      %4779 = vmatprep.subr.bf16.mxu0 %v4748
      %4780 = vmatpush1.bf16.msra.mxu0 %v4747
      %4781 = vmatprep.subr.bf16.mxu0 %v4750
      %4782 = vmatpush1.bf16.msra.mxu0 %v4749
      %4783 = vmatprep.subr.bf16.mxu0 0
      %4784 = vmatpush1.bf16.msra.mxu0 0
      %4785 = vmatprep.subr.bf16.mxu0 0
      %4786 = vmatpush1.bf16.msra.mxu0 0
      %4787 = vmatprep.subr.bf16.mxu0 0
      %4788 = vmatpush1.bf16.msra.mxu0 0
      %4789 = vmatprep.subr.bf16.mxu0 0
      %4790 = vmatpush1.bf16.msra.mxu0 0
      %4791 = vmatprep.subr.bf16.mxu0 0
      %4792 = vmatpush1.bf16.msra.mxu0 0
      %4793 = vmatprep.subr.bf16.mxu0 0
      %4794 = vmatpush1.bf16.msra.mxu0 0
      %4795 = vmatprep.subr.bf16.mxu0 0
      %4796 = vmatpush1.bf16.msra.mxu0 0
      %4797 = vmatprep.subr.bf16.mxu0 0
      %4798 = vmatpush1.bf16.msra.mxu0 0
      %4799 = vmatprep.mubr.bf16.mxu0 0
      %4800 = vmatmul.mubr.bf16.gmra.mrb[0].mxu0 %v4669
      %v4801 = vpop.f32.mrb[0].mxu0
      %v4802 = vadd.f32 0.0, %v4801
      %v4803 = vpop.f32.mrb[0].mxu0
      %v4804 = vadd.f32 0.0, %v4803
      %v4805 = vpop.f32.mrb[0].mxu0
      %v4806 = vadd.f32 0.0, %v4805
      %v4807 = vpop.f32.mrb[0].mxu0
      %v4808 = vadd.f32 0.0, %v4807
      %4809 = vdwg.mxu0
      %v4810 = vadd.f32 %v4647, %v4802
      %v4811 = vadd.f32 %v4648, %v4804
      %v4812 = vadd.f32 %v4649, %v4806
      %v4813 = vadd.f32 %v4650, %v4808
      %v4814 = vcombine.low %v4148, %v4150
      %v4815 = vcombine.low %v4156, %v4158
      %v4818 = vpack.c.bf16 %v4815, %v4814
      %s4819 = scalar_lea.vmem %s5, 512
      %v4820 = vld [vmem:[%s4819] sm:$0xff]
      %v4821 = vld [vmem:[%s4819 + $0x8] sm:$0xff]
      %v4822 = vld [vmem:[%s4819 + $0x10] sm:$0xff]
      %v4823 = vld [vmem:[%s4819 + $0x18] sm:$0xff]
      %v4824 = vld [vmem:[%s4819 + $0x20] sm:$0xff]
      %v4825 = vld [vmem:[%s4819 + $0x28] sm:$0xff]
      %v4826 = vld [vmem:[%s4819 + $0x30] sm:$0xff]
      %v4827 = vld [vmem:[%s4819 + $0x38] sm:$0xff]
      %v4828 = vld [vmem:[%s4819 + $0x40] sm:$0xff]
      %v4829 = vld [vmem:[%s4819 + $0x48] sm:$0xff]
      %v4830 = vld [vmem:[%s4819 + $0x50] sm:$0xff]
      %v4831 = vld [vmem:[%s4819 + $0x58] sm:$0xff]
      %v4832 = vld [vmem:[%s4819 + $0x60] sm:$0xff]
      %v4833 = vld [vmem:[%s4819 + $0x68] sm:$0xff]
      %v4834 = vld [vmem:[%s4819 + $0x70] sm:$0xff]
      %v4835 = vld [vmem:[%s4819 + $0x78] sm:$0xff]
      %v4852 = vunpack.c.l.b16 %v4820
      %v4853 = vunpack.c.h.b16 %v4820
      %v4854 = vunpack.c.l.b16 %v4821
      %v4855 = vunpack.c.h.b16 %v4821
      %v4856 = vunpack.c.l.b16 %v4822
      %v4857 = vunpack.c.h.b16 %v4822
      %v4858 = vunpack.c.l.b16 %v4823
      %v4859 = vunpack.c.h.b16 %v4823
      %v4860 = vunpack.c.l.b16 %v4824
      %v4861 = vunpack.c.h.b16 %v4824
      %v4862 = vunpack.c.l.b16 %v4825
      %v4863 = vunpack.c.h.b16 %v4825
      %v4864 = vunpack.c.l.b16 %v4826
      %v4865 = vunpack.c.h.b16 %v4826
      %v4866 = vunpack.c.l.b16 %v4827
      %v4867 = vunpack.c.h.b16 %v4827
      %v4868 = vunpack.c.l.b16 %v4828
      %v4869 = vunpack.c.h.b16 %v4828
      %v4870 = vunpack.c.l.b16 %v4829
      %v4871 = vunpack.c.h.b16 %v4829
      %v4872 = vunpack.c.l.b16 %v4830
      %v4873 = vunpack.c.h.b16 %v4830
      %v4874 = vunpack.c.l.b16 %v4831
      %v4875 = vunpack.c.h.b16 %v4831
      %v4876 = vunpack.c.l.b16 %v4832
      %v4877 = vunpack.c.h.b16 %v4832
      %v4878 = vunpack.c.l.b16 %v4833
      %v4879 = vunpack.c.h.b16 %v4833
      %v4880 = vunpack.c.l.b16 %v4834
      %v4881 = vunpack.c.h.b16 %v4834
      %v4882 = vunpack.c.l.b16 %v4835
      %v4883 = vunpack.c.h.b16 %v4835
      %v4884 = vpack.c.b16 %v4854, %v4852
      %v4885 = vpack.c.b16 %v4855, %v4853
      %v4886 = vpack.c.b16 %v4858, %v4856
      %v4887 = vpack.c.b16 %v4859, %v4857
      %v4888 = vpack.c.b16 %v4862, %v4860
      %v4889 = vpack.c.b16 %v4863, %v4861
      %v4890 = vpack.c.b16 %v4866, %v4864
      %v4891 = vpack.c.b16 %v4867, %v4865
      %v4892 = vpack.c.b16 %v4870, %v4868
      %v4893 = vpack.c.b16 %v4871, %v4869
      %v4894 = vpack.c.b16 %v4874, %v4872
      %v4895 = vpack.c.b16 %v4875, %v4873
      %v4896 = vpack.c.b16 %v4878, %v4876
      %v4897 = vpack.c.b16 %v4879, %v4877
      %v4898 = vpack.c.b16 %v4882, %v4880
      %v4899 = vpack.c.b16 %v4883, %v4881
      %4916 = vmatprep.subr.bf16.mxu0 %v4885
      %4917 = vmatpush1.bf16.msra.mxu0 %v4884
      %4918 = vmatprep.subr.bf16.mxu0 %v4887
      %4919 = vmatpush1.bf16.msra.mxu0 %v4886
      %4920 = vmatprep.subr.bf16.mxu0 %v4889
      %4921 = vmatpush1.bf16.msra.mxu0 %v4888
      %4922 = vmatprep.subr.bf16.mxu0 %v4891
      %4923 = vmatpush1.bf16.msra.mxu0 %v4890
      %4924 = vmatprep.subr.bf16.mxu0 %v4893
      %4925 = vmatpush1.bf16.msra.mxu0 %v4892
      %4926 = vmatprep.subr.bf16.mxu0 %v4895
      %4927 = vmatpush1.bf16.msra.mxu0 %v4894
      %4928 = vmatprep.subr.bf16.mxu0 %v4897
      %4929 = vmatpush1.bf16.msra.mxu0 %v4896
      %4930 = vmatprep.subr.bf16.mxu0 %v4899
      %4931 = vmatpush1.bf16.msra.mxu0 %v4898
      %4932 = vmatprep.subr.bf16.mxu0 0
      %4933 = vmatpush1.bf16.msra.mxu0 0
      %4934 = vmatprep.subr.bf16.mxu0 0
      %4935 = vmatpush1.bf16.msra.mxu0 0
      %4936 = vmatprep.subr.bf16.mxu0 0
      %4937 = vmatpush1.bf16.msra.mxu0 0
      %4938 = vmatprep.subr.bf16.mxu0 0
      %4939 = vmatpush1.bf16.msra.mxu0 0
      %4940 = vmatprep.subr.bf16.mxu0 0
      %4941 = vmatpush1.bf16.msra.mxu0 0
      %4942 = vmatprep.subr.bf16.mxu0 0
      %4943 = vmatpush1.bf16.msra.mxu0 0
      %4944 = vmatprep.subr.bf16.mxu0 0
      %4945 = vmatpush1.bf16.msra.mxu0 0
      %4946 = vmatprep.subr.bf16.mxu0 0
      %4947 = vmatpush1.bf16.msra.mxu0 0
      %4948 = vmatprep.mubr.bf16.mxu0 0
      %4949 = vmatmul.mubr.bf16.gmra.mrb[0].mxu0 %v4818
      %v4950 = vpop.f32.mrb[0].mxu0
      %v4951 = vadd.f32 0.0, %v4950
      %v4952 = vpop.f32.mrb[0].mxu0
      %v4953 = vadd.f32 0.0, %v4952
      %v4954 = vpop.f32.mrb[0].mxu0
      %v4955 = vadd.f32 0.0, %v4954
      %v4956 = vpop.f32.mrb[0].mxu0
      %v4957 = vadd.f32 0.0, %v4956
      %4958 = vdwg.mxu0
      %v4959 = vadd.f32 %v4810, %v4951
      %v4960 = vadd.f32 %v4811, %v4953
      %v4961 = vadd.f32 %v4812, %v4955
      %v4962 = vadd.f32 %v4813, %v4957
      %v4963 = vcombine.high %v4150, %v4150
      %v4964 = vcombine.high %v4158, %v4158
      %v4965 = vrot.slane %v4150, 5
      %v4966 = vrot.slane %v4965, 4
      %v4967 = vrot.slane %v4963, 5
      %v4968 = vsel %vm4485, %v4966, %v4967
      %v4969 = vrot.slane %v4158, 5
      %v4970 = vrot.slane %v4969, 4
      %v4971 = vrot.slane %v4964, 5
      %v4972 = vsel %vm4485, %v4970, %v4971
      %v4973 = vcombine.low %v4493, %v4968
      %v4974 = vcombine.low %v4501, %v4972
      %v4977 = vpack.c.bf16 %v4974, %v4973
      %s4978 = scalar_lea.vmem %s5, 640
      %v4979 = vld [vmem:[%s4978] sm:$0xff]
      %v4980 = vld [vmem:[%s4978 + $0x8] sm:$0xff]
      %v4981 = vld [vmem:[%s4978 + $0x10] sm:$0xff]
      %v4982 = vld [vmem:[%s4978 + $0x18] sm:$0xff]
      %v4983 = vld [vmem:[%s4978 + $0x20] sm:$0xff]
      %v4984 = vld [vmem:[%s4978 + $0x28] sm:$0xff]
      %v4985 = vld [vmem:[%s4978 + $0x30] sm:$0xff]
      %v4986 = vld [vmem:[%s4978 + $0x38] sm:$0xff]
      %v4987 = vld [vmem:[%s4978 + $0x40] sm:$0xff]
      %v4988 = vld [vmem:[%s4978 + $0x48] sm:$0xff]
      %v4989 = vld [vmem:[%s4978 + $0x50] sm:$0xff]
      %v4990 = vld [vmem:[%s4978 + $0x58] sm:$0xff]
      %v4991 = vld [vmem:[%s4978 + $0x60] sm:$0xff]
      %v4992 = vld [vmem:[%s4978 + $0x68] sm:$0xff]
      %v4993 = vld [vmem:[%s4978 + $0x70] sm:$0xff]
      %v4994 = vld [vmem:[%s4978 + $0x78] sm:$0xff]
      %v5011 = vunpack.c.l.b16 %v4979
      %v5012 = vunpack.c.h.b16 %v4979
      %v5013 = vunpack.c.l.b16 %v4980
      %v5014 = vunpack.c.h.b16 %v4980
      %v5015 = vunpack.c.l.b16 %v4981
      %v5016 = vunpack.c.h.b16 %v4981
      %v5017 = vunpack.c.l.b16 %v4982
      %v5018 = vunpack.c.h.b16 %v4982
      %v5019 = vunpack.c.l.b16 %v4983
      %v5020 = vunpack.c.h.b16 %v4983
      %v5021 = vunpack.c.l.b16 %v4984
      %v5022 = vunpack.c.h.b16 %v4984
      %v5023 = vunpack.c.l.b16 %v4985
      %v5024 = vunpack.c.h.b16 %v4985
      %v5025 = vunpack.c.l.b16 %v4986
      %v5026 = vunpack.c.h.b16 %v4986
      %v5027 = vunpack.c.l.b16 %v4987
      %v5028 = vunpack.c.h.b16 %v4987
      %v5029 = vunpack.c.l.b16 %v4988
      %v5030 = vunpack.c.h.b16 %v4988
      %v5031 = vunpack.c.l.b16 %v4989
      %v5032 = vunpack.c.h.b16 %v4989
      %v5033 = vunpack.c.l.b16 %v4990
      %v5034 = vunpack.c.h.b16 %v4990
      %v5035 = vunpack.c.l.b16 %v4991
      %v5036 = vunpack.c.h.b16 %v4991
      %v5037 = vunpack.c.l.b16 %v4992
      %v5038 = vunpack.c.h.b16 %v4992
      %v5039 = vunpack.c.l.b16 %v4993
      %v5040 = vunpack.c.h.b16 %v4993
      %v5041 = vunpack.c.l.b16 %v4994
      %v5042 = vunpack.c.h.b16 %v4994
      %v5043 = vpack.c.b16 %v5013, %v5011
      %v5044 = vpack.c.b16 %v5014, %v5012
      %v5045 = vpack.c.b16 %v5017, %v5015
      %v5046 = vpack.c.b16 %v5018, %v5016
      %v5047 = vpack.c.b16 %v5021, %v5019
      %v5048 = vpack.c.b16 %v5022, %v5020
      %v5049 = vpack.c.b16 %v5025, %v5023
      %v5050 = vpack.c.b16 %v5026, %v5024
      %v5051 = vpack.c.b16 %v5029, %v5027
      %v5052 = vpack.c.b16 %v5030, %v5028
      %v5053 = vpack.c.b16 %v5033, %v5031
      %v5054 = vpack.c.b16 %v5034, %v5032
      %v5055 = vpack.c.b16 %v5037, %v5035
      %v5056 = vpack.c.b16 %v5038, %v5036
      %v5057 = vpack.c.b16 %v5041, %v5039
      %v5058 = vpack.c.b16 %v5042, %v5040
      %5075 = vmatprep.subr.bf16.mxu0 %v5044
      %5076 = vmatpush1.bf16.msra.mxu0 %v5043
      %5077 = vmatprep.subr.bf16.mxu0 %v5046
      %5078 = vmatpush1.bf16.msra.mxu0 %v5045
      %5079 = vmatprep.subr.bf16.mxu0 %v5048
      %5080 = vmatpush1.bf16.msra.mxu0 %v5047
      %5081 = vmatprep.subr.bf16.mxu0 %v5050
      %5082 = vmatpush1.bf16.msra.mxu0 %v5049
      %5083 = vmatprep.subr.bf16.mxu0 %v5052
      %5084 = vmatpush1.bf16.msra.mxu0 %v5051
      %5085 = vmatprep.subr.bf16.mxu0 %v5054
      %5086 = vmatpush1.bf16.msra.mxu0 %v5053
      %5087 = vmatprep.subr.bf16.mxu0 %v5056
      %5088 = vmatpush1.bf16.msra.mxu0 %v5055
      %5089 = vmatprep.subr.bf16.mxu0 %v5058
      %5090 = vmatpush1.bf16.msra.mxu0 %v5057
      %5091 = vmatprep.subr.bf16.mxu0 0
      %5092 = vmatpush1.bf16.msra.mxu0 0
      %5093 = vmatprep.subr.bf16.mxu0 0
      %5094 = vmatpush1.bf16.msra.mxu0 0
      %5095 = vmatprep.subr.bf16.mxu0 0
      %5096 = vmatpush1.bf16.msra.mxu0 0
      %5097 = vmatprep.subr.bf16.mxu0 0
      %5098 = vmatpush1.bf16.msra.mxu0 0
      %5099 = vmatprep.subr.bf16.mxu0 0
      %5100 = vmatpush1.bf16.msra.mxu0 0
      %5101 = vmatprep.subr.bf16.mxu0 0
      %5102 = vmatpush1.bf16.msra.mxu0 0
      %5103 = vmatprep.subr.bf16.mxu0 0
      %5104 = vmatpush1.bf16.msra.mxu0 0
      %5105 = vmatprep.subr.bf16.mxu0 0
      %5106 = vmatpush1.bf16.msra.mxu0 0
      %5107 = vmatprep.mubr.bf16.mxu0 0
      %5108 = vmatmul.mubr.bf16.gmra.mrb[0].mxu0 %v4977
      %v5109 = vpop.f32.mrb[0].mxu0
      %v5110 = vadd.f32 0.0, %v5109
      %v5111 = vpop.f32.mrb[0].mxu0
      %v5112 = vadd.f32 0.0, %v5111
      %v5113 = vpop.f32.mrb[0].mxu0
      %v5114 = vadd.f32 0.0, %v5113
      %v5115 = vpop.f32.mrb[0].mxu0
      %v5116 = vadd.f32 0.0, %v5115
      %5117 = vdwg.mxu0
      %v5118 = vadd.f32 %v4959, %v5110
      %v5119 = vadd.f32 %v4960, %v5112
      %v5120 = vadd.f32 %v4961, %v5114
      %v5121 = vadd.f32 %v4962, %v5116
      %v5126 = vcombine.high %v4151, %v4151
      %v5127 = vcombine.high %v4159, %v4159
      %v5128 = vrot.slane %v5126, 7
      %v5129 = vrot.slane %v5128, 4
      %v5130 = vrot.slane %v4152, 7
      %v5131 = vsel %vm4173, %v5129, %v5130
      %v5132 = vrot.slane %v5127, 7
      %v5133 = vrot.slane %v5132, 4
      %v5134 = vrot.slane %v4160, 7
      %v5135 = vsel %vm4173, %v5133, %v5134
      %v5136 = vcombine.low %v4660, %v5131
      %v5137 = vcombine.low %v4664, %v5135
      %v5140 = vpack.c.bf16 %v5137, %v5136
      %s5141 = scalar_lea.vmem %s5, 768
      %v5142 = vld [vmem:[%s5141] sm:$0xff]
      %v5143 = vld [vmem:[%s5141 + $0x8] sm:$0xff]
      %v5144 = vld [vmem:[%s5141 + $0x10] sm:$0xff]
      %v5145 = vld [vmem:[%s5141 + $0x18] sm:$0xff]
      %v5146 = vld [vmem:[%s5141 + $0x20] sm:$0xff]
      %v5147 = vld [vmem:[%s5141 + $0x28] sm:$0xff]
      %v5148 = vld [vmem:[%s5141 + $0x30] sm:$0xff]
      %v5149 = vld [vmem:[%s5141 + $0x38] sm:$0xff]
      %v5150 = vld [vmem:[%s5141 + $0x40] sm:$0xff]
      %v5151 = vld [vmem:[%s5141 + $0x48] sm:$0xff]
      %v5152 = vld [vmem:[%s5141 + $0x50] sm:$0xff]
      %v5153 = vld [vmem:[%s5141 + $0x58] sm:$0xff]
      %v5154 = vld [vmem:[%s5141 + $0x60] sm:$0xff]
      %v5155 = vld [vmem:[%s5141 + $0x68] sm:$0xff]
      %v5156 = vld [vmem:[%s5141 + $0x70] sm:$0xff]
      %v5157 = vld [vmem:[%s5141 + $0x78] sm:$0xff]
      %v5174 = vunpack.c.l.b16 %v5142
      %v5175 = vunpack.c.h.b16 %v5142
      %v5176 = vunpack.c.l.b16 %v5143
      %v5177 = vunpack.c.h.b16 %v5143
      %v5178 = vunpack.c.l.b16 %v5144
      %v5179 = vunpack.c.h.b16 %v5144
      %v5180 = vunpack.c.l.b16 %v5145
      %v5181 = vunpack.c.h.b16 %v5145
      %v5182 = vunpack.c.l.b16 %v5146
      %v5183 = vunpack.c.h.b16 %v5146
      %v5184 = vunpack.c.l.b16 %v5147
      %v5185 = vunpack.c.h.b16 %v5147
      %v5186 = vunpack.c.l.b16 %v5148
      %v5187 = vunpack.c.h.b16 %v5148
      %v5188 = vunpack.c.l.b16 %v5149
      %v5189 = vunpack.c.h.b16 %v5149
      %v5190 = vunpack.c.l.b16 %v5150
      %v5191 = vunpack.c.h.b16 %v5150
      %v5192 = vunpack.c.l.b16 %v5151
      %v5193 = vunpack.c.h.b16 %v5151
      %v5194 = vunpack.c.l.b16 %v5152
      %v5195 = vunpack.c.h.b16 %v5152
      %v5196 = vunpack.c.l.b16 %v5153
      %v5197 = vunpack.c.h.b16 %v5153
      %v5198 = vunpack.c.l.b16 %v5154
      %v5199 = vunpack.c.h.b16 %v5154
      %v5200 = vunpack.c.l.b16 %v5155
      %v5201 = vunpack.c.h.b16 %v5155
      %v5202 = vunpack.c.l.b16 %v5156
      %v5203 = vunpack.c.h.b16 %v5156
      %v5204 = vunpack.c.l.b16 %v5157
      %v5205 = vunpack.c.h.b16 %v5157
      %v5206 = vpack.c.b16 %v5176, %v5174
      %v5207 = vpack.c.b16 %v5177, %v5175
      %v5208 = vpack.c.b16 %v5180, %v5178
      %v5209 = vpack.c.b16 %v5181, %v5179
      %v5210 = vpack.c.b16 %v5184, %v5182
      %v5211 = vpack.c.b16 %v5185, %v5183
      %v5212 = vpack.c.b16 %v5188, %v5186
      %v5213 = vpack.c.b16 %v5189, %v5187
      %v5214 = vpack.c.b16 %v5192, %v5190
      %v5215 = vpack.c.b16 %v5193, %v5191
      %v5216 = vpack.c.b16 %v5196, %v5194
      %v5217 = vpack.c.b16 %v5197, %v5195
      %v5218 = vpack.c.b16 %v5200, %v5198
      %v5219 = vpack.c.b16 %v5201, %v5199
      %v5220 = vpack.c.b16 %v5204, %v5202
      %v5221 = vpack.c.b16 %v5205, %v5203
      %5238 = vmatprep.subr.bf16.mxu0 %v5207
      %5239 = vmatpush1.bf16.msra.mxu0 %v5206
      %5240 = vmatprep.subr.bf16.mxu0 %v5209
      %5241 = vmatpush1.bf16.msra.mxu0 %v5208
      %5242 = vmatprep.subr.bf16.mxu0 %v5211
      %5243 = vmatpush1.bf16.msra.mxu0 %v5210
      %5244 = vmatprep.subr.bf16.mxu0 %v5213
      %5245 = vmatpush1.bf16.msra.mxu0 %v5212
      %5246 = vmatprep.subr.bf16.mxu0 %v5215
      %5247 = vmatpush1.bf16.msra.mxu0 %v5214
      %5248 = vmatprep.subr.bf16.mxu0 %v5217
      %5249 = vmatpush1.bf16.msra.mxu0 %v5216
      %5250 = vmatprep.subr.bf16.mxu0 %v5219
      %5251 = vmatpush1.bf16.msra.mxu0 %v5218
      %5252 = vmatprep.subr.bf16.mxu0 %v5221
      %5253 = vmatpush1.bf16.msra.mxu0 %v5220
      %5254 = vmatprep.subr.bf16.mxu0 0
      %5255 = vmatpush1.bf16.msra.mxu0 0
      %5256 = vmatprep.subr.bf16.mxu0 0
      %5257 = vmatpush1.bf16.msra.mxu0 0
      %5258 = vmatprep.subr.bf16.mxu0 0
      %5259 = vmatpush1.bf16.msra.mxu0 0
      %5260 = vmatprep.subr.bf16.mxu0 0
      %5261 = vmatpush1.bf16.msra.mxu0 0
      %5262 = vmatprep.subr.bf16.mxu0 0
      %5263 = vmatpush1.bf16.msra.mxu0 0
      %5264 = vmatprep.subr.bf16.mxu0 0
      %5265 = vmatpush1.bf16.msra.mxu0 0
      %5266 = vmatprep.subr.bf16.mxu0 0
      %5267 = vmatpush1.bf16.msra.mxu0 0
      %5268 = vmatprep.subr.bf16.mxu0 0
      %5269 = vmatpush1.bf16.msra.mxu0 0
      %5270 = vmatprep.mubr.bf16.mxu0 0
      %5271 = vmatmul.mubr.bf16.gmra.mrb[0].mxu0 %v5140
      %v5272 = vpop.f32.mrb[0].mxu0
      %v5273 = vadd.f32 0.0, %v5272
      %v5274 = vpop.f32.mrb[0].mxu0
      %v5275 = vadd.f32 0.0, %v5274
      %v5276 = vpop.f32.mrb[0].mxu0
      %v5277 = vadd.f32 0.0, %v5276
      %v5278 = vpop.f32.mrb[0].mxu0
      %v5279 = vadd.f32 0.0, %v5278
      %5280 = vdwg.mxu0
      %v5281 = vadd.f32 %v5118, %v5273
      %v5282 = vadd.f32 %v5119, %v5275
      %v5283 = vadd.f32 %v5120, %v5277
      %v5284 = vadd.f32 %v5121, %v5279
      %v5285 = vcombine.low %v4150, %v4152
      %v5286 = vcombine.low %v4158, %v4160
      %v5289 = vpack.c.bf16 %v5286, %v5285
      %s5290 = scalar_lea.vmem %s5, 896
      %v5291 = vld [vmem:[%s5290] sm:$0xff]
      %v5292 = vld [vmem:[%s5290 + $0x8] sm:$0xff]
      %v5293 = vld [vmem:[%s5290 + $0x10] sm:$0xff]
      %v5294 = vld [vmem:[%s5290 + $0x18] sm:$0xff]
      %v5295 = vld [vmem:[%s5290 + $0x20] sm:$0xff]
      %v5296 = vld [vmem:[%s5290 + $0x28] sm:$0xff]
      %v5297 = vld [vmem:[%s5290 + $0x30] sm:$0xff]
      %v5298 = vld [vmem:[%s5290 + $0x38] sm:$0xff]
      %v5299 = vld [vmem:[%s5290 + $0x40] sm:$0xff]
      %v5300 = vld [vmem:[%s5290 + $0x48] sm:$0xff]
      %v5301 = vld [vmem:[%s5290 + $0x50] sm:$0xff]
      %v5302 = vld [vmem:[%s5290 + $0x58] sm:$0xff]
      %v5303 = vld [vmem:[%s5290 + $0x60] sm:$0xff]
      %v5304 = vld [vmem:[%s5290 + $0x68] sm:$0xff]
      %v5305 = vld [vmem:[%s5290 + $0x70] sm:$0xff]
      %v5306 = vld [vmem:[%s5290 + $0x78] sm:$0xff]
      %v5323 = vunpack.c.l.b16 %v5291
      %v5324 = vunpack.c.h.b16 %v5291
      %v5325 = vunpack.c.l.b16 %v5292
      %v5326 = vunpack.c.h.b16 %v5292
      %v5327 = vunpack.c.l.b16 %v5293
      %v5328 = vunpack.c.h.b16 %v5293
      %v5329 = vunpack.c.l.b16 %v5294
      %v5330 = vunpack.c.h.b16 %v5294
      %v5331 = vunpack.c.l.b16 %v5295
      %v5332 = vunpack.c.h.b16 %v5295
      %v5333 = vunpack.c.l.b16 %v5296
      %v5334 = vunpack.c.h.b16 %v5296
      %v5335 = vunpack.c.l.b16 %v5297
      %v5336 = vunpack.c.h.b16 %v5297
      %v5337 = vunpack.c.l.b16 %v5298
      %v5338 = vunpack.c.h.b16 %v5298
      %v5339 = vunpack.c.l.b16 %v5299
      %v5340 = vunpack.c.h.b16 %v5299
      %v5341 = vunpack.c.l.b16 %v5300
      %v5342 = vunpack.c.h.b16 %v5300
      %v5343 = vunpack.c.l.b16 %v5301
      %v5344 = vunpack.c.h.b16 %v5301
      %v5345 = vunpack.c.l.b16 %v5302
      %v5346 = vunpack.c.h.b16 %v5302
      %v5347 = vunpack.c.l.b16 %v5303
      %v5348 = vunpack.c.h.b16 %v5303
      %v5349 = vunpack.c.l.b16 %v5304
      %v5350 = vunpack.c.h.b16 %v5304
      %v5351 = vunpack.c.l.b16 %v5305
      %v5352 = vunpack.c.h.b16 %v5305
      %v5353 = vunpack.c.l.b16 %v5306
      %v5354 = vunpack.c.h.b16 %v5306
      %v5355 = vpack.c.b16 %v5325, %v5323
      %v5356 = vpack.c.b16 %v5326, %v5324
      %v5357 = vpack.c.b16 %v5329, %v5327
      %v5358 = vpack.c.b16 %v5330, %v5328
      %v5359 = vpack.c.b16 %v5333, %v5331
      %v5360 = vpack.c.b16 %v5334, %v5332
      %v5361 = vpack.c.b16 %v5337, %v5335
      %v5362 = vpack.c.b16 %v5338, %v5336
      %v5363 = vpack.c.b16 %v5341, %v5339
      %v5364 = vpack.c.b16 %v5342, %v5340
      %v5365 = vpack.c.b16 %v5345, %v5343
      %v5366 = vpack.c.b16 %v5346, %v5344
      %v5367 = vpack.c.b16 %v5349, %v5347
      %v5368 = vpack.c.b16 %v5350, %v5348
      %v5369 = vpack.c.b16 %v5353, %v5351
      %v5370 = vpack.c.b16 %v5354, %v5352
      %5387 = vmatprep.subr.bf16.mxu0 %v5356
      %5388 = vmatpush1.bf16.msra.mxu0 %v5355
      %5389 = vmatprep.subr.bf16.mxu0 %v5358
      %5390 = vmatpush1.bf16.msra.mxu0 %v5357
      %5391 = vmatprep.subr.bf16.mxu0 %v5360
      %5392 = vmatpush1.bf16.msra.mxu0 %v5359
      %5393 = vmatprep.subr.bf16.mxu0 %v5362
      %5394 = vmatpush1.bf16.msra.mxu0 %v5361
      %5395 = vmatprep.subr.bf16.mxu0 %v5364
      %5396 = vmatpush1.bf16.msra.mxu0 %v5363
      %5397 = vmatprep.subr.bf16.mxu0 %v5366
      %5398 = vmatpush1.bf16.msra.mxu0 %v5365
      %5399 = vmatprep.subr.bf16.mxu0 %v5368
      %5400 = vmatpush1.bf16.msra.mxu0 %v5367
      %5401 = vmatprep.subr.bf16.mxu0 %v5370
      %5402 = vmatpush1.bf16.msra.mxu0 %v5369
      %5403 = vmatprep.subr.bf16.mxu0 0
      %5404 = vmatpush1.bf16.msra.mxu0 0
      %5405 = vmatprep.subr.bf16.mxu0 0
      %5406 = vmatpush1.bf16.msra.mxu0 0
      %5407 = vmatprep.subr.bf16.mxu0 0
      %5408 = vmatpush1.bf16.msra.mxu0 0
      %5409 = vmatprep.subr.bf16.mxu0 0
      %5410 = vmatpush1.bf16.msra.mxu0 0
      %5411 = vmatprep.subr.bf16.mxu0 0
      %5412 = vmatpush1.bf16.msra.mxu0 0
      %5413 = vmatprep.subr.bf16.mxu0 0
      %5414 = vmatpush1.bf16.msra.mxu0 0
      %5415 = vmatprep.subr.bf16.mxu0 0
      %5416 = vmatpush1.bf16.msra.mxu0 0
      %5417 = vmatprep.subr.bf16.mxu0 0
      %5418 = vmatpush1.bf16.msra.mxu0 0
      %5419 = vmatprep.mubr.bf16.mxu0 0
      %5420 = vmatmul.mubr.bf16.gmra.mrb[0].mxu0 %v5289
      %v5421 = vpop.f32.mrb[0].mxu0
      %v5422 = vadd.f32 0.0, %v5421
      %v5423 = vpop.f32.mrb[0].mxu0
      %v5424 = vadd.f32 0.0, %v5423
      %v5425 = vpop.f32.mrb[0].mxu0
      %v5426 = vadd.f32 0.0, %v5425
      %v5427 = vpop.f32.mrb[0].mxu0
      %v5428 = vadd.f32 0.0, %v5427
      %5429 = vdwg.mxu0
      %v5430 = vadd.f32 %v5281, %v5422
      %v5431 = vadd.f32 %v5282, %v5424
      %v5432 = vadd.f32 %v5283, %v5426
      %v5433 = vadd.f32 %v5284, %v5428
      %v5434 = vcombine.high %v4152, %v4152
      %v5435 = vcombine.high %v4160, %v4160
      %v5436 = vrot.slane %v4152, 5
      %v5437 = vrot.slane %v5436, 4
      %v5438 = vrot.slane %v5434, 5
      %v5439 = vsel %vm4485, %v5437, %v5438
      %v5440 = vrot.slane %v4160, 5
      %v5441 = vrot.slane %v5440, 4
      %v5442 = vrot.slane %v5435, 5
      %v5443 = vsel %vm4485, %v5441, %v5442
      %v5444 = vcombine.low %v4968, %v5439
      %v5445 = vcombine.low %v4972, %v5443
      %v5448 = vpack.c.bf16 %v5445, %v5444
      %s5449 = scalar_lea.vmem %s5, 1024
      %v5450 = vld [vmem:[%s5449] sm:$0xff]
      %v5451 = vld [vmem:[%s5449 + $0x8] sm:$0xff]
      %v5452 = vld [vmem:[%s5449 + $0x10] sm:$0xff]
      %v5453 = vld [vmem:[%s5449 + $0x18] sm:$0xff]
      %v5454 = vld [vmem:[%s5449 + $0x20] sm:$0xff]
      %v5455 = vld [vmem:[%s5449 + $0x28] sm:$0xff]
      %v5456 = vld [vmem:[%s5449 + $0x30] sm:$0xff]
      %v5457 = vld [vmem:[%s5449 + $0x38] sm:$0xff]
      %v5458 = vld [vmem:[%s5449 + $0x40] sm:$0xff]
      %v5459 = vld [vmem:[%s5449 + $0x48] sm:$0xff]
      %v5460 = vld [vmem:[%s5449 + $0x50] sm:$0xff]
      %v5461 = vld [vmem:[%s5449 + $0x58] sm:$0xff]
      %v5462 = vld [vmem:[%s5449 + $0x60] sm:$0xff]
      %v5463 = vld [vmem:[%s5449 + $0x68] sm:$0xff]
      %v5464 = vld [vmem:[%s5449 + $0x70] sm:$0xff]
      %v5465 = vld [vmem:[%s5449 + $0x78] sm:$0xff]
      %v5482 = vunpack.c.l.b16 %v5450
      %v5483 = vunpack.c.h.b16 %v5450
      %v5484 = vunpack.c.l.b16 %v5451
      %v5485 = vunpack.c.h.b16 %v5451
      %v5486 = vunpack.c.l.b16 %v5452
      %v5487 = vunpack.c.h.b16 %v5452
      %v5488 = vunpack.c.l.b16 %v5453
      %v5489 = vunpack.c.h.b16 %v5453
      %v5490 = vunpack.c.l.b16 %v5454
      %v5491 = vunpack.c.h.b16 %v5454
      %v5492 = vunpack.c.l.b16 %v5455
      %v5493 = vunpack.c.h.b16 %v5455
      %v5494 = vunpack.c.l.b16 %v5456
      %v5495 = vunpack.c.h.b16 %v5456
      %v5496 = vunpack.c.l.b16 %v5457
      %v5497 = vunpack.c.h.b16 %v5457
      %v5498 = vunpack.c.l.b16 %v5458
      %v5499 = vunpack.c.h.b16 %v5458
      %v5500 = vunpack.c.l.b16 %v5459
      %v5501 = vunpack.c.h.b16 %v5459
      %v5502 = vunpack.c.l.b16 %v5460
      %v5503 = vunpack.c.h.b16 %v5460
      %v5504 = vunpack.c.l.b16 %v5461
      %v5505 = vunpack.c.h.b16 %v5461
      %v5506 = vunpack.c.l.b16 %v5462
      %v5507 = vunpack.c.h.b16 %v5462
      %v5508 = vunpack.c.l.b16 %v5463
      %v5509 = vunpack.c.h.b16 %v5463
      %v5510 = vunpack.c.l.b16 %v5464
      %v5511 = vunpack.c.h.b16 %v5464
      %v5512 = vunpack.c.l.b16 %v5465
      %v5513 = vunpack.c.h.b16 %v5465
      %v5514 = vpack.c.b16 %v5484, %v5482
      %v5515 = vpack.c.b16 %v5485, %v5483
      %v5516 = vpack.c.b16 %v5488, %v5486
      %v5517 = vpack.c.b16 %v5489, %v5487
      %v5518 = vpack.c.b16 %v5492, %v5490
      %v5519 = vpack.c.b16 %v5493, %v5491
      %v5520 = vpack.c.b16 %v5496, %v5494
      %v5521 = vpack.c.b16 %v5497, %v5495
      %v5522 = vpack.c.b16 %v5500, %v5498
      %v5523 = vpack.c.b16 %v5501, %v5499
      %v5524 = vpack.c.b16 %v5504, %v5502
      %v5525 = vpack.c.b16 %v5505, %v5503
      %v5526 = vpack.c.b16 %v5508, %v5506
      %v5527 = vpack.c.b16 %v5509, %v5507
      %v5528 = vpack.c.b16 %v5512, %v5510
      %v5529 = vpack.c.b16 %v5513, %v5511
      %5546 = vmatprep.subr.bf16.mxu0 %v5515
      %5547 = vmatpush1.bf16.msra.mxu0 %v5514
      %5548 = vmatprep.subr.bf16.mxu0 %v5517
      %5549 = vmatpush1.bf16.msra.mxu0 %v5516
      %5550 = vmatprep.subr.bf16.mxu0 %v5519
      %5551 = vmatpush1.bf16.msra.mxu0 %v5518
      %5552 = vmatprep.subr.bf16.mxu0 %v5521
      %5553 = vmatpush1.bf16.msra.mxu0 %v5520
      %5554 = vmatprep.subr.bf16.mxu0 %v5523
      %5555 = vmatpush1.bf16.msra.mxu0 %v5522
      %5556 = vmatprep.subr.bf16.mxu0 %v5525
      %5557 = vmatpush1.bf16.msra.mxu0 %v5524
      %5558 = vmatprep.subr.bf16.mxu0 %v5527
      %5559 = vmatpush1.bf16.msra.mxu0 %v5526
      %5560 = vmatprep.subr.bf16.mxu0 %v5529
      %5561 = vmatpush1.bf16.msra.mxu0 %v5528
      %5562 = vmatprep.subr.bf16.mxu0 0
      %5563 = vmatpush1.bf16.msra.mxu0 0
      %5564 = vmatprep.subr.bf16.mxu0 0
      %5565 = vmatpush1.bf16.msra.mxu0 0
      %5566 = vmatprep.subr.bf16.mxu0 0
      %5567 = vmatpush1.bf16.msra.mxu0 0
      %5568 = vmatprep.subr.bf16.mxu0 0
      %5569 = vmatpush1.bf16.msra.mxu0 0
      %5570 = vmatprep.subr.bf16.mxu0 0
      %5571 = vmatpush1.bf16.msra.mxu0 0
      %5572 = vmatprep.subr.bf16.mxu0 0
      %5573 = vmatpush1.bf16.msra.mxu0 0
      %5574 = vmatprep.subr.bf16.mxu0 0
      %5575 = vmatpush1.bf16.msra.mxu0 0
      %5576 = vmatprep.subr.bf16.mxu0 0
      %5577 = vmatpush1.bf16.msra.mxu0 0
      %5578 = vmatprep.mubr.bf16.mxu0 0
      %5579 = vmatmul.mubr.bf16.gmra.mrb[0].mxu0 %v5448
      %v5580 = vpop.f32.mrb[0].mxu0
      %v5581 = vadd.f32 0.0, %v5580
      %v5582 = vpop.f32.mrb[0].mxu0
      %v5583 = vadd.f32 0.0, %v5582
      %v5584 = vpop.f32.mrb[0].mxu0
      %v5585 = vadd.f32 0.0, %v5584
      %v5586 = vpop.f32.mrb[0].mxu0
      %v5587 = vadd.f32 0.0, %v5586
      %5588 = vdwg.mxu0
      %v5589 = vadd.f32 %v5430, %v5581
      %v5590 = vadd.f32 %v5431, %v5583
      %v5591 = vadd.f32 %v5432, %v5585
      %v5592 = vadd.f32 %v5433, %v5587
      %v5593 = vld [vmem:[%s6] sm:$0x3]
      %v5595 = vlaneseq
      %v5596 = vshrl.u32 %v5595, 7
      %v5597 = vsub.s32 0, %v5596
      %v5598 = vrot.slane %v5593, %v5597
      %v5599 = vlaneseq
      %v5600 = vshrl.u32 %v5599, 7
      %v5601 = vsub.s32 1, %v5600
      %v5602 = vrot.slane %v5593, %v5601
      %v5605 = vadd.f32 %v5589, %v5598
      %v5606 = vadd.f32 %v5590, %v5602
      %v5607 = vadd.f32 %v5591, %v5598
      %v5608 = vadd.f32 %v5592, %v5602
      %v5609 = vmax.f32 %v5605, 0.0
      %v5610 = vmax.f32 %v5606, 0.0
      %v5611 = vmax.f32 %v5607, 0.0
      %v5612 = vmax.f32 %v5608, 0.0
      %v5617 = vcombine.low %v5609, %v5610
      %v5618 = vcombine.high %v5609, %v5610
      %v5620 = vunpack.c.l.s4 1983009808
      %v5621 = vunpack.c.0.s8 %v5620
      %v5622 = vlaneseq
      %v5623 = vshrl.u32 %v5622, 7
      %v5624 = vsub.s32 %v5621, %v5623
      %v5625 = vrot.slane %v5617, %v5624
      %v5627 = vunpack.c.l.s4 1983009808
      %v5628 = vunpack.c.0.s8 %v5627
      %v5629 = vlaneseq
      %v5630 = vshrl.u32 %v5629, 7
      %v5631 = vsub.s32 %v5628, %v5630
      %v5632 = vrot.slane %v5618, %v5631
      %v5633 = vcombine.high %v5625, %v5625
      %v5634 = vcombine.high %v5632, %v5632
      %v5635 = vcombine.low %v5611, %v5612
      %v5636 = vcombine.high %v5611, %v5612
      %v5638 = vunpack.c.l.s4 1983009808
      %v5639 = vunpack.c.0.s8 %v5638
      %v5640 = vlaneseq
      %v5641 = vshrl.u32 %v5640, 7
      %v5642 = vsub.s32 %v5639, %v5641
      %v5643 = vrot.slane %v5635, %v5642
      %v5645 = vunpack.c.l.s4 1983009808
      %v5646 = vunpack.c.0.s8 %v5645
      %v5647 = vlaneseq
      %v5648 = vshrl.u32 %v5647, 7
      %v5649 = vsub.s32 %v5646, %v5648
      %v5650 = vrot.slane %v5636, %v5649
      %v5651 = vcombine.high %v5643, %v5643
      %v5652 = vcombine.high %v5650, %v5650
      %v5661 = vrot.slane %v5625, 7
      %v5662 = vrot.slane %v5661, 2
      %v5663 = vrot.slane %v5633, 7
      %v5664 = vrot.slane %v5663, 2
      %v5665 = vrot.slane %v5632, 7
      %v5666 = vrot.slane %v5665, 2
      %v5667 = vrot.slane %v5634, 7
      %v5668 = vrot.slane %v5667, 2
      %v5669 = vrot.slane %v5643, 7
      %v5670 = vrot.slane %v5669, 2
      %v5671 = vrot.slane %v5651, 7
      %v5672 = vrot.slane %v5671, 2
      %v5673 = vrot.slane %v5650, 7
      %v5674 = vrot.slane %v5673, 2
      %v5675 = vrot.slane %v5652, 7
      %v5676 = vrot.slane %v5675, 2
      %v5685 = vmax.f32 %v5625, %v5662
      %v5686 = vmax.f32 %v5633, %v5664
      %v5687 = vmax.f32 %v5632, %v5666
      %v5688 = vmax.f32 %v5634, %v5668
      %v5689 = vmax.f32 %v5643, %v5670
      %v5690 = vmax.f32 %v5651, %v5672
      %v5691 = vmax.f32 %v5650, %v5674
      %v5692 = vmax.f32 %v5652, %v5676
      %5693 = vst [vmem:[#allocation4] sm:$0xff] 0.0
      %5694 = vst [vmem:[#allocation4 + $0x8] sm:$0xff] 0.0
      %5695 = vst [vmem:[#allocation4 + $0x10] sm:$0xff] 0.0
      %5696 = vst [vmem:[#allocation4 + $0x18] sm:$0xff] 0.0
      %5697 = vst [vmem:[#allocation4 + $0x80] sm:$0xff] 0.0
      %5698 = vst [vmem:[#allocation4 + $0x88] sm:$0xff] 0.0
      %5699 = vst [vmem:[#allocation4 + $0x90] sm:$0xff] 0.0
      %5700 = vst [vmem:[#allocation4 + $0x98] sm:$0xff] 0.0
      %s5701 = scalar_lea.vmem [#allocation4], 96
      %5702 = vst [vmem:[%s5701] sm:$0xff] 0.0
      %5703 = vst [vmem:[%s5701 + $0x8] sm:$0xff] 0.0
      %5704 = vst [vmem:[%s5701 + $0x10] sm:$0xff] 0.0
      %5705 = vst [vmem:[%s5701 + $0x18] sm:$0xff] 0.0
      %5706 = vst [vmem:[%s5701 + $0x80] sm:$0xff] 0.0
      %5707 = vst [vmem:[%s5701 + $0x88] sm:$0xff] 0.0
      %5708 = vst [vmem:[%s5701 + $0x90] sm:$0xff] 0.0
      %5709 = vst [vmem:[%s5701 + $0x98] sm:$0xff] 0.0
      %s5710 = scalar_lea.vmem [#allocation4], 32
      %v5711 = vlaneseq
      %vm5712 = vcmp.ge.s32.totalorder %v5711, 0
      %vm5713 = vcmp.lt.s32.totalorder %v5711, 256
      %vm5714 = vmand %vm5712, %vm5713
      %s5715 = scalar_lea.vmem %s5710, 7 [#allocation4]
      %5716 = vst.msk [vmem:[%s5715] ss:$8 sm:$0x3] %vm5714, 0.0
      %5717 = vst.msk [vmem:[%s5715] ss:$8 sm:$0x0] %vm5714, 0.0
      %s5718 = scalar_lea.vmem %s5710, 39 [#allocation4]
      %5719 = vst.msk [vmem:[%s5718] ss:$8 sm:$0x3] %vm5714, 0.0
      %5720 = vst.msk [vmem:[%s5718] ss:$8 sm:$0x0] %vm5714, 0.0
      %s5721 = scalar_lea.vmem %s5710, 135 [#allocation4]
      %5722 = vst.msk [vmem:[%s5721] ss:$8 sm:$0x3] %vm5714, 0.0
      %5723 = vst.msk [vmem:[%s5721] ss:$8 sm:$0x0] %vm5714, 0.0
      %s5724 = scalar_lea.vmem %s5710, 167 [#allocation4]
      %5725 = vst.msk [vmem:[%s5724] ss:$8 sm:$0x3] %vm5714, 0.0
      %5726 = vst.msk [vmem:[%s5724] ss:$8 sm:$0x0] %vm5714, 0.0
      %s5727 = scalar_lea.vmem %s5710, 18 [#allocation4]
      %5728 = vst.msk [vmem:[%s5727] ss:$8 sm:$0x3] %vm5714, 0.0
      %5729 = vst.msk [vmem:[%s5727] ss:$8 sm:$0x0] %vm5714, 0.0
      %s5730 = scalar_lea.vmem %s5710, 50 [#allocation4]
      %5731 = vst.msk [vmem:[%s5730] ss:$8 sm:$0x3] %vm5714, 0.0
      %5732 = vst.msk [vmem:[%s5730] ss:$8 sm:$0x0] %vm5714, 0.0
      %s5733 = scalar_lea.vmem %s5710, 146 [#allocation4]
      %5734 = vst.msk [vmem:[%s5733] ss:$8 sm:$0x3] %vm5714, 0.0
      %5735 = vst.msk [vmem:[%s5733] ss:$8 sm:$0x0] %vm5714, 0.0
      %s5736 = scalar_lea.vmem %s5710, 178 [#allocation4]
      %5737 = vst.msk [vmem:[%s5736] ss:$8 sm:$0x3] %vm5714, 0.0
      %5738 = vst.msk [vmem:[%s5736] ss:$8 sm:$0x0] %vm5714, 0.0
      %v5747 = vlaneseq
      %v5748 = vshrl.u32 %v5747, 7
      %v5749 = vsub.s32 0, %v5748
      %v5750 = vrot.slane %v5685, %v5749
      %v5751 = vlaneseq
      %v5752 = vshrl.u32 %v5751, 7
      %v5753 = vsub.s32 2, %v5752
      %v5754 = vrot.slane %v5685, %v5753
      %v5755 = vlaneseq
      %v5756 = vshrl.u32 %v5755, 7
      %v5757 = vsub.s32 0, %v5756
      %v5758 = vrot.slane %v5686, %v5757
      %v5759 = vlaneseq
      %v5760 = vshrl.u32 %v5759, 7
      %v5761 = vsub.s32 2, %v5760
      %v5762 = vrot.slane %v5686, %v5761
      %v5763 = vlaneseq
      %v5764 = vshrl.u32 %v5763, 7
      %v5765 = vsub.s32 0, %v5764
      %v5766 = vrot.slane %v5687, %v5765
      %v5767 = vlaneseq
      %v5768 = vshrl.u32 %v5767, 7
      %v5769 = vsub.s32 2, %v5768
      %v5770 = vrot.slane %v5687, %v5769
      %v5771 = vlaneseq
      %v5772 = vshrl.u32 %v5771, 7
      %v5773 = vsub.s32 0, %v5772
      %v5774 = vrot.slane %v5688, %v5773
      %v5775 = vlaneseq
      %v5776 = vshrl.u32 %v5775, 7
      %v5777 = vsub.s32 2, %v5776
      %v5778 = vrot.slane %v5688, %v5777
      %v5779 = vlaneseq
      %v5780 = vshrl.u32 %v5779, 7
      %v5781 = vsub.s32 0, %v5780
      %v5782 = vrot.slane %v5689, %v5781
      %v5783 = vlaneseq
      %v5784 = vshrl.u32 %v5783, 7
      %v5785 = vsub.s32 2, %v5784
      %v5786 = vrot.slane %v5689, %v5785
      %v5787 = vlaneseq
      %v5788 = vshrl.u32 %v5787, 7
      %v5789 = vsub.s32 0, %v5788
      %v5790 = vrot.slane %v5690, %v5789
      %v5791 = vlaneseq
      %v5792 = vshrl.u32 %v5791, 7
      %v5793 = vsub.s32 2, %v5792
      %v5794 = vrot.slane %v5690, %v5793
      %v5795 = vlaneseq
      %v5796 = vshrl.u32 %v5795, 7
      %v5797 = vsub.s32 0, %v5796
      %v5798 = vrot.slane %v5691, %v5797
      %v5799 = vlaneseq
      %v5800 = vshrl.u32 %v5799, 7
      %v5801 = vsub.s32 2, %v5800
      %v5802 = vrot.slane %v5691, %v5801
      %v5803 = vlaneseq
      %v5804 = vshrl.u32 %v5803, 7
      %v5805 = vsub.s32 0, %v5804
      %v5806 = vrot.slane %v5692, %v5805
      %v5807 = vlaneseq
      %v5808 = vshrl.u32 %v5807, 7
      %v5809 = vsub.s32 2, %v5808
      %v5810 = vrot.slane %v5692, %v5809
      %v5811 = vsel %vm2378, %v5758, %v5750
      %v5812 = vsel %vm2378, %v5762, %v5754
      %v5813 = vsel %vm2378, %v5774, %v5766
      %v5814 = vsel %vm2378, %v5778, %v5770
      %v5815 = vsel %vm2378, %v5790, %v5782
      %v5816 = vsel %vm2378, %v5794, %v5786
      %v5817 = vsel %vm2378, %v5806, %v5798
      %v5818 = vsel %vm2378, %v5810, %v5802
      %5827 = vst [vmem:[%s5710 + $0x10] sm:$0x3] %v5811
      %5828 = vst [vmem:[%s5710 + $0x18] sm:$0x3] %v5812
      %5829 = vst [vmem:[%s5710 + $0x30] sm:$0x3] %v5813
      %5830 = vst [vmem:[%s5710 + $0x38] sm:$0x3] %v5814
      %5831 = vst [vmem:[%s5710 + $0x90] sm:$0x3] %v5815
      %5832 = vst [vmem:[%s5710 + $0x98] sm:$0x3] %v5816
      %5833 = vst [vmem:[%s5710 + $0xb0] sm:$0x3] %v5817
      %5834 = vst [vmem:[%s5710 + $0xb8] sm:$0x3] %v5818
      %v5835 = vld [vmem:[#allocation4] sm:$0xff]
      %v5836 = vld [vmem:[#allocation4 + $0x8] sm:$0xff]
      %v5837 = vld [vmem:[#allocation4 + $0x10] sm:$0xff]
      %v5838 = vld [vmem:[#allocation4 + $0x18] sm:$0xff]
      %v5839 = vld [vmem:[#allocation4 + $0x20] sm:$0xff]
      %v5840 = vld [vmem:[#allocation4 + $0x28] sm:$0xff]
      %v5841 = vld [vmem:[#allocation4 + $0x30] sm:$0xff]
      %v5842 = vld [vmem:[#allocation4 + $0x38] sm:$0xff]
      %v5843 = vld [vmem:[#allocation4 + $0x40] sm:$0xff]
      %v5844 = vld [vmem:[#allocation4 + $0x48] sm:$0xff]
      %v5845 = vld [vmem:[#allocation4 + $0x50] sm:$0xff]
      %v5846 = vld [vmem:[#allocation4 + $0x58] sm:$0xff]
      %v5847 = vld [vmem:[#allocation4 + $0x60] sm:$0xff]
      %v5848 = vld [vmem:[#allocation4 + $0x68] sm:$0xff]
      %v5849 = vld [vmem:[#allocation4 + $0x70] sm:$0xff]
      %v5850 = vld [vmem:[#allocation4 + $0x78] sm:$0xff]
      %v5851 = vld [vmem:[#allocation4 + $0x80] sm:$0xff]
      %v5852 = vld [vmem:[#allocation4 + $0x88] sm:$0xff]
      %v5853 = vld [vmem:[#allocation4 + $0x90] sm:$0xff]
      %v5854 = vld [vmem:[#allocation4 + $0x98] sm:$0xff]
      %v5855 = vld [vmem:[#allocation4 + $0xa0] sm:$0xff]
      %v5856 = vld [vmem:[#allocation4 + $0xa8] sm:$0xff]
      %v5857 = vld [vmem:[#allocation4 + $0xb0] sm:$0xff]
      %v5858 = vld [vmem:[#allocation4 + $0xb8] sm:$0xff]
      %v5859 = vld [vmem:[#allocation4 + $0xc0] sm:$0xff]
      %v5860 = vld [vmem:[#allocation4 + $0xc8] sm:$0xff]
      %v5861 = vld [vmem:[#allocation4 + $0xd0] sm:$0xff]
      %v5862 = vld [vmem:[#allocation4 + $0xd8] sm:$0xff]
      %v5863 = vld [vmem:[#allocation4 + $0xe0] sm:$0xff]
      %v5864 = vld [vmem:[#allocation4 + $0xe8] sm:$0xff]
      %v5865 = vld [vmem:[#allocation4 + $0xf0] sm:$0xff]
      %v5866 = vld [vmem:[#allocation4 + $0xf8] sm:$0xff]
      %v5883 = vcombine.high %v5835, %v5836
      %v5885 = vunpack.c.l.s4 1983009808
      %v5886 = vunpack.c.0.s8 %v5885
      %v5887 = vlaneseq
      %v5888 = vshrl.u32 %v5887, 7
      %v5889 = vsub.s32 %v5886, %v5888
      %v5890 = vrot.slane %v5883, %v5889
      %v5891 = vcombine.high %v5890, %v5890
      %v5892 = vcombine.low %v5837, %v5838
      %v5894 = vunpack.c.l.s4 1983009808
      %v5895 = vunpack.c.0.s8 %v5894
      %v5896 = vlaneseq
      %v5897 = vshrl.u32 %v5896, 7
      %v5898 = vsub.s32 %v5895, %v5897
      %v5899 = vrot.slane %v5892, %v5898
      %v5900 = vcombine.high %v5839, %v5840
      %v5902 = vunpack.c.l.s4 1983009808
      %v5903 = vunpack.c.0.s8 %v5902
      %v5904 = vlaneseq
      %v5905 = vshrl.u32 %v5904, 7
      %v5906 = vsub.s32 %v5903, %v5905
      %v5907 = vrot.slane %v5900, %v5906
      %v5908 = vcombine.high %v5907, %v5907
      %v5909 = vcombine.low %v5841, %v5842
      %v5911 = vunpack.c.l.s4 1983009808
      %v5912 = vunpack.c.0.s8 %v5911
      %v5913 = vlaneseq
      %v5914 = vshrl.u32 %v5913, 7
      %v5915 = vsub.s32 %v5912, %v5914
      %v5916 = vrot.slane %v5909, %v5915
      %v5917 = vcombine.high %v5851, %v5852
      %v5919 = vunpack.c.l.s4 1983009808
      %v5920 = vunpack.c.0.s8 %v5919
      %v5921 = vlaneseq
      %v5922 = vshrl.u32 %v5921, 7
      %v5923 = vsub.s32 %v5920, %v5922
      %v5924 = vrot.slane %v5917, %v5923
      %v5925 = vcombine.high %v5924, %v5924
      %v5926 = vcombine.low %v5853, %v5854
      %v5928 = vunpack.c.l.s4 1983009808
      %v5929 = vunpack.c.0.s8 %v5928
      %v5930 = vlaneseq
      %v5931 = vshrl.u32 %v5930, 7
      %v5932 = vsub.s32 %v5929, %v5931
      %v5933 = vrot.slane %v5926, %v5932
      %v5934 = vcombine.high %v5855, %v5856
      %v5936 = vunpack.c.l.s4 1983009808
      %v5937 = vunpack.c.0.s8 %v5936
      %v5938 = vlaneseq
      %v5939 = vshrl.u32 %v5938, 7
      %v5940 = vsub.s32 %v5937, %v5939
      %v5941 = vrot.slane %v5934, %v5940
      %v5942 = vcombine.high %v5941, %v5941
      %v5943 = vcombine.low %v5857, %v5858
      %v5945 = vunpack.c.l.s4 1983009808
      %v5946 = vunpack.c.0.s8 %v5945
      %v5947 = vlaneseq
      %v5948 = vshrl.u32 %v5947, 7
      %v5949 = vsub.s32 %v5946, %v5948
      %v5950 = vrot.slane %v5943, %v5949
      %vm5951 = vmor %vm2509, %vm2380
      %vm5952 = vmor %vm5951, %vm2384
      %vm5953 = vmor %vm5952, %vm2388
      %v5954 = vrot.slane %v5891, 7
      %v5955 = vrot.slane %v5954, 2
      %v5956 = vrot.slane %v5899, 7
      %v5957 = vsel %vm5953, %v5955, %v5956
      %v5958 = vrot.slane %v5908, 7
      %v5959 = vrot.slane %v5958, 2
      %v5960 = vrot.slane %v5916, 7
      %v5961 = vsel %vm5953, %v5959, %v5960
      %v5962 = vrot.slane %v5925, 7
      %v5963 = vrot.slane %v5962, 2
      %v5964 = vrot.slane %v5933, 7
      %v5965 = vsel %vm5953, %v5963, %v5964
      %v5966 = vrot.slane %v5942, 7
      %v5967 = vrot.slane %v5966, 2
      %v5968 = vrot.slane %v5950, 7
      %v5969 = vsel %vm5953, %v5967, %v5968
      %v5970 = vcombine.low %v5957, %v5961
      %v5971 = vcombine.low %v5965, %v5969
      %v5973 = vunpack.c.l.s4 1983009808
      %v5974 = vunpack.c.0.s8 %v5973
      %v5975 = vlaneseq
      %v5976 = vshrl.u32 %v5975, 7
      %v5977 = vsub.s32 %v5974, %v5976
      %v5978 = vrot.slane %v5970, %v5977
      %v5980 = vunpack.c.l.s4 1983009808
      %v5981 = vunpack.c.0.s8 %v5980
      %v5982 = vlaneseq
      %v5983 = vshrl.u32 %v5982, 7
      %v5984 = vsub.s32 %v5981, %v5983
      %v5985 = vrot.slane %v5971, %v5984
      %v5986 = vcombine.low %v5978, %v5985
      %v5987 = vcombine.high %v5978, %v5985
      %v5990 = vpack.c.bf16 %v5986, %v5986
      %v5991 = vpack.c.bf16 %v5987, %v5987
      %v5992 = vld [vmem:[%s7] sm:$0xff]
      %v5993 = vld [vmem:[%s7 + $0x8] sm:$0xff]
      %v5994 = vld [vmem:[%s7 + $0x10] sm:$0xff]
      %v5995 = vld [vmem:[%s7 + $0x18] sm:$0xff]
      %v5996 = vld [vmem:[%s7 + $0x20] sm:$0xff]
      %v5997 = vld [vmem:[%s7 + $0x28] sm:$0xff]
      %v5998 = vld [vmem:[%s7 + $0x30] sm:$0xff]
      %v5999 = vld [vmem:[%s7 + $0x38] sm:$0xff]
      %v6000 = vld [vmem:[%s7 + $0x40] sm:$0xff]
      %v6001 = vld [vmem:[%s7 + $0x48] sm:$0xff]
      %v6002 = vld [vmem:[%s7 + $0x50] sm:$0xff]
      %v6003 = vld [vmem:[%s7 + $0x58] sm:$0xff]
      %v6004 = vld [vmem:[%s7 + $0x60] sm:$0xff]
      %v6005 = vld [vmem:[%s7 + $0x68] sm:$0xff]
      %v6006 = vld [vmem:[%s7 + $0x70] sm:$0xff]
      %v6007 = vld [vmem:[%s7 + $0x78] sm:$0xff]
      %v6008 = vld [vmem:[%s7 + $0x80] sm:$0xff]
      %v6009 = vld [vmem:[%s7 + $0x88] sm:$0xff]
      %v6010 = vld [vmem:[%s7 + $0x90] sm:$0xff]
      %v6011 = vld [vmem:[%s7 + $0x98] sm:$0xff]
      %v6012 = vld [vmem:[%s7 + $0xa0] sm:$0xff]
      %v6013 = vld [vmem:[%s7 + $0xa8] sm:$0xff]
      %v6014 = vld [vmem:[%s7 + $0xb0] sm:$0xff]
      %v6015 = vld [vmem:[%s7 + $0xb8] sm:$0xff]
      %v6016 = vld [vmem:[%s7 + $0xc0] sm:$0xff]
      %v6017 = vld [vmem:[%s7 + $0xc8] sm:$0xff]
      %v6018 = vld [vmem:[%s7 + $0xd0] sm:$0xff]
      %v6019 = vld [vmem:[%s7 + $0xd8] sm:$0xff]
      %v6020 = vld [vmem:[%s7 + $0xe0] sm:$0xff]
      %v6021 = vld [vmem:[%s7 + $0xe8] sm:$0xff]
      %v6022 = vld [vmem:[%s7 + $0xf0] sm:$0xff]
      %v6023 = vld [vmem:[%s7 + $0xf8] sm:$0xff]
      %v6024 = vcombine.low %v5899, %v5916
      %v6025 = vcombine.low %v5933, %v5950
      %v6027 = vunpack.c.l.s4 1983009808
      %v6028 = vunpack.c.0.s8 %v6027
      %v6029 = vlaneseq
      %v6030 = vshrl.u32 %v6029, 7
      %v6031 = vsub.s32 %v6028, %v6030
      %v6032 = vrot.slane %v6024, %v6031
      %v6034 = vunpack.c.l.s4 1983009808
      %v6035 = vunpack.c.0.s8 %v6034
      %v6036 = vlaneseq
      %v6037 = vshrl.u32 %v6036, 7
      %v6038 = vsub.s32 %v6035, %v6037
      %v6039 = vrot.slane %v6025, %v6038
      %v6040 = vcombine.low %v6032, %v6039
      %v6041 = vcombine.high %v6032, %v6039
      %v6044 = vpack.c.bf16 %v6040, %v6040
      %v6045 = vpack.c.bf16 %v6041, %v6041
      %s6046 = scalar_lea.vmem %s7, 256
      %v6047 = vld [vmem:[%s6046] sm:$0xff]
      %v6048 = vld [vmem:[%s6046 + $0x8] sm:$0xff]
      %v6049 = vld [vmem:[%s6046 + $0x10] sm:$0xff]
      %v6050 = vld [vmem:[%s6046 + $0x18] sm:$0xff]
      %v6051 = vld [vmem:[%s6046 + $0x20] sm:$0xff]
      %v6052 = vld [vmem:[%s6046 + $0x28] sm:$0xff]
      %v6053 = vld [vmem:[%s6046 + $0x30] sm:$0xff]
      %v6054 = vld [vmem:[%s6046 + $0x38] sm:$0xff]
      %v6055 = vld [vmem:[%s6046 + $0x40] sm:$0xff]
      %v6056 = vld [vmem:[%s6046 + $0x48] sm:$0xff]
      %v6057 = vld [vmem:[%s6046 + $0x50] sm:$0xff]
      %v6058 = vld [vmem:[%s6046 + $0x58] sm:$0xff]
      %v6059 = vld [vmem:[%s6046 + $0x60] sm:$0xff]
      %v6060 = vld [vmem:[%s6046 + $0x68] sm:$0xff]
      %v6061 = vld [vmem:[%s6046 + $0x70] sm:$0xff]
      %v6062 = vld [vmem:[%s6046 + $0x78] sm:$0xff]
      %v6063 = vld [vmem:[%s6046 + $0x80] sm:$0xff]
      %v6064 = vld [vmem:[%s6046 + $0x88] sm:$0xff]
      %v6065 = vld [vmem:[%s6046 + $0x90] sm:$0xff]
      %v6066 = vld [vmem:[%s6046 + $0x98] sm:$0xff]
      %v6067 = vld [vmem:[%s6046 + $0xa0] sm:$0xff]
      %v6068 = vld [vmem:[%s6046 + $0xa8] sm:$0xff]
      %v6069 = vld [vmem:[%s6046 + $0xb0] sm:$0xff]
      %v6070 = vld [vmem:[%s6046 + $0xb8] sm:$0xff]
      %v6071 = vld [vmem:[%s6046 + $0xc0] sm:$0xff]
      %v6072 = vld [vmem:[%s6046 + $0xc8] sm:$0xff]
      %v6073 = vld [vmem:[%s6046 + $0xd0] sm:$0xff]
      %v6074 = vld [vmem:[%s6046 + $0xd8] sm:$0xff]
      %v6075 = vld [vmem:[%s6046 + $0xe0] sm:$0xff]
      %v6076 = vld [vmem:[%s6046 + $0xe8] sm:$0xff]
      %v6077 = vld [vmem:[%s6046 + $0xf0] sm:$0xff]
      %v6078 = vld [vmem:[%s6046 + $0xf8] sm:$0xff]
      %v6111 = vunpack.c.l.b16 %v6047
      %v6112 = vunpack.c.h.b16 %v6047
      %v6113 = vunpack.c.l.b16 %v6048
      %v6114 = vunpack.c.h.b16 %v6048
      %v6115 = vunpack.c.l.b16 %v6049
      %v6116 = vunpack.c.h.b16 %v6049
      %v6117 = vunpack.c.l.b16 %v6050
      %v6118 = vunpack.c.h.b16 %v6050
      %v6119 = vunpack.c.l.b16 %v6051
      %v6120 = vunpack.c.h.b16 %v6051
      %v6121 = vunpack.c.l.b16 %v6052
      %v6122 = vunpack.c.h.b16 %v6052
      %v6123 = vunpack.c.l.b16 %v6053
      %v6124 = vunpack.c.h.b16 %v6053
      %v6125 = vunpack.c.l.b16 %v6054
      %v6126 = vunpack.c.h.b16 %v6054
      %v6127 = vunpack.c.l.b16 %v6055
      %v6128 = vunpack.c.h.b16 %v6055
      %v6129 = vunpack.c.l.b16 %v6056
      %v6130 = vunpack.c.h.b16 %v6056
      %v6131 = vunpack.c.l.b16 %v6057
      %v6132 = vunpack.c.h.b16 %v6057
      %v6133 = vunpack.c.l.b16 %v6058
      %v6134 = vunpack.c.h.b16 %v6058
      %v6135 = vunpack.c.l.b16 %v6059
      %v6136 = vunpack.c.h.b16 %v6059
      %v6137 = vunpack.c.l.b16 %v6060
      %v6138 = vunpack.c.h.b16 %v6060
      %v6139 = vunpack.c.l.b16 %v6061
      %v6140 = vunpack.c.h.b16 %v6061
      %v6141 = vunpack.c.l.b16 %v6062
      %v6142 = vunpack.c.h.b16 %v6062
      %v6143 = vunpack.c.l.b16 %v6063
      %v6144 = vunpack.c.h.b16 %v6063
      %v6145 = vunpack.c.l.b16 %v6064
      %v6146 = vunpack.c.h.b16 %v6064
      %v6147 = vunpack.c.l.b16 %v6065
      %v6148 = vunpack.c.h.b16 %v6065
      %v6149 = vunpack.c.l.b16 %v6066
      %v6150 = vunpack.c.h.b16 %v6066
      %v6151 = vunpack.c.l.b16 %v6067
      %v6152 = vunpack.c.h.b16 %v6067
      %v6153 = vunpack.c.l.b16 %v6068
      %v6154 = vunpack.c.h.b16 %v6068
      %v6155 = vunpack.c.l.b16 %v6069
      %v6156 = vunpack.c.h.b16 %v6069
      %v6157 = vunpack.c.l.b16 %v6070
      %v6158 = vunpack.c.h.b16 %v6070
      %v6159 = vunpack.c.l.b16 %v6071
      %v6160 = vunpack.c.h.b16 %v6071
      %v6161 = vunpack.c.l.b16 %v6072
      %v6162 = vunpack.c.h.b16 %v6072
      %v6163 = vunpack.c.l.b16 %v6073
      %v6164 = vunpack.c.h.b16 %v6073
      %v6165 = vunpack.c.l.b16 %v6074
      %v6166 = vunpack.c.h.b16 %v6074
      %v6167 = vunpack.c.l.b16 %v6075
      %v6168 = vunpack.c.h.b16 %v6075
      %v6169 = vunpack.c.l.b16 %v6076
      %v6170 = vunpack.c.h.b16 %v6076
      %v6171 = vunpack.c.l.b16 %v6077
      %v6172 = vunpack.c.h.b16 %v6077
      %v6173 = vunpack.c.l.b16 %v6078
      %v6174 = vunpack.c.h.b16 %v6078
      %v6175 = vpack.c.b16 %v6113, %v6111
      %v6176 = vpack.c.b16 %v6114, %v6112
      %v6177 = vpack.c.b16 %v6117, %v6115
      %v6178 = vpack.c.b16 %v6118, %v6116
      %v6179 = vpack.c.b16 %v6121, %v6119
      %v6180 = vpack.c.b16 %v6122, %v6120
      %v6181 = vpack.c.b16 %v6125, %v6123
      %v6182 = vpack.c.b16 %v6126, %v6124
      %v6183 = vpack.c.b16 %v6129, %v6127
      %v6184 = vpack.c.b16 %v6130, %v6128
      %v6185 = vpack.c.b16 %v6133, %v6131
      %v6186 = vpack.c.b16 %v6134, %v6132
      %v6187 = vpack.c.b16 %v6137, %v6135
      %v6188 = vpack.c.b16 %v6138, %v6136
      %v6189 = vpack.c.b16 %v6141, %v6139
      %v6190 = vpack.c.b16 %v6142, %v6140
      %v6191 = vpack.c.b16 %v6145, %v6143
      %v6192 = vpack.c.b16 %v6146, %v6144
      %v6193 = vpack.c.b16 %v6149, %v6147
      %v6194 = vpack.c.b16 %v6150, %v6148
      %v6195 = vpack.c.b16 %v6153, %v6151
      %v6196 = vpack.c.b16 %v6154, %v6152
      %v6197 = vpack.c.b16 %v6157, %v6155
      %v6198 = vpack.c.b16 %v6158, %v6156
      %v6199 = vpack.c.b16 %v6161, %v6159
      %v6200 = vpack.c.b16 %v6162, %v6160
      %v6201 = vpack.c.b16 %v6165, %v6163
      %v6202 = vpack.c.b16 %v6166, %v6164
      %v6203 = vpack.c.b16 %v6169, %v6167
      %v6204 = vpack.c.b16 %v6170, %v6168
      %v6205 = vpack.c.b16 %v6173, %v6171
      %v6206 = vpack.c.b16 %v6174, %v6172
      %6239 = vmatprep.subr.bf16.mxu0 %v6176
      %6240 = vmatpush1.bf16.msra.mxu0 %v6175
      %6241 = vmatprep.subr.bf16.mxu0 %v6178
      %6242 = vmatpush1.bf16.msra.mxu0 %v6177
      %6243 = vmatprep.subr.bf16.mxu0 %v6180
      %6244 = vmatpush1.bf16.msra.mxu0 %v6179
      %6245 = vmatprep.subr.bf16.mxu0 %v6182
      %6246 = vmatpush1.bf16.msra.mxu0 %v6181
      %6247 = vmatprep.subr.bf16.mxu0 %v6184
      %6248 = vmatpush1.bf16.msra.mxu0 %v6183
      %6249 = vmatprep.subr.bf16.mxu0 %v6186
      %6250 = vmatpush1.bf16.msra.mxu0 %v6185
      %6251 = vmatprep.subr.bf16.mxu0 %v6188
      %6252 = vmatpush1.bf16.msra.mxu0 %v6187
      %6253 = vmatprep.subr.bf16.mxu0 %v6190
      %6254 = vmatpush1.bf16.msra.mxu0 %v6189
      %6255 = vmatprep.subr.bf16.mxu0 %v6192
      %6256 = vmatpush1.bf16.msra.mxu0 %v6191
      %6257 = vmatprep.subr.bf16.mxu0 %v6194
      %6258 = vmatpush1.bf16.msra.mxu0 %v6193
      %6259 = vmatprep.subr.bf16.mxu0 %v6196
      %6260 = vmatpush1.bf16.msra.mxu0 %v6195
      %6261 = vmatprep.subr.bf16.mxu0 %v6198
      %6262 = vmatpush1.bf16.msra.mxu0 %v6197
      %6263 = vmatprep.subr.bf16.mxu0 %v6200
      %6264 = vmatpush1.bf16.msra.mxu0 %v6199
      %6265 = vmatprep.subr.bf16.mxu0 %v6202
      %6266 = vmatpush1.bf16.msra.mxu0 %v6201
      %6267 = vmatprep.subr.bf16.mxu0 %v6204
      %6268 = vmatpush1.bf16.msra.mxu0 %v6203
      %6269 = vmatprep.subr.bf16.mxu0 %v6206
      %6270 = vmatpush1.bf16.msra.mxu0 %v6205
      %6271 = vmatprep.mubr.bf16.mxu0 %v6045
      %6272 = vmatmul.mubr.bf16.gmra.mrb[0].mxu0 %v6044
      %v6273 = vpop.f32.mrb[0].mxu0
      %v6274 = vadd.f32 0.0, %v6273
      %v6275 = vpop.f32.mrb[0].mxu0
      %v6276 = vadd.f32 0.0, %v6275
      %v6277 = vpop.f32.mrb[0].mxu0
      %v6278 = vpop.f32.mrb[0].mxu0
      %6279 = vdwg.mxu0
      %v6312 = vunpack.c.l.b16 %v5992
      %v6313 = vunpack.c.h.b16 %v5992
      %v6314 = vunpack.c.l.b16 %v5993
      %v6315 = vunpack.c.h.b16 %v5993
      %v6316 = vunpack.c.l.b16 %v5994
      %v6317 = vunpack.c.h.b16 %v5994
      %v6318 = vunpack.c.l.b16 %v5995
      %v6319 = vunpack.c.h.b16 %v5995
      %v6320 = vunpack.c.l.b16 %v5996
      %v6321 = vunpack.c.h.b16 %v5996
      %v6322 = vunpack.c.l.b16 %v5997
      %v6323 = vunpack.c.h.b16 %v5997
      %v6324 = vunpack.c.l.b16 %v5998
      %v6325 = vunpack.c.h.b16 %v5998
      %v6326 = vunpack.c.l.b16 %v5999
      %v6327 = vunpack.c.h.b16 %v5999
      %v6328 = vunpack.c.l.b16 %v6000
      %v6329 = vunpack.c.h.b16 %v6000
      %v6330 = vunpack.c.l.b16 %v6001
      %v6331 = vunpack.c.h.b16 %v6001
      %v6332 = vunpack.c.l.b16 %v6002
      %v6333 = vunpack.c.h.b16 %v6002
      %v6334 = vunpack.c.l.b16 %v6003
      %v6335 = vunpack.c.h.b16 %v6003
      %v6336 = vunpack.c.l.b16 %v6004
      %v6337 = vunpack.c.h.b16 %v6004
      %v6338 = vunpack.c.l.b16 %v6005
      %v6339 = vunpack.c.h.b16 %v6005
      %v6340 = vunpack.c.l.b16 %v6006
      %v6341 = vunpack.c.h.b16 %v6006
      %v6342 = vunpack.c.l.b16 %v6007
      %v6343 = vunpack.c.h.b16 %v6007
      %v6344 = vunpack.c.l.b16 %v6008
      %v6345 = vunpack.c.h.b16 %v6008
      %v6346 = vunpack.c.l.b16 %v6009
      %v6347 = vunpack.c.h.b16 %v6009
      %v6348 = vunpack.c.l.b16 %v6010
      %v6349 = vunpack.c.h.b16 %v6010
      %v6350 = vunpack.c.l.b16 %v6011
      %v6351 = vunpack.c.h.b16 %v6011
      %v6352 = vunpack.c.l.b16 %v6012
      %v6353 = vunpack.c.h.b16 %v6012
      %v6354 = vunpack.c.l.b16 %v6013
      %v6355 = vunpack.c.h.b16 %v6013
      %v6356 = vunpack.c.l.b16 %v6014
      %v6357 = vunpack.c.h.b16 %v6014
      %v6358 = vunpack.c.l.b16 %v6015
      %v6359 = vunpack.c.h.b16 %v6015
      %v6360 = vunpack.c.l.b16 %v6016
      %v6361 = vunpack.c.h.b16 %v6016
      %v6362 = vunpack.c.l.b16 %v6017
      %v6363 = vunpack.c.h.b16 %v6017
      %v6364 = vunpack.c.l.b16 %v6018
      %v6365 = vunpack.c.h.b16 %v6018
      %v6366 = vunpack.c.l.b16 %v6019
      %v6367 = vunpack.c.h.b16 %v6019
      %v6368 = vunpack.c.l.b16 %v6020
      %v6369 = vunpack.c.h.b16 %v6020
      %v6370 = vunpack.c.l.b16 %v6021
      %v6371 = vunpack.c.h.b16 %v6021
      %v6372 = vunpack.c.l.b16 %v6022
      %v6373 = vunpack.c.h.b16 %v6022
      %v6374 = vunpack.c.l.b16 %v6023
      %v6375 = vunpack.c.h.b16 %v6023
      %v6376 = vpack.c.b16 %v6314, %v6312
      %v6377 = vpack.c.b16 %v6315, %v6313
      %v6378 = vpack.c.b16 %v6318, %v6316
      %v6379 = vpack.c.b16 %v6319, %v6317
      %v6380 = vpack.c.b16 %v6322, %v6320
      %v6381 = vpack.c.b16 %v6323, %v6321
      %v6382 = vpack.c.b16 %v6326, %v6324
      %v6383 = vpack.c.b16 %v6327, %v6325
      %v6384 = vpack.c.b16 %v6330, %v6328
      %v6385 = vpack.c.b16 %v6331, %v6329
      %v6386 = vpack.c.b16 %v6334, %v6332
      %v6387 = vpack.c.b16 %v6335, %v6333
      %v6388 = vpack.c.b16 %v6338, %v6336
      %v6389 = vpack.c.b16 %v6339, %v6337
      %v6390 = vpack.c.b16 %v6342, %v6340
      %v6391 = vpack.c.b16 %v6343, %v6341
      %v6392 = vpack.c.b16 %v6346, %v6344
      %v6393 = vpack.c.b16 %v6347, %v6345
      %v6394 = vpack.c.b16 %v6350, %v6348
      %v6395 = vpack.c.b16 %v6351, %v6349
      %v6396 = vpack.c.b16 %v6354, %v6352
      %v6397 = vpack.c.b16 %v6355, %v6353
      %v6398 = vpack.c.b16 %v6358, %v6356
      %v6399 = vpack.c.b16 %v6359, %v6357
      %v6400 = vpack.c.b16 %v6362, %v6360
      %v6401 = vpack.c.b16 %v6363, %v6361
      %v6402 = vpack.c.b16 %v6366, %v6364
      %v6403 = vpack.c.b16 %v6367, %v6365
      %v6404 = vpack.c.b16 %v6370, %v6368
      %v6405 = vpack.c.b16 %v6371, %v6369
      %v6406 = vpack.c.b16 %v6374, %v6372
      %v6407 = vpack.c.b16 %v6375, %v6373
      %6440 = vmatprep.subr.bf16.mxu0 %v6377
      %6441 = vmatpush1.bf16.msra.mxu0 %v6376
      %6442 = vmatprep.subr.bf16.mxu0 %v6379
      %6443 = vmatpush1.bf16.msra.mxu0 %v6378
      %6444 = vmatprep.subr.bf16.mxu0 %v6381
      %6445 = vmatpush1.bf16.msra.mxu0 %v6380
      %6446 = vmatprep.subr.bf16.mxu0 %v6383
      %6447 = vmatpush1.bf16.msra.mxu0 %v6382
      %6448 = vmatprep.subr.bf16.mxu0 %v6385
      %6449 = vmatpush1.bf16.msra.mxu0 %v6384
      %6450 = vmatprep.subr.bf16.mxu0 %v6387
      %6451 = vmatpush1.bf16.msra.mxu0 %v6386
      %6452 = vmatprep.subr.bf16.mxu0 %v6389
      %6453 = vmatpush1.bf16.msra.mxu0 %v6388
      %6454 = vmatprep.subr.bf16.mxu0 %v6391
      %6455 = vmatpush1.bf16.msra.mxu0 %v6390
      %6456 = vmatprep.subr.bf16.mxu0 %v6393
      %6457 = vmatpush1.bf16.msra.mxu0 %v6392
      %6458 = vmatprep.subr.bf16.mxu0 %v6395
      %6459 = vmatpush1.bf16.msra.mxu0 %v6394
      %6460 = vmatprep.subr.bf16.mxu0 %v6397
      %6461 = vmatpush1.bf16.msra.mxu0 %v6396
      %6462 = vmatprep.subr.bf16.mxu0 %v6399
      %6463 = vmatpush1.bf16.msra.mxu0 %v6398
      %6464 = vmatprep.subr.bf16.mxu0 %v6401
      %6465 = vmatpush1.bf16.msra.mxu0 %v6400
      %6466 = vmatprep.subr.bf16.mxu0 %v6403
      %6467 = vmatpush1.bf16.msra.mxu0 %v6402
      %6468 = vmatprep.subr.bf16.mxu0 %v6405
      %6469 = vmatpush1.bf16.msra.mxu0 %v6404
      %6470 = vmatprep.subr.bf16.mxu0 %v6407
      %6471 = vmatpush1.bf16.msra.mxu0 %v6406
      %6472 = vmatprep.mubr.bf16.mxu0 %v5991
      %6473 = vmatmul.mubr.bf16.gmra.mrb[0].mxu0 %v5990
      %v6474 = vpop.f32.mrb[0].mxu0
      %v6475 = vadd.f32 %v6274, %v6474
      %v6476 = vpop.f32.mrb[0].mxu0
      %v6477 = vadd.f32 %v6276, %v6476
      %v6478 = vpop.f32.mrb[0].mxu0
      %v6479 = vpop.f32.mrb[0].mxu0
      %6480 = vdwg.mxu0
      %v6481 = vcombine.high %v5899, %v5899
      %v6482 = vcombine.high %v5916, %v5916
      %v6483 = vcombine.high %v5933, %v5933
      %v6484 = vcombine.high %v5950, %v5950
      %v6485 = vrot.slane %v5956, 2
      %v6486 = vrot.slane %v6481, 7
      %v6487 = vsel %vm5953, %v6485, %v6486
      %v6488 = vrot.slane %v5960, 2
      %v6489 = vrot.slane %v6482, 7
      %v6490 = vsel %vm5953, %v6488, %v6489
      %v6491 = vrot.slane %v5964, 2
      %v6492 = vrot.slane %v6483, 7
      %v6493 = vsel %vm5953, %v6491, %v6492
      %v6494 = vrot.slane %v5968, 2
      %v6495 = vrot.slane %v6484, 7
      %v6496 = vsel %vm5953, %v6494, %v6495
      %v6497 = vcombine.low %v6487, %v6490
      %v6498 = vcombine.low %v6493, %v6496
      %v6500 = vunpack.c.l.s4 1983009808
      %v6501 = vunpack.c.0.s8 %v6500
      %v6502 = vlaneseq
      %v6503 = vshrl.u32 %v6502, 7
      %v6504 = vsub.s32 %v6501, %v6503
      %v6505 = vrot.slane %v6497, %v6504
      %v6507 = vunpack.c.l.s4 1983009808
      %v6508 = vunpack.c.0.s8 %v6507
      %v6509 = vlaneseq
      %v6510 = vshrl.u32 %v6509, 7
      %v6511 = vsub.s32 %v6508, %v6510
      %v6512 = vrot.slane %v6498, %v6511
      %v6513 = vcombine.low %v6505, %v6512
      %v6514 = vcombine.high %v6505, %v6512
      %v6517 = vpack.c.bf16 %v6513, %v6513
      %v6518 = vpack.c.bf16 %v6514, %v6514
      %s6519 = scalar_lea.vmem %s7, 512
      %v6520 = vld [vmem:[%s6519] sm:$0xff]
      %v6521 = vld [vmem:[%s6519 + $0x8] sm:$0xff]
      %v6522 = vld [vmem:[%s6519 + $0x10] sm:$0xff]
      %v6523 = vld [vmem:[%s6519 + $0x18] sm:$0xff]
      %v6524 = vld [vmem:[%s6519 + $0x20] sm:$0xff]
      %v6525 = vld [vmem:[%s6519 + $0x28] sm:$0xff]
      %v6526 = vld [vmem:[%s6519 + $0x30] sm:$0xff]
      %v6527 = vld [vmem:[%s6519 + $0x38] sm:$0xff]
      %v6528 = vld [vmem:[%s6519 + $0x40] sm:$0xff]
      %v6529 = vld [vmem:[%s6519 + $0x48] sm:$0xff]
      %v6530 = vld [vmem:[%s6519 + $0x50] sm:$0xff]
      %v6531 = vld [vmem:[%s6519 + $0x58] sm:$0xff]
      %v6532 = vld [vmem:[%s6519 + $0x60] sm:$0xff]
      %v6533 = vld [vmem:[%s6519 + $0x68] sm:$0xff]
      %v6534 = vld [vmem:[%s6519 + $0x70] sm:$0xff]
      %v6535 = vld [vmem:[%s6519 + $0x78] sm:$0xff]
      %v6536 = vld [vmem:[%s6519 + $0x80] sm:$0xff]
      %v6537 = vld [vmem:[%s6519 + $0x88] sm:$0xff]
      %v6538 = vld [vmem:[%s6519 + $0x90] sm:$0xff]
      %v6539 = vld [vmem:[%s6519 + $0x98] sm:$0xff]
      %v6540 = vld [vmem:[%s6519 + $0xa0] sm:$0xff]
      %v6541 = vld [vmem:[%s6519 + $0xa8] sm:$0xff]
      %v6542 = vld [vmem:[%s6519 + $0xb0] sm:$0xff]
      %v6543 = vld [vmem:[%s6519 + $0xb8] sm:$0xff]
      %v6544 = vld [vmem:[%s6519 + $0xc0] sm:$0xff]
      %v6545 = vld [vmem:[%s6519 + $0xc8] sm:$0xff]
      %v6546 = vld [vmem:[%s6519 + $0xd0] sm:$0xff]
      %v6547 = vld [vmem:[%s6519 + $0xd8] sm:$0xff]
      %v6548 = vld [vmem:[%s6519 + $0xe0] sm:$0xff]
      %v6549 = vld [vmem:[%s6519 + $0xe8] sm:$0xff]
      %v6550 = vld [vmem:[%s6519 + $0xf0] sm:$0xff]
      %v6551 = vld [vmem:[%s6519 + $0xf8] sm:$0xff]
      %v6584 = vunpack.c.l.b16 %v6520
      %v6585 = vunpack.c.h.b16 %v6520
      %v6586 = vunpack.c.l.b16 %v6521
      %v6587 = vunpack.c.h.b16 %v6521
      %v6588 = vunpack.c.l.b16 %v6522
      %v6589 = vunpack.c.h.b16 %v6522
      %v6590 = vunpack.c.l.b16 %v6523
      %v6591 = vunpack.c.h.b16 %v6523
      %v6592 = vunpack.c.l.b16 %v6524
      %v6593 = vunpack.c.h.b16 %v6524
      %v6594 = vunpack.c.l.b16 %v6525
      %v6595 = vunpack.c.h.b16 %v6525
      %v6596 = vunpack.c.l.b16 %v6526
      %v6597 = vunpack.c.h.b16 %v6526
      %v6598 = vunpack.c.l.b16 %v6527
      %v6599 = vunpack.c.h.b16 %v6527
      %v6600 = vunpack.c.l.b16 %v6528
      %v6601 = vunpack.c.h.b16 %v6528
      %v6602 = vunpack.c.l.b16 %v6529
      %v6603 = vunpack.c.h.b16 %v6529
      %v6604 = vunpack.c.l.b16 %v6530
      %v6605 = vunpack.c.h.b16 %v6530
      %v6606 = vunpack.c.l.b16 %v6531
      %v6607 = vunpack.c.h.b16 %v6531
      %v6608 = vunpack.c.l.b16 %v6532
      %v6609 = vunpack.c.h.b16 %v6532
      %v6610 = vunpack.c.l.b16 %v6533
      %v6611 = vunpack.c.h.b16 %v6533
      %v6612 = vunpack.c.l.b16 %v6534
      %v6613 = vunpack.c.h.b16 %v6534
      %v6614 = vunpack.c.l.b16 %v6535
      %v6615 = vunpack.c.h.b16 %v6535
      %v6616 = vunpack.c.l.b16 %v6536
      %v6617 = vunpack.c.h.b16 %v6536
      %v6618 = vunpack.c.l.b16 %v6537
      %v6619 = vunpack.c.h.b16 %v6537
      %v6620 = vunpack.c.l.b16 %v6538
      %v6621 = vunpack.c.h.b16 %v6538
      %v6622 = vunpack.c.l.b16 %v6539
      %v6623 = vunpack.c.h.b16 %v6539
      %v6624 = vunpack.c.l.b16 %v6540
      %v6625 = vunpack.c.h.b16 %v6540
      %v6626 = vunpack.c.l.b16 %v6541
      %v6627 = vunpack.c.h.b16 %v6541
      %v6628 = vunpack.c.l.b16 %v6542
      %v6629 = vunpack.c.h.b16 %v6542
      %v6630 = vunpack.c.l.b16 %v6543
      %v6631 = vunpack.c.h.b16 %v6543
      %v6632 = vunpack.c.l.b16 %v6544
      %v6633 = vunpack.c.h.b16 %v6544
      %v6634 = vunpack.c.l.b16 %v6545
      %v6635 = vunpack.c.h.b16 %v6545
      %v6636 = vunpack.c.l.b16 %v6546
      %v6637 = vunpack.c.h.b16 %v6546
      %v6638 = vunpack.c.l.b16 %v6547
      %v6639 = vunpack.c.h.b16 %v6547
      %v6640 = vunpack.c.l.b16 %v6548
      %v6641 = vunpack.c.h.b16 %v6548
      %v6642 = vunpack.c.l.b16 %v6549
      %v6643 = vunpack.c.h.b16 %v6549
      %v6644 = vunpack.c.l.b16 %v6550
      %v6645 = vunpack.c.h.b16 %v6550
      %v6646 = vunpack.c.l.b16 %v6551
      %v6647 = vunpack.c.h.b16 %v6551
      %v6648 = vpack.c.b16 %v6586, %v6584
      %v6649 = vpack.c.b16 %v6587, %v6585
      %v6650 = vpack.c.b16 %v6590, %v6588
      %v6651 = vpack.c.b16 %v6591, %v6589
      %v6652 = vpack.c.b16 %v6594, %v6592
      %v6653 = vpack.c.b16 %v6595, %v6593
      %v6654 = vpack.c.b16 %v6598, %v6596
      %v6655 = vpack.c.b16 %v6599, %v6597
      %v6656 = vpack.c.b16 %v6602, %v6600
      %v6657 = vpack.c.b16 %v6603, %v6601
      %v6658 = vpack.c.b16 %v6606, %v6604
      %v6659 = vpack.c.b16 %v6607, %v6605
      %v6660 = vpack.c.b16 %v6610, %v6608
      %v6661 = vpack.c.b16 %v6611, %v6609
      %v6662 = vpack.c.b16 %v6614, %v6612
      %v6663 = vpack.c.b16 %v6615, %v6613
      %v6664 = vpack.c.b16 %v6618, %v6616
      %v6665 = vpack.c.b16 %v6619, %v6617
      %v6666 = vpack.c.b16 %v6622, %v6620
      %v6667 = vpack.c.b16 %v6623, %v6621
      %v6668 = vpack.c.b16 %v6626, %v6624
      %v6669 = vpack.c.b16 %v6627, %v6625
      %v6670 = vpack.c.b16 %v6630, %v6628
      %v6671 = vpack.c.b16 %v6631, %v6629
      %v6672 = vpack.c.b16 %v6634, %v6632
      %v6673 = vpack.c.b16 %v6635, %v6633
      %v6674 = vpack.c.b16 %v6638, %v6636
      %v6675 = vpack.c.b16 %v6639, %v6637
      %v6676 = vpack.c.b16 %v6642, %v6640
      %v6677 = vpack.c.b16 %v6643, %v6641
      %v6678 = vpack.c.b16 %v6646, %v6644
      %v6679 = vpack.c.b16 %v6647, %v6645
      %6712 = vmatprep.subr.bf16.mxu0 %v6649
      %6713 = vmatpush1.bf16.msra.mxu0 %v6648
      %6714 = vmatprep.subr.bf16.mxu0 %v6651
      %6715 = vmatpush1.bf16.msra.mxu0 %v6650
      %6716 = vmatprep.subr.bf16.mxu0 %v6653
      %6717 = vmatpush1.bf16.msra.mxu0 %v6652
      %6718 = vmatprep.subr.bf16.mxu0 %v6655
      %6719 = vmatpush1.bf16.msra.mxu0 %v6654
      %6720 = vmatprep.subr.bf16.mxu0 %v6657
      %6721 = vmatpush1.bf16.msra.mxu0 %v6656
      %6722 = vmatprep.subr.bf16.mxu0 %v6659
      %6723 = vmatpush1.bf16.msra.mxu0 %v6658
      %6724 = vmatprep.subr.bf16.mxu0 %v6661
      %6725 = vmatpush1.bf16.msra.mxu0 %v6660
      %6726 = vmatprep.subr.bf16.mxu0 %v6663
      %6727 = vmatpush1.bf16.msra.mxu0 %v6662
      %6728 = vmatprep.subr.bf16.mxu0 %v6665
      %6729 = vmatpush1.bf16.msra.mxu0 %v6664
      %6730 = vmatprep.subr.bf16.mxu0 %v6667
      %6731 = vmatpush1.bf16.msra.mxu0 %v6666
      %6732 = vmatprep.subr.bf16.mxu0 %v6669
      %6733 = vmatpush1.bf16.msra.mxu0 %v6668
      %6734 = vmatprep.subr.bf16.mxu0 %v6671
      %6735 = vmatpush1.bf16.msra.mxu0 %v6670
      %6736 = vmatprep.subr.bf16.mxu0 %v6673
      %6737 = vmatpush1.bf16.msra.mxu0 %v6672
      %6738 = vmatprep.subr.bf16.mxu0 %v6675
      %6739 = vmatpush1.bf16.msra.mxu0 %v6674
      %6740 = vmatprep.subr.bf16.mxu0 %v6677
      %6741 = vmatpush1.bf16.msra.mxu0 %v6676
      %6742 = vmatprep.subr.bf16.mxu0 %v6679
      %6743 = vmatpush1.bf16.msra.mxu0 %v6678
      %6744 = vmatprep.mubr.bf16.mxu0 %v6518
      %6745 = vmatmul.mubr.bf16.gmra.mrb[0].mxu0 %v6517
      %v6746 = vpop.f32.mrb[0].mxu0
      %v6747 = vadd.f32 0.0, %v6746
      %v6748 = vpop.f32.mrb[0].mxu0
      %v6749 = vadd.f32 0.0, %v6748
      %v6750 = vpop.f32.mrb[0].mxu0
      %v6751 = vpop.f32.mrb[0].mxu0
      %6752 = vdwg.mxu0
      %v6753 = vadd.f32 %v6475, %v6747
      %v6754 = vadd.f32 %v6477, %v6749
      %v6763 = vcombine.high %v5843, %v5844
      %v6765 = vunpack.c.l.s4 1983009808
      %v6766 = vunpack.c.0.s8 %v6765
      %v6767 = vlaneseq
      %v6768 = vshrl.u32 %v6767, 7
      %v6769 = vsub.s32 %v6766, %v6768
      %v6770 = vrot.slane %v6763, %v6769
      %v6771 = vcombine.high %v6770, %v6770
      %v6772 = vcombine.low %v5845, %v5846
      %v6774 = vunpack.c.l.s4 1983009808
      %v6775 = vunpack.c.0.s8 %v6774
      %v6776 = vlaneseq
      %v6777 = vshrl.u32 %v6776, 7
      %v6778 = vsub.s32 %v6775, %v6777
      %v6779 = vrot.slane %v6772, %v6778
      %v6780 = vcombine.high %v5859, %v5860
      %v6782 = vunpack.c.l.s4 1983009808
      %v6783 = vunpack.c.0.s8 %v6782
      %v6784 = vlaneseq
      %v6785 = vshrl.u32 %v6784, 7
      %v6786 = vsub.s32 %v6783, %v6785
      %v6787 = vrot.slane %v6780, %v6786
      %v6788 = vcombine.high %v6787, %v6787
      %v6789 = vcombine.low %v5861, %v5862
      %v6791 = vunpack.c.l.s4 1983009808
      %v6792 = vunpack.c.0.s8 %v6791
      %v6793 = vlaneseq
      %v6794 = vshrl.u32 %v6793, 7
      %v6795 = vsub.s32 %v6792, %v6794
      %v6796 = vrot.slane %v6789, %v6795
      %v6797 = vrot.slane %v6771, 7
      %v6798 = vrot.slane %v6797, 2
      %v6799 = vrot.slane %v6779, 7
      %v6800 = vsel %vm5953, %v6798, %v6799
      %v6801 = vrot.slane %v6788, 7
      %v6802 = vrot.slane %v6801, 2
      %v6803 = vrot.slane %v6796, 7
      %v6804 = vsel %vm5953, %v6802, %v6803
      %v6805 = vcombine.low %v5961, %v6800
      %v6806 = vcombine.low %v5969, %v6804
      %v6808 = vunpack.c.l.s4 1983009808
      %v6809 = vunpack.c.0.s8 %v6808
      %v6810 = vlaneseq
      %v6811 = vshrl.u32 %v6810, 7
      %v6812 = vsub.s32 %v6809, %v6811
      %v6813 = vrot.slane %v6805, %v6812
      %v6815 = vunpack.c.l.s4 1983009808
      %v6816 = vunpack.c.0.s8 %v6815
      %v6817 = vlaneseq
      %v6818 = vshrl.u32 %v6817, 7
      %v6819 = vsub.s32 %v6816, %v6818
      %v6820 = vrot.slane %v6806, %v6819
      %v6821 = vcombine.low %v6813, %v6820
      %v6822 = vcombine.high %v6813, %v6820
      %v6825 = vpack.c.bf16 %v6821, %v6821
      %v6826 = vpack.c.bf16 %v6822, %v6822
      %s6827 = scalar_lea.vmem %s7, 768
      %v6828 = vld [vmem:[%s6827] sm:$0xff]
      %v6829 = vld [vmem:[%s6827 + $0x8] sm:$0xff]
      %v6830 = vld [vmem:[%s6827 + $0x10] sm:$0xff]
      %v6831 = vld [vmem:[%s6827 + $0x18] sm:$0xff]
      %v6832 = vld [vmem:[%s6827 + $0x20] sm:$0xff]
      %v6833 = vld [vmem:[%s6827 + $0x28] sm:$0xff]
      %v6834 = vld [vmem:[%s6827 + $0x30] sm:$0xff]
      %v6835 = vld [vmem:[%s6827 + $0x38] sm:$0xff]
      %v6836 = vld [vmem:[%s6827 + $0x40] sm:$0xff]
      %v6837 = vld [vmem:[%s6827 + $0x48] sm:$0xff]
      %v6838 = vld [vmem:[%s6827 + $0x50] sm:$0xff]
      %v6839 = vld [vmem:[%s6827 + $0x58] sm:$0xff]
      %v6840 = vld [vmem:[%s6827 + $0x60] sm:$0xff]
      %v6841 = vld [vmem:[%s6827 + $0x68] sm:$0xff]
      %v6842 = vld [vmem:[%s6827 + $0x70] sm:$0xff]
      %v6843 = vld [vmem:[%s6827 + $0x78] sm:$0xff]
      %v6844 = vld [vmem:[%s6827 + $0x80] sm:$0xff]
      %v6845 = vld [vmem:[%s6827 + $0x88] sm:$0xff]
      %v6846 = vld [vmem:[%s6827 + $0x90] sm:$0xff]
      %v6847 = vld [vmem:[%s6827 + $0x98] sm:$0xff]
      %v6848 = vld [vmem:[%s6827 + $0xa0] sm:$0xff]
      %v6849 = vld [vmem:[%s6827 + $0xa8] sm:$0xff]
      %v6850 = vld [vmem:[%s6827 + $0xb0] sm:$0xff]
      %v6851 = vld [vmem:[%s6827 + $0xb8] sm:$0xff]
      %v6852 = vld [vmem:[%s6827 + $0xc0] sm:$0xff]
      %v6853 = vld [vmem:[%s6827 + $0xc8] sm:$0xff]
      %v6854 = vld [vmem:[%s6827 + $0xd0] sm:$0xff]
      %v6855 = vld [vmem:[%s6827 + $0xd8] sm:$0xff]
      %v6856 = vld [vmem:[%s6827 + $0xe0] sm:$0xff]
      %v6857 = vld [vmem:[%s6827 + $0xe8] sm:$0xff]
      %v6858 = vld [vmem:[%s6827 + $0xf0] sm:$0xff]
      %v6859 = vld [vmem:[%s6827 + $0xf8] sm:$0xff]
      %v6892 = vunpack.c.l.b16 %v6828
      %v6893 = vunpack.c.h.b16 %v6828
      %v6894 = vunpack.c.l.b16 %v6829
      %v6895 = vunpack.c.h.b16 %v6829
      %v6896 = vunpack.c.l.b16 %v6830
      %v6897 = vunpack.c.h.b16 %v6830
      %v6898 = vunpack.c.l.b16 %v6831
      %v6899 = vunpack.c.h.b16 %v6831
      %v6900 = vunpack.c.l.b16 %v6832
      %v6901 = vunpack.c.h.b16 %v6832
      %v6902 = vunpack.c.l.b16 %v6833
      %v6903 = vunpack.c.h.b16 %v6833
      %v6904 = vunpack.c.l.b16 %v6834
      %v6905 = vunpack.c.h.b16 %v6834
      %v6906 = vunpack.c.l.b16 %v6835
      %v6907 = vunpack.c.h.b16 %v6835
      %v6908 = vunpack.c.l.b16 %v6836
      %v6909 = vunpack.c.h.b16 %v6836
      %v6910 = vunpack.c.l.b16 %v6837
      %v6911 = vunpack.c.h.b16 %v6837
      %v6912 = vunpack.c.l.b16 %v6838
      %v6913 = vunpack.c.h.b16 %v6838
      %v6914 = vunpack.c.l.b16 %v6839
      %v6915 = vunpack.c.h.b16 %v6839
      %v6916 = vunpack.c.l.b16 %v6840
      %v6917 = vunpack.c.h.b16 %v6840
      %v6918 = vunpack.c.l.b16 %v6841
      %v6919 = vunpack.c.h.b16 %v6841
      %v6920 = vunpack.c.l.b16 %v6842
      %v6921 = vunpack.c.h.b16 %v6842
      %v6922 = vunpack.c.l.b16 %v6843
      %v6923 = vunpack.c.h.b16 %v6843
      %v6924 = vunpack.c.l.b16 %v6844
      %v6925 = vunpack.c.h.b16 %v6844
      %v6926 = vunpack.c.l.b16 %v6845
      %v6927 = vunpack.c.h.b16 %v6845
      %v6928 = vunpack.c.l.b16 %v6846
      %v6929 = vunpack.c.h.b16 %v6846
      %v6930 = vunpack.c.l.b16 %v6847
      %v6931 = vunpack.c.h.b16 %v6847
      %v6932 = vunpack.c.l.b16 %v6848
      %v6933 = vunpack.c.h.b16 %v6848
      %v6934 = vunpack.c.l.b16 %v6849
      %v6935 = vunpack.c.h.b16 %v6849
      %v6936 = vunpack.c.l.b16 %v6850
      %v6937 = vunpack.c.h.b16 %v6850
      %v6938 = vunpack.c.l.b16 %v6851
      %v6939 = vunpack.c.h.b16 %v6851
      %v6940 = vunpack.c.l.b16 %v6852
      %v6941 = vunpack.c.h.b16 %v6852
      %v6942 = vunpack.c.l.b16 %v6853
      %v6943 = vunpack.c.h.b16 %v6853
      %v6944 = vunpack.c.l.b16 %v6854
      %v6945 = vunpack.c.h.b16 %v6854
      %v6946 = vunpack.c.l.b16 %v6855
      %v6947 = vunpack.c.h.b16 %v6855
      %v6948 = vunpack.c.l.b16 %v6856
      %v6949 = vunpack.c.h.b16 %v6856
      %v6950 = vunpack.c.l.b16 %v6857
      %v6951 = vunpack.c.h.b16 %v6857
      %v6952 = vunpack.c.l.b16 %v6858
      %v6953 = vunpack.c.h.b16 %v6858
      %v6954 = vunpack.c.l.b16 %v6859
      %v6955 = vunpack.c.h.b16 %v6859
      %v6956 = vpack.c.b16 %v6894, %v6892
      %v6957 = vpack.c.b16 %v6895, %v6893
      %v6958 = vpack.c.b16 %v6898, %v6896
      %v6959 = vpack.c.b16 %v6899, %v6897
      %v6960 = vpack.c.b16 %v6902, %v6900
      %v6961 = vpack.c.b16 %v6903, %v6901
      %v6962 = vpack.c.b16 %v6906, %v6904
      %v6963 = vpack.c.b16 %v6907, %v6905
      %v6964 = vpack.c.b16 %v6910, %v6908
      %v6965 = vpack.c.b16 %v6911, %v6909
      %v6966 = vpack.c.b16 %v6914, %v6912
      %v6967 = vpack.c.b16 %v6915, %v6913
      %v6968 = vpack.c.b16 %v6918, %v6916
      %v6969 = vpack.c.b16 %v6919, %v6917
      %v6970 = vpack.c.b16 %v6922, %v6920
      %v6971 = vpack.c.b16 %v6923, %v6921
      %v6972 = vpack.c.b16 %v6926, %v6924
      %v6973 = vpack.c.b16 %v6927, %v6925
      %v6974 = vpack.c.b16 %v6930, %v6928
      %v6975 = vpack.c.b16 %v6931, %v6929
      %v6976 = vpack.c.b16 %v6934, %v6932
      %v6977 = vpack.c.b16 %v6935, %v6933
      %v6978 = vpack.c.b16 %v6938, %v6936
      %v6979 = vpack.c.b16 %v6939, %v6937
      %v6980 = vpack.c.b16 %v6942, %v6940
      %v6981 = vpack.c.b16 %v6943, %v6941
      %v6982 = vpack.c.b16 %v6946, %v6944
      %v6983 = vpack.c.b16 %v6947, %v6945
      %v6984 = vpack.c.b16 %v6950, %v6948
      %v6985 = vpack.c.b16 %v6951, %v6949
      %v6986 = vpack.c.b16 %v6954, %v6952
      %v6987 = vpack.c.b16 %v6955, %v6953
      %7020 = vmatprep.subr.bf16.mxu0 %v6957
      %7021 = vmatpush1.bf16.msra.mxu0 %v6956
      %7022 = vmatprep.subr.bf16.mxu0 %v6959
      %7023 = vmatpush1.bf16.msra.mxu0 %v6958
      %7024 = vmatprep.subr.bf16.mxu0 %v6961
      %7025 = vmatpush1.bf16.msra.mxu0 %v6960
      %7026 = vmatprep.subr.bf16.mxu0 %v6963
      %7027 = vmatpush1.bf16.msra.mxu0 %v6962
      %7028 = vmatprep.subr.bf16.mxu0 %v6965
      %7029 = vmatpush1.bf16.msra.mxu0 %v6964
      %7030 = vmatprep.subr.bf16.mxu0 %v6967
      %7031 = vmatpush1.bf16.msra.mxu0 %v6966
      %7032 = vmatprep.subr.bf16.mxu0 %v6969
      %7033 = vmatpush1.bf16.msra.mxu0 %v6968
      %7034 = vmatprep.subr.bf16.mxu0 %v6971
      %7035 = vmatpush1.bf16.msra.mxu0 %v6970
      %7036 = vmatprep.subr.bf16.mxu0 %v6973
      %7037 = vmatpush1.bf16.msra.mxu0 %v6972
      %7038 = vmatprep.subr.bf16.mxu0 %v6975
      %7039 = vmatpush1.bf16.msra.mxu0 %v6974
      %7040 = vmatprep.subr.bf16.mxu0 %v6977
      %7041 = vmatpush1.bf16.msra.mxu0 %v6976
      %7042 = vmatprep.subr.bf16.mxu0 %v6979
      %7043 = vmatpush1.bf16.msra.mxu0 %v6978
      %7044 = vmatprep.subr.bf16.mxu0 %v6981
      %7045 = vmatpush1.bf16.msra.mxu0 %v6980
      %7046 = vmatprep.subr.bf16.mxu0 %v6983
      %7047 = vmatpush1.bf16.msra.mxu0 %v6982
      %7048 = vmatprep.subr.bf16.mxu0 %v6985
      %7049 = vmatpush1.bf16.msra.mxu0 %v6984
      %7050 = vmatprep.subr.bf16.mxu0 %v6987
      %7051 = vmatpush1.bf16.msra.mxu0 %v6986
      %7052 = vmatprep.mubr.bf16.mxu0 %v6826
      %7053 = vmatmul.mubr.bf16.gmra.mrb[0].mxu0 %v6825
      %v7054 = vpop.f32.mrb[0].mxu0
      %v7055 = vadd.f32 0.0, %v7054
      %v7056 = vpop.f32.mrb[0].mxu0
      %v7057 = vadd.f32 0.0, %v7056
      %v7058 = vpop.f32.mrb[0].mxu0
      %v7059 = vpop.f32.mrb[0].mxu0
      %7060 = vdwg.mxu0
      %v7061 = vadd.f32 %v6753, %v7055
      %v7062 = vadd.f32 %v6754, %v7057
      %v7063 = vcombine.low %v5916, %v6779
      %v7064 = vcombine.low %v5950, %v6796
      %v7066 = vunpack.c.l.s4 1983009808
      %v7067 = vunpack.c.0.s8 %v7066
      %v7068 = vlaneseq
      %v7069 = vshrl.u32 %v7068, 7
      %v7070 = vsub.s32 %v7067, %v7069
      %v7071 = vrot.slane %v7063, %v7070
      %v7073 = vunpack.c.l.s4 1983009808
      %v7074 = vunpack.c.0.s8 %v7073
      %v7075 = vlaneseq
      %v7076 = vshrl.u32 %v7075, 7
      %v7077 = vsub.s32 %v7074, %v7076
      %v7078 = vrot.slane %v7064, %v7077
      %v7079 = vcombine.low %v7071, %v7078
      %v7080 = vcombine.high %v7071, %v7078
      %v7083 = vpack.c.bf16 %v7079, %v7079
      %v7084 = vpack.c.bf16 %v7080, %v7080
      %s7085 = scalar_lea.vmem %s7, 1024
      %v7086 = vld [vmem:[%s7085] sm:$0xff]
      %v7087 = vld [vmem:[%s7085 + $0x8] sm:$0xff]
      %v7088 = vld [vmem:[%s7085 + $0x10] sm:$0xff]
      %v7089 = vld [vmem:[%s7085 + $0x18] sm:$0xff]
      %v7090 = vld [vmem:[%s7085 + $0x20] sm:$0xff]
      %v7091 = vld [vmem:[%s7085 + $0x28] sm:$0xff]
      %v7092 = vld [vmem:[%s7085 + $0x30] sm:$0xff]
      %v7093 = vld [vmem:[%s7085 + $0x38] sm:$0xff]
      %v7094 = vld [vmem:[%s7085 + $0x40] sm:$0xff]
      %v7095 = vld [vmem:[%s7085 + $0x48] sm:$0xff]
      %v7096 = vld [vmem:[%s7085 + $0x50] sm:$0xff]
      %v7097 = vld [vmem:[%s7085 + $0x58] sm:$0xff]
      %v7098 = vld [vmem:[%s7085 + $0x60] sm:$0xff]
      %v7099 = vld [vmem:[%s7085 + $0x68] sm:$0xff]
      %v7100 = vld [vmem:[%s7085 + $0x70] sm:$0xff]
      %v7101 = vld [vmem:[%s7085 + $0x78] sm:$0xff]
      %v7102 = vld [vmem:[%s7085 + $0x80] sm:$0xff]
      %v7103 = vld [vmem:[%s7085 + $0x88] sm:$0xff]
      %v7104 = vld [vmem:[%s7085 + $0x90] sm:$0xff]
      %v7105 = vld [vmem:[%s7085 + $0x98] sm:$0xff]
      %v7106 = vld [vmem:[%s7085 + $0xa0] sm:$0xff]
      %v7107 = vld [vmem:[%s7085 + $0xa8] sm:$0xff]
      %v7108 = vld [vmem:[%s7085 + $0xb0] sm:$0xff]
      %v7109 = vld [vmem:[%s7085 + $0xb8] sm:$0xff]
      %v7110 = vld [vmem:[%s7085 + $0xc0] sm:$0xff]
      %v7111 = vld [vmem:[%s7085 + $0xc8] sm:$0xff]
      %v7112 = vld [vmem:[%s7085 + $0xd0] sm:$0xff]
      %v7113 = vld [vmem:[%s7085 + $0xd8] sm:$0xff]
      %v7114 = vld [vmem:[%s7085 + $0xe0] sm:$0xff]
      %v7115 = vld [vmem:[%s7085 + $0xe8] sm:$0xff]
      %v7116 = vld [vmem:[%s7085 + $0xf0] sm:$0xff]
      %v7117 = vld [vmem:[%s7085 + $0xf8] sm:$0xff]
      %v7150 = vunpack.c.l.b16 %v7086
      %v7151 = vunpack.c.h.b16 %v7086
      %v7152 = vunpack.c.l.b16 %v7087
      %v7153 = vunpack.c.h.b16 %v7087
      %v7154 = vunpack.c.l.b16 %v7088
      %v7155 = vunpack.c.h.b16 %v7088
      %v7156 = vunpack.c.l.b16 %v7089
      %v7157 = vunpack.c.h.b16 %v7089
      %v7158 = vunpack.c.l.b16 %v7090
      %v7159 = vunpack.c.h.b16 %v7090
      %v7160 = vunpack.c.l.b16 %v7091
      %v7161 = vunpack.c.h.b16 %v7091
      %v7162 = vunpack.c.l.b16 %v7092
      %v7163 = vunpack.c.h.b16 %v7092
      %v7164 = vunpack.c.l.b16 %v7093
      %v7165 = vunpack.c.h.b16 %v7093
      %v7166 = vunpack.c.l.b16 %v7094
      %v7167 = vunpack.c.h.b16 %v7094
      %v7168 = vunpack.c.l.b16 %v7095
      %v7169 = vunpack.c.h.b16 %v7095
      %v7170 = vunpack.c.l.b16 %v7096
      %v7171 = vunpack.c.h.b16 %v7096
      %v7172 = vunpack.c.l.b16 %v7097
      %v7173 = vunpack.c.h.b16 %v7097
      %v7174 = vunpack.c.l.b16 %v7098
      %v7175 = vunpack.c.h.b16 %v7098
      %v7176 = vunpack.c.l.b16 %v7099
      %v7177 = vunpack.c.h.b16 %v7099
      %v7178 = vunpack.c.l.b16 %v7100
      %v7179 = vunpack.c.h.b16 %v7100
      %v7180 = vunpack.c.l.b16 %v7101
      %v7181 = vunpack.c.h.b16 %v7101
      %v7182 = vunpack.c.l.b16 %v7102
      %v7183 = vunpack.c.h.b16 %v7102
      %v7184 = vunpack.c.l.b16 %v7103
      %v7185 = vunpack.c.h.b16 %v7103
      %v7186 = vunpack.c.l.b16 %v7104
      %v7187 = vunpack.c.h.b16 %v7104
      %v7188 = vunpack.c.l.b16 %v7105
      %v7189 = vunpack.c.h.b16 %v7105
      %v7190 = vunpack.c.l.b16 %v7106
      %v7191 = vunpack.c.h.b16 %v7106
      %v7192 = vunpack.c.l.b16 %v7107
      %v7193 = vunpack.c.h.b16 %v7107
      %v7194 = vunpack.c.l.b16 %v7108
      %v7195 = vunpack.c.h.b16 %v7108
      %v7196 = vunpack.c.l.b16 %v7109
      %v7197 = vunpack.c.h.b16 %v7109
      %v7198 = vunpack.c.l.b16 %v7110
      %v7199 = vunpack.c.h.b16 %v7110
      %v7200 = vunpack.c.l.b16 %v7111
      %v7201 = vunpack.c.h.b16 %v7111
      %v7202 = vunpack.c.l.b16 %v7112
      %v7203 = vunpack.c.h.b16 %v7112
      %v7204 = vunpack.c.l.b16 %v7113
      %v7205 = vunpack.c.h.b16 %v7113
      %v7206 = vunpack.c.l.b16 %v7114
      %v7207 = vunpack.c.h.b16 %v7114
      %v7208 = vunpack.c.l.b16 %v7115
      %v7209 = vunpack.c.h.b16 %v7115
      %v7210 = vunpack.c.l.b16 %v7116
      %v7211 = vunpack.c.h.b16 %v7116
      %v7212 = vunpack.c.l.b16 %v7117
      %v7213 = vunpack.c.h.b16 %v7117
      %v7214 = vpack.c.b16 %v7152, %v7150
      %v7215 = vpack.c.b16 %v7153, %v7151
      %v7216 = vpack.c.b16 %v7156, %v7154
      %v7217 = vpack.c.b16 %v7157, %v7155
      %v7218 = vpack.c.b16 %v7160, %v7158
      %v7219 = vpack.c.b16 %v7161, %v7159
      %v7220 = vpack.c.b16 %v7164, %v7162
      %v7221 = vpack.c.b16 %v7165, %v7163
      %v7222 = vpack.c.b16 %v7168, %v7166
      %v7223 = vpack.c.b16 %v7169, %v7167
      %v7224 = vpack.c.b16 %v7172, %v7170
      %v7225 = vpack.c.b16 %v7173, %v7171
      %v7226 = vpack.c.b16 %v7176, %v7174
      %v7227 = vpack.c.b16 %v7177, %v7175
      %v7228 = vpack.c.b16 %v7180, %v7178
      %v7229 = vpack.c.b16 %v7181, %v7179
      %v7230 = vpack.c.b16 %v7184, %v7182
      %v7231 = vpack.c.b16 %v7185, %v7183
      %v7232 = vpack.c.b16 %v7188, %v7186
      %v7233 = vpack.c.b16 %v7189, %v7187
      %v7234 = vpack.c.b16 %v7192, %v7190
      %v7235 = vpack.c.b16 %v7193, %v7191
      %v7236 = vpack.c.b16 %v7196, %v7194
      %v7237 = vpack.c.b16 %v7197, %v7195
      %v7238 = vpack.c.b16 %v7200, %v7198
      %v7239 = vpack.c.b16 %v7201, %v7199
      %v7240 = vpack.c.b16 %v7204, %v7202
      %v7241 = vpack.c.b16 %v7205, %v7203
      %v7242 = vpack.c.b16 %v7208, %v7206
      %v7243 = vpack.c.b16 %v7209, %v7207
      %v7244 = vpack.c.b16 %v7212, %v7210
      %v7245 = vpack.c.b16 %v7213, %v7211
      %7278 = vmatprep.subr.bf16.mxu0 %v7215
      %7279 = vmatpush1.bf16.msra.mxu0 %v7214
      %7280 = vmatprep.subr.bf16.mxu0 %v7217
      %7281 = vmatpush1.bf16.msra.mxu0 %v7216
      %7282 = vmatprep.subr.bf16.mxu0 %v7219
      %7283 = vmatpush1.bf16.msra.mxu0 %v7218
      %7284 = vmatprep.subr.bf16.mxu0 %v7221
      %7285 = vmatpush1.bf16.msra.mxu0 %v7220
      %7286 = vmatprep.subr.bf16.mxu0 %v7223
      %7287 = vmatpush1.bf16.msra.mxu0 %v7222
      %7288 = vmatprep.subr.bf16.mxu0 %v7225
      %7289 = vmatpush1.bf16.msra.mxu0 %v7224
      %7290 = vmatprep.subr.bf16.mxu0 %v7227
      %7291 = vmatpush1.bf16.msra.mxu0 %v7226
      %7292 = vmatprep.subr.bf16.mxu0 %v7229
      %7293 = vmatpush1.bf16.msra.mxu0 %v7228
      %7294 = vmatprep.subr.bf16.mxu0 %v7231
      %7295 = vmatpush1.bf16.msra.mxu0 %v7230
      %7296 = vmatprep.subr.bf16.mxu0 %v7233
      %7297 = vmatpush1.bf16.msra.mxu0 %v7232
      %7298 = vmatprep.subr.bf16.mxu0 %v7235
      %7299 = vmatpush1.bf16.msra.mxu0 %v7234
      %7300 = vmatprep.subr.bf16.mxu0 %v7237
      %7301 = vmatpush1.bf16.msra.mxu0 %v7236
      %7302 = vmatprep.subr.bf16.mxu0 %v7239
      %7303 = vmatpush1.bf16.msra.mxu0 %v7238
      %7304 = vmatprep.subr.bf16.mxu0 %v7241
      %7305 = vmatpush1.bf16.msra.mxu0 %v7240
      %7306 = vmatprep.subr.bf16.mxu0 %v7243
      %7307 = vmatpush1.bf16.msra.mxu0 %v7242
      %7308 = vmatprep.subr.bf16.mxu0 %v7245
      %7309 = vmatpush1.bf16.msra.mxu0 %v7244
      %7310 = vmatprep.mubr.bf16.mxu0 %v7084
      %7311 = vmatmul.mubr.bf16.gmra.mrb[0].mxu0 %v7083
      %v7312 = vpop.f32.mrb[0].mxu0
      %v7313 = vadd.f32 0.0, %v7312
      %v7314 = vpop.f32.mrb[0].mxu0
      %v7315 = vadd.f32 0.0, %v7314
      %v7316 = vpop.f32.mrb[0].mxu0
      %v7317 = vpop.f32.mrb[0].mxu0
      %7318 = vdwg.mxu0
      %v7319 = vadd.f32 %v7061, %v7313
      %v7320 = vadd.f32 %v7062, %v7315
      %v7321 = vcombine.high %v6779, %v6779
      %v7322 = vcombine.high %v6796, %v6796
      %v7323 = vrot.slane %v6799, 2
      %v7324 = vrot.slane %v7321, 7
      %v7325 = vsel %vm5953, %v7323, %v7324
      %v7326 = vrot.slane %v6803, 2
      %v7327 = vrot.slane %v7322, 7
      %v7328 = vsel %vm5953, %v7326, %v7327
      %v7329 = vcombine.low %v6490, %v7325
      %v7330 = vcombine.low %v6496, %v7328
      %v7332 = vunpack.c.l.s4 1983009808
      %v7333 = vunpack.c.0.s8 %v7332
      %v7334 = vlaneseq
      %v7335 = vshrl.u32 %v7334, 7
      %v7336 = vsub.s32 %v7333, %v7335
      %v7337 = vrot.slane %v7329, %v7336
      %v7339 = vunpack.c.l.s4 1983009808
      %v7340 = vunpack.c.0.s8 %v7339
      %v7341 = vlaneseq
      %v7342 = vshrl.u32 %v7341, 7
      %v7343 = vsub.s32 %v7340, %v7342
      %v7344 = vrot.slane %v7330, %v7343
      %v7345 = vcombine.low %v7337, %v7344
      %v7346 = vcombine.high %v7337, %v7344
      %v7349 = vpack.c.bf16 %v7345, %v7345
      %v7350 = vpack.c.bf16 %v7346, %v7346
      %s7351 = scalar_lea.vmem %s7, 1280
      %v7352 = vld [vmem:[%s7351] sm:$0xff]
      %v7353 = vld [vmem:[%s7351 + $0x8] sm:$0xff]
      %v7354 = vld [vmem:[%s7351 + $0x10] sm:$0xff]
      %v7355 = vld [vmem:[%s7351 + $0x18] sm:$0xff]
      %v7356 = vld [vmem:[%s7351 + $0x20] sm:$0xff]
      %v7357 = vld [vmem:[%s7351 + $0x28] sm:$0xff]
      %v7358 = vld [vmem:[%s7351 + $0x30] sm:$0xff]
      %v7359 = vld [vmem:[%s7351 + $0x38] sm:$0xff]
      %v7360 = vld [vmem:[%s7351 + $0x40] sm:$0xff]
      %v7361 = vld [vmem:[%s7351 + $0x48] sm:$0xff]
      %v7362 = vld [vmem:[%s7351 + $0x50] sm:$0xff]
      %v7363 = vld [vmem:[%s7351 + $0x58] sm:$0xff]
      %v7364 = vld [vmem:[%s7351 + $0x60] sm:$0xff]
      %v7365 = vld [vmem:[%s7351 + $0x68] sm:$0xff]
      %v7366 = vld [vmem:[%s7351 + $0x70] sm:$0xff]
      %v7367 = vld [vmem:[%s7351 + $0x78] sm:$0xff]
      %v7368 = vld [vmem:[%s7351 + $0x80] sm:$0xff]
      %v7369 = vld [vmem:[%s7351 + $0x88] sm:$0xff]
      %v7370 = vld [vmem:[%s7351 + $0x90] sm:$0xff]
      %v7371 = vld [vmem:[%s7351 + $0x98] sm:$0xff]
      %v7372 = vld [vmem:[%s7351 + $0xa0] sm:$0xff]
      %v7373 = vld [vmem:[%s7351 + $0xa8] sm:$0xff]
      %v7374 = vld [vmem:[%s7351 + $0xb0] sm:$0xff]
      %v7375 = vld [vmem:[%s7351 + $0xb8] sm:$0xff]
      %v7376 = vld [vmem:[%s7351 + $0xc0] sm:$0xff]
      %v7377 = vld [vmem:[%s7351 + $0xc8] sm:$0xff]
      %v7378 = vld [vmem:[%s7351 + $0xd0] sm:$0xff]
      %v7379 = vld [vmem:[%s7351 + $0xd8] sm:$0xff]
      %v7380 = vld [vmem:[%s7351 + $0xe0] sm:$0xff]
      %v7381 = vld [vmem:[%s7351 + $0xe8] sm:$0xff]
      %v7382 = vld [vmem:[%s7351 + $0xf0] sm:$0xff]
      %v7383 = vld [vmem:[%s7351 + $0xf8] sm:$0xff]
      %v7416 = vunpack.c.l.b16 %v7352
      %v7417 = vunpack.c.h.b16 %v7352
      %v7418 = vunpack.c.l.b16 %v7353
      %v7419 = vunpack.c.h.b16 %v7353
      %v7420 = vunpack.c.l.b16 %v7354
      %v7421 = vunpack.c.h.b16 %v7354
      %v7422 = vunpack.c.l.b16 %v7355
      %v7423 = vunpack.c.h.b16 %v7355
      %v7424 = vunpack.c.l.b16 %v7356
      %v7425 = vunpack.c.h.b16 %v7356
      %v7426 = vunpack.c.l.b16 %v7357
      %v7427 = vunpack.c.h.b16 %v7357
      %v7428 = vunpack.c.l.b16 %v7358
      %v7429 = vunpack.c.h.b16 %v7358
      %v7430 = vunpack.c.l.b16 %v7359
      %v7431 = vunpack.c.h.b16 %v7359
      %v7432 = vunpack.c.l.b16 %v7360
      %v7433 = vunpack.c.h.b16 %v7360
      %v7434 = vunpack.c.l.b16 %v7361
      %v7435 = vunpack.c.h.b16 %v7361
      %v7436 = vunpack.c.l.b16 %v7362
      %v7437 = vunpack.c.h.b16 %v7362
      %v7438 = vunpack.c.l.b16 %v7363
      %v7439 = vunpack.c.h.b16 %v7363
      %v7440 = vunpack.c.l.b16 %v7364
      %v7441 = vunpack.c.h.b16 %v7364
      %v7442 = vunpack.c.l.b16 %v7365
      %v7443 = vunpack.c.h.b16 %v7365
      %v7444 = vunpack.c.l.b16 %v7366
      %v7445 = vunpack.c.h.b16 %v7366
      %v7446 = vunpack.c.l.b16 %v7367
      %v7447 = vunpack.c.h.b16 %v7367
      %v7448 = vunpack.c.l.b16 %v7368
      %v7449 = vunpack.c.h.b16 %v7368
      %v7450 = vunpack.c.l.b16 %v7369
      %v7451 = vunpack.c.h.b16 %v7369
      %v7452 = vunpack.c.l.b16 %v7370
      %v7453 = vunpack.c.h.b16 %v7370
      %v7454 = vunpack.c.l.b16 %v7371
      %v7455 = vunpack.c.h.b16 %v7371
      %v7456 = vunpack.c.l.b16 %v7372
      %v7457 = vunpack.c.h.b16 %v7372
      %v7458 = vunpack.c.l.b16 %v7373
      %v7459 = vunpack.c.h.b16 %v7373
      %v7460 = vunpack.c.l.b16 %v7374
      %v7461 = vunpack.c.h.b16 %v7374
      %v7462 = vunpack.c.l.b16 %v7375
      %v7463 = vunpack.c.h.b16 %v7375
      %v7464 = vunpack.c.l.b16 %v7376
      %v7465 = vunpack.c.h.b16 %v7376
      %v7466 = vunpack.c.l.b16 %v7377
      %v7467 = vunpack.c.h.b16 %v7377
      %v7468 = vunpack.c.l.b16 %v7378
      %v7469 = vunpack.c.h.b16 %v7378
      %v7470 = vunpack.c.l.b16 %v7379
      %v7471 = vunpack.c.h.b16 %v7379
      %v7472 = vunpack.c.l.b16 %v7380
      %v7473 = vunpack.c.h.b16 %v7380
      %v7474 = vunpack.c.l.b16 %v7381
      %v7475 = vunpack.c.h.b16 %v7381
      %v7476 = vunpack.c.l.b16 %v7382
      %v7477 = vunpack.c.h.b16 %v7382
      %v7478 = vunpack.c.l.b16 %v7383
      %v7479 = vunpack.c.h.b16 %v7383
      %v7480 = vpack.c.b16 %v7418, %v7416
      %v7481 = vpack.c.b16 %v7419, %v7417
      %v7482 = vpack.c.b16 %v7422, %v7420
      %v7483 = vpack.c.b16 %v7423, %v7421
      %v7484 = vpack.c.b16 %v7426, %v7424
      %v7485 = vpack.c.b16 %v7427, %v7425
      %v7486 = vpack.c.b16 %v7430, %v7428
      %v7487 = vpack.c.b16 %v7431, %v7429
      %v7488 = vpack.c.b16 %v7434, %v7432
      %v7489 = vpack.c.b16 %v7435, %v7433
      %v7490 = vpack.c.b16 %v7438, %v7436
      %v7491 = vpack.c.b16 %v7439, %v7437
      %v7492 = vpack.c.b16 %v7442, %v7440
      %v7493 = vpack.c.b16 %v7443, %v7441
      %v7494 = vpack.c.b16 %v7446, %v7444
      %v7495 = vpack.c.b16 %v7447, %v7445
      %v7496 = vpack.c.b16 %v7450, %v7448
      %v7497 = vpack.c.b16 %v7451, %v7449
      %v7498 = vpack.c.b16 %v7454, %v7452
      %v7499 = vpack.c.b16 %v7455, %v7453
      %v7500 = vpack.c.b16 %v7458, %v7456
      %v7501 = vpack.c.b16 %v7459, %v7457
      %v7502 = vpack.c.b16 %v7462, %v7460
      %v7503 = vpack.c.b16 %v7463, %v7461
      %v7504 = vpack.c.b16 %v7466, %v7464
      %v7505 = vpack.c.b16 %v7467, %v7465
      %v7506 = vpack.c.b16 %v7470, %v7468
      %v7507 = vpack.c.b16 %v7471, %v7469
      %v7508 = vpack.c.b16 %v7474, %v7472
      %v7509 = vpack.c.b16 %v7475, %v7473
      %v7510 = vpack.c.b16 %v7478, %v7476
      %v7511 = vpack.c.b16 %v7479, %v7477
      %7544 = vmatprep.subr.bf16.mxu0 %v7481
      %7545 = vmatpush1.bf16.msra.mxu0 %v7480
      %7546 = vmatprep.subr.bf16.mxu0 %v7483
      %7547 = vmatpush1.bf16.msra.mxu0 %v7482
      %7548 = vmatprep.subr.bf16.mxu0 %v7485
      %7549 = vmatpush1.bf16.msra.mxu0 %v7484
      %7550 = vmatprep.subr.bf16.mxu0 %v7487
      %7551 = vmatpush1.bf16.msra.mxu0 %v7486
      %7552 = vmatprep.subr.bf16.mxu0 %v7489
      %7553 = vmatpush1.bf16.msra.mxu0 %v7488
      %7554 = vmatprep.subr.bf16.mxu0 %v7491
      %7555 = vmatpush1.bf16.msra.mxu0 %v7490
      %7556 = vmatprep.subr.bf16.mxu0 %v7493
      %7557 = vmatpush1.bf16.msra.mxu0 %v7492
      %7558 = vmatprep.subr.bf16.mxu0 %v7495
      %7559 = vmatpush1.bf16.msra.mxu0 %v7494
      %7560 = vmatprep.subr.bf16.mxu0 %v7497
      %7561 = vmatpush1.bf16.msra.mxu0 %v7496
      %7562 = vmatprep.subr.bf16.mxu0 %v7499
      %7563 = vmatpush1.bf16.msra.mxu0 %v7498
      %7564 = vmatprep.subr.bf16.mxu0 %v7501
      %7565 = vmatpush1.bf16.msra.mxu0 %v7500
      %7566 = vmatprep.subr.bf16.mxu0 %v7503
      %7567 = vmatpush1.bf16.msra.mxu0 %v7502
      %7568 = vmatprep.subr.bf16.mxu0 %v7505
      %7569 = vmatpush1.bf16.msra.mxu0 %v7504
      %7570 = vmatprep.subr.bf16.mxu0 %v7507
      %7571 = vmatpush1.bf16.msra.mxu0 %v7506
      %7572 = vmatprep.subr.bf16.mxu0 %v7509
      %7573 = vmatpush1.bf16.msra.mxu0 %v7508
      %7574 = vmatprep.subr.bf16.mxu0 %v7511
      %7575 = vmatpush1.bf16.msra.mxu0 %v7510
      %7576 = vmatprep.mubr.bf16.mxu0 %v7350
      %7577 = vmatmul.mubr.bf16.gmra.mrb[0].mxu0 %v7349
      %v7578 = vpop.f32.mrb[0].mxu0
      %v7579 = vadd.f32 0.0, %v7578
      %v7580 = vpop.f32.mrb[0].mxu0
      %v7581 = vadd.f32 0.0, %v7580
      %v7582 = vpop.f32.mrb[0].mxu0
      %v7583 = vpop.f32.mrb[0].mxu0
      %7584 = vdwg.mxu0
      %v7585 = vadd.f32 %v7319, %v7579
      %v7586 = vadd.f32 %v7320, %v7581
      %v7595 = vcombine.high %v5847, %v5848
      %v7597 = vunpack.c.l.s4 1983009808
      %v7598 = vunpack.c.0.s8 %v7597
      %v7599 = vlaneseq
      %v7600 = vshrl.u32 %v7599, 7
      %v7601 = vsub.s32 %v7598, %v7600
      %v7602 = vrot.slane %v7595, %v7601
      %v7603 = vcombine.high %v7602, %v7602
      %v7604 = vcombine.low %v5849, %v5850
      %v7606 = vunpack.c.l.s4 1983009808
      %v7607 = vunpack.c.0.s8 %v7606
      %v7608 = vlaneseq
      %v7609 = vshrl.u32 %v7608, 7
      %v7610 = vsub.s32 %v7607, %v7609
      %v7611 = vrot.slane %v7604, %v7610
      %v7612 = vcombine.high %v5863, %v5864
      %v7614 = vunpack.c.l.s4 1983009808
      %v7615 = vunpack.c.0.s8 %v7614
      %v7616 = vlaneseq
      %v7617 = vshrl.u32 %v7616, 7
      %v7618 = vsub.s32 %v7615, %v7617
      %v7619 = vrot.slane %v7612, %v7618
      %v7620 = vcombine.high %v7619, %v7619
      %v7621 = vcombine.low %v5865, %v5866
      %v7623 = vunpack.c.l.s4 1983009808
      %v7624 = vunpack.c.0.s8 %v7623
      %v7625 = vlaneseq
      %v7626 = vshrl.u32 %v7625, 7
      %v7627 = vsub.s32 %v7624, %v7626
      %v7628 = vrot.slane %v7621, %v7627
      %v7629 = vrot.slane %v7603, 7
      %v7630 = vrot.slane %v7629, 2
      %v7631 = vrot.slane %v7611, 7
      %v7632 = vsel %vm5953, %v7630, %v7631
      %v7633 = vrot.slane %v7620, 7
      %v7634 = vrot.slane %v7633, 2
      %v7635 = vrot.slane %v7628, 7
      %v7636 = vsel %vm5953, %v7634, %v7635
      %v7637 = vcombine.low %v6800, %v7632
      %v7638 = vcombine.low %v6804, %v7636
      %v7640 = vunpack.c.l.s4 1983009808
      %v7641 = vunpack.c.0.s8 %v7640
      %v7642 = vlaneseq
      %v7643 = vshrl.u32 %v7642, 7
      %v7644 = vsub.s32 %v7641, %v7643
      %v7645 = vrot.slane %v7637, %v7644
      %v7647 = vunpack.c.l.s4 1983009808
      %v7648 = vunpack.c.0.s8 %v7647
      %v7649 = vlaneseq
      %v7650 = vshrl.u32 %v7649, 7
      %v7651 = vsub.s32 %v7648, %v7650
      %v7652 = vrot.slane %v7638, %v7651
      %v7653 = vcombine.low %v7645, %v7652
      %v7654 = vcombine.high %v7645, %v7652
      %v7657 = vpack.c.bf16 %v7653, %v7653
      %v7658 = vpack.c.bf16 %v7654, %v7654
      %s7659 = scalar_lea.vmem %s7, 1536
      %v7660 = vld [vmem:[%s7659] sm:$0xff]
      %v7661 = vld [vmem:[%s7659 + $0x8] sm:$0xff]
      %v7662 = vld [vmem:[%s7659 + $0x10] sm:$0xff]
      %v7663 = vld [vmem:[%s7659 + $0x18] sm:$0xff]
      %v7664 = vld [vmem:[%s7659 + $0x20] sm:$0xff]
      %v7665 = vld [vmem:[%s7659 + $0x28] sm:$0xff]
      %v7666 = vld [vmem:[%s7659 + $0x30] sm:$0xff]
      %v7667 = vld [vmem:[%s7659 + $0x38] sm:$0xff]
      %v7668 = vld [vmem:[%s7659 + $0x40] sm:$0xff]
      %v7669 = vld [vmem:[%s7659 + $0x48] sm:$0xff]
      %v7670 = vld [vmem:[%s7659 + $0x50] sm:$0xff]
      %v7671 = vld [vmem:[%s7659 + $0x58] sm:$0xff]
      %v7672 = vld [vmem:[%s7659 + $0x60] sm:$0xff]
      %v7673 = vld [vmem:[%s7659 + $0x68] sm:$0xff]
      %v7674 = vld [vmem:[%s7659 + $0x70] sm:$0xff]
      %v7675 = vld [vmem:[%s7659 + $0x78] sm:$0xff]
      %v7676 = vld [vmem:[%s7659 + $0x80] sm:$0xff]
      %v7677 = vld [vmem:[%s7659 + $0x88] sm:$0xff]
      %v7678 = vld [vmem:[%s7659 + $0x90] sm:$0xff]
      %v7679 = vld [vmem:[%s7659 + $0x98] sm:$0xff]
      %v7680 = vld [vmem:[%s7659 + $0xa0] sm:$0xff]
      %v7681 = vld [vmem:[%s7659 + $0xa8] sm:$0xff]
      %v7682 = vld [vmem:[%s7659 + $0xb0] sm:$0xff]
      %v7683 = vld [vmem:[%s7659 + $0xb8] sm:$0xff]
      %v7684 = vld [vmem:[%s7659 + $0xc0] sm:$0xff]
      %v7685 = vld [vmem:[%s7659 + $0xc8] sm:$0xff]
      %v7686 = vld [vmem:[%s7659 + $0xd0] sm:$0xff]
      %v7687 = vld [vmem:[%s7659 + $0xd8] sm:$0xff]
      %v7688 = vld [vmem:[%s7659 + $0xe0] sm:$0xff]
      %v7689 = vld [vmem:[%s7659 + $0xe8] sm:$0xff]
      %v7690 = vld [vmem:[%s7659 + $0xf0] sm:$0xff]
      %v7691 = vld [vmem:[%s7659 + $0xf8] sm:$0xff]
      %v7724 = vunpack.c.l.b16 %v7660
      %v7725 = vunpack.c.h.b16 %v7660
      %v7726 = vunpack.c.l.b16 %v7661
      %v7727 = vunpack.c.h.b16 %v7661
      %v7728 = vunpack.c.l.b16 %v7662
      %v7729 = vunpack.c.h.b16 %v7662
      %v7730 = vunpack.c.l.b16 %v7663
      %v7731 = vunpack.c.h.b16 %v7663
      %v7732 = vunpack.c.l.b16 %v7664
      %v7733 = vunpack.c.h.b16 %v7664
      %v7734 = vunpack.c.l.b16 %v7665
      %v7735 = vunpack.c.h.b16 %v7665
      %v7736 = vunpack.c.l.b16 %v7666
      %v7737 = vunpack.c.h.b16 %v7666
      %v7738 = vunpack.c.l.b16 %v7667
      %v7739 = vunpack.c.h.b16 %v7667
      %v7740 = vunpack.c.l.b16 %v7668
      %v7741 = vunpack.c.h.b16 %v7668
      %v7742 = vunpack.c.l.b16 %v7669
      %v7743 = vunpack.c.h.b16 %v7669
      %v7744 = vunpack.c.l.b16 %v7670
      %v7745 = vunpack.c.h.b16 %v7670
      %v7746 = vunpack.c.l.b16 %v7671
      %v7747 = vunpack.c.h.b16 %v7671
      %v7748 = vunpack.c.l.b16 %v7672
      %v7749 = vunpack.c.h.b16 %v7672
      %v7750 = vunpack.c.l.b16 %v7673
      %v7751 = vunpack.c.h.b16 %v7673
      %v7752 = vunpack.c.l.b16 %v7674
      %v7753 = vunpack.c.h.b16 %v7674
      %v7754 = vunpack.c.l.b16 %v7675
      %v7755 = vunpack.c.h.b16 %v7675
      %v7756 = vunpack.c.l.b16 %v7676
      %v7757 = vunpack.c.h.b16 %v7676
      %v7758 = vunpack.c.l.b16 %v7677
      %v7759 = vunpack.c.h.b16 %v7677
      %v7760 = vunpack.c.l.b16 %v7678
      %v7761 = vunpack.c.h.b16 %v7678
      %v7762 = vunpack.c.l.b16 %v7679
      %v7763 = vunpack.c.h.b16 %v7679
      %v7764 = vunpack.c.l.b16 %v7680
      %v7765 = vunpack.c.h.b16 %v7680
      %v7766 = vunpack.c.l.b16 %v7681
      %v7767 = vunpack.c.h.b16 %v7681
      %v7768 = vunpack.c.l.b16 %v7682
      %v7769 = vunpack.c.h.b16 %v7682
      %v7770 = vunpack.c.l.b16 %v7683
      %v7771 = vunpack.c.h.b16 %v7683
      %v7772 = vunpack.c.l.b16 %v7684
      %v7773 = vunpack.c.h.b16 %v7684
      %v7774 = vunpack.c.l.b16 %v7685
      %v7775 = vunpack.c.h.b16 %v7685
      %v7776 = vunpack.c.l.b16 %v7686
      %v7777 = vunpack.c.h.b16 %v7686
      %v7778 = vunpack.c.l.b16 %v7687
      %v7779 = vunpack.c.h.b16 %v7687
      %v7780 = vunpack.c.l.b16 %v7688
      %v7781 = vunpack.c.h.b16 %v7688
      %v7782 = vunpack.c.l.b16 %v7689
      %v7783 = vunpack.c.h.b16 %v7689
      %v7784 = vunpack.c.l.b16 %v7690
      %v7785 = vunpack.c.h.b16 %v7690
      %v7786 = vunpack.c.l.b16 %v7691
      %v7787 = vunpack.c.h.b16 %v7691
      %v7788 = vpack.c.b16 %v7726, %v7724
      %v7789 = vpack.c.b16 %v7727, %v7725
      %v7790 = vpack.c.b16 %v7730, %v7728
      %v7791 = vpack.c.b16 %v7731, %v7729
      %v7792 = vpack.c.b16 %v7734, %v7732
      %v7793 = vpack.c.b16 %v7735, %v7733
      %v7794 = vpack.c.b16 %v7738, %v7736
      %v7795 = vpack.c.b16 %v7739, %v7737
      %v7796 = vpack.c.b16 %v7742, %v7740
      %v7797 = vpack.c.b16 %v7743, %v7741
      %v7798 = vpack.c.b16 %v7746, %v7744
      %v7799 = vpack.c.b16 %v7747, %v7745
      %v7800 = vpack.c.b16 %v7750, %v7748
      %v7801 = vpack.c.b16 %v7751, %v7749
      %v7802 = vpack.c.b16 %v7754, %v7752
      %v7803 = vpack.c.b16 %v7755, %v7753
      %v7804 = vpack.c.b16 %v7758, %v7756
      %v7805 = vpack.c.b16 %v7759, %v7757
      %v7806 = vpack.c.b16 %v7762, %v7760
      %v7807 = vpack.c.b16 %v7763, %v7761
      %v7808 = vpack.c.b16 %v7766, %v7764
      %v7809 = vpack.c.b16 %v7767, %v7765
      %v7810 = vpack.c.b16 %v7770, %v7768
      %v7811 = vpack.c.b16 %v7771, %v7769
      %v7812 = vpack.c.b16 %v7774, %v7772
      %v7813 = vpack.c.b16 %v7775, %v7773
      %v7814 = vpack.c.b16 %v7778, %v7776
      %v7815 = vpack.c.b16 %v7779, %v7777
      %v7816 = vpack.c.b16 %v7782, %v7780
      %v7817 = vpack.c.b16 %v7783, %v7781
      %v7818 = vpack.c.b16 %v7786, %v7784
      %v7819 = vpack.c.b16 %v7787, %v7785
      %7852 = vmatprep.subr.bf16.mxu0 %v7789
      %7853 = vmatpush1.bf16.msra.mxu0 %v7788
      %7854 = vmatprep.subr.bf16.mxu0 %v7791
      %7855 = vmatpush1.bf16.msra.mxu0 %v7790
      %7856 = vmatprep.subr.bf16.mxu0 %v7793
      %7857 = vmatpush1.bf16.msra.mxu0 %v7792
      %7858 = vmatprep.subr.bf16.mxu0 %v7795
      %7859 = vmatpush1.bf16.msra.mxu0 %v7794
      %7860 = vmatprep.subr.bf16.mxu0 %v7797
      %7861 = vmatpush1.bf16.msra.mxu0 %v7796
      %7862 = vmatprep.subr.bf16.mxu0 %v7799
      %7863 = vmatpush1.bf16.msra.mxu0 %v7798
      %7864 = vmatprep.subr.bf16.mxu0 %v7801
      %7865 = vmatpush1.bf16.msra.mxu0 %v7800
      %7866 = vmatprep.subr.bf16.mxu0 %v7803
      %7867 = vmatpush1.bf16.msra.mxu0 %v7802
      %7868 = vmatprep.subr.bf16.mxu0 %v7805
      %7869 = vmatpush1.bf16.msra.mxu0 %v7804
      %7870 = vmatprep.subr.bf16.mxu0 %v7807
      %7871 = vmatpush1.bf16.msra.mxu0 %v7806
      %7872 = vmatprep.subr.bf16.mxu0 %v7809
      %7873 = vmatpush1.bf16.msra.mxu0 %v7808
      %7874 = vmatprep.subr.bf16.mxu0 %v7811
      %7875 = vmatpush1.bf16.msra.mxu0 %v7810
      %7876 = vmatprep.subr.bf16.mxu0 %v7813
      %7877 = vmatpush1.bf16.msra.mxu0 %v7812
      %7878 = vmatprep.subr.bf16.mxu0 %v7815
      %7879 = vmatpush1.bf16.msra.mxu0 %v7814
      %7880 = vmatprep.subr.bf16.mxu0 %v7817
      %7881 = vmatpush1.bf16.msra.mxu0 %v7816
      %7882 = vmatprep.subr.bf16.mxu0 %v7819
      %7883 = vmatpush1.bf16.msra.mxu0 %v7818
      %7884 = vmatprep.mubr.bf16.mxu0 %v7658
      %7885 = vmatmul.mubr.bf16.gmra.mrb[0].mxu0 %v7657
      %v7886 = vpop.f32.mrb[0].mxu0
      %v7887 = vadd.f32 0.0, %v7886
      %v7888 = vpop.f32.mrb[0].mxu0
      %v7889 = vadd.f32 0.0, %v7888
      %v7890 = vpop.f32.mrb[0].mxu0
      %v7891 = vpop.f32.mrb[0].mxu0
      %7892 = vdwg.mxu0
      %v7893 = vadd.f32 %v7585, %v7887
      %v7894 = vadd.f32 %v7586, %v7889
      %v7895 = vcombine.low %v6779, %v7611
      %v7896 = vcombine.low %v6796, %v7628
      %v7898 = vunpack.c.l.s4 1983009808
      %v7899 = vunpack.c.0.s8 %v7898
      %v7900 = vlaneseq
      %v7901 = vshrl.u32 %v7900, 7
      %v7902 = vsub.s32 %v7899, %v7901
      %v7903 = vrot.slane %v7895, %v7902
      %v7905 = vunpack.c.l.s4 1983009808
      %v7906 = vunpack.c.0.s8 %v7905
      %v7907 = vlaneseq
      %v7908 = vshrl.u32 %v7907, 7
      %v7909 = vsub.s32 %v7906, %v7908
      %v7910 = vrot.slane %v7896, %v7909
      %v7911 = vcombine.low %v7903, %v7910
      %v7912 = vcombine.high %v7903, %v7910
      %v7915 = vpack.c.bf16 %v7911, %v7911
      %v7916 = vpack.c.bf16 %v7912, %v7912
      %s7917 = scalar_lea.vmem %s7, 1792
      %v7918 = vld [vmem:[%s7917] sm:$0xff]
      %v7919 = vld [vmem:[%s7917 + $0x8] sm:$0xff]
      %v7920 = vld [vmem:[%s7917 + $0x10] sm:$0xff]
      %v7921 = vld [vmem:[%s7917 + $0x18] sm:$0xff]
      %v7922 = vld [vmem:[%s7917 + $0x20] sm:$0xff]
      %v7923 = vld [vmem:[%s7917 + $0x28] sm:$0xff]
      %v7924 = vld [vmem:[%s7917 + $0x30] sm:$0xff]
      %v7925 = vld [vmem:[%s7917 + $0x38] sm:$0xff]
      %v7926 = vld [vmem:[%s7917 + $0x40] sm:$0xff]
      %v7927 = vld [vmem:[%s7917 + $0x48] sm:$0xff]
      %v7928 = vld [vmem:[%s7917 + $0x50] sm:$0xff]
      %v7929 = vld [vmem:[%s7917 + $0x58] sm:$0xff]
      %v7930 = vld [vmem:[%s7917 + $0x60] sm:$0xff]
      %v7931 = vld [vmem:[%s7917 + $0x68] sm:$0xff]
      %v7932 = vld [vmem:[%s7917 + $0x70] sm:$0xff]
      %v7933 = vld [vmem:[%s7917 + $0x78] sm:$0xff]
      %v7934 = vld [vmem:[%s7917 + $0x80] sm:$0xff]
      %v7935 = vld [vmem:[%s7917 + $0x88] sm:$0xff]
      %v7936 = vld [vmem:[%s7917 + $0x90] sm:$0xff]
      %v7937 = vld [vmem:[%s7917 + $0x98] sm:$0xff]
      %v7938 = vld [vmem:[%s7917 + $0xa0] sm:$0xff]
      %v7939 = vld [vmem:[%s7917 + $0xa8] sm:$0xff]
      %v7940 = vld [vmem:[%s7917 + $0xb0] sm:$0xff]
      %v7941 = vld [vmem:[%s7917 + $0xb8] sm:$0xff]
      %v7942 = vld [vmem:[%s7917 + $0xc0] sm:$0xff]
      %v7943 = vld [vmem:[%s7917 + $0xc8] sm:$0xff]
      %v7944 = vld [vmem:[%s7917 + $0xd0] sm:$0xff]
      %v7945 = vld [vmem:[%s7917 + $0xd8] sm:$0xff]
      %v7946 = vld [vmem:[%s7917 + $0xe0] sm:$0xff]
      %v7947 = vld [vmem:[%s7917 + $0xe8] sm:$0xff]
      %v7948 = vld [vmem:[%s7917 + $0xf0] sm:$0xff]
      %v7949 = vld [vmem:[%s7917 + $0xf8] sm:$0xff]
      %v7982 = vunpack.c.l.b16 %v7918
      %v7983 = vunpack.c.h.b16 %v7918
      %v7984 = vunpack.c.l.b16 %v7919
      %v7985 = vunpack.c.h.b16 %v7919
      %v7986 = vunpack.c.l.b16 %v7920
      %v7987 = vunpack.c.h.b16 %v7920
      %v7988 = vunpack.c.l.b16 %v7921
      %v7989 = vunpack.c.h.b16 %v7921
      %v7990 = vunpack.c.l.b16 %v7922
      %v7991 = vunpack.c.h.b16 %v7922
      %v7992 = vunpack.c.l.b16 %v7923
      %v7993 = vunpack.c.h.b16 %v7923
      %v7994 = vunpack.c.l.b16 %v7924
      %v7995 = vunpack.c.h.b16 %v7924
      %v7996 = vunpack.c.l.b16 %v7925
      %v7997 = vunpack.c.h.b16 %v7925
      %v7998 = vunpack.c.l.b16 %v7926
      %v7999 = vunpack.c.h.b16 %v7926
      %v8000 = vunpack.c.l.b16 %v7927
      %v8001 = vunpack.c.h.b16 %v7927
      %v8002 = vunpack.c.l.b16 %v7928
      %v8003 = vunpack.c.h.b16 %v7928
      %v8004 = vunpack.c.l.b16 %v7929
      %v8005 = vunpack.c.h.b16 %v7929
      %v8006 = vunpack.c.l.b16 %v7930
      %v8007 = vunpack.c.h.b16 %v7930
      %v8008 = vunpack.c.l.b16 %v7931
      %v8009 = vunpack.c.h.b16 %v7931
      %v8010 = vunpack.c.l.b16 %v7932
      %v8011 = vunpack.c.h.b16 %v7932
      %v8012 = vunpack.c.l.b16 %v7933
      %v8013 = vunpack.c.h.b16 %v7933
      %v8014 = vunpack.c.l.b16 %v7934
      %v8015 = vunpack.c.h.b16 %v7934
      %v8016 = vunpack.c.l.b16 %v7935
      %v8017 = vunpack.c.h.b16 %v7935
      %v8018 = vunpack.c.l.b16 %v7936
      %v8019 = vunpack.c.h.b16 %v7936
      %v8020 = vunpack.c.l.b16 %v7937
      %v8021 = vunpack.c.h.b16 %v7937
      %v8022 = vunpack.c.l.b16 %v7938
      %v8023 = vunpack.c.h.b16 %v7938
      %v8024 = vunpack.c.l.b16 %v7939
      %v8025 = vunpack.c.h.b16 %v7939
      %v8026 = vunpack.c.l.b16 %v7940
      %v8027 = vunpack.c.h.b16 %v7940
      %v8028 = vunpack.c.l.b16 %v7941
      %v8029 = vunpack.c.h.b16 %v7941
      %v8030 = vunpack.c.l.b16 %v7942
      %v8031 = vunpack.c.h.b16 %v7942
      %v8032 = vunpack.c.l.b16 %v7943
      %v8033 = vunpack.c.h.b16 %v7943
      %v8034 = vunpack.c.l.b16 %v7944
      %v8035 = vunpack.c.h.b16 %v7944
      %v8036 = vunpack.c.l.b16 %v7945
      %v8037 = vunpack.c.h.b16 %v7945
      %v8038 = vunpack.c.l.b16 %v7946
      %v8039 = vunpack.c.h.b16 %v7946
      %v8040 = vunpack.c.l.b16 %v7947
      %v8041 = vunpack.c.h.b16 %v7947
      %v8042 = vunpack.c.l.b16 %v7948
      %v8043 = vunpack.c.h.b16 %v7948
      %v8044 = vunpack.c.l.b16 %v7949
      %v8045 = vunpack.c.h.b16 %v7949
      %v8046 = vpack.c.b16 %v7984, %v7982
      %v8047 = vpack.c.b16 %v7985, %v7983
      %v8048 = vpack.c.b16 %v7988, %v7986
      %v8049 = vpack.c.b16 %v7989, %v7987
      %v8050 = vpack.c.b16 %v7992, %v7990
      %v8051 = vpack.c.b16 %v7993, %v7991
      %v8052 = vpack.c.b16 %v7996, %v7994
      %v8053 = vpack.c.b16 %v7997, %v7995
      %v8054 = vpack.c.b16 %v8000, %v7998
      %v8055 = vpack.c.b16 %v8001, %v7999
      %v8056 = vpack.c.b16 %v8004, %v8002
      %v8057 = vpack.c.b16 %v8005, %v8003
      %v8058 = vpack.c.b16 %v8008, %v8006
      %v8059 = vpack.c.b16 %v8009, %v8007
      %v8060 = vpack.c.b16 %v8012, %v8010
      %v8061 = vpack.c.b16 %v8013, %v8011
      %v8062 = vpack.c.b16 %v8016, %v8014
      %v8063 = vpack.c.b16 %v8017, %v8015
      %v8064 = vpack.c.b16 %v8020, %v8018
      %v8065 = vpack.c.b16 %v8021, %v8019
      %v8066 = vpack.c.b16 %v8024, %v8022
      %v8067 = vpack.c.b16 %v8025, %v8023
      %v8068 = vpack.c.b16 %v8028, %v8026
      %v8069 = vpack.c.b16 %v8029, %v8027
      %v8070 = vpack.c.b16 %v8032, %v8030
      %v8071 = vpack.c.b16 %v8033, %v8031
      %v8072 = vpack.c.b16 %v8036, %v8034
      %v8073 = vpack.c.b16 %v8037, %v8035
      %v8074 = vpack.c.b16 %v8040, %v8038
      %v8075 = vpack.c.b16 %v8041, %v8039
      %v8076 = vpack.c.b16 %v8044, %v8042
      %v8077 = vpack.c.b16 %v8045, %v8043
      %8110 = vmatprep.subr.bf16.mxu0 %v8047
      %8111 = vmatpush1.bf16.msra.mxu0 %v8046
      %8112 = vmatprep.subr.bf16.mxu0 %v8049
      %8113 = vmatpush1.bf16.msra.mxu0 %v8048
      %8114 = vmatprep.subr.bf16.mxu0 %v8051
      %8115 = vmatpush1.bf16.msra.mxu0 %v8050
      %8116 = vmatprep.subr.bf16.mxu0 %v8053
      %8117 = vmatpush1.bf16.msra.mxu0 %v8052
      %8118 = vmatprep.subr.bf16.mxu0 %v8055
      %8119 = vmatpush1.bf16.msra.mxu0 %v8054
      %8120 = vmatprep.subr.bf16.mxu0 %v8057
      %8121 = vmatpush1.bf16.msra.mxu0 %v8056
      %8122 = vmatprep.subr.bf16.mxu0 %v8059
      %8123 = vmatpush1.bf16.msra.mxu0 %v8058
      %8124 = vmatprep.subr.bf16.mxu0 %v8061
      %8125 = vmatpush1.bf16.msra.mxu0 %v8060
      %8126 = vmatprep.subr.bf16.mxu0 %v8063
      %8127 = vmatpush1.bf16.msra.mxu0 %v8062
      %8128 = vmatprep.subr.bf16.mxu0 %v8065
      %8129 = vmatpush1.bf16.msra.mxu0 %v8064
      %8130 = vmatprep.subr.bf16.mxu0 %v8067
      %8131 = vmatpush1.bf16.msra.mxu0 %v8066
      %8132 = vmatprep.subr.bf16.mxu0 %v8069
      %8133 = vmatpush1.bf16.msra.mxu0 %v8068
      %8134 = vmatprep.subr.bf16.mxu0 %v8071
      %8135 = vmatpush1.bf16.msra.mxu0 %v8070
      %8136 = vmatprep.subr.bf16.mxu0 %v8073
      %8137 = vmatpush1.bf16.msra.mxu0 %v8072
      %8138 = vmatprep.subr.bf16.mxu0 %v8075
      %8139 = vmatpush1.bf16.msra.mxu0 %v8074
      %8140 = vmatprep.subr.bf16.mxu0 %v8077
      %8141 = vmatpush1.bf16.msra.mxu0 %v8076
      %8142 = vmatprep.mubr.bf16.mxu0 %v7916
      %8143 = vmatmul.mubr.bf16.gmra.mrb[0].mxu0 %v7915
      %v8144 = vpop.f32.mrb[0].mxu0
      %v8145 = vadd.f32 0.0, %v8144
      %v8146 = vpop.f32.mrb[0].mxu0
      %v8147 = vadd.f32 0.0, %v8146
      %v8148 = vpop.f32.mrb[0].mxu0
      %v8149 = vpop.f32.mrb[0].mxu0
      %8150 = vdwg.mxu0
      %v8151 = vadd.f32 %v7893, %v8145
      %v8152 = vadd.f32 %v7894, %v8147
      %v8153 = vcombine.high %v7611, %v7611
      %v8154 = vcombine.high %v7628, %v7628
      %v8155 = vrot.slane %v7631, 2
      %v8156 = vrot.slane %v8153, 7
      %v8157 = vsel %vm5953, %v8155, %v8156
      %v8158 = vrot.slane %v7635, 2
      %v8159 = vrot.slane %v8154, 7
      %v8160 = vsel %vm5953, %v8158, %v8159
      %v8161 = vcombine.low %v7325, %v8157
      %v8162 = vcombine.low %v7328, %v8160
      %v8164 = vunpack.c.l.s4 1983009808
      %v8165 = vunpack.c.0.s8 %v8164
      %v8166 = vlaneseq
      %v8167 = vshrl.u32 %v8166, 7
      %v8168 = vsub.s32 %v8165, %v8167
      %v8169 = vrot.slane %v8161, %v8168
      %v8171 = vunpack.c.l.s4 1983009808
      %v8172 = vunpack.c.0.s8 %v8171
      %v8173 = vlaneseq
      %v8174 = vshrl.u32 %v8173, 7
      %v8175 = vsub.s32 %v8172, %v8174
      %v8176 = vrot.slane %v8162, %v8175
      %v8177 = vcombine.low %v8169, %v8176
      %v8178 = vcombine.high %v8169, %v8176
      %v8181 = vpack.c.bf16 %v8177, %v8177
      %v8182 = vpack.c.bf16 %v8178, %v8178
      %s8183 = scalar_lea.vmem %s7, 2048
      %v8184 = vld [vmem:[%s8183] sm:$0xff]
      %v8185 = vld [vmem:[%s8183 + $0x8] sm:$0xff]
      %v8186 = vld [vmem:[%s8183 + $0x10] sm:$0xff]
      %v8187 = vld [vmem:[%s8183 + $0x18] sm:$0xff]
      %v8188 = vld [vmem:[%s8183 + $0x20] sm:$0xff]
      %v8189 = vld [vmem:[%s8183 + $0x28] sm:$0xff]
      %v8190 = vld [vmem:[%s8183 + $0x30] sm:$0xff]
      %v8191 = vld [vmem:[%s8183 + $0x38] sm:$0xff]
      %v8192 = vld [vmem:[%s8183 + $0x40] sm:$0xff]
      %v8193 = vld [vmem:[%s8183 + $0x48] sm:$0xff]
      %v8194 = vld [vmem:[%s8183 + $0x50] sm:$0xff]
      %v8195 = vld [vmem:[%s8183 + $0x58] sm:$0xff]
      %v8196 = vld [vmem:[%s8183 + $0x60] sm:$0xff]
      %v8197 = vld [vmem:[%s8183 + $0x68] sm:$0xff]
      %v8198 = vld [vmem:[%s8183 + $0x70] sm:$0xff]
      %v8199 = vld [vmem:[%s8183 + $0x78] sm:$0xff]
      %v8200 = vld [vmem:[%s8183 + $0x80] sm:$0xff]
      %v8201 = vld [vmem:[%s8183 + $0x88] sm:$0xff]
      %v8202 = vld [vmem:[%s8183 + $0x90] sm:$0xff]
      %v8203 = vld [vmem:[%s8183 + $0x98] sm:$0xff]
      %v8204 = vld [vmem:[%s8183 + $0xa0] sm:$0xff]
      %v8205 = vld [vmem:[%s8183 + $0xa8] sm:$0xff]
      %v8206 = vld [vmem:[%s8183 + $0xb0] sm:$0xff]
      %v8207 = vld [vmem:[%s8183 + $0xb8] sm:$0xff]
      %v8208 = vld [vmem:[%s8183 + $0xc0] sm:$0xff]
      %v8209 = vld [vmem:[%s8183 + $0xc8] sm:$0xff]
      %v8210 = vld [vmem:[%s8183 + $0xd0] sm:$0xff]
      %v8211 = vld [vmem:[%s8183 + $0xd8] sm:$0xff]
      %v8212 = vld [vmem:[%s8183 + $0xe0] sm:$0xff]
      %v8213 = vld [vmem:[%s8183 + $0xe8] sm:$0xff]
      %v8214 = vld [vmem:[%s8183 + $0xf0] sm:$0xff]
      %v8215 = vld [vmem:[%s8183 + $0xf8] sm:$0xff]
      %v8248 = vunpack.c.l.b16 %v8184
      %v8249 = vunpack.c.h.b16 %v8184
      %v8250 = vunpack.c.l.b16 %v8185
      %v8251 = vunpack.c.h.b16 %v8185
      %v8252 = vunpack.c.l.b16 %v8186
      %v8253 = vunpack.c.h.b16 %v8186
      %v8254 = vunpack.c.l.b16 %v8187
      %v8255 = vunpack.c.h.b16 %v8187
      %v8256 = vunpack.c.l.b16 %v8188
      %v8257 = vunpack.c.h.b16 %v8188
      %v8258 = vunpack.c.l.b16 %v8189
      %v8259 = vunpack.c.h.b16 %v8189
      %v8260 = vunpack.c.l.b16 %v8190
      %v8261 = vunpack.c.h.b16 %v8190
      %v8262 = vunpack.c.l.b16 %v8191
      %v8263 = vunpack.c.h.b16 %v8191
      %v8264 = vunpack.c.l.b16 %v8192
      %v8265 = vunpack.c.h.b16 %v8192
      %v8266 = vunpack.c.l.b16 %v8193
      %v8267 = vunpack.c.h.b16 %v8193
      %v8268 = vunpack.c.l.b16 %v8194
      %v8269 = vunpack.c.h.b16 %v8194
      %v8270 = vunpack.c.l.b16 %v8195
      %v8271 = vunpack.c.h.b16 %v8195
      %v8272 = vunpack.c.l.b16 %v8196
      %v8273 = vunpack.c.h.b16 %v8196
      %v8274 = vunpack.c.l.b16 %v8197
      %v8275 = vunpack.c.h.b16 %v8197
      %v8276 = vunpack.c.l.b16 %v8198
      %v8277 = vunpack.c.h.b16 %v8198
      %v8278 = vunpack.c.l.b16 %v8199
      %v8279 = vunpack.c.h.b16 %v8199
      %v8280 = vunpack.c.l.b16 %v8200
      %v8281 = vunpack.c.h.b16 %v8200
      %v8282 = vunpack.c.l.b16 %v8201
      %v8283 = vunpack.c.h.b16 %v8201
      %v8284 = vunpack.c.l.b16 %v8202
      %v8285 = vunpack.c.h.b16 %v8202
      %v8286 = vunpack.c.l.b16 %v8203
      %v8287 = vunpack.c.h.b16 %v8203
      %v8288 = vunpack.c.l.b16 %v8204
      %v8289 = vunpack.c.h.b16 %v8204
      %v8290 = vunpack.c.l.b16 %v8205
      %v8291 = vunpack.c.h.b16 %v8205
      %v8292 = vunpack.c.l.b16 %v8206
      %v8293 = vunpack.c.h.b16 %v8206
      %v8294 = vunpack.c.l.b16 %v8207
      %v8295 = vunpack.c.h.b16 %v8207
      %v8296 = vunpack.c.l.b16 %v8208
      %v8297 = vunpack.c.h.b16 %v8208
      %v8298 = vunpack.c.l.b16 %v8209
      %v8299 = vunpack.c.h.b16 %v8209
      %v8300 = vunpack.c.l.b16 %v8210
      %v8301 = vunpack.c.h.b16 %v8210
      %v8302 = vunpack.c.l.b16 %v8211
      %v8303 = vunpack.c.h.b16 %v8211
      %v8304 = vunpack.c.l.b16 %v8212
      %v8305 = vunpack.c.h.b16 %v8212
      %v8306 = vunpack.c.l.b16 %v8213
      %v8307 = vunpack.c.h.b16 %v8213
      %v8308 = vunpack.c.l.b16 %v8214
      %v8309 = vunpack.c.h.b16 %v8214
      %v8310 = vunpack.c.l.b16 %v8215
      %v8311 = vunpack.c.h.b16 %v8215
      %v8312 = vpack.c.b16 %v8250, %v8248
      %v8313 = vpack.c.b16 %v8251, %v8249
      %v8314 = vpack.c.b16 %v8254, %v8252
      %v8315 = vpack.c.b16 %v8255, %v8253
      %v8316 = vpack.c.b16 %v8258, %v8256
      %v8317 = vpack.c.b16 %v8259, %v8257
      %v8318 = vpack.c.b16 %v8262, %v8260
      %v8319 = vpack.c.b16 %v8263, %v8261
      %v8320 = vpack.c.b16 %v8266, %v8264
      %v8321 = vpack.c.b16 %v8267, %v8265
      %v8322 = vpack.c.b16 %v8270, %v8268
      %v8323 = vpack.c.b16 %v8271, %v8269
      %v8324 = vpack.c.b16 %v8274, %v8272
      %v8325 = vpack.c.b16 %v8275, %v8273
      %v8326 = vpack.c.b16 %v8278, %v8276
      %v8327 = vpack.c.b16 %v8279, %v8277
      %v8328 = vpack.c.b16 %v8282, %v8280
      %v8329 = vpack.c.b16 %v8283, %v8281
      %v8330 = vpack.c.b16 %v8286, %v8284
      %v8331 = vpack.c.b16 %v8287, %v8285
      %v8332 = vpack.c.b16 %v8290, %v8288
      %v8333 = vpack.c.b16 %v8291, %v8289
      %v8334 = vpack.c.b16 %v8294, %v8292
      %v8335 = vpack.c.b16 %v8295, %v8293
      %v8336 = vpack.c.b16 %v8298, %v8296
      %v8337 = vpack.c.b16 %v8299, %v8297
      %v8338 = vpack.c.b16 %v8302, %v8300
      %v8339 = vpack.c.b16 %v8303, %v8301
      %v8340 = vpack.c.b16 %v8306, %v8304
      %v8341 = vpack.c.b16 %v8307, %v8305
      %v8342 = vpack.c.b16 %v8310, %v8308
      %v8343 = vpack.c.b16 %v8311, %v8309
      %8376 = vmatprep.subr.bf16.mxu0 %v8313
      %8377 = vmatpush1.bf16.msra.mxu0 %v8312
      %8378 = vmatprep.subr.bf16.mxu0 %v8315
      %8379 = vmatpush1.bf16.msra.mxu0 %v8314
      %8380 = vmatprep.subr.bf16.mxu0 %v8317
      %8381 = vmatpush1.bf16.msra.mxu0 %v8316
      %8382 = vmatprep.subr.bf16.mxu0 %v8319
      %8383 = vmatpush1.bf16.msra.mxu0 %v8318
      %8384 = vmatprep.subr.bf16.mxu0 %v8321
      %8385 = vmatpush1.bf16.msra.mxu0 %v8320
      %8386 = vmatprep.subr.bf16.mxu0 %v8323
      %8387 = vmatpush1.bf16.msra.mxu0 %v8322
      %8388 = vmatprep.subr.bf16.mxu0 %v8325
      %8389 = vmatpush1.bf16.msra.mxu0 %v8324
      %8390 = vmatprep.subr.bf16.mxu0 %v8327
      %8391 = vmatpush1.bf16.msra.mxu0 %v8326
      %8392 = vmatprep.subr.bf16.mxu0 %v8329
      %8393 = vmatpush1.bf16.msra.mxu0 %v8328
      %8394 = vmatprep.subr.bf16.mxu0 %v8331
      %8395 = vmatpush1.bf16.msra.mxu0 %v8330
      %8396 = vmatprep.subr.bf16.mxu0 %v8333
      %8397 = vmatpush1.bf16.msra.mxu0 %v8332
      %8398 = vmatprep.subr.bf16.mxu0 %v8335
      %8399 = vmatpush1.bf16.msra.mxu0 %v8334
      %8400 = vmatprep.subr.bf16.mxu0 %v8337
      %8401 = vmatpush1.bf16.msra.mxu0 %v8336
      %8402 = vmatprep.subr.bf16.mxu0 %v8339
      %8403 = vmatpush1.bf16.msra.mxu0 %v8338
      %8404 = vmatprep.subr.bf16.mxu0 %v8341
      %8405 = vmatpush1.bf16.msra.mxu0 %v8340
      %8406 = vmatprep.subr.bf16.mxu0 %v8343
      %8407 = vmatpush1.bf16.msra.mxu0 %v8342
      %8408 = vmatprep.mubr.bf16.mxu0 %v8182
      %8409 = vmatmul.mubr.bf16.gmra.mrb[0].mxu0 %v8181
      %v8410 = vpop.f32.mrb[0].mxu0
      %v8411 = vadd.f32 0.0, %v8410
      %v8412 = vpop.f32.mrb[0].mxu0
      %v8413 = vadd.f32 0.0, %v8412
      %v8414 = vpop.f32.mrb[0].mxu0
      %v8415 = vpop.f32.mrb[0].mxu0
      %8416 = vdwg.mxu0
      %v8417 = vadd.f32 %v8151, %v8411
      %v8418 = vadd.f32 %v8152, %v8413
      %v8419 = vld [vmem:[%s8] sm:$0x3]
      %v8421 = vlaneseq
      %v8422 = vshrl.u32 %v8421, 7
      %v8423 = vsub.s32 0, %v8422
      %v8424 = vrot.slane %v8419, %v8423
      %v8425 = vlaneseq
      %v8426 = vshrl.u32 %v8425, 7
      %v8427 = vsub.s32 1, %v8426
      %v8428 = vrot.slane %v8419, %v8427
      %v8431 = vadd.f32 %v8417, %v8424
      %v8432 = vadd.f32 %v8418, %v8428
      %v8433 = vmax.f32 %v8431, 0.0
      %v8434 = vmax.f32 %v8432, 0.0
      %v8437 = vcombine.low %v8433, %v8434
      %v8438 = vcombine.high %v8433, %v8434
      %v8440 = vunpack.c.l.s4 1983009808
      %v8441 = vunpack.c.0.s8 %v8440
      %v8442 = vlaneseq
      %v8443 = vshrl.u32 %v8442, 7
      %v8444 = vsub.s32 %v8441, %v8443
      %v8445 = vrot.slane %v8437, %v8444
      %v8447 = vunpack.c.l.s4 1983009808
      %v8448 = vunpack.c.0.s8 %v8447
      %v8449 = vlaneseq
      %v8450 = vshrl.u32 %v8449, 7
      %v8451 = vsub.s32 %v8448, %v8450
      %v8452 = vrot.slane %v8438, %v8451
      %v8453 = vcombine.high %v8445, %v8445
      %v8454 = vcombine.high %v8452, %v8452
      %v8456 = vunpack.c.l.s4 1983009808
      %v8457 = vunpack.c.0.s8 %v8456
      %v8458 = vlaneseq
      %v8459 = vshrl.u32 %v8458, 7
      %v8460 = vsub.s32 %v8457, %v8459
      %v8461 = vrot.slane %v8445, %v8460
      %v8462 = vcombine.high %v8461, %v8461
      %v8464 = vunpack.c.l.s4 1983009808
      %v8465 = vunpack.c.0.s8 %v8464
      %v8466 = vlaneseq
      %v8467 = vshrl.u32 %v8466, 7
      %v8468 = vsub.s32 %v8465, %v8467
      %v8469 = vrot.slane %v8453, %v8468
      %v8470 = vcombine.high %v8469, %v8469
      %v8471 = vld [vmem:[%s9] sm:$0xff]
      %v8472 = vld [vmem:[%s9 + $0x8] sm:$0xff]
      %v8473 = vld [vmem:[%s9 + $0x10] sm:$0xff]
      %v8474 = vld [vmem:[%s9 + $0x18] sm:$0xff]
      %v8475 = vld [vmem:[%s9 + $0x20] sm:$0xff]
      %vm8476 = vcmask 15360
      %v8478 = vsel %vm8476, %v8471, 0
      %v8481 = vsel %vm8476, %v8472, 0
      %v8484 = vsel %vm8476, %v8473, 0
      %v8487 = vsel %vm8476, %v8474, 0
      %v8490 = vsel %vm8476, %v8475, 0
      %vm8492 = vcmask 1041408
      %v8493 = vsel %vm8492, %v8461, 0
      %v8495 = vsel %vm8492, %v8462, 0
      %v8497 = vsel %vm8492, %v8469, 0
      %v8499 = vsel %vm8492, %v8470, 0
      %8501 = vmatprep.subr.mxu0 %v8495
      %8502 = vmatpush1.msra.mxu0 %v8493
      %8503 = vmatprep.subr.mxu0 0.0
      %8504 = vmatpush1.msra.mxu0 0.0
      %8505 = vmatprep.subr.mxu0 0.0
      %8506 = vmatpush1.msra.mxu0 0.0
      %8507 = vmatprep.subr.mxu0 0.0
      %8508 = vmatpush1.msra.mxu0 0.0
      %8509 = vmatprep.subr.mxu0 0.0
      %8510 = vmatpush1.msra.mxu0 0.0
      %8511 = vmatprep.subr.mxu0 0.0
      %8512 = vmatpush1.msra.mxu0 0.0
      %8513 = vmatprep.subr.mxu0 0.0
      %8514 = vmatpush1.msra.mxu0 0.0
      %8515 = vmatprep.subr.mxu0 0.0
      %8516 = vmatpush1.msra.mxu0 0.0
      %8517 = vmatprep.subr.mxu0 0.0
      %8518 = vmatpush1.msra.mxu0 0.0
      %8519 = vmatprep.subr.mxu0 0.0
      %8520 = vmatpush1.msra.mxu0 0.0
      %8521 = vmatprep.subr.mxu0 0.0
      %8522 = vmatpush1.msra.mxu0 0.0
      %8523 = vmatprep.subr.mxu0 0.0
      %8524 = vmatpush1.msra.mxu0 0.0
      %8525 = vmatprep.subr.mxu0 0.0
      %8526 = vmatpush1.msra.mxu0 0.0
      %8527 = vmatprep.subr.mxu0 0.0
      %8528 = vmatpush1.msra.mxu0 0.0
      %8529 = vmatprep.subr.mxu0 0.0
      %8530 = vmatpush1.msra.mxu0 0.0
      %8531 = vmatprep.subr.mxu0 0.0
      %8532 = vmatpush1.msra.mxu0 0.0
      %8533 = vmatprep.subr.mxu0 0.0
      %8534 = vmatpush1.msra.mxu0 0.0
      %8535 = vmatprep.subr.mxu0 0.0
      %8536 = vmatpush1.msra.mxu0 0.0
      %8537 = vmatprep.subr.mxu0 0.0
      %8538 = vmatpush1.msra.mxu0 0.0
      %8539 = vmatprep.subr.mxu0 0.0
      %8540 = vmatpush1.msra.mxu0 0.0
      %8541 = vmatprep.subr.mxu0 0.0
      %8542 = vmatpush1.msra.mxu0 0.0
      %8543 = vmatprep.subr.mxu0 0.0
      %8544 = vmatpush1.msra.mxu0 0.0
      %8545 = vmatprep.subr.mxu0 0.0
      %8546 = vmatpush1.msra.mxu0 0.0
      %8547 = vmatprep.subr.mxu0 0.0
      %8548 = vmatpush1.msra.mxu0 0.0
      %8549 = vmatprep.subr.mxu0 0.0
      %8550 = vmatpush1.msra.mxu0 0.0
      %8551 = vmatprep.subr.mxu0 0.0
      %8552 = vmatpush1.msra.mxu0 0.0
      %8553 = vmatprep.subr.mxu0 0.0
      %8554 = vmatpush1.msra.mxu0 0.0
      %8555 = vmatprep.subr.mxu0 0.0
      %8556 = vmatpush1.msra.mxu0 0.0
      %8557 = vmatprep.subr.mxu0 0.0
      %8558 = vmatpush1.msra.mxu0 0.0
      %8559 = vmatprep.subr.mxu0 0.0
      %8560 = vmatpush1.msra.mxu0 0.0
      %8561 = vmatprep.subr.mxu0 0.0
      %8562 = vmatpush1.msra.mxu0 0.0
      %8563 = vmatprep.subr.mxu0 0.0
      %8564 = vmatpush1.msra.mxu0 0.0
      %8565 = vmatprep.mubr.f32.mxu0 0.0
      %8566 = vmatmul.mubr.f32.gmra.mrb[0].mxu0 %v8478
      %v8567 = vpop.f32.mrb[0].mxu0
      %v8568 = vadd.f32 0.0, %v8567
      %v8569 = vpop.f32.mrb[0].mxu0
      %v8570 = vadd.f32 0.0, %v8569
      %8571 = vmatprep.mubr.f32.mxu0 0.0
      %8572 = vmatmul.mubr.f32.gmra.mrb[0].mxu0 %v8481
      %v8573 = vpop.f32.mrb[0].mxu0
      %v8574 = vadd.f32 0.0, %v8573
      %v8575 = vpop.f32.mrb[0].mxu0
      %v8576 = vadd.f32 0.0, %v8575
      %8577 = vmatprep.mubr.f32.mxu0 0.0
      %8578 = vmatmul.mubr.f32.gmra.mrb[0].mxu0 %v8484
      %v8579 = vpop.f32.mrb[0].mxu0
      %v8580 = vadd.f32 0.0, %v8579
      %v8581 = vpop.f32.mrb[0].mxu0
      %v8582 = vadd.f32 0.0, %v8581
      %8583 = vmatprep.mubr.f32.mxu0 0.0
      %8584 = vmatmul.mubr.f32.gmra.mrb[0].mxu0 %v8487
      %v8585 = vpop.f32.mrb[0].mxu0
      %v8586 = vadd.f32 0.0, %v8585
      %v8587 = vpop.f32.mrb[0].mxu0
      %v8588 = vadd.f32 0.0, %v8587
      %8589 = vmatprep.mubr.f32.mxu0 0.0
      %8590 = vmatmul.mubr.f32.gmra.mrb[0].mxu0 %v8490
      %v8591 = vpop.f32.mrb[0].mxu0
      %v8592 = vadd.f32 0.0, %v8591
      %v8593 = vpop.f32.mrb[0].mxu0
      %v8594 = vadd.f32 0.0, %v8593
      %8595 = vdwg.mxu0
      %8596 = vmatprep.subr.mxu0 %v8499
      %8597 = vmatpush1.msra.mxu0 %v8497
      %8598 = vmatprep.subr.mxu0 0.0
      %8599 = vmatpush1.msra.mxu0 0.0
      %8600 = vmatprep.subr.mxu0 0.0
      %8601 = vmatpush1.msra.mxu0 0.0
      %8602 = vmatprep.subr.mxu0 0.0
      %8603 = vmatpush1.msra.mxu0 0.0
      %8604 = vmatprep.subr.mxu0 0.0
      %8605 = vmatpush1.msra.mxu0 0.0
      %8606 = vmatprep.subr.mxu0 0.0
      %8607 = vmatpush1.msra.mxu0 0.0
      %8608 = vmatprep.subr.mxu0 0.0
      %8609 = vmatpush1.msra.mxu0 0.0
      %8610 = vmatprep.subr.mxu0 0.0
      %8611 = vmatpush1.msra.mxu0 0.0
      %8612 = vmatprep.subr.mxu0 0.0
      %8613 = vmatpush1.msra.mxu0 0.0
      %8614 = vmatprep.subr.mxu0 0.0
      %8615 = vmatpush1.msra.mxu0 0.0
      %8616 = vmatprep.subr.mxu0 0.0
      %8617 = vmatpush1.msra.mxu0 0.0
      %8618 = vmatprep.subr.mxu0 0.0
      %8619 = vmatpush1.msra.mxu0 0.0
      %8620 = vmatprep.subr.mxu0 0.0
      %8621 = vmatpush1.msra.mxu0 0.0
      %8622 = vmatprep.subr.mxu0 0.0
      %8623 = vmatpush1.msra.mxu0 0.0
      %8624 = vmatprep.subr.mxu0 0.0
      %8625 = vmatpush1.msra.mxu0 0.0
      %8626 = vmatprep.subr.mxu0 0.0
      %8627 = vmatpush1.msra.mxu0 0.0
      %8628 = vmatprep.subr.mxu0 0.0
      %8629 = vmatpush1.msra.mxu0 0.0
      %8630 = vmatprep.subr.mxu0 0.0
      %8631 = vmatpush1.msra.mxu0 0.0
      %8632 = vmatprep.subr.mxu0 0.0
      %8633 = vmatpush1.msra.mxu0 0.0
      %8634 = vmatprep.subr.mxu0 0.0
      %8635 = vmatpush1.msra.mxu0 0.0
      %8636 = vmatprep.subr.mxu0 0.0
      %8637 = vmatpush1.msra.mxu0 0.0
      %8638 = vmatprep.subr.mxu0 0.0
      %8639 = vmatpush1.msra.mxu0 0.0
      %8640 = vmatprep.subr.mxu0 0.0
      %8641 = vmatpush1.msra.mxu0 0.0
      %8642 = vmatprep.subr.mxu0 0.0
      %8643 = vmatpush1.msra.mxu0 0.0
      %8644 = vmatprep.subr.mxu0 0.0
      %8645 = vmatpush1.msra.mxu0 0.0
      %8646 = vmatprep.subr.mxu0 0.0
      %8647 = vmatpush1.msra.mxu0 0.0
      %8648 = vmatprep.subr.mxu0 0.0
      %8649 = vmatpush1.msra.mxu0 0.0
      %8650 = vmatprep.subr.mxu0 0.0
      %8651 = vmatpush1.msra.mxu0 0.0
      %8652 = vmatprep.subr.mxu0 0.0
      %8653 = vmatpush1.msra.mxu0 0.0
      %8654 = vmatprep.subr.mxu0 0.0
      %8655 = vmatpush1.msra.mxu0 0.0
      %8656 = vmatprep.subr.mxu0 0.0
      %8657 = vmatpush1.msra.mxu0 0.0
      %8658 = vmatprep.subr.mxu0 0.0
      %8659 = vmatpush1.msra.mxu0 0.0
      %8660 = vmatprep.mubr.f32.mxu0 0.0
      %8661 = vmatmul.mubr.f32.gmra.mrb[0].mxu0 %v8478
      %v8662 = vpop.f32.mrb[0].mxu0
      %v8663 = vadd.f32 0.0, %v8662
      %v8664 = vpop.f32.mrb[0].mxu0
      %v8665 = vadd.f32 0.0, %v8664
      %8666 = vmatprep.mubr.f32.mxu0 0.0
      %8667 = vmatmul.mubr.f32.gmra.mrb[0].mxu0 %v8481
      %v8668 = vpop.f32.mrb[0].mxu0
      %v8669 = vadd.f32 0.0, %v8668
      %v8670 = vpop.f32.mrb[0].mxu0
      %v8671 = vadd.f32 0.0, %v8670
      %8672 = vmatprep.mubr.f32.mxu0 0.0
      %8673 = vmatmul.mubr.f32.gmra.mrb[0].mxu0 %v8484
      %v8674 = vpop.f32.mrb[0].mxu0
      %v8675 = vadd.f32 0.0, %v8674
      %v8676 = vpop.f32.mrb[0].mxu0
      %v8677 = vadd.f32 0.0, %v8676
      %8678 = vmatprep.mubr.f32.mxu0 0.0
      %8679 = vmatmul.mubr.f32.gmra.mrb[0].mxu0 %v8487
      %v8680 = vpop.f32.mrb[0].mxu0
      %v8681 = vadd.f32 0.0, %v8680
      %v8682 = vpop.f32.mrb[0].mxu0
      %v8683 = vadd.f32 0.0, %v8682
      %8684 = vmatprep.mubr.f32.mxu0 0.0
      %8685 = vmatmul.mubr.f32.gmra.mrb[0].mxu0 %v8490
      %v8686 = vpop.f32.mrb[0].mxu0
      %v8687 = vadd.f32 0.0, %v8686
      %v8688 = vpop.f32.mrb[0].mxu0
      %v8689 = vadd.f32 0.0, %v8688
      %8690 = vdwg.mxu0
      %8691 = vst [vmem:[%s366] sm:$0xff] %v8568
      %8692 = vst [vmem:[%s366 + $0x8] sm:$0xff] %v8570
      %8693 = vst [vmem:[%s366 + $0x10] sm:$0xff] %v8663
      %8694 = vst [vmem:[%s366 + $0x18] sm:$0xff] %v8665
      %8695 = vst [vmem:[%s366 + $0x20] sm:$0xff] %v8574
      %8696 = vst [vmem:[%s366 + $0x28] sm:$0xff] %v8576
      %8697 = vst [vmem:[%s366 + $0x30] sm:$0xff] %v8669
      %8698 = vst [vmem:[%s366 + $0x38] sm:$0xff] %v8671
      %8699 = vst [vmem:[%s366 + $0x40] sm:$0xff] %v8580
      %8700 = vst [vmem:[%s366 + $0x48] sm:$0xff] %v8582
      %8701 = vst [vmem:[%s366 + $0x50] sm:$0xff] %v8675
      %8702 = vst [vmem:[%s366 + $0x58] sm:$0xff] %v8677
      %8703 = vst [vmem:[%s366 + $0x60] sm:$0xff] %v8586
      %8704 = vst [vmem:[%s366 + $0x68] sm:$0xff] %v8588
      %8705 = vst [vmem:[%s366 + $0x70] sm:$0xff] %v8681
      %8706 = vst [vmem:[%s366 + $0x78] sm:$0xff] %v8683
      %8707 = vst [vmem:[%s366 + $0x80] sm:$0xff] %v8592
      %8708 = vst [vmem:[%s366 + $0x88] sm:$0xff] %v8594
      %8709 = vst [vmem:[%s366 + $0x90] sm:$0xff] %v8687
      %8710 = vst [vmem:[%s366 + $0x98] sm:$0xff] %v8689
      %v8712 = vunpack.c.l.s4 1983009808
      %v8713 = vunpack.c.0.s8 %v8712
      %v8714 = vlaneseq
      %v8715 = vshrl.u32 %v8714, 7
      %v8716 = vsub.s32 %v8713, %v8715
      %v8717 = vrot.slane %v8452, %v8716
      %v8718 = vcombine.high %v8717, %v8717
      %v8720 = vunpack.c.l.s4 1983009808
      %v8721 = vunpack.c.0.s8 %v8720
      %v8722 = vlaneseq
      %v8723 = vshrl.u32 %v8722, 7
      %v8724 = vsub.s32 %v8721, %v8723
      %v8725 = vrot.slane %v8454, %v8724
      %v8726 = vcombine.high %v8725, %v8725
      %v8727 = vld [vmem:[%s9] sm:$0xff]
      %v8728 = vld [vmem:[%s9 + $0x8] sm:$0xff]
      %v8729 = vld [vmem:[%s9 + $0x10] sm:$0xff]
      %v8730 = vld [vmem:[%s9 + $0x18] sm:$0xff]
      %v8731 = vld [vmem:[%s9 + $0x20] sm:$0xff]
      %v8733 = vsel %vm8476, %v8727, 0
      %v8736 = vsel %vm8476, %v8728, 0
      %v8739 = vsel %vm8476, %v8729, 0
      %v8742 = vsel %vm8476, %v8730, 0
      %v8745 = vsel %vm8476, %v8731, 0
      %v8747 = vsel %vm8492, %v8717, 0
      %v8749 = vsel %vm8492, %v8718, 0
      %v8751 = vsel %vm8492, %v8725, 0
      %v8753 = vsel %vm8492, %v8726, 0
      %8755 = vmatprep.subr.mxu0 %v8749
      %8756 = vmatpush1.msra.mxu0 %v8747
      %8757 = vmatprep.subr.mxu0 0.0
      %8758 = vmatpush1.msra.mxu0 0.0
      %8759 = vmatprep.subr.mxu0 0.0
      %8760 = vmatpush1.msra.mxu0 0.0
      %8761 = vmatprep.subr.mxu0 0.0
      %8762 = vmatpush1.msra.mxu0 0.0
      %8763 = vmatprep.subr.mxu0 0.0
      %8764 = vmatpush1.msra.mxu0 0.0
      %8765 = vmatprep.subr.mxu0 0.0
      %8766 = vmatpush1.msra.mxu0 0.0
      %8767 = vmatprep.subr.mxu0 0.0
      %8768 = vmatpush1.msra.mxu0 0.0
      %8769 = vmatprep.subr.mxu0 0.0
      %8770 = vmatpush1.msra.mxu0 0.0
      %8771 = vmatprep.subr.mxu0 0.0
      %8772 = vmatpush1.msra.mxu0 0.0
      %8773 = vmatprep.subr.mxu0 0.0
      %8774 = vmatpush1.msra.mxu0 0.0
      %8775 = vmatprep.subr.mxu0 0.0
      %8776 = vmatpush1.msra.mxu0 0.0
      %8777 = vmatprep.subr.mxu0 0.0
      %8778 = vmatpush1.msra.mxu0 0.0
      %8779 = vmatprep.subr.mxu0 0.0
      %8780 = vmatpush1.msra.mxu0 0.0
      %8781 = vmatprep.subr.mxu0 0.0
      %8782 = vmatpush1.msra.mxu0 0.0
      %8783 = vmatprep.subr.mxu0 0.0
      %8784 = vmatpush1.msra.mxu0 0.0
      %8785 = vmatprep.subr.mxu0 0.0
      %8786 = vmatpush1.msra.mxu0 0.0
      %8787 = vmatprep.subr.mxu0 0.0
      %8788 = vmatpush1.msra.mxu0 0.0
      %8789 = vmatprep.subr.mxu0 0.0
      %8790 = vmatpush1.msra.mxu0 0.0
      %8791 = vmatprep.subr.mxu0 0.0
      %8792 = vmatpush1.msra.mxu0 0.0
      %8793 = vmatprep.subr.mxu0 0.0
      %8794 = vmatpush1.msra.mxu0 0.0
      %8795 = vmatprep.subr.mxu0 0.0
      %8796 = vmatpush1.msra.mxu0 0.0
      %8797 = vmatprep.subr.mxu0 0.0
      %8798 = vmatpush1.msra.mxu0 0.0
      %8799 = vmatprep.subr.mxu0 0.0
      %8800 = vmatpush1.msra.mxu0 0.0
      %8801 = vmatprep.subr.mxu0 0.0
      %8802 = vmatpush1.msra.mxu0 0.0
      %8803 = vmatprep.subr.mxu0 0.0
      %8804 = vmatpush1.msra.mxu0 0.0
      %8805 = vmatprep.subr.mxu0 0.0
      %8806 = vmatpush1.msra.mxu0 0.0
      %8807 = vmatprep.subr.mxu0 0.0
      %8808 = vmatpush1.msra.mxu0 0.0
      %8809 = vmatprep.subr.mxu0 0.0
      %8810 = vmatpush1.msra.mxu0 0.0
      %8811 = vmatprep.subr.mxu0 0.0
      %8812 = vmatpush1.msra.mxu0 0.0
      %8813 = vmatprep.subr.mxu0 0.0
      %8814 = vmatpush1.msra.mxu0 0.0
      %8815 = vmatprep.subr.mxu0 0.0
      %8816 = vmatpush1.msra.mxu0 0.0
      %8817 = vmatprep.subr.mxu0 0.0
      %8818 = vmatpush1.msra.mxu0 0.0
      %8819 = vmatprep.mubr.f32.mxu0 0.0
      %8820 = vmatmul.mubr.f32.gmra.mrb[0].mxu0 %v8733
      %v8821 = vpop.f32.mrb[0].mxu0
      %v8822 = vadd.f32 0.0, %v8821
      %v8823 = vpop.f32.mrb[0].mxu0
      %v8824 = vadd.f32 0.0, %v8823
      %8825 = vmatprep.mubr.f32.mxu0 0.0
      %8826 = vmatmul.mubr.f32.gmra.mrb[0].mxu0 %v8736
      %v8827 = vpop.f32.mrb[0].mxu0
      %v8828 = vadd.f32 0.0, %v8827
      %v8829 = vpop.f32.mrb[0].mxu0
      %v8830 = vadd.f32 0.0, %v8829
      %8831 = vmatprep.mubr.f32.mxu0 0.0
      %8832 = vmatmul.mubr.f32.gmra.mrb[0].mxu0 %v8739
      %v8833 = vpop.f32.mrb[0].mxu0
      %v8834 = vadd.f32 0.0, %v8833
      %v8835 = vpop.f32.mrb[0].mxu0
      %v8836 = vadd.f32 0.0, %v8835
      %8837 = vmatprep.mubr.f32.mxu0 0.0
      %8838 = vmatmul.mubr.f32.gmra.mrb[0].mxu0 %v8742
      %v8839 = vpop.f32.mrb[0].mxu0
      %v8840 = vadd.f32 0.0, %v8839
      %v8841 = vpop.f32.mrb[0].mxu0
      %v8842 = vadd.f32 0.0, %v8841
      %8843 = vmatprep.mubr.f32.mxu0 0.0
      %8844 = vmatmul.mubr.f32.gmra.mrb[0].mxu0 %v8745
      %v8845 = vpop.f32.mrb[0].mxu0
      %v8846 = vadd.f32 0.0, %v8845
      %v8847 = vpop.f32.mrb[0].mxu0
      %v8848 = vadd.f32 0.0, %v8847
      %8849 = vdwg.mxu0
      %8850 = vmatprep.subr.mxu0 %v8753
      %8851 = vmatpush1.msra.mxu0 %v8751
      %8852 = vmatprep.subr.mxu0 0.0
      %8853 = vmatpush1.msra.mxu0 0.0
      %8854 = vmatprep.subr.mxu0 0.0
      %8855 = vmatpush1.msra.mxu0 0.0
      %8856 = vmatprep.subr.mxu0 0.0
      %8857 = vmatpush1.msra.mxu0 0.0
      %8858 = vmatprep.subr.mxu0 0.0
      %8859 = vmatpush1.msra.mxu0 0.0
      %8860 = vmatprep.subr.mxu0 0.0
      %8861 = vmatpush1.msra.mxu0 0.0
      %8862 = vmatprep.subr.mxu0 0.0
      %8863 = vmatpush1.msra.mxu0 0.0
      %8864 = vmatprep.subr.mxu0 0.0
      %8865 = vmatpush1.msra.mxu0 0.0
      %8866 = vmatprep.subr.mxu0 0.0
      %8867 = vmatpush1.msra.mxu0 0.0
      %8868 = vmatprep.subr.mxu0 0.0
      %8869 = vmatpush1.msra.mxu0 0.0
      %8870 = vmatprep.subr.mxu0 0.0
      %8871 = vmatpush1.msra.mxu0 0.0
      %8872 = vmatprep.subr.mxu0 0.0
      %8873 = vmatpush1.msra.mxu0 0.0
      %8874 = vmatprep.subr.mxu0 0.0
      %8875 = vmatpush1.msra.mxu0 0.0
      %8876 = vmatprep.subr.mxu0 0.0
      %8877 = vmatpush1.msra.mxu0 0.0
      %8878 = vmatprep.subr.mxu0 0.0
      %8879 = vmatpush1.msra.mxu0 0.0
      %8880 = vmatprep.subr.mxu0 0.0
      %8881 = vmatpush1.msra.mxu0 0.0
      %8882 = vmatprep.subr.mxu0 0.0
      %8883 = vmatpush1.msra.mxu0 0.0
      %8884 = vmatprep.subr.mxu0 0.0
      %8885 = vmatpush1.msra.mxu0 0.0
      %8886 = vmatprep.subr.mxu0 0.0
      %8887 = vmatpush1.msra.mxu0 0.0
      %8888 = vmatprep.subr.mxu0 0.0
      %8889 = vmatpush1.msra.mxu0 0.0
      %8890 = vmatprep.subr.mxu0 0.0
      %8891 = vmatpush1.msra.mxu0 0.0
      %8892 = vmatprep.subr.mxu0 0.0
      %8893 = vmatpush1.msra.mxu0 0.0
      %8894 = vmatprep.subr.mxu0 0.0
      %8895 = vmatpush1.msra.mxu0 0.0
      %8896 = vmatprep.subr.mxu0 0.0
      %8897 = vmatpush1.msra.mxu0 0.0
      %8898 = vmatprep.subr.mxu0 0.0
      %8899 = vmatpush1.msra.mxu0 0.0
      %8900 = vmatprep.subr.mxu0 0.0
      %8901 = vmatpush1.msra.mxu0 0.0
      %8902 = vmatprep.subr.mxu0 0.0
      %8903 = vmatpush1.msra.mxu0 0.0
      %8904 = vmatprep.subr.mxu0 0.0
      %8905 = vmatpush1.msra.mxu0 0.0
      %8906 = vmatprep.subr.mxu0 0.0
      %8907 = vmatpush1.msra.mxu0 0.0
      %8908 = vmatprep.subr.mxu0 0.0
      %8909 = vmatpush1.msra.mxu0 0.0
      %8910 = vmatprep.subr.mxu0 0.0
      %8911 = vmatpush1.msra.mxu0 0.0
      %8912 = vmatprep.subr.mxu0 0.0
      %8913 = vmatpush1.msra.mxu0 0.0
      %8914 = vmatprep.mubr.f32.mxu0 0.0
      %8915 = vmatmul.mubr.f32.gmra.mrb[0].mxu0 %v8733
      %v8916 = vpop.f32.mrb[0].mxu0
      %v8917 = vadd.f32 0.0, %v8916
      %v8918 = vpop.f32.mrb[0].mxu0
      %v8919 = vadd.f32 0.0, %v8918
      %8920 = vmatprep.mubr.f32.mxu0 0.0
      %8921 = vmatmul.mubr.f32.gmra.mrb[0].mxu0 %v8736
      %v8922 = vpop.f32.mrb[0].mxu0
      %v8923 = vadd.f32 0.0, %v8922
      %v8924 = vpop.f32.mrb[0].mxu0
      %v8925 = vadd.f32 0.0, %v8924
      %8926 = vmatprep.mubr.f32.mxu0 0.0
      %8927 = vmatmul.mubr.f32.gmra.mrb[0].mxu0 %v8739
      %v8928 = vpop.f32.mrb[0].mxu0
      %v8929 = vadd.f32 0.0, %v8928
      %v8930 = vpop.f32.mrb[0].mxu0
      %v8931 = vadd.f32 0.0, %v8930
      %8932 = vmatprep.mubr.f32.mxu0 0.0
      %8933 = vmatmul.mubr.f32.gmra.mrb[0].mxu0 %v8742
      %v8934 = vpop.f32.mrb[0].mxu0
      %v8935 = vadd.f32 0.0, %v8934
      %v8936 = vpop.f32.mrb[0].mxu0
      %v8937 = vadd.f32 0.0, %v8936
      %8938 = vmatprep.mubr.f32.mxu0 0.0
      %8939 = vmatmul.mubr.f32.gmra.mrb[0].mxu0 %v8745
      %v8940 = vpop.f32.mrb[0].mxu0
      %v8941 = vadd.f32 0.0, %v8940
      %v8942 = vpop.f32.mrb[0].mxu0
      %v8943 = vadd.f32 0.0, %v8942
      %8944 = vdwg.mxu0
      %s8945 = scalar_lea.vmem %s366, 160
      %8946 = vst [vmem:[%s8945] sm:$0xff] %v8822
      %8947 = vst [vmem:[%s8945 + $0x8] sm:$0xff] %v8824
      %8948 = vst [vmem:[%s8945 + $0x10] sm:$0xff] %v8917
      %8949 = vst [vmem:[%s8945 + $0x18] sm:$0xff] %v8919
      %8950 = vst [vmem:[%s8945 + $0x20] sm:$0xff] %v8828
      %8951 = vst [vmem:[%s8945 + $0x28] sm:$0xff] %v8830
      %8952 = vst [vmem:[%s8945 + $0x30] sm:$0xff] %v8923
      %8953 = vst [vmem:[%s8945 + $0x38] sm:$0xff] %v8925
      %8954 = vst [vmem:[%s8945 + $0x40] sm:$0xff] %v8834
      %8955 = vst [vmem:[%s8945 + $0x48] sm:$0xff] %v8836
      %8956 = vst [vmem:[%s8945 + $0x50] sm:$0xff] %v8929
      %8957 = vst [vmem:[%s8945 + $0x58] sm:$0xff] %v8931
      %8958 = vst [vmem:[%s8945 + $0x60] sm:$0xff] %v8840
      %8959 = vst [vmem:[%s8945 + $0x68] sm:$0xff] %v8842
      %8960 = vst [vmem:[%s8945 + $0x70] sm:$0xff] %v8935
      %8961 = vst [vmem:[%s8945 + $0x78] sm:$0xff] %v8937
      %8962 = vst [vmem:[%s8945 + $0x80] sm:$0xff] %v8846
      %8963 = vst [vmem:[%s8945 + $0x88] sm:$0xff] %v8848
      %8964 = vst [vmem:[%s8945 + $0x90] sm:$0xff] %v8941
      %8965 = vst [vmem:[%s8945 + $0x98] sm:$0xff] %v8943
      %s8966 = smul.u32 2, %s21
      %p8967 = scmp.lt.s32.totalorder %s8966, 3
      %s8968 = scalar_select %p8967, %s8966, 3
      %s8969 = smul.addr %s8968, 20
      %s8970 = smul.addr %s8969, 8
      %s8971 = scalar_lea.vmem %s10, %s8970
      // Predicated region
      $region61: #{fixed_cnn_forward.1} parent=59 // pred_check
        %p8972 = pneg %p254
      $region62: #{fixed_cnn_forward.1} parent=59 // pred_check_branch
        %8974 = sbr.rel (%p8972) target = $region64
      $region63: #{fixed_cnn_forward.1} parent=59 // pred_region
        %s8975 = smul.u32 2, %s21
      $region64: #{fixed_cnn_forward.1} parent=59 // pred_fallthru
        _
    $region60: #{fixed_cnn_forward.1} parent=5 // pred_fallthru
      _
    %p8976 = scmp.le.s32.totalorder 2, %s16
    // Predicated region
    $region65: #{fixed_cnn_forward.1} parent=5 // pred_check
      %p8977 = pneg %p8976
    $region66: #{fixed_cnn_forward.1} parent=5 // pred_check_branch
      %8979 = sbr.rel (%p8977) target = $region68
    $region67: #{fixed_cnn_forward.1} parent=5 // pred_region
      %s8980 = ssub.s32 %s16, 2
      // Predicated region
      $region69: #{fixed_cnn_forward.1} parent=67 // pred_check
        %p8981 = pneg %p260
      $region70: #{fixed_cnn_forward.1} parent=67 // pred_check_branch
        %8983 = sbr.rel (%p8981) target = $region72
      $region71: #{fixed_cnn_forward.1} parent=67 // pred_region
        %s8984 = smul.u32 2, %s22
        %p8985 = scmp.lt.s32.totalorder %s8984, 3
        %s8986 = scalar_select %p8985, %s8984, 3
        %s8987 = smul.addr %s8986, 20
        %s8988 = smul.addr %s8987, 8
        %s8989 = scalar_lea.vmem %s10, %s8988
      $region72: #{fixed_cnn_forward.1} parent=67 // pred_fallthru
        _
    $region68: #{fixed_cnn_forward.1} parent=5 // pred_fallthru
      _
  $region6: #{fixed_cnn_forward.1} parent=0 // loop_footer
    %s20 = sadd.s32 1, %s16
  $region7: #{fixed_cnn_forward.1} parent=0 // loop_footer_branch
    %15 = sbr.rel target = $region3
  $region8: #{fixed_cnn_forward.1} parent=0 // loop_exit
    _

</llo_original>
